<compile_context>
chip_gen: v5e
topology: v5e:2x2
jax: 0.10.0
libtpu: 0.0.40
codegen_flags: <defaults>
</compile_context>

<pallas_src>
import functools

import jax
import jax.numpy as jnp
from jax.experimental import pallas as pl
from jax.experimental.pallas import tpu as pltpu


# ----------------------------------------------------------------------------
# helpers
# ----------------------------------------------------------------------------
def _round_up(x, m):
    return (x + m - 1) // m * m


def _pick_tiles(M, K, N):
    """Adaptive MXU tiles: up to 256x256x512, minimal padding, >=2 N blocks
    when M is tiny (keeps both v7x TensorCores busy)."""
    mp8 = _round_up(M, 8)
    tm = min(256, mp8)
    # K tile: minimize K padding, prefer the larger tile on ties (fewer steps).
    best_kp, tk = None, 128
    for c in (512, 384, 256, 128):
        kp = _round_up(K, c)
        if best_kp is None or kp < best_kp:
            best_kp, tk = kp, c
    tn = min(256, _round_up(N, 128))
    if mp8 <= 64 and N >= 256:
        tn = 128
    return tm, tk, tn


_VMEM_LIMIT = 32 * 1024 * 1024  # explicit, safe on v5e/v6e/v7x


# ----------------------------------------------------------------------------
# Pallas kernels
# ----------------------------------------------------------------------------
def _mm_bias_act_kernel(a_ref, b_ref, bias_ref, o_ref, acc_ref, *, swish_act):
    """Tiled matmul, f32 accumulator; epilogue: +bias (and optional swish)."""
    @pl.when(pl.program_id(2) == 0)
    def _():
        acc_ref[...] = jnp.zeros_like(acc_ref)

    acc_ref[...] += jnp.dot(a_ref[...], b_ref[...],
                            preferred_element_type=jnp.float32)

    @pl.when(pl.program_id(2) == pl.num_programs(2) - 1)
    def _():
        y = acc_ref[...] + bias_ref[...]
        if swish_act:
            y = y * (1.0 / (1.0 + jnp.exp(-y)))          # swish, f32 VPU/EUP
        o_ref[...] = y


def _mm_bias_stats_kernel(a_ref, b_ref, bias_ref, o_ref, stats_ref, acc_ref):
    """Tiled matmul + bias; also emits per-channel sum / sum-of-squares
    partials (for one-pass BatchNorm statistics)."""
    @pl.when(pl.program_id(2) == 0)
    def _():
        acc_ref[...] = jnp.zeros_like(acc_ref)

    acc_ref[...] += jnp.dot(a_ref[...], b_ref[...],
                            preferred_element_type=jnp.float32)

    @pl.when(pl.program_id(2) == pl.num_programs(2) - 1)
    def _():
        y = acc_ref[...] + bias_ref[...]
        o_ref[...] = y
        s1 = jnp.sum(y, axis=0, keepdims=True)            # (1, tn)
        s2 = jnp.sum(y * y, axis=0, keepdims=True)        # (1, tn)
        stats_ref[...] = jnp.concatenate([s1, s2], axis=0)[None]  # (1, 2, tn)


def _affine_swish_kernel(x_ref, scale_ref, shift_ref, o_ref):
    """y = x*scale + shift ; out = y*sigmoid(y).  All math in f32."""
    y = x_ref[...] * scale_ref[...] + shift_ref[...]
    o_ref[...] = y * (1.0 / (1.0 + jnp.exp(-y)))


# ----------------------------------------------------------------------------
# Pallas wrappers
# ----------------------------------------------------------------------------
def matmul_bias_act(a, w2d, bias, swish_act):
    """(M,K)@(K,N) + bias (+ optional swish). bf16 operands, f32 out (sliced)."""
    M, K = a.shape
    _, N = w2d.shape
    tm, tk, tn = _pick_tiles(M, K, N)
    Mp, Kp, Np = _round_up(M, tm), _round_up(K, tk), _round_up(N, tn)
    a_p = jnp.pad(a, ((0, Mp - M), (0, Kp - K))).astype(jnp.bfloat16)
    b_p = jnp.pad(w2d, ((0, Kp - K), (0, Np - N))).astype(jnp.bfloat16)
    bias_p = jnp.pad(bias.astype(jnp.float32), (0, Np - N)).reshape(1, Np)
    out = pl.pallas_call(
        functools.partial(_mm_bias_act_kernel, swish_act=swish_act),
        out_shape=jax.ShapeDtypeStruct((Mp, Np), jnp.float32),
        grid_spec=pltpu.PrefetchScalarGridSpec(
            num_scalar_prefetch=0,
            grid=(Mp // tm, Np // tn, Kp // tk),
            in_specs=[pl.BlockSpec((tm, tk), lambda i, j, k: (i, k)),
                      pl.BlockSpec((tk, tn), lambda i, j, k: (k, j)),
                      pl.BlockSpec((1, tn), lambda i, j, k: (0, j))],
            out_specs=pl.BlockSpec((tm, tn), lambda i, j, k: (i, j)),
            scratch_shapes=[pltpu.VMEM((tm, tn), jnp.float32)]),
        compiler_params=pltpu.CompilerParams(
            dimension_semantics=("parallel", "parallel", "arbitrary"),
            vmem_limit_bytes=_VMEM_LIMIT),
    )(a_p, b_p, bias_p)
    return out[:M, :N]


def matmul_bias_stats(a, w2d, bias):
    """Matmul + bias; also returns per-(M-block) channel sum / sumsq partials.
    Returns padded output (Mp, Np), stats (Mblocks, 2, Np), and (Mp, Np)."""
    M, K = a.shape
    _, N = w2d.shape
    tm, tk, tn = _pick_tiles(M, K, N)
    Mp, Kp, Np = _round_up(M, tm), _round_up(K, tk), _round_up(N, tn)
    nmb = Mp // tm
    a_p = jnp.pad(a, ((0, Mp - M), (0, Kp - K))).astype(jnp.bfloat16)
    b_p = jnp.pad(w2d, ((0, Kp - K), (0, Np - N))).astype(jnp.bfloat16)
    bias_p = jnp.pad(bias.astype(jnp.float32), (0, Np - N)).reshape(1, Np)
    y_pad, stats = pl.pallas_call(
        _mm_bias_stats_kernel,
        out_shape=(jax.ShapeDtypeStruct((Mp, Np), jnp.float32),
                   jax.ShapeDtypeStruct((nmb, 2, Np), jnp.float32)),
        grid_spec=pltpu.PrefetchScalarGridSpec(
            num_scalar_prefetch=0,
            grid=(nmb, Np // tn, Kp // tk),
            in_specs=[pl.BlockSpec((tm, tk), lambda i, j, k: (i, k)),
                      pl.BlockSpec((tk, tn), lambda i, j, k: (k, j)),
                      pl.BlockSpec((1, tn), lambda i, j, k: (0, j))],
            out_specs=[pl.BlockSpec((tm, tn), lambda i, j, k: (i, j)),
                       pl.BlockSpec((1, 2, tn), lambda i, j, k: (i, 0, j))],
            scratch_shapes=[pltpu.VMEM((tm, tn), jnp.float32)]),
        compiler_params=pltpu.CompilerParams(
            dimension_semantics=("parallel", "parallel", "arbitrary"),
            vmem_limit_bytes=_VMEM_LIMIT),
    )(a_p, b_p, bias_p)
    return y_pad, stats, (Mp, Np)


def affine_swish_padded(y_pad, scale_pad, shift_pad):
    """Tiled elementwise scale/shift + swish over the (already lane-padded,
    hence lane-dense) matmul output.  Grid over rows for pipelining."""
    Mp, Np = y_pad.shape
    em = 8
    for cand in (1024, 512, 256, 128, 64, 32, 16, 8):
        if Mp % cand == 0:
            em = cand
            break
    return pl.pallas_call(
        _affine_swish_kernel,
        out_shape=jax.ShapeDtypeStruct((Mp, Np), jnp.float32),
        grid_spec=pltpu.PrefetchScalarGridSpec(
            num_scalar_prefetch=0,
            grid=(Mp // em,),
            in_specs=[pl.BlockSpec((em, Np), lambda i: (i, 0)),
                      pl.BlockSpec((1, Np), lambda i: (0, 0)),
                      pl.BlockSpec((1, Np), lambda i: (0, 0))],
            out_specs=pl.BlockSpec((em, Np), lambda i: (i, 0))),
        compiler_params=pltpu.CompilerParams(
            dimension_semantics=("parallel",),
            vmem_limit_bytes=_VMEM_LIMIT),
    )(y_pad, scale_pad.reshape(1, Np), shift_pad.reshape(1, Np))


# ----------------------------------------------------------------------------
# Conv building blocks (im2col glue in JAX, matmul / epilogues in Pallas)
# ----------------------------------------------------------------------------
def _im2col(x, k, stride, pad):
    """x: (B,H,W,C) NHWC -> (B*OH*OW, k*k*C) patch matrix, order (kh, kw, C)."""
    B, H, W, C = x.shape
    xp = jnp.pad(x, ((0, 0), (pad, pad), (pad, pad), (0, 0)))
    OH = (H + 2 * pad - k) // stride + 1
    OW = (W + 2 * pad - k) // stride + 1
    cols = []
    for i in range(k):
        for j in range(k):
            cols.append(xp[:, i:i + stride * OH:stride,
                           j:j + stride * OW:stride, :])
    patches = jnp.concatenate(cols, axis=-1)
    return patches.reshape(B * OH * OW, k * k * C), (B, OH, OW)


def _w2d(w_oihw):
    """PyTorch (OC,IC,KH,KW) -> (KH*KW*IC, OC) matching im2col patch order."""
    OC = w_oihw.shape[0]
    return jnp.transpose(w_oihw, (2, 3, 1, 0)).reshape(-1, OC)


def conv_swish(x, p, stride):
    """Conv2d(bias=True) + swish, bias + activation fused in matmul epilogue."""
    w = p["w"]
    k = w.shape[2]
    OC = w.shape[0]
    a, (B, OH, OW) = _im2col(x, k, stride, (k - 1) // 2)
    y = matmul_bias_act(a, _w2d(w), p["b"], swish_act=True)
    return y.reshape(B, OH, OW, OC)


def conv_bn_swish(x, p, stride):
    """Conv2d(bias=True) + BatchNorm2d (train-mode batch stats) + swish.
    One matmul pass emits the conv output AND per-channel sum/sumsq partials;
    a second tiled pass applies the BN affine + swish."""
    w, b = p["w"], p["b"]
    k = w.shape[2]
    OC = w.shape[0]
    a, (B, OH, OW) = _im2col(x, k, stride, (k - 1) // 2)
    M = a.shape[0]

    y_pad, stats, (Mp, Np) = matmul_bias_stats(a, _w2d(w), b)

    # BN batch statistics from the fused partials.  Padded rows of `a` are all
    # zero, so they contribute exactly `bias` per channel -> subtract them.
    n_pad = Mp - M
    s1 = jnp.sum(stats[:, 0, :OC], axis=0) - n_pad * b
    s2 = jnp.sum(stats[:, 1, :OC], axis=0) - n_pad * b * b
    mean = s1 / M
    var = jnp.maximum(s2 / M - mean * mean, 0.0)          # biased variance
    inv = jax.lax.rsqrt(var + 1e-5)
    scale = p["gamma"] * inv
    shift = p["beta"] - mean * scale

    scale_pad = jnp.pad(scale, (0, Np - OC), constant_values=1.0)
    shift_pad = jnp.pad(shift, (0, Np - OC))
    out_pad = affine_swish_padded(y_pad, scale_pad, shift_pad)
    return out_pad[:M, :OC].reshape(B, OH, OW, OC)


# ----------------------------------------------------------------------------
# Parameter init (deterministic; PyTorch defaults: BN gamma=1, beta=0)
# ----------------------------------------------------------------------------
def init_params(key):
    keys = iter(jax.random.split(key, 32))

    def conv(oc, ic, k):
        fan_in = ic * k * k
        std = (2.0 / fan_in) ** 0.5
        w = std * jax.random.normal(next(keys), (oc, ic, k, k), jnp.float32)
        b = 0.01 * jax.random.normal(next(keys), (oc,), jnp.float32)
        return {"w": w, "b": b}

    def conv_bn(oc, ic, k):
        p = conv(oc, ic, k)
        p["gamma"] = jnp.ones((oc,), jnp.float32)
        p["beta"] = jnp.zeros((oc,), jnp.float32)
        return p

    return {
        "conv1": conv(64, 3, 3),
        "conv2": conv_bn(64, 64, 3),
        "conv3": conv_bn(128, 64, 3),
        "conv4": conv_bn(128, 128, 3),
        "conv5": conv_bn(256, 128, 3),
        "conv6": conv_bn(256, 256, 3),
        "conv7": conv_bn(512, 256, 3),
        "conv8": conv_bn(512, 512, 3),
        "conv9": conv(1, 512, 1),
    }


# ----------------------------------------------------------------------------
# Forward pass (Discriminator_Feature.forward)
# ----------------------------------------------------------------------------
def discriminator_feature_forward(params, x_nchw):
    x = jnp.transpose(x_nchw, (0, 2, 3, 1)).astype(jnp.float32)   # NHWC

    x = conv_swish(x, params["conv1"], stride=1)
    x = conv_bn_swish(x, params["conv2"], stride=2)
    x = conv_bn_swish(x, params["conv3"], stride=1)
    x = conv_bn_swish(x, params["conv4"], stride=2)
    x = conv_bn_swish(x, params["conv5"], stride=1)
    x = conv_bn_swish(x, params["conv6"], stride=2)
    x = conv_bn_swish(x, params["conv7"], stride=1)
    x = conv_bn_swish(x, params["conv8"], stride=2)

    # conv9: Conv2d(512, 1, k=1, stride=1, padding=1) -> global avg pool ->
    # sigmoid -> (B, 1).  Tiny N=1 matmul: left to XLA per perf review
    # (routing it through the 128/256-wide MXU kernel wastes >98% of lanes).
    w9 = params["conv9"]["w"].reshape(1, 512).T                    # (512, 1)
    b9 = params["conv9"]["b"]
    xp = jnp.pad(x, ((0, 0), (1, 1), (1, 1), (0, 0)))              # padding=1
    y9 = jnp.einsum("bhwc,co->bhwo", xp, w9) + b9                  # (B,H+2,W+2,1)
    pooled = jnp.mean(y9, axis=(1, 2, 3))                          # avg_pool2d
    return jax.nn.sigmoid(pooled).reshape(-1, 1)                   # (B, 1)


# ----------------------------------------------------------------------------
if __name__ == "__main__":
    key = jax.random.PRNGKey(0)
    pkey, xkey = jax.random.split(key)
    params = init_params(pkey)

    # Four stride-2 stages: 16 -> 8 -> 4 -> 2 -> 1.
    x = jax.random.normal(xkey, (2, 3, 16, 16), jnp.float32)       # NCHW

    fwd = jax.jit(discriminator_feature_forward)
    out = fwd(params, x)
    jax.block_until_ready(out)

    assert out.shape == (2, 1), out.shape
    assert bool(jnp.all(jnp.isfinite(out)))
    assert bool(jnp.all((out >= 0.0) & (out <= 1.0)))
    print("KERNEL_OK")
</pallas_src>

<mosaic_0001>
module attributes {stable_mosaic.version = 11 : i64} {
  func.func @_mm_bias_act_kernel(%arg0: i32, %arg1: i32, %arg2: i32, %arg3: memref<256x128xbf16, #tpu.memory_space<vmem>>, %arg4: memref<128x128xbf16, #tpu.memory_space<vmem>>, %arg5: memref<1x128xf32, #tpu.memory_space<vmem>>, %arg6: memref<256x128xf32, #tpu.memory_space<vmem>>, %arg7: memref<256x128xf32, #tpu.memory_space<vmem>>) attributes {dimension_semantics = [#tpu.dimension_semantics<parallel>, #tpu.dimension_semantics<parallel>, #tpu.dimension_semantics<arbitrary>], iteration_bounds = array<i64: 2, 1, 1>, scalar_prefetch = 0 : i64, scratch_operands = 1 : i64, tpu.core_type = #tpu.core_type<tc>, window_params = [{transform_indices = @transform_0, window_bounds = array<i64: 256, 128>}, {transform_indices = @transform_1, window_bounds = array<i64: 128, 128>}, {transform_indices = @transform_2, window_bounds = array<i64: 1, 128>}, {transform_indices = @transform_3, window_bounds = array<i64: 256, 128>}]} {
    %c0_i32 = arith.constant 0 : i32
    %0 = arith.cmpi eq, %arg2, %c0_i32 : i32
    %1 = arith.extui %0 : i1 to i32
    %c0_i32_0 = arith.constant 0 : i32
    %2 = arith.cmpi ne, %1, %c0_i32_0 : i32
    scf.if %2 {
      %cst_10 = arith.constant 0.000000e+00 : f32
      %12 = vector.broadcast %cst_10 : f32 to vector<256x128xf32>
      %c0_11 = arith.constant 0 : index
      %c0_12 = arith.constant 0 : index
      %13 = vector.load %arg7[%c0_11, %c0_12] : memref<256x128xf32, #tpu.memory_space<vmem>>, vector<256x128xf32>
      tpu.vector_store %arg7[%c0_11, %c0_12], %12 {strides = array<i32>} : memref<256x128xf32, #tpu.memory_space<vmem>>, vector<256x128xf32>,
    } else {
    }
    %c0 = arith.constant 0 : index
    %c0_1 = arith.constant 0 : index
    %3 = vector.load %arg7[%c0, %c0_1] : memref<256x128xf32, #tpu.memory_space<vmem>>, vector<256x128xf32>
    %c0_2 = arith.constant 0 : index
    %c0_3 = arith.constant 0 : index
    %4 = vector.load %arg3[%c0_2, %c0_3] : memref<256x128xbf16, #tpu.memory_space<vmem>>, vector<256x128xbf16>
    %c0_4 = arith.constant 0 : index
    %c0_5 = arith.constant 0 : index
    %5 = vector.load %arg4[%c0_4, %c0_5] : memref<128x128xbf16, #tpu.memory_space<vmem>>, vector<128x128xbf16>
    %cst = arith.constant dense<0.000000e+00> : vector<256x128xf32>
    %6 = tpu.matmul %4, %5, %cst {dimension_numbers = #tpu.dot_dimension_numbers<[1], [0], [0], [1], [0, 0, 1, 1], [], []>} : vector<256x128xbf16>, vector<128x128xbf16>, vector<256x128xf32> -> vector<256x128xf32>
    %7 = arith.addf %3, %6 : vector<256x128xf32>
    %c0_6 = arith.constant 0 : index
    %c0_7 = arith.constant 0 : index
    %8 = vector.load %arg7[%c0_6, %c0_7] : memref<256x128xf32, #tpu.memory_space<vmem>>, vector<256x128xf32>
    tpu.vector_store %arg7[%c0_6, %c0_7], %7 {strides = array<i32>} : memref<256x128xf32, #tpu.memory_space<vmem>>, vector<256x128xf32>,
    %c0_i32_8 = arith.constant 0 : i32
    %9 = arith.cmpi eq, %arg2, %c0_i32_8 : i32
    %10 = arith.extui %9 : i1 to i32
    %c0_i32_9 = arith.constant 0 : i32
    %11 = arith.cmpi ne, %10, %c0_i32_9 : i32
    scf.if %11 {
      %c0_10 = arith.constant 0 : index
      %c0_11 = arith.constant 0 : index
      %12 = vector.load %arg7[%c0_10, %c0_11] : memref<256x128xf32, #tpu.memory_space<vmem>>, vector<256x128xf32>
      %c0_12 = arith.constant 0 : index
      %c0_13 = arith.constant 0 : index
      %13 = vector.load %arg5[%c0_12, %c0_13] : memref<1x128xf32, #tpu.memory_space<vmem>>, vector<1x128xf32>
      %14 = vector.broadcast %13 : vector<1x128xf32> to vector<256x128xf32>
      %15 = arith.addf %12, %14 : vector<256x128xf32>
      %cst_14 = arith.constant 0.000000e+00 : f32
      %16 = vector.broadcast %cst_14 : f32 to vector<256x128xf32>
      %17 = arith.subf %16, %15 : vector<256x128xf32>
      %18 = math.exp %17 : vector<256x128xf32>
      %cst_15 = arith.constant 1.000000e+00 : f32
      %19 = vector.broadcast %cst_15 : f32 to vector<256x128xf32>
      %20 = arith.addf %19, %18 : vector<256x128xf32>
      %cst_16 = arith.constant 1.000000e+00 : f32
      %21 = vector.broadcast %cst_16 : f32 to vector<256x128xf32>
      %22 = arith.divf %21, %20 : vector<256x128xf32>
      %23 = arith.mulf %15, %22 : vector<256x128xf32>
      %c0_17 = arith.constant 0 : index
      %c0_18 = arith.constant 0 : index
      %24 = vector.load %arg6[%c0_17, %c0_18] : memref<256x128xf32, #tpu.memory_space<vmem>>, vector<256x128xf32>
      tpu.vector_store %arg6[%c0_17, %c0_18], %23 {strides = array<i32>} : memref<256x128xf32, #tpu.memory_space<vmem>>, vector<256x128xf32>,
    } else {
    }
    return
  }
  func.func @transform_0(%arg0: i32, %arg1: i32, %arg2: i32) -> (i32, i32) {
    %c0_i32 = arith.constant 0 : i32
    return %arg0, %arg2 : i32, i32
  }
  func.func @transform_1(%arg0: i32, %arg1: i32, %arg2: i32) -> (i32, i32) {
    %c0_i32 = arith.constant 0 : i32
    return %arg2, %arg1 : i32, i32
  }
  func.func @transform_2(%arg0: i32, %arg1: i32, %arg2: i32) -> (i32, i32) {
    %c0_i32 = arith.constant 0 : i32
    %c0_i32_0 = arith.constant 0 : i32
    return %c0_i32, %arg1 : i32, i32
  }
  func.func @transform_3(%arg0: i32, %arg1: i32, %arg2: i32) -> (i32, i32) {
    %c0_i32 = arith.constant 0 : i32
    return %arg0, %arg1 : i32, i32
  }
}

module attributes {stable_mosaic.version = 11 : i64} {
  func.func @_mm_bias_stats_kernel(%arg0: i32, %arg1: i32, %arg2: i32, %arg3: memref<128x128xbf16, #tpu.memory_space<vmem>>, %arg4: memref<128x128xbf16, #tpu.memory_space<vmem>>, %arg5: memref<1x128xf32, #tpu.memory_space<vmem>>, %arg6: memref<128x128xf32, #tpu.memory_space<vmem>>, %arg7: memref<1x2x128xf32, #tpu.memory_space<vmem>>, %arg8: memref<128x128xf32, #tpu.memory_space<vmem>>) attributes {dimension_semantics = [#tpu.dimension_semantics<parallel>, #tpu.dimension_semantics<parallel>, #tpu.dimension_semantics<arbitrary>], iteration_bounds = array<i64: 1, 1, 5>, scalar_prefetch = 0 : i64, scratch_operands = 1 : i64, tpu.core_type = #tpu.core_type<tc>, window_params = [{transform_indices = @transform_0, window_bounds = array<i64: 128, 128>}, {transform_indices = @transform_1, window_bounds = array<i64: 128, 128>}, {transform_indices = @transform_2, window_bounds = array<i64: 1, 128>}, {transform_indices = @transform_3, window_bounds = array<i64: 128, 128>}, {transform_indices = @transform_4, window_bounds = array<i64: 1, 2, 128>}]} {
    %c0_i32 = arith.constant 0 : i32
    %0 = arith.cmpi eq, %arg2, %c0_i32 : i32
    %1 = arith.extui %0 : i1 to i32
    %c0_i32_0 = arith.constant 0 : i32
    %2 = arith.cmpi ne, %1, %c0_i32_0 : i32
    scf.if %2 {
      %cst_9 = arith.constant 0.000000e+00 : f32
      %12 = vector.broadcast %cst_9 : f32 to vector<128x128xf32>
      %c0_10 = arith.constant 0 : index
      %c0_11 = arith.constant 0 : index
      %13 = vector.load %arg8[%c0_10, %c0_11] : memref<128x128xf32, #tpu.memory_space<vmem>>, vector<128x128xf32>
      tpu.vector_store %arg8[%c0_10, %c0_11], %12 {strides = array<i32>} : memref<128x128xf32, #tpu.memory_space<vmem>>, vector<128x128xf32>,
    } else {
    }
    %c0 = arith.constant 0 : index
    %c0_1 = arith.constant 0 : index
    %3 = vector.load %arg8[%c0, %c0_1] : memref<128x128xf32, #tpu.memory_space<vmem>>, vector<128x128xf32>
    %c0_2 = arith.constant 0 : index
    %c0_3 = arith.constant 0 : index
    %4 = vector.load %arg3[%c0_2, %c0_3] : memref<128x128xbf16, #tpu.memory_space<vmem>>, vector<128x128xbf16>
    %c0_4 = arith.constant 0 : index
    %c0_5 = arith.constant 0 : index
    %5 = vector.load %arg4[%c0_4, %c0_5] : memref<128x128xbf16, #tpu.memory_space<vmem>>, vector<128x128xbf16>
    %cst = arith.constant dense<0.000000e+00> : vector<128x128xf32>
    %6 = tpu.matmul %4, %5, %cst {dimension_numbers = #tpu.dot_dimension_numbers<[1], [0], [0], [1], [0, 0, 1, 1], [], []>} : vector<128x128xbf16>, vector<128x128xbf16>, vector<128x128xf32> -> vector<128x128xf32>
    %7 = arith.addf %3, %6 : vector<128x128xf32>
    %c0_6 = arith.constant 0 : index
    %c0_7 = arith.constant 0 : index
    %8 = vector.load %arg8[%c0_6, %c0_7] : memref<128x128xf32, #tpu.memory_space<vmem>>, vector<128x128xf32>
    tpu.vector_store %arg8[%c0_6, %c0_7], %7 {strides = array<i32>} : memref<128x128xf32, #tpu.memory_space<vmem>>, vector<128x128xf32>,
    %c4_i32 = arith.constant 4 : i32
    %9 = arith.cmpi eq, %arg2, %c4_i32 : i32
    %10 = arith.extui %9 : i1 to i32
    %c0_i32_8 = arith.constant 0 : i32
    %11 = arith.cmpi ne, %10, %c0_i32_8 : i32
    scf.if %11 {
      %c0_9 = arith.constant 0 : index
      %c0_10 = arith.constant 0 : index
      %12 = vector.load %arg8[%c0_9, %c0_10] : memref<128x128xf32, #tpu.memory_space<vmem>>, vector<128x128xf32>
      %c0_11 = arith.constant 0 : index
      %c0_12 = arith.constant 0 : index
      %13 = vector.load %arg5[%c0_11, %c0_12] : memref<1x128xf32, #tpu.memory_space<vmem>>, vector<1x128xf32>
      %14 = vector.broadcast %13 : vector<1x128xf32> to vector<128x128xf32>
      %15 = arith.addf %12, %14 : vector<128x128xf32>
      %c0_13 = arith.constant 0 : index
      %c0_14 = arith.constant 0 : index
      %16 = vector.load %arg6[%c0_13, %c0_14] : memref<128x128xf32, #tpu.memory_space<vmem>>, vector<128x128xf32>
      tpu.vector_store %arg6[%c0_13, %c0_14], %15 {strides = array<i32>} : memref<128x128xf32, #tpu.memory_space<vmem>>, vector<128x128xf32>,
      %cst_15 = arith.constant dense<0.000000e+00> : vector<128xf32>
      %17 = vector.multi_reduction <add>, %15, %cst_15 [0] : vector<128x128xf32> to vector<128xf32>
      %18 = vector.shape_cast %17 : vector<128xf32> to vector<1x128xf32>
      %19 = arith.mulf %15, %15 : vector<128x128xf32>
      %cst_16 = arith.constant dense<0.000000e+00> : vector<128xf32>
      %20 = vector.multi_reduction <add>, %19, %cst_16 [0] : vector<128x128xf32> to vector<128xf32>
      %21 = vector.shape_cast %20 : vector<128xf32> to vector<1x128xf32>
      %22 = tpu.concatenate %18, %21 in 0 : vector<1x128xf32>, vector<1x128xf32> -> vector<2x128xf32>
      %23 = vector.shape_cast %22 : vector<2x128xf32> to vector<1x2x128xf32>
      %c0_17 = arith.constant 0 : index
      %c0_18 = arith.constant 0 : index
      %c0_19 = arith.constant 0 : index
      %24 = vector.load %arg7[%c0_17, %c0_18, %c0_19] : memref<1x2x128xf32, #tpu.memory_space<vmem>>, vector<1x2x128xf32>
      tpu.vector_store %arg7[%c0_17, %c0_18, %c0_19], %23 {strides = array<i32>} : memref<1x2x128xf32, #tpu.memory_space<vmem>>, vector<1x2x128xf32>,
    } else {
    }
    return
  }
  func.func @transform_0(%arg0: i32, %arg1: i32, %arg2: i32) -> (i32, i32) {
    %c0_i32 = arith.constant 0 : i32
    return %arg0, %arg2 : i32, i32
  }
  func.func @transform_1(%arg0: i32, %arg1: i32, %arg2: i32) -> (i32, i32) {
    %c0_i32 = arith.constant 0 : i32
    return %arg2, %arg1 : i32, i32
  }
  func.func @transform_2(%arg0: i32, %arg1: i32, %arg2: i32) -> (i32, i32) {
    %c0_i32 = arith.constant 0 : i32
    %c0_i32_0 = arith.constant 0 : i32
    return %c0_i32, %arg1 : i32, i32
  }
  func.func @transform_3(%arg0: i32, %arg1: i32, %arg2: i32) -> (i32, i32) {
    %c0_i32 = arith.constant 0 : i32
    return %arg0, %arg1 : i32, i32
  }
  func.func @transform_4(%arg0: i32, %arg1: i32, %arg2: i32) -> (i32, i32, i32) {
    %c0_i32 = arith.constant 0 : i32
    %c0_i32_0 = arith.constant 0 : i32
    return %arg0, %c0_i32, %arg1 : i32, i32, i32
  }
}

module attributes {stable_mosaic.version = 11 : i64} {
  func.func @_affine_swish_kernel(%arg0: i32, %arg1: memref<128x128xf32, #tpu.memory_space<vmem>>, %arg2: memref<1x128xf32, #tpu.memory_space<vmem>>, %arg3: memref<1x128xf32, #tpu.memory_space<vmem>>, %arg4: memref<128x128xf32, #tpu.memory_space<vmem>>) attributes {dimension_semantics = [#tpu.dimension_semantics<parallel>], iteration_bounds = array<i64: 1>, scalar_prefetch = 0 : i64, scratch_operands = 0 : i64, tpu.core_type = #tpu.core_type<tc>, window_params = [{transform_indices = @transform_0, window_bounds = array<i64: 128, 128>}, {pipeline_mode = #tpu.pipeline_mode<synchronous>, transform_indices = @transform_1, window_bounds = array<i64: 1, 128>}, {pipeline_mode = #tpu.pipeline_mode<synchronous>, transform_indices = @transform_2, window_bounds = array<i64: 1, 128>}, {transform_indices = @transform_3, window_bounds = array<i64: 128, 128>}]} {
    %c0 = arith.constant 0 : index
    %c0_0 = arith.constant 0 : index
    %0 = vector.load %arg1[%c0, %c0_0] : memref<128x128xf32, #tpu.memory_space<vmem>>, vector<128x128xf32>
    %c0_1 = arith.constant 0 : index
    %c0_2 = arith.constant 0 : index
    %1 = vector.load %arg2[%c0_1, %c0_2] : memref<1x128xf32, #tpu.memory_space<vmem>>, vector<1x128xf32>
    %2 = vector.broadcast %1 : vector<1x128xf32> to vector<128x128xf32>
    %3 = arith.mulf %0, %2 : vector<128x128xf32>
    %c0_3 = arith.constant 0 : index
    %c0_4 = arith.constant 0 : index
    %4 = vector.load %arg3[%c0_3, %c0_4] : memref<1x128xf32, #tpu.memory_space<vmem>>, vector<1x128xf32>
    %5 = vector.broadcast %4 : vector<1x128xf32> to vector<128x128xf32>
    %6 = arith.addf %3, %5 : vector<128x128xf32>
    %cst = arith.constant 0.000000e+00 : f32
    %7 = vector.broadcast %cst : f32 to vector<128x128xf32>
    %8 = arith.subf %7, %6 : vector<128x128xf32>
    %9 = math.exp %8 : vector<128x128xf32>
    %cst_5 = arith.constant 1.000000e+00 : f32
    %10 = vector.broadcast %cst_5 : f32 to vector<128x128xf32>
    %11 = arith.addf %10, %9 : vector<128x128xf32>
    %cst_6 = arith.constant 1.000000e+00 : f32
    %12 = vector.broadcast %cst_6 : f32 to vector<128x128xf32>
    %13 = arith.divf %12, %11 : vector<128x128xf32>
    %14 = arith.mulf %6, %13 : vector<128x128xf32>
    %c0_7 = arith.constant 0 : index
    %c0_8 = arith.constant 0 : index
    %15 = vector.load %arg4[%c0_7, %c0_8] : memref<128x128xf32, #tpu.memory_space<vmem>>, vector<128x128xf32>
    tpu.vector_store %arg4[%c0_7, %c0_8], %14 {strides = array<i32>} : memref<128x128xf32, #tpu.memory_space<vmem>>, vector<128x128xf32>,
    return
  }
  func.func @transform_0(%arg0: i32) -> (i32, i32) {
    %c0_i32 = arith.constant 0 : i32
    %c0_i32_0 = arith.constant 0 : i32
    return %arg0, %c0_i32 : i32, i32
  }
  func.func @transform_1(%arg0: i32) -> (i32, i32) {
    %c0_i32 = arith.constant 0 : i32
    %c0_i32_0 = arith.constant 0 : i32
    %c0_i32_1 = arith.constant 0 : i32
    return %c0_i32, %c0_i32_0 : i32, i32
  }
  func.func @transform_2(%arg0: i32) -> (i32, i32) {
    %c0_i32 = arith.constant 0 : i32
    %c0_i32_0 = arith.constant 0 : i32
    %c0_i32_1 = arith.constant 0 : i32
    return %c0_i32, %c0_i32_0 : i32, i32
  }
  func.func @transform_3(%arg0: i32) -> (i32, i32) {
    %c0_i32 = arith.constant 0 : i32
    %c0_i32_0 = arith.constant 0 : i32
    return %arg0, %c0_i32 : i32, i32
  }
}

module attributes {stable_mosaic.version = 11 : i64} {
  func.func @_affine_swish_kernel(%arg0: i32, %arg1: memref<32x128xf32, #tpu.memory_space<vmem>>, %arg2: memref<1x128xf32, #tpu.memory_space<vmem>>, %arg3: memref<1x128xf32, #tpu.memory_space<vmem>>, %arg4: memref<32x128xf32, #tpu.memory_space<vmem>>) attributes {dimension_semantics = [#tpu.dimension_semantics<parallel>], iteration_bounds = array<i64: 1>, scalar_prefetch = 0 : i64, scratch_operands = 0 : i64, tpu.core_type = #tpu.core_type<tc>, window_params = [{transform_indices = @transform_0, window_bounds = array<i64: 32, 128>}, {pipeline_mode = #tpu.pipeline_mode<synchronous>, transform_indices = @transform_1, window_bounds = array<i64: 1, 128>}, {pipeline_mode = #tpu.pipeline_mode<synchronous>, transform_indices = @transform_2, window_bounds = array<i64: 1, 128>}, {transform_indices = @transform_3, window_bounds = array<i64: 32, 128>}]} {
    %c0 = arith.constant 0 : index
    %c0_0 = arith.constant 0 : index
    %0 = vector.load %arg1[%c0, %c0_0] : memref<32x128xf32, #tpu.memory_space<vmem>>, vector<32x128xf32>
    %c0_1 = arith.constant 0 : index
    %c0_2 = arith.constant 0 : index
    %1 = vector.load %arg2[%c0_1, %c0_2] : memref<1x128xf32, #tpu.memory_space<vmem>>, vector<1x128xf32>
    %2 = vector.broadcast %1 : vector<1x128xf32> to vector<32x128xf32>
    %3 = arith.mulf %0, %2 : vector<32x128xf32>
    %c0_3 = arith.constant 0 : index
    %c0_4 = arith.constant 0 : index
    %4 = vector.load %arg3[%c0_3, %c0_4] : memref<1x128xf32, #tpu.memory_space<vmem>>, vector<1x128xf32>
    %5 = vector.broadcast %4 : vector<1x128xf32> to vector<32x128xf32>
    %6 = arith.addf %3, %5 : vector<32x128xf32>
    %cst = arith.constant 0.000000e+00 : f32
    %7 = vector.broadcast %cst : f32 to vector<32x128xf32>
    %8 = arith.subf %7, %6 : vector<32x128xf32>
    %9 = math.exp %8 : vector<32x128xf32>
    %cst_5 = arith.constant 1.000000e+00 : f32
    %10 = vector.broadcast %cst_5 : f32 to vector<32x128xf32>
    %11 = arith.addf %10, %9 : vector<32x128xf32>
    %cst_6 = arith.constant 1.000000e+00 : f32
    %12 = vector.broadcast %cst_6 : f32 to vector<32x128xf32>
    %13 = arith.divf %12, %11 : vector<32x128xf32>
    %14 = arith.mulf %6, %13 : vector<32x128xf32>
    %c0_7 = arith.constant 0 : index
    %c0_8 = arith.constant 0 : index
    %15 = vector.load %arg4[%c0_7, %c0_8] : memref<32x128xf32, #tpu.memory_space<vmem>>, vector<32x128xf32>
    tpu.vector_store %arg4[%c0_7, %c0_8], %14 {strides = array<i32>} : memref<32x128xf32, #tpu.memory_space<vmem>>, vector<32x128xf32>,
    return
  }
  func.func @transform_0(%arg0: i32) -> (i32, i32) {
    %c0_i32 = arith.constant 0 : i32
    %c0_i32_0 = arith.constant 0 : i32
    return %arg0, %c0_i32 : i32, i32
  }
  func.func @transform_1(%arg0: i32) -> (i32, i32) {
    %c0_i32 = arith.constant 0 : i32
    %c0_i32_0 = arith.constant 0 : i32
    %c0_i32_1 = arith.constant 0 : i32
    return %c0_i32, %c0_i32_0 : i32, i32
  }
  func.func @transform_2(%arg0: i32) -> (i32, i32) {
    %c0_i32 = arith.constant 0 : i32
    %c0_i32_0 = arith.constant 0 : i32
    %c0_i32_1 = arith.constant 0 : i32
    return %c0_i32, %c0_i32_0 : i32, i32
  }
  func.func @transform_3(%arg0: i32) -> (i32, i32) {
    %c0_i32 = arith.constant 0 : i32
    %c0_i32_0 = arith.constant 0 : i32
    return %arg0, %c0_i32 : i32, i32
  }
}

module attributes {stable_mosaic.version = 11 : i64} {
  func.func @_mm_bias_stats_kernel(%arg0: i32, %arg1: i32, %arg2: i32, %arg3: memref<32x384xbf16, #tpu.memory_space<vmem>>, %arg4: memref<384x128xbf16, #tpu.memory_space<vmem>>, %arg5: memref<1x128xf32, #tpu.memory_space<vmem>>, %arg6: memref<32x128xf32, #tpu.memory_space<vmem>>, %arg7: memref<1x2x128xf32, #tpu.memory_space<vmem>>, %arg8: memref<32x128xf32, #tpu.memory_space<vmem>>) attributes {dimension_semantics = [#tpu.dimension_semantics<parallel>, #tpu.dimension_semantics<parallel>, #tpu.dimension_semantics<arbitrary>], iteration_bounds = array<i64: 1, 1, 3>, scalar_prefetch = 0 : i64, scratch_operands = 1 : i64, tpu.core_type = #tpu.core_type<tc>, window_params = [{transform_indices = @transform_0, window_bounds = array<i64: 32, 384>}, {transform_indices = @transform_1, window_bounds = array<i64: 384, 128>}, {transform_indices = @transform_2, window_bounds = array<i64: 1, 128>}, {transform_indices = @transform_3, window_bounds = array<i64: 32, 128>}, {transform_indices = @transform_4, window_bounds = array<i64: 1, 2, 128>}]} {
    %c0_i32 = arith.constant 0 : i32
    %0 = arith.cmpi eq, %arg2, %c0_i32 : i32
    %1 = arith.extui %0 : i1 to i32
    %c0_i32_0 = arith.constant 0 : i32
    %2 = arith.cmpi ne, %1, %c0_i32_0 : i32
    scf.if %2 {
      %cst_9 = arith.constant 0.000000e+00 : f32
      %12 = vector.broadcast %cst_9 : f32 to vector<32x128xf32>
      %c0_10 = arith.constant 0 : index
      %c0_11 = arith.constant 0 : index
      %13 = vector.load %arg8[%c0_10, %c0_11] : memref<32x128xf32, #tpu.memory_space<vmem>>, vector<32x128xf32>
      tpu.vector_store %arg8[%c0_10, %c0_11], %12 {strides = array<i32>} : memref<32x128xf32, #tpu.memory_space<vmem>>, vector<32x128xf32>,
    } else {
    }
    %c0 = arith.constant 0 : index
    %c0_1 = arith.constant 0 : index
    %3 = vector.load %arg8[%c0, %c0_1] : memref<32x128xf32, #tpu.memory_space<vmem>>, vector<32x128xf32>
    %c0_2 = arith.constant 0 : index
    %c0_3 = arith.constant 0 : index
    %4 = vector.load %arg3[%c0_2, %c0_3] : memref<32x384xbf16, #tpu.memory_space<vmem>>, vector<32x384xbf16>
    %c0_4 = arith.constant 0 : index
    %c0_5 = arith.constant 0 : index
    %5 = vector.load %arg4[%c0_4, %c0_5] : memref<384x128xbf16, #tpu.memory_space<vmem>>, vector<384x128xbf16>
    %cst = arith.constant dense<0.000000e+00> : vector<32x128xf32>
    %6 = tpu.matmul %4, %5, %cst {dimension_numbers = #tpu.dot_dimension_numbers<[1], [0], [0], [1], [0, 0, 1, 1], [], []>} : vector<32x384xbf16>, vector<384x128xbf16>, vector<32x128xf32> -> vector<32x128xf32>
    %7 = arith.addf %3, %6 : vector<32x128xf32>
    %c0_6 = arith.constant 0 : index
    %c0_7 = arith.constant 0 : index
    %8 = vector.load %arg8[%c0_6, %c0_7] : memref<32x128xf32, #tpu.memory_space<vmem>>, vector<32x128xf32>
    tpu.vector_store %arg8[%c0_6, %c0_7], %7 {strides = array<i32>} : memref<32x128xf32, #tpu.memory_space<vmem>>, vector<32x128xf32>,
    %c2_i32 = arith.constant 2 : i32
    %9 = arith.cmpi eq, %arg2, %c2_i32 : i32
    %10 = arith.extui %9 : i1 to i32
    %c0_i32_8 = arith.constant 0 : i32
    %11 = arith.cmpi ne, %10, %c0_i32_8 : i32
    scf.if %11 {
      %c0_9 = arith.constant 0 : index
      %c0_10 = arith.constant 0 : index
      %12 = vector.load %arg8[%c0_9, %c0_10] : memref<32x128xf32, #tpu.memory_space<vmem>>, vector<32x128xf32>
      %c0_11 = arith.constant 0 : index
      %c0_12 = arith.constant 0 : index
      %13 = vector.load %arg5[%c0_11, %c0_12] : memref<1x128xf32, #tpu.memory_space<vmem>>, vector<1x128xf32>
      %14 = vector.broadcast %13 : vector<1x128xf32> to vector<32x128xf32>
      %15 = arith.addf %12, %14 : vector<32x128xf32>
      %c0_13 = arith.constant 0 : index
      %c0_14 = arith.constant 0 : index
      %16 = vector.load %arg6[%c0_13, %c0_14] : memref<32x128xf32, #tpu.memory_space<vmem>>, vector<32x128xf32>
      tpu.vector_store %arg6[%c0_13, %c0_14], %15 {strides = array<i32>} : memref<32x128xf32, #tpu.memory_space<vmem>>, vector<32x128xf32>,
      %cst_15 = arith.constant dense<0.000000e+00> : vector<128xf32>
      %17 = vector.multi_reduction <add>, %15, %cst_15 [0] : vector<32x128xf32> to vector<128xf32>
      %18 = vector.shape_cast %17 : vector<128xf32> to vector<1x128xf32>
      %19 = arith.mulf %15, %15 : vector<32x128xf32>
      %cst_16 = arith.constant dense<0.000000e+00> : vector<128xf32>
      %20 = vector.multi_reduction <add>, %19, %cst_16 [0] : vector<32x128xf32> to vector<128xf32>
      %21 = vector.shape_cast %20 : vector<128xf32> to vector<1x128xf32>
      %22 = tpu.concatenate %18, %21 in 0 : vector<1x128xf32>, vector<1x128xf32> -> vector<2x128xf32>
      %23 = vector.shape_cast %22 : vector<2x128xf32> to vector<1x2x128xf32>
      %c0_17 = arith.constant 0 : index
      %c0_18 = arith.constant 0 : index
      %c0_19 = arith.constant 0 : index
      %24 = vector.load %arg7[%c0_17, %c0_18, %c0_19] : memref<1x2x128xf32, #tpu.memory_space<vmem>>, vector<1x2x128xf32>
      tpu.vector_store %arg7[%c0_17, %c0_18, %c0_19], %23 {strides = array<i32>} : memref<1x2x128xf32, #tpu.memory_space<vmem>>, vector<1x2x128xf32>,
    } else {
    }
    return
  }
  func.func @transform_0(%arg0: i32, %arg1: i32, %arg2: i32) -> (i32, i32) {
    %c0_i32 = arith.constant 0 : i32
    return %arg0, %arg2 : i32, i32
  }
  func.func @transform_1(%arg0: i32, %arg1: i32, %arg2: i32) -> (i32, i32) {
    %c0_i32 = arith.constant 0 : i32
    return %arg2, %arg1 : i32, i32
  }
  func.func @transform_2(%arg0: i32, %arg1: i32, %arg2: i32) -> (i32, i32) {
    %c0_i32 = arith.constant 0 : i32
    %c0_i32_0 = arith.constant 0 : i32
    return %c0_i32, %arg1 : i32, i32
  }
  func.func @transform_3(%arg0: i32, %arg1: i32, %arg2: i32) -> (i32, i32) {
    %c0_i32 = arith.constant 0 : i32
    return %arg0, %arg1 : i32, i32
  }
  func.func @transform_4(%arg0: i32, %arg1: i32, %arg2: i32) -> (i32, i32, i32) {
    %c0_i32 = arith.constant 0 : i32
    %c0_i32_0 = arith.constant 0 : i32
    return %arg0, %c0_i32, %arg1 : i32, i32, i32
  }
}

module attributes {stable_mosaic.version = 11 : i64} {
  func.func @_mm_bias_stats_kernel(%arg0: i32, %arg1: i32, %arg2: i32, %arg3: memref<32x384xbf16, #tpu.memory_space<vmem>>, %arg4: memref<384x128xbf16, #tpu.memory_space<vmem>>, %arg5: memref<1x128xf32, #tpu.memory_space<vmem>>, %arg6: memref<32x128xf32, #tpu.memory_space<vmem>>, %arg7: memref<1x2x128xf32, #tpu.memory_space<vmem>>, %arg8: memref<32x128xf32, #tpu.memory_space<vmem>>) attributes {dimension_semantics = [#tpu.dimension_semantics<parallel>, #tpu.dimension_semantics<parallel>, #tpu.dimension_semantics<arbitrary>], iteration_bounds = array<i64: 1, 2, 3>, scalar_prefetch = 0 : i64, scratch_operands = 1 : i64, tpu.core_type = #tpu.core_type<tc>, window_params = [{transform_indices = @transform_0, window_bounds = array<i64: 32, 384>}, {transform_indices = @transform_1, window_bounds = array<i64: 384, 128>}, {transform_indices = @transform_2, window_bounds = array<i64: 1, 128>}, {transform_indices = @transform_3, window_bounds = array<i64: 32, 128>}, {transform_indices = @transform_4, window_bounds = array<i64: 1, 2, 128>}]} {
    %c0_i32 = arith.constant 0 : i32
    %0 = arith.cmpi eq, %arg2, %c0_i32 : i32
    %1 = arith.extui %0 : i1 to i32
    %c0_i32_0 = arith.constant 0 : i32
    %2 = arith.cmpi ne, %1, %c0_i32_0 : i32
    scf.if %2 {
      %cst_9 = arith.constant 0.000000e+00 : f32
      %12 = vector.broadcast %cst_9 : f32 to vector<32x128xf32>
      %c0_10 = arith.constant 0 : index
      %c0_11 = arith.constant 0 : index
      %13 = vector.load %arg8[%c0_10, %c0_11] : memref<32x128xf32, #tpu.memory_space<vmem>>, vector<32x128xf32>
      tpu.vector_store %arg8[%c0_10, %c0_11], %12 {strides = array<i32>} : memref<32x128xf32, #tpu.memory_space<vmem>>, vector<32x128xf32>,
    } else {
    }
    %c0 = arith.constant 0 : index
    %c0_1 = arith.constant 0 : index
    %3 = vector.load %arg8[%c0, %c0_1] : memref<32x128xf32, #tpu.memory_space<vmem>>, vector<32x128xf32>
    %c0_2 = arith.constant 0 : index
    %c0_3 = arith.constant 0 : index
    %4 = vector.load %arg3[%c0_2, %c0_3] : memref<32x384xbf16, #tpu.memory_space<vmem>>, vector<32x384xbf16>
    %c0_4 = arith.constant 0 : index
    %c0_5 = arith.constant 0 : index
    %5 = vector.load %arg4[%c0_4, %c0_5] : memref<384x128xbf16, #tpu.memory_space<vmem>>, vector<384x128xbf16>
    %cst = arith.constant dense<0.000000e+00> : vector<32x128xf32>
    %6 = tpu.matmul %4, %5, %cst {dimension_numbers = #tpu.dot_dimension_numbers<[1], [0], [0], [1], [0, 0, 1, 1], [], []>} : vector<32x384xbf16>, vector<384x128xbf16>, vector<32x128xf32> -> vector<32x128xf32>
    %7 = arith.addf %3, %6 : vector<32x128xf32>
    %c0_6 = arith.constant 0 : index
    %c0_7 = arith.constant 0 : index
    %8 = vector.load %arg8[%c0_6, %c0_7] : memref<32x128xf32, #tpu.memory_space<vmem>>, vector<32x128xf32>
    tpu.vector_store %arg8[%c0_6, %c0_7], %7 {strides = array<i32>} : memref<32x128xf32, #tpu.memory_space<vmem>>, vector<32x128xf32>,
    %c2_i32 = arith.constant 2 : i32
    %9 = arith.cmpi eq, %arg2, %c2_i32 : i32
    %10 = arith.extui %9 : i1 to i32
    %c0_i32_8 = arith.constant 0 : i32
    %11 = arith.cmpi ne, %10, %c0_i32_8 : i32
    scf.if %11 {
      %c0_9 = arith.constant 0 : index
      %c0_10 = arith.constant 0 : index
      %12 = vector.load %arg8[%c0_9, %c0_10] : memref<32x128xf32, #tpu.memory_space<vmem>>, vector<32x128xf32>
      %c0_11 = arith.constant 0 : index
      %c0_12 = arith.constant 0 : index
      %13 = vector.load %arg5[%c0_11, %c0_12] : memref<1x128xf32, #tpu.memory_space<vmem>>, vector<1x128xf32>
      %14 = vector.broadcast %13 : vector<1x128xf32> to vector<32x128xf32>
      %15 = arith.addf %12, %14 : vector<32x128xf32>
      %c0_13 = arith.constant 0 : index
      %c0_14 = arith.constant 0 : index
      %16 = vector.load %arg6[%c0_13, %c0_14] : memref<32x128xf32, #tpu.memory_space<vmem>>, vector<32x128xf32>
      tpu.vector_store %arg6[%c0_13, %c0_14], %15 {strides = array<i32>} : memref<32x128xf32, #tpu.memory_space<vmem>>, vector<32x128xf32>,
      %cst_15 = arith.constant dense<0.000000e+00> : vector<128xf32>
      %17 = vector.multi_reduction <add>, %15, %cst_15 [0] : vector<32x128xf32> to vector<128xf32>
      %18 = vector.shape_cast %17 : vector<128xf32> to vector<1x128xf32>
      %19 = arith.mulf %15, %15 : vector<32x128xf32>
      %cst_16 = arith.constant dense<0.000000e+00> : vector<128xf32>
      %20 = vector.multi_reduction <add>, %19, %cst_16 [0] : vector<32x128xf32> to vector<128xf32>
      %21 = vector.shape_cast %20 : vector<128xf32> to vector<1x128xf32>
      %22 = tpu.concatenate %18, %21 in 0 : vector<1x128xf32>, vector<1x128xf32> -> vector<2x128xf32>
      %23 = vector.shape_cast %22 : vector<2x128xf32> to vector<1x2x128xf32>
      %c0_17 = arith.constant 0 : index
      %c0_18 = arith.constant 0 : index
      %c0_19 = arith.constant 0 : index
      %24 = vector.load %arg7[%c0_17, %c0_18, %c0_19] : memref<1x2x128xf32, #tpu.memory_space<vmem>>, vector<1x2x128xf32>
      tpu.vector_store %arg7[%c0_17, %c0_18, %c0_19], %23 {strides = array<i32>} : memref<1x2x128xf32, #tpu.memory_space<vmem>>, vector<1x2x128xf32>,
    } else {
    }
    return
  }
  func.func @transform_0(%arg0: i32, %arg1: i32, %arg2: i32) -> (i32, i32) {
    %c0_i32 = arith.constant 0 : i32
    return %arg0, %arg2 : i32, i32
  }
  func.func @transform_1(%arg0: i32, %arg1: i32, %arg2: i32) -> (i32, i32) {
    %c0_i32 = arith.constant 0 : i32
    return %arg2, %arg1 : i32, i32
  }
  func.func @transform_2(%arg0: i32, %arg1: i32, %arg2: i32) -> (i32, i32) {
    %c0_i32 = arith.constant 0 : i32
    %c0_i32_0 = arith.constant 0 : i32
    return %c0_i32, %arg1 : i32, i32
  }
  func.func @transform_3(%arg0: i32, %arg1: i32, %arg2: i32) -> (i32, i32) {
    %c0_i32 = arith.constant 0 : i32
    return %arg0, %arg1 : i32, i32
  }
  func.func @transform_4(%arg0: i32, %arg1: i32, %arg2: i32) -> (i32, i32, i32) {
    %c0_i32 = arith.constant 0 : i32
    %c0_i32_0 = arith.constant 0 : i32
    return %arg0, %c0_i32, %arg1 : i32, i32, i32
  }
}

module attributes {stable_mosaic.version = 11 : i64} {
  func.func @_affine_swish_kernel(%arg0: i32, %arg1: memref<32x256xf32, #tpu.memory_space<vmem>>, %arg2: memref<1x256xf32, #tpu.memory_space<vmem>>, %arg3: memref<1x256xf32, #tpu.memory_space<vmem>>, %arg4: memref<32x256xf32, #tpu.memory_space<vmem>>) attributes {dimension_semantics = [#tpu.dimension_semantics<parallel>], iteration_bounds = array<i64: 1>, scalar_prefetch = 0 : i64, scratch_operands = 0 : i64, tpu.core_type = #tpu.core_type<tc>, window_params = [{transform_indices = @transform_0, window_bounds = array<i64: 32, 256>}, {pipeline_mode = #tpu.pipeline_mode<synchronous>, transform_indices = @transform_1, window_bounds = array<i64: 1, 256>}, {pipeline_mode = #tpu.pipeline_mode<synchronous>, transform_indices = @transform_2, window_bounds = array<i64: 1, 256>}, {transform_indices = @transform_3, window_bounds = array<i64: 32, 256>}]} {
    %c0 = arith.constant 0 : index
    %c0_0 = arith.constant 0 : index
    %0 = vector.load %arg1[%c0, %c0_0] : memref<32x256xf32, #tpu.memory_space<vmem>>, vector<32x256xf32>
    %c0_1 = arith.constant 0 : index
    %c0_2 = arith.constant 0 : index
    %1 = vector.load %arg2[%c0_1, %c0_2] : memref<1x256xf32, #tpu.memory_space<vmem>>, vector<1x256xf32>
    %2 = vector.broadcast %1 : vector<1x256xf32> to vector<32x256xf32>
    %3 = arith.mulf %0, %2 : vector<32x256xf32>
    %c0_3 = arith.constant 0 : index
    %c0_4 = arith.constant 0 : index
    %4 = vector.load %arg3[%c0_3, %c0_4] : memref<1x256xf32, #tpu.memory_space<vmem>>, vector<1x256xf32>
    %5 = vector.broadcast %4 : vector<1x256xf32> to vector<32x256xf32>
    %6 = arith.addf %3, %5 : vector<32x256xf32>
    %cst = arith.constant 0.000000e+00 : f32
    %7 = vector.broadcast %cst : f32 to vector<32x256xf32>
    %8 = arith.subf %7, %6 : vector<32x256xf32>
    %9 = math.exp %8 : vector<32x256xf32>
    %cst_5 = arith.constant 1.000000e+00 : f32
    %10 = vector.broadcast %cst_5 : f32 to vector<32x256xf32>
    %11 = arith.addf %10, %9 : vector<32x256xf32>
    %cst_6 = arith.constant 1.000000e+00 : f32
    %12 = vector.broadcast %cst_6 : f32 to vector<32x256xf32>
    %13 = arith.divf %12, %11 : vector<32x256xf32>
    %14 = arith.mulf %6, %13 : vector<32x256xf32>
    %c0_7 = arith.constant 0 : index
    %c0_8 = arith.constant 0 : index
    %15 = vector.load %arg4[%c0_7, %c0_8] : memref<32x256xf32, #tpu.memory_space<vmem>>, vector<32x256xf32>
    tpu.vector_store %arg4[%c0_7, %c0_8], %14 {strides = array<i32>} : memref<32x256xf32, #tpu.memory_space<vmem>>, vector<32x256xf32>,
    return
  }
  func.func @transform_0(%arg0: i32) -> (i32, i32) {
    %c0_i32 = arith.constant 0 : i32
    %c0_i32_0 = arith.constant 0 : i32
    return %arg0, %c0_i32 : i32, i32
  }
  func.func @transform_1(%arg0: i32) -> (i32, i32) {
    %c0_i32 = arith.constant 0 : i32
    %c0_i32_0 = arith.constant 0 : i32
    %c0_i32_1 = arith.constant 0 : i32
    return %c0_i32, %c0_i32_0 : i32, i32
  }
  func.func @transform_2(%arg0: i32) -> (i32, i32) {
    %c0_i32 = arith.constant 0 : i32
    %c0_i32_0 = arith.constant 0 : i32
    %c0_i32_1 = arith.constant 0 : i32
    return %c0_i32, %c0_i32_0 : i32, i32
  }
  func.func @transform_3(%arg0: i32) -> (i32, i32) {
    %c0_i32 = arith.constant 0 : i32
    %c0_i32_0 = arith.constant 0 : i32
    return %arg0, %c0_i32 : i32, i32
  }
}

module attributes {stable_mosaic.version = 11 : i64} {
  func.func @_mm_bias_stats_kernel(%arg0: i32, %arg1: i32, %arg2: i32, %arg3: memref<8x384xbf16, #tpu.memory_space<vmem>>, %arg4: memref<384x128xbf16, #tpu.memory_space<vmem>>, %arg5: memref<1x128xf32, #tpu.memory_space<vmem>>, %arg6: memref<8x128xf32, #tpu.memory_space<vmem>>, %arg7: memref<1x2x128xf32, #tpu.memory_space<vmem>>, %arg8: memref<8x128xf32, #tpu.memory_space<vmem>>) attributes {dimension_semantics = [#tpu.dimension_semantics<parallel>, #tpu.dimension_semantics<parallel>, #tpu.dimension_semantics<arbitrary>], iteration_bounds = array<i64: 1, 2, 6>, scalar_prefetch = 0 : i64, scratch_operands = 1 : i64, tpu.core_type = #tpu.core_type<tc>, window_params = [{transform_indices = @transform_0, window_bounds = array<i64: 8, 384>}, {transform_indices = @transform_1, window_bounds = array<i64: 384, 128>}, {transform_indices = @transform_2, window_bounds = array<i64: 1, 128>}, {transform_indices = @transform_3, window_bounds = array<i64: 8, 128>}, {transform_indices = @transform_4, window_bounds = array<i64: 1, 2, 128>}]} {
    %c0_i32 = arith.constant 0 : i32
    %0 = arith.cmpi eq, %arg2, %c0_i32 : i32
    %1 = arith.extui %0 : i1 to i32
    %c0_i32_0 = arith.constant 0 : i32
    %2 = arith.cmpi ne, %1, %c0_i32_0 : i32
    scf.if %2 {
      %cst_9 = arith.constant 0.000000e+00 : f32
      %12 = vector.broadcast %cst_9 : f32 to vector<8x128xf32>
      %c0_10 = arith.constant 0 : index
      %c0_11 = arith.constant 0 : index
      %13 = vector.load %arg8[%c0_10, %c0_11] : memref<8x128xf32, #tpu.memory_space<vmem>>, vector<8x128xf32>
      tpu.vector_store %arg8[%c0_10, %c0_11], %12 {strides = array<i32>} : memref<8x128xf32, #tpu.memory_space<vmem>>, vector<8x128xf32>,
    } else {
    }
    %c0 = arith.constant 0 : index
    %c0_1 = arith.constant 0 : index
    %3 = vector.load %arg8[%c0, %c0_1] : memref<8x128xf32, #tpu.memory_space<vmem>>, vector<8x128xf32>
    %c0_2 = arith.constant 0 : index
    %c0_3 = arith.constant 0 : index
    %4 = vector.load %arg3[%c0_2, %c0_3] : memref<8x384xbf16, #tpu.memory_space<vmem>>, vector<8x384xbf16>
    %c0_4 = arith.constant 0 : index
    %c0_5 = arith.constant 0 : index
    %5 = vector.load %arg4[%c0_4, %c0_5] : memref<384x128xbf16, #tpu.memory_space<vmem>>, vector<384x128xbf16>
    %cst = arith.constant dense<0.000000e+00> : vector<8x128xf32>
    %6 = tpu.matmul %4, %5, %cst {dimension_numbers = #tpu.dot_dimension_numbers<[1], [0], [0], [1], [0, 0, 1, 1], [], []>} : vector<8x384xbf16>, vector<384x128xbf16>, vector<8x128xf32> -> vector<8x128xf32>
    %7 = arith.addf %3, %6 : vector<8x128xf32>
    %c0_6 = arith.constant 0 : index
    %c0_7 = arith.constant 0 : index
    %8 = vector.load %arg8[%c0_6, %c0_7] : memref<8x128xf32, #tpu.memory_space<vmem>>, vector<8x128xf32>
    tpu.vector_store %arg8[%c0_6, %c0_7], %7 {strides = array<i32>} : memref<8x128xf32, #tpu.memory_space<vmem>>, vector<8x128xf32>,
    %c5_i32 = arith.constant 5 : i32
    %9 = arith.cmpi eq, %arg2, %c5_i32 : i32
    %10 = arith.extui %9 : i1 to i32
    %c0_i32_8 = arith.constant 0 : i32
    %11 = arith.cmpi ne, %10, %c0_i32_8 : i32
    scf.if %11 {
      %c0_9 = arith.constant 0 : index
      %c0_10 = arith.constant 0 : index
      %12 = vector.load %arg8[%c0_9, %c0_10] : memref<8x128xf32, #tpu.memory_space<vmem>>, vector<8x128xf32>
      %c0_11 = arith.constant 0 : index
      %c0_12 = arith.constant 0 : index
      %13 = vector.load %arg5[%c0_11, %c0_12] : memref<1x128xf32, #tpu.memory_space<vmem>>, vector<1x128xf32>
      %14 = vector.broadcast %13 : vector<1x128xf32> to vector<8x128xf32>
      %15 = arith.addf %12, %14 : vector<8x128xf32>
      %c0_13 = arith.constant 0 : index
      %c0_14 = arith.constant 0 : index
      %16 = vector.load %arg6[%c0_13, %c0_14] : memref<8x128xf32, #tpu.memory_space<vmem>>, vector<8x128xf32>
      tpu.vector_store %arg6[%c0_13, %c0_14], %15 {strides = array<i32>} : memref<8x128xf32, #tpu.memory_space<vmem>>, vector<8x128xf32>,
      %cst_15 = arith.constant dense<0.000000e+00> : vector<128xf32>
      %17 = vector.multi_reduction <add>, %15, %cst_15 [0] : vector<8x128xf32> to vector<128xf32>
      %18 = vector.shape_cast %17 : vector<128xf32> to vector<1x128xf32>
      %19 = arith.mulf %15, %15 : vector<8x128xf32>
      %cst_16 = arith.constant dense<0.000000e+00> : vector<128xf32>
      %20 = vector.multi_reduction <add>, %19, %cst_16 [0] : vector<8x128xf32> to vector<128xf32>
      %21 = vector.shape_cast %20 : vector<128xf32> to vector<1x128xf32>
      %22 = tpu.concatenate %18, %21 in 0 : vector<1x128xf32>, vector<1x128xf32> -> vector<2x128xf32>
      %23 = vector.shape_cast %22 : vector<2x128xf32> to vector<1x2x128xf32>
      %c0_17 = arith.constant 0 : index
      %c0_18 = arith.constant 0 : index
      %c0_19 = arith.constant 0 : index
      %24 = vector.load %arg7[%c0_17, %c0_18, %c0_19] : memref<1x2x128xf32, #tpu.memory_space<vmem>>, vector<1x2x128xf32>
      tpu.vector_store %arg7[%c0_17, %c0_18, %c0_19], %23 {strides = array<i32>} : memref<1x2x128xf32, #tpu.memory_space<vmem>>, vector<1x2x128xf32>,
    } else {
    }
    return
  }
  func.func @transform_0(%arg0: i32, %arg1: i32, %arg2: i32) -> (i32, i32) {
    %c0_i32 = arith.constant 0 : i32
    return %arg0, %arg2 : i32, i32
  }
  func.func @transform_1(%arg0: i32, %arg1: i32, %arg2: i32) -> (i32, i32) {
    %c0_i32 = arith.constant 0 : i32
    return %arg2, %arg1 : i32, i32
  }
  func.func @transform_2(%arg0: i32, %arg1: i32, %arg2: i32) -> (i32, i32) {
    %c0_i32 = arith.constant 0 : i32
    %c0_i32_0 = arith.constant 0 : i32
    return %c0_i32, %arg1 : i32, i32
  }
  func.func @transform_3(%arg0: i32, %arg1: i32, %arg2: i32) -> (i32, i32) {
    %c0_i32 = arith.constant 0 : i32
    return %arg0, %arg1 : i32, i32
  }
  func.func @transform_4(%arg0: i32, %arg1: i32, %arg2: i32) -> (i32, i32, i32) {
    %c0_i32 = arith.constant 0 : i32
    %c0_i32_0 = arith.constant 0 : i32
    return %arg0, %c0_i32, %arg1 : i32, i32, i32
  }
}

module attributes {stable_mosaic.version = 11 : i64} {
  func.func @_affine_swish_kernel(%arg0: i32, %arg1: memref<8x256xf32, #tpu.memory_space<vmem>>, %arg2: memref<1x256xf32, #tpu.memory_space<vmem>>, %arg3: memref<1x256xf32, #tpu.memory_space<vmem>>, %arg4: memref<8x256xf32, #tpu.memory_space<vmem>>) attributes {dimension_semantics = [#tpu.dimension_semantics<parallel>], iteration_bounds = array<i64: 1>, scalar_prefetch = 0 : i64, scratch_operands = 0 : i64, tpu.core_type = #tpu.core_type<tc>, window_params = [{transform_indices = @transform_0, window_bounds = array<i64: 8, 256>}, {pipeline_mode = #tpu.pipeline_mode<synchronous>, transform_indices = @transform_1, window_bounds = array<i64: 1, 256>}, {pipeline_mode = #tpu.pipeline_mode<synchronous>, transform_indices = @transform_2, window_bounds = array<i64: 1, 256>}, {transform_indices = @transform_3, window_bounds = array<i64: 8, 256>}]} {
    %c0 = arith.constant 0 : index
    %c0_0 = arith.constant 0 : index
    %0 = vector.load %arg1[%c0, %c0_0] : memref<8x256xf32, #tpu.memory_space<vmem>>, vector<8x256xf32>
    %c0_1 = arith.constant 0 : index
    %c0_2 = arith.constant 0 : index
    %1 = vector.load %arg2[%c0_1, %c0_2] : memref<1x256xf32, #tpu.memory_space<vmem>>, vector<1x256xf32>
    %2 = vector.broadcast %1 : vector<1x256xf32> to vector<8x256xf32>
    %3 = arith.mulf %0, %2 : vector<8x256xf32>
    %c0_3 = arith.constant 0 : index
    %c0_4 = arith.constant 0 : index
    %4 = vector.load %arg3[%c0_3, %c0_4] : memref<1x256xf32, #tpu.memory_space<vmem>>, vector<1x256xf32>
    %5 = vector.broadcast %4 : vector<1x256xf32> to vector<8x256xf32>
    %6 = arith.addf %3, %5 : vector<8x256xf32>
    %cst = arith.constant 0.000000e+00 : f32
    %7 = vector.broadcast %cst : f32 to vector<8x256xf32>
    %8 = arith.subf %7, %6 : vector<8x256xf32>
    %9 = math.exp %8 : vector<8x256xf32>
    %cst_5 = arith.constant 1.000000e+00 : f32
    %10 = vector.broadcast %cst_5 : f32 to vector<8x256xf32>
    %11 = arith.addf %10, %9 : vector<8x256xf32>
    %cst_6 = arith.constant 1.000000e+00 : f32
    %12 = vector.broadcast %cst_6 : f32 to vector<8x256xf32>
    %13 = arith.divf %12, %11 : vector<8x256xf32>
    %14 = arith.mulf %6, %13 : vector<8x256xf32>
    %c0_7 = arith.constant 0 : index
    %c0_8 = arith.constant 0 : index
    %15 = vector.load %arg4[%c0_7, %c0_8] : memref<8x256xf32, #tpu.memory_space<vmem>>, vector<8x256xf32>
    tpu.vector_store %arg4[%c0_7, %c0_8], %14 {strides = array<i32>} : memref<8x256xf32, #tpu.memory_space<vmem>>, vector<8x256xf32>,
    return
  }
  func.func @transform_0(%arg0: i32) -> (i32, i32) {
    %c0_i32 = arith.constant 0 : i32
    %c0_i32_0 = arith.constant 0 : i32
    return %arg0, %c0_i32 : i32, i32
  }
  func.func @transform_1(%arg0: i32) -> (i32, i32) {
    %c0_i32 = arith.constant 0 : i32
    %c0_i32_0 = arith.constant 0 : i32
    %c0_i32_1 = arith.constant 0 : i32
    return %c0_i32, %c0_i32_0 : i32, i32
  }
  func.func @transform_2(%arg0: i32) -> (i32, i32) {
    %c0_i32 = arith.constant 0 : i32
    %c0_i32_0 = arith.constant 0 : i32
    %c0_i32_1 = arith.constant 0 : i32
    return %c0_i32, %c0_i32_0 : i32, i32
  }
  func.func @transform_3(%arg0: i32) -> (i32, i32) {
    %c0_i32 = arith.constant 0 : i32
    %c0_i32_0 = arith.constant 0 : i32
    return %arg0, %c0_i32 : i32, i32
  }
}

module attributes {stable_mosaic.version = 11 : i64} {
  func.func @_mm_bias_stats_kernel(%arg0: i32, %arg1: i32, %arg2: i32, %arg3: memref<8x384xbf16, #tpu.memory_space<vmem>>, %arg4: memref<384x128xbf16, #tpu.memory_space<vmem>>, %arg5: memref<1x128xf32, #tpu.memory_space<vmem>>, %arg6: memref<8x128xf32, #tpu.memory_space<vmem>>, %arg7: memref<1x2x128xf32, #tpu.memory_space<vmem>>, %arg8: memref<8x128xf32, #tpu.memory_space<vmem>>) attributes {dimension_semantics = [#tpu.dimension_semantics<parallel>, #tpu.dimension_semantics<parallel>, #tpu.dimension_semantics<arbitrary>], iteration_bounds = array<i64: 1, 4, 6>, scalar_prefetch = 0 : i64, scratch_operands = 1 : i64, tpu.core_type = #tpu.core_type<tc>, window_params = [{transform_indices = @transform_0, window_bounds = array<i64: 8, 384>}, {transform_indices = @transform_1, window_bounds = array<i64: 384, 128>}, {transform_indices = @transform_2, window_bounds = array<i64: 1, 128>}, {transform_indices = @transform_3, window_bounds = array<i64: 8, 128>}, {transform_indices = @transform_4, window_bounds = array<i64: 1, 2, 128>}]} {
    %c0_i32 = arith.constant 0 : i32
    %0 = arith.cmpi eq, %arg2, %c0_i32 : i32
    %1 = arith.extui %0 : i1 to i32
    %c0_i32_0 = arith.constant 0 : i32
    %2 = arith.cmpi ne, %1, %c0_i32_0 : i32
    scf.if %2 {
      %cst_9 = arith.constant 0.000000e+00 : f32
      %12 = vector.broadcast %cst_9 : f32 to vector<8x128xf32>
      %c0_10 = arith.constant 0 : index
      %c0_11 = arith.constant 0 : index
      %13 = vector.load %arg8[%c0_10, %c0_11] : memref<8x128xf32, #tpu.memory_space<vmem>>, vector<8x128xf32>
      tpu.vector_store %arg8[%c0_10, %c0_11], %12 {strides = array<i32>} : memref<8x128xf32, #tpu.memory_space<vmem>>, vector<8x128xf32>,
    } else {
    }
    %c0 = arith.constant 0 : index
    %c0_1 = arith.constant 0 : index
    %3 = vector.load %arg8[%c0, %c0_1] : memref<8x128xf32, #tpu.memory_space<vmem>>, vector<8x128xf32>
    %c0_2 = arith.constant 0 : index
    %c0_3 = arith.constant 0 : index
    %4 = vector.load %arg3[%c0_2, %c0_3] : memref<8x384xbf16, #tpu.memory_space<vmem>>, vector<8x384xbf16>
    %c0_4 = arith.constant 0 : index
    %c0_5 = arith.constant 0 : index
    %5 = vector.load %arg4[%c0_4, %c0_5] : memref<384x128xbf16, #tpu.memory_space<vmem>>, vector<384x128xbf16>
    %cst = arith.constant dense<0.000000e+00> : vector<8x128xf32>
    %6 = tpu.matmul %4, %5, %cst {dimension_numbers = #tpu.dot_dimension_numbers<[1], [0], [0], [1], [0, 0, 1, 1], [], []>} : vector<8x384xbf16>, vector<384x128xbf16>, vector<8x128xf32> -> vector<8x128xf32>
    %7 = arith.addf %3, %6 : vector<8x128xf32>
    %c0_6 = arith.constant 0 : index
    %c0_7 = arith.constant 0 : index
    %8 = vector.load %arg8[%c0_6, %c0_7] : memref<8x128xf32, #tpu.memory_space<vmem>>, vector<8x128xf32>
    tpu.vector_store %arg8[%c0_6, %c0_7], %7 {strides = array<i32>} : memref<8x128xf32, #tpu.memory_space<vmem>>, vector<8x128xf32>,
    %c5_i32 = arith.constant 5 : i32
    %9 = arith.cmpi eq, %arg2, %c5_i32 : i32
    %10 = arith.extui %9 : i1 to i32
    %c0_i32_8 = arith.constant 0 : i32
    %11 = arith.cmpi ne, %10, %c0_i32_8 : i32
    scf.if %11 {
      %c0_9 = arith.constant 0 : index
      %c0_10 = arith.constant 0 : index
      %12 = vector.load %arg8[%c0_9, %c0_10] : memref<8x128xf32, #tpu.memory_space<vmem>>, vector<8x128xf32>
      %c0_11 = arith.constant 0 : index
      %c0_12 = arith.constant 0 : index
      %13 = vector.load %arg5[%c0_11, %c0_12] : memref<1x128xf32, #tpu.memory_space<vmem>>, vector<1x128xf32>
      %14 = vector.broadcast %13 : vector<1x128xf32> to vector<8x128xf32>
      %15 = arith.addf %12, %14 : vector<8x128xf32>
      %c0_13 = arith.constant 0 : index
      %c0_14 = arith.constant 0 : index
      %16 = vector.load %arg6[%c0_13, %c0_14] : memref<8x128xf32, #tpu.memory_space<vmem>>, vector<8x128xf32>
      tpu.vector_store %arg6[%c0_13, %c0_14], %15 {strides = array<i32>} : memref<8x128xf32, #tpu.memory_space<vmem>>, vector<8x128xf32>,
      %cst_15 = arith.constant dense<0.000000e+00> : vector<128xf32>
      %17 = vector.multi_reduction <add>, %15, %cst_15 [0] : vector<8x128xf32> to vector<128xf32>
      %18 = vector.shape_cast %17 : vector<128xf32> to vector<1x128xf32>
      %19 = arith.mulf %15, %15 : vector<8x128xf32>
      %cst_16 = arith.constant dense<0.000000e+00> : vector<128xf32>
      %20 = vector.multi_reduction <add>, %19, %cst_16 [0] : vector<8x128xf32> to vector<128xf32>
      %21 = vector.shape_cast %20 : vector<128xf32> to vector<1x128xf32>
      %22 = tpu.concatenate %18, %21 in 0 : vector<1x128xf32>, vector<1x128xf32> -> vector<2x128xf32>
      %23 = vector.shape_cast %22 : vector<2x128xf32> to vector<1x2x128xf32>
      %c0_17 = arith.constant 0 : index
      %c0_18 = arith.constant 0 : index
      %c0_19 = arith.constant 0 : index
      %24 = vector.load %arg7[%c0_17, %c0_18, %c0_19] : memref<1x2x128xf32, #tpu.memory_space<vmem>>, vector<1x2x128xf32>
      tpu.vector_store %arg7[%c0_17, %c0_18, %c0_19], %23 {strides = array<i32>} : memref<1x2x128xf32, #tpu.memory_space<vmem>>, vector<1x2x128xf32>,
    } else {
    }
    return
  }
  func.func @transform_0(%arg0: i32, %arg1: i32, %arg2: i32) -> (i32, i32) {
    %c0_i32 = arith.constant 0 : i32
    return %arg0, %arg2 : i32, i32
  }
  func.func @transform_1(%arg0: i32, %arg1: i32, %arg2: i32) -> (i32, i32) {
    %c0_i32 = arith.constant 0 : i32
    return %arg2, %arg1 : i32, i32
  }
  func.func @transform_2(%arg0: i32, %arg1: i32, %arg2: i32) -> (i32, i32) {
    %c0_i32 = arith.constant 0 : i32
    %c0_i32_0 = arith.constant 0 : i32
    return %c0_i32, %arg1 : i32, i32
  }
  func.func @transform_3(%arg0: i32, %arg1: i32, %arg2: i32) -> (i32, i32) {
    %c0_i32 = arith.constant 0 : i32
    return %arg0, %arg1 : i32, i32
  }
  func.func @transform_4(%arg0: i32, %arg1: i32, %arg2: i32) -> (i32, i32, i32) {
    %c0_i32 = arith.constant 0 : i32
    %c0_i32_0 = arith.constant 0 : i32
    return %arg0, %c0_i32, %arg1 : i32, i32, i32
  }
}

module attributes {stable_mosaic.version = 11 : i64} {
  func.func @_affine_swish_kernel(%arg0: i32, %arg1: memref<8x512xf32, #tpu.memory_space<vmem>>, %arg2: memref<1x512xf32, #tpu.memory_space<vmem>>, %arg3: memref<1x512xf32, #tpu.memory_space<vmem>>, %arg4: memref<8x512xf32, #tpu.memory_space<vmem>>) attributes {dimension_semantics = [#tpu.dimension_semantics<parallel>], iteration_bounds = array<i64: 1>, scalar_prefetch = 0 : i64, scratch_operands = 0 : i64, tpu.core_type = #tpu.core_type<tc>, window_params = [{transform_indices = @transform_0, window_bounds = array<i64: 8, 512>}, {pipeline_mode = #tpu.pipeline_mode<synchronous>, transform_indices = @transform_1, window_bounds = array<i64: 1, 512>}, {pipeline_mode = #tpu.pipeline_mode<synchronous>, transform_indices = @transform_2, window_bounds = array<i64: 1, 512>}, {transform_indices = @transform_3, window_bounds = array<i64: 8, 512>}]} {
    %c0 = arith.constant 0 : index
    %c0_0 = arith.constant 0 : index
    %0 = vector.load %arg1[%c0, %c0_0] : memref<8x512xf32, #tpu.memory_space<vmem>>, vector<8x512xf32>
    %c0_1 = arith.constant 0 : index
    %c0_2 = arith.constant 0 : index
    %1 = vector.load %arg2[%c0_1, %c0_2] : memref<1x512xf32, #tpu.memory_space<vmem>>, vector<1x512xf32>
    %2 = vector.broadcast %1 : vector<1x512xf32> to vector<8x512xf32>
    %3 = arith.mulf %0, %2 : vector<8x512xf32>
    %c0_3 = arith.constant 0 : index
    %c0_4 = arith.constant 0 : index
    %4 = vector.load %arg3[%c0_3, %c0_4] : memref<1x512xf32, #tpu.memory_space<vmem>>, vector<1x512xf32>
    %5 = vector.broadcast %4 : vector<1x512xf32> to vector<8x512xf32>
    %6 = arith.addf %3, %5 : vector<8x512xf32>
    %cst = arith.constant 0.000000e+00 : f32
    %7 = vector.broadcast %cst : f32 to vector<8x512xf32>
    %8 = arith.subf %7, %6 : vector<8x512xf32>
    %9 = math.exp %8 : vector<8x512xf32>
    %cst_5 = arith.constant 1.000000e+00 : f32
    %10 = vector.broadcast %cst_5 : f32 to vector<8x512xf32>
    %11 = arith.addf %10, %9 : vector<8x512xf32>
    %cst_6 = arith.constant 1.000000e+00 : f32
    %12 = vector.broadcast %cst_6 : f32 to vector<8x512xf32>
    %13 = arith.divf %12, %11 : vector<8x512xf32>
    %14 = arith.mulf %6, %13 : vector<8x512xf32>
    %c0_7 = arith.constant 0 : index
    %c0_8 = arith.constant 0 : index
    %15 = vector.load %arg4[%c0_7, %c0_8] : memref<8x512xf32, #tpu.memory_space<vmem>>, vector<8x512xf32>
    tpu.vector_store %arg4[%c0_7, %c0_8], %14 {strides = array<i32>} : memref<8x512xf32, #tpu.memory_space<vmem>>, vector<8x512xf32>,
    return
  }
  func.func @transform_0(%arg0: i32) -> (i32, i32) {
    %c0_i32 = arith.constant 0 : i32
    %c0_i32_0 = arith.constant 0 : i32
    return %arg0, %c0_i32 : i32, i32
  }
  func.func @transform_1(%arg0: i32) -> (i32, i32) {
    %c0_i32 = arith.constant 0 : i32
    %c0_i32_0 = arith.constant 0 : i32
    %c0_i32_1 = arith.constant 0 : i32
    return %c0_i32, %c0_i32_0 : i32, i32
  }
  func.func @transform_2(%arg0: i32) -> (i32, i32) {
    %c0_i32 = arith.constant 0 : i32
    %c0_i32_0 = arith.constant 0 : i32
    %c0_i32_1 = arith.constant 0 : i32
    return %c0_i32, %c0_i32_0 : i32, i32
  }
  func.func @transform_3(%arg0: i32) -> (i32, i32) {
    %c0_i32 = arith.constant 0 : i32
    %c0_i32_0 = arith.constant 0 : i32
    return %arg0, %c0_i32 : i32, i32
  }
}

module attributes {stable_mosaic.version = 11 : i64} {
  func.func @_mm_bias_stats_kernel(%arg0: i32, %arg1: i32, %arg2: i32, %arg3: memref<8x512xbf16, #tpu.memory_space<vmem>>, %arg4: memref<512x128xbf16, #tpu.memory_space<vmem>>, %arg5: memref<1x128xf32, #tpu.memory_space<vmem>>, %arg6: memref<8x128xf32, #tpu.memory_space<vmem>>, %arg7: memref<1x2x128xf32, #tpu.memory_space<vmem>>, %arg8: memref<8x128xf32, #tpu.memory_space<vmem>>) attributes {dimension_semantics = [#tpu.dimension_semantics<parallel>, #tpu.dimension_semantics<parallel>, #tpu.dimension_semantics<arbitrary>], iteration_bounds = array<i64: 1, 4, 9>, scalar_prefetch = 0 : i64, scratch_operands = 1 : i64, tpu.core_type = #tpu.core_type<tc>, window_params = [{transform_indices = @transform_0, window_bounds = array<i64: 8, 512>}, {transform_indices = @transform_1, window_bounds = array<i64: 512, 128>}, {transform_indices = @transform_2, window_bounds = array<i64: 1, 128>}, {transform_indices = @transform_3, window_bounds = array<i64: 8, 128>}, {transform_indices = @transform_4, window_bounds = array<i64: 1, 2, 128>}]} {
    %c0_i32 = arith.constant 0 : i32
    %0 = arith.cmpi eq, %arg2, %c0_i32 : i32
    %1 = arith.extui %0 : i1 to i32
    %c0_i32_0 = arith.constant 0 : i32
    %2 = arith.cmpi ne, %1, %c0_i32_0 : i32
    scf.if %2 {
      %cst_9 = arith.constant 0.000000e+00 : f32
      %12 = vector.broadcast %cst_9 : f32 to vector<8x128xf32>
      %c0_10 = arith.constant 0 : index
      %c0_11 = arith.constant 0 : index
      %13 = vector.load %arg8[%c0_10, %c0_11] : memref<8x128xf32, #tpu.memory_space<vmem>>, vector<8x128xf32>
      tpu.vector_store %arg8[%c0_10, %c0_11], %12 {strides = array<i32>} : memref<8x128xf32, #tpu.memory_space<vmem>>, vector<8x128xf32>,
    } else {
    }
    %c0 = arith.constant 0 : index
    %c0_1 = arith.constant 0 : index
    %3 = vector.load %arg8[%c0, %c0_1] : memref<8x128xf32, #tpu.memory_space<vmem>>, vector<8x128xf32>
    %c0_2 = arith.constant 0 : index
    %c0_3 = arith.constant 0 : index
    %4 = vector.load %arg3[%c0_2, %c0_3] : memref<8x512xbf16, #tpu.memory_space<vmem>>, vector<8x512xbf16>
    %c0_4 = arith.constant 0 : index
    %c0_5 = arith.constant 0 : index
    %5 = vector.load %arg4[%c0_4, %c0_5] : memref<512x128xbf16, #tpu.memory_space<vmem>>, vector<512x128xbf16>
    %cst = arith.constant dense<0.000000e+00> : vector<8x128xf32>
    %6 = tpu.matmul %4, %5, %cst {dimension_numbers = #tpu.dot_dimension_numbers<[1], [0], [0], [1], [0, 0, 1, 1], [], []>} : vector<8x512xbf16>, vector<512x128xbf16>, vector<8x128xf32> -> vector<8x128xf32>
    %7 = arith.addf %3, %6 : vector<8x128xf32>
    %c0_6 = arith.constant 0 : index
    %c0_7 = arith.constant 0 : index
    %8 = vector.load %arg8[%c0_6, %c0_7] : memref<8x128xf32, #tpu.memory_space<vmem>>, vector<8x128xf32>
    tpu.vector_store %arg8[%c0_6, %c0_7], %7 {strides = array<i32>} : memref<8x128xf32, #tpu.memory_space<vmem>>, vector<8x128xf32>,
    %c8_i32 = arith.constant 8 : i32
    %9 = arith.cmpi eq, %arg2, %c8_i32 : i32
    %10 = arith.extui %9 : i1 to i32
    %c0_i32_8 = arith.constant 0 : i32
    %11 = arith.cmpi ne, %10, %c0_i32_8 : i32
    scf.if %11 {
      %c0_9 = arith.constant 0 : index
      %c0_10 = arith.constant 0 : index
      %12 = vector.load %arg8[%c0_9, %c0_10] : memref<8x128xf32, #tpu.memory_space<vmem>>, vector<8x128xf32>
      %c0_11 = arith.constant 0 : index
      %c0_12 = arith.constant 0 : index
      %13 = vector.load %arg5[%c0_11, %c0_12] : memref<1x128xf32, #tpu.memory_space<vmem>>, vector<1x128xf32>
      %14 = vector.broadcast %13 : vector<1x128xf32> to vector<8x128xf32>
      %15 = arith.addf %12, %14 : vector<8x128xf32>
      %c0_13 = arith.constant 0 : index
      %c0_14 = arith.constant 0 : index
      %16 = vector.load %arg6[%c0_13, %c0_14] : memref<8x128xf32, #tpu.memory_space<vmem>>, vector<8x128xf32>
      tpu.vector_store %arg6[%c0_13, %c0_14], %15 {strides = array<i32>} : memref<8x128xf32, #tpu.memory_space<vmem>>, vector<8x128xf32>,
      %cst_15 = arith.constant dense<0.000000e+00> : vector<128xf32>
      %17 = vector.multi_reduction <add>, %15, %cst_15 [0] : vector<8x128xf32> to vector<128xf32>
      %18 = vector.shape_cast %17 : vector<128xf32> to vector<1x128xf32>
      %19 = arith.mulf %15, %15 : vector<8x128xf32>
      %cst_16 = arith.constant dense<0.000000e+00> : vector<128xf32>
      %20 = vector.multi_reduction <add>, %19, %cst_16 [0] : vector<8x128xf32> to vector<128xf32>
      %21 = vector.shape_cast %20 : vector<128xf32> to vector<1x128xf32>
      %22 = tpu.concatenate %18, %21 in 0 : vector<1x128xf32>, vector<1x128xf32> -> vector<2x128xf32>
      %23 = vector.shape_cast %22 : vector<2x128xf32> to vector<1x2x128xf32>
      %c0_17 = arith.constant 0 : index
      %c0_18 = arith.constant 0 : index
      %c0_19 = arith.constant 0 : index
      %24 = vector.load %arg7[%c0_17, %c0_18, %c0_19] : memref<1x2x128xf32, #tpu.memory_space<vmem>>, vector<1x2x128xf32>
      tpu.vector_store %arg7[%c0_17, %c0_18, %c0_19], %23 {strides = array<i32>} : memref<1x2x128xf32, #tpu.memory_space<vmem>>, vector<1x2x128xf32>,
    } else {
    }
    return
  }
  func.func @transform_0(%arg0: i32, %arg1: i32, %arg2: i32) -> (i32, i32) {
    %c0_i32 = arith.constant 0 : i32
    return %arg0, %arg2 : i32, i32
  }
  func.func @transform_1(%arg0: i32, %arg1: i32, %arg2: i32) -> (i32, i32) {
    %c0_i32 = arith.constant 0 : i32
    return %arg2, %arg1 : i32, i32
  }
  func.func @transform_2(%arg0: i32, %arg1: i32, %arg2: i32) -> (i32, i32) {
    %c0_i32 = arith.constant 0 : i32
    %c0_i32_0 = arith.constant 0 : i32
    return %c0_i32, %arg1 : i32, i32
  }
  func.func @transform_3(%arg0: i32, %arg1: i32, %arg2: i32) -> (i32, i32) {
    %c0_i32 = arith.constant 0 : i32
    return %arg0, %arg1 : i32, i32
  }
  func.func @transform_4(%arg0: i32, %arg1: i32, %arg2: i32) -> (i32, i32, i32) {
    %c0_i32 = arith.constant 0 : i32
    %c0_i32_0 = arith.constant 0 : i32
    return %arg0, %c0_i32, %arg1 : i32, i32, i32
  }
}

</mosaic_0001>

<llo_original>
// kernel: discriminator_feature_forward.15
$region0: #{discriminator_feature_forward.15}
  #allocation0 [shape = 'u32[]', space=smem, size = 0x4, offset = 0x4, fixed_abs, tag = 'smem constant byte address 0x4 - core index']
  #allocation1 [shape = 'u32[72,128]{1,0:T(1,128)}', space=vmem, size = 0x9000, scoped, tag = 'internal scratch']
  #allocation2 [shape = 'f32[256,128]{1,0:T(8,128)}', space=vmem, size = 0x20000, scoped, tag = 'scratch operand']
  %s0 = inlined_call_operand.vmem [shape: bf16[512,128], index: 0, kind: input, shape index: {}]
  %s1 = inlined_call_operand.vmem [shape: bf16[128,128], index: 1, kind: input, shape index: {}]
  %s2 = inlined_call_operand.vmem [shape: f32[1,128], index: 2, kind: input, shape index: {}]
  %s3 = inlined_call_operand.vmem [shape: f32[512,128], index: 3, kind: output, shape index: {}]
  %s4 = sld [smem:[#allocation0]]
  $region53: #{discriminator_feature_forward.15} parent=0
    _
  %s6 = ssub.s32 1, %s4
  %s7 = scalar_select 0, %s6, %s4
  loop: start=0, step=1, limit=4
  $region2: #{discriminator_feature_forward.15} parent=0 // loop_pre_header
    _
  $region3: #{discriminator_feature_forward.15} parent=0 // loop_header
    %s9 = sphi 0, %s13
    %p10 = scmp.ge.s32.totalorder %s9, 4
    %s16 = sphi 0, %s35
    %s17 = sphi 0, %s31
    %s18 = sphi 0, %s27
    %s19 = sphi 0, %s16
    %s20 = sphi 0, %s17
    %s21 = sphi 0, %s18
    %s22 = sphi 0, %s19
    %s23 = sphi 0, %s20
    %s24 = sphi 0, %s21
    %s40 = sphi 0, %s42
    %s43 = sphi 0, %s40
    %s44 = sphi 0, %s43
    %s60 = sphi 0, %s44
    %s68 = sphi 0, %s70
    %s71 = sphi 0, %s68
    %s72 = sphi 0, %s71
    %s88 = sphi 0, %s72
    %s94 = sphi 0, %s96
    %s97 = sphi 0, %s94
    %s98 = sphi 0, %s97
    %s114 = sphi 0, %s98
    %s122 = sphi 0, %s124
    %s125 = sphi 0, %s122
    %s126 = sphi 0, %s125
    %s142 = sphi 0, %s126
  $region4: #{discriminator_feature_forward.15} parent=0 // loop_header_branch
    %12 = sbr.rel (%p10) target = $region8
  $region5: #{discriminator_feature_forward.15} parent=0 // loop_body
    %s14 = ssub.s32 %s9, 1
    %s15 = ssub.s32 %s9, 2
    %s25 = sadd.s32 1, %s18
    %p26 = scmp.ge.s32.totalorder %s25, 1
    %s27 = scalar_select %p26, 0, %s25
    %s28 = sadd.s32 1, %s17
    %s29 = scalar_select %p26, %s28, %s17
    %p30 = scmp.ge.s32.totalorder %s29, 1
    %s31 = scalar_select %p30, 0, %s29
    %s32 = sadd.s32 1, %s16
    %s33 = scalar_select %p30, %s32, %s16
    %p34 = scmp.ge.s32.totalorder %s33, 2
    %s35 = scalar_select %p34, 0, %s33
    %s36 = ssub.s32 %s16, %s35
    %s37 = ssub.s32 %s18, %s27
    %s38 = sor.u32 %s36, %s37
    %p39 = scmp.eq.s32.totalorder %s38, 0
    %s41 = sadd.s32 %s40, 1
    %s42 = scalar_select %p39, %s40, %s41
    %p45 = pneg %p39
    %p46 = scmp.eq.s32.totalorder %s9, 1
    %p47 = por %p45, %p46
    %p48 = scmp.ne.s32.totalorder %s40, %s43
    %p49 = scmp.eq.s32.totalorder %s9, 0
    %p50 = por %p48, %p49
    %p51 = scmp.ne.s32.totalorder %s40, %s43
    %p52 = scmp.eq.s32.totalorder %s14, 1
    %p53 = por %p51, %p52
    %p54 = scmp.ne.s32.totalorder %s43, %s44
    %p55 = scmp.eq.s32.totalorder %s14, 0
    %p56 = por %p54, %p55
    %p57 = scmp.ne.s32.totalorder %s43, %s44
    %p58 = scmp.eq.s32.totalorder %s15, 1
    %p59 = por %p57, %p58
    %p61 = scmp.ne.s32.totalorder %s44, %s60
    %p62 = scmp.eq.s32.totalorder %s15, 0
    %p63 = por %p61, %p62
    %s64 = ssub.s32 %s18, %s27
    %s65 = ssub.s32 %s17, %s31
    %s66 = sor.u32 %s64, %s65
    %p67 = scmp.eq.s32.totalorder %s66, 0
    %s69 = sadd.s32 %s68, 1
    %s70 = scalar_select %p67, %s68, %s69
    %p73 = pneg %p67
    %p74 = scmp.eq.s32.totalorder %s9, 1
    %p75 = por %p73, %p74
    %p76 = scmp.ne.s32.totalorder %s68, %s71
    %p77 = scmp.eq.s32.totalorder %s9, 0
    %p78 = por %p76, %p77
    %p79 = scmp.ne.s32.totalorder %s68, %s71
    %p80 = scmp.eq.s32.totalorder %s14, 1
    %p81 = por %p79, %p80
    %p82 = scmp.ne.s32.totalorder %s71, %s72
    %p83 = scmp.eq.s32.totalorder %s14, 0
    %p84 = por %p82, %p83
    %p85 = scmp.ne.s32.totalorder %s71, %s72
    %p86 = scmp.eq.s32.totalorder %s15, 1
    %p87 = por %p85, %p86
    %p89 = scmp.ne.s32.totalorder %s72, %s88
    %p90 = scmp.eq.s32.totalorder %s15, 0
    %p91 = por %p89, %p90
    %s92 = ssub.s32 %s17, %s31
    %p93 = scmp.eq.s32.totalorder %s92, 0
    %s95 = sadd.s32 %s94, 1
    %s96 = scalar_select %p93, %s94, %s95
    %p99 = pneg %p93
    %p100 = scmp.eq.s32.totalorder %s9, 1
    %p101 = por %p99, %p100
    %p102 = scmp.ne.s32.totalorder %s94, %s97
    %p103 = scmp.eq.s32.totalorder %s9, 0
    %p104 = por %p102, %p103
    %p105 = scmp.ne.s32.totalorder %s94, %s97
    %p106 = scmp.eq.s32.totalorder %s14, 1
    %p107 = por %p105, %p106
    %p108 = scmp.ne.s32.totalorder %s97, %s98
    %p109 = scmp.eq.s32.totalorder %s14, 0
    %p110 = por %p108, %p109
    %p111 = scmp.ne.s32.totalorder %s97, %s98
    %p112 = scmp.eq.s32.totalorder %s15, 1
    %p113 = por %p111, %p112
    %p115 = scmp.ne.s32.totalorder %s98, %s114
    %p116 = scmp.eq.s32.totalorder %s15, 0
    %p117 = por %p115, %p116
    %s118 = ssub.s32 %s16, %s35
    %s119 = ssub.s32 %s17, %s31
    %s120 = sor.u32 %s118, %s119
    %p121 = scmp.eq.s32.totalorder %s120, 0
    %s123 = sadd.s32 %s122, 1
    %s124 = scalar_select %p121, %s122, %s123
    %p127 = pneg %p121
    %p128 = scmp.eq.s32.totalorder %s9, 1
    %p129 = por %p127, %p128
    %p130 = scmp.ne.s32.totalorder %s122, %s125
    %p131 = scmp.eq.s32.totalorder %s9, 0
    %p132 = por %p130, %p131
    %p133 = scmp.ne.s32.totalorder %s122, %s125
    %p134 = scmp.eq.s32.totalorder %s14, 1
    %p135 = por %p133, %p134
    %p136 = scmp.ne.s32.totalorder %s125, %s126
    %p137 = scmp.eq.s32.totalorder %s14, 0
    %p138 = por %p136, %p137
    %p139 = scmp.ne.s32.totalorder %s125, %s126
    %p140 = scmp.eq.s32.totalorder %s15, 1
    %p141 = por %p139, %p140
    %p143 = scmp.ne.s32.totalorder %s126, %s142
    %p144 = scmp.eq.s32.totalorder %s15, 0
    %p145 = por %p143, %p144
    %p146 = scmp.le.s32.totalorder 1, %s9
    %p147 = scmp.lt.s32.totalorder %s9, 3
    %p148 = pnand %p146, %p147
    %p149 = pneg %p148
    // Predicated region
    $region9: #{discriminator_feature_forward.15} parent=5 // pred_check
      _
    $region10: #{discriminator_feature_forward.15} parent=5 // pred_check_branch
      %151 = sbr.rel (%p148) target = $region12
    $region11: #{discriminator_feature_forward.15} parent=5 // pred_region
      %s152 = ssub.s32 %s9, 1
      // Predicated region
      $region13: #{discriminator_feature_forward.15} parent=11 // pred_check
        %p153 = pneg %p84
      $region14: #{discriminator_feature_forward.15} parent=11 // pred_check_branch
        %155 = sbr.rel (%p153) target = $region16
      $region15: #{discriminator_feature_forward.15} parent=11 // pred_region
        %s156 = smul.u32 16, %s21
        %p157 = scmp.lt.s32.totalorder %s156, 15
        %s158 = scalar_select %p157, %s156, 15
        %p159 = scmp.lt.s32.totalorder %s20, 0
        %s160 = scalar_select %p159, %s20, 0
        %s161 = sadd.s32 %s160, %s158
        %s162 = smul.addr %s161, 4
        %s163 = scalar_lea.vmem %s1, %s162
        %s164 = smul.u32 16, %s21
      $region16: #{discriminator_feature_forward.15} parent=11 // pred_fallthru
        _
      // Predicated region
      $region17: #{discriminator_feature_forward.15} parent=11 // pred_check
        %p165 = pneg %p110
      $region18: #{discriminator_feature_forward.15} parent=11 // pred_check_branch
        %167 = sbr.rel (%p165) target = $region20
      $region19: #{discriminator_feature_forward.15} parent=11 // pred_region
        %p168 = scmp.lt.s32.totalorder %s20, 0
        %s169 = scalar_select %p168, %s20, 0
        %s170 = scalar_lea.vmem %s2, %s169
      $region20: #{discriminator_feature_forward.15} parent=11 // pred_fallthru
        _
    $region12: #{discriminator_feature_forward.15} parent=5 // pred_fallthru
      _
    %p171 = scmp.lt.s32.totalorder %s9, 2
    // Predicated region
    $region21: #{discriminator_feature_forward.15} parent=5 // pred_check
      %p172 = pneg %p171
    $region22: #{discriminator_feature_forward.15} parent=5 // pred_check_branch
      %174 = sbr.rel (%p172) target = $region24
    $region23: #{discriminator_feature_forward.15} parent=5 // pred_region
      // Predicated region
      $region25: #{discriminator_feature_forward.15} parent=23 // pred_check
        %p175 = pneg %p50
      $region26: #{discriminator_feature_forward.15} parent=23 // pred_check_branch
        %177 = sbr.rel (%p175) target = $region28
      $region27: #{discriminator_feature_forward.15} parent=23 // pred_region
        %s178 = smul.u32 32, %s16
        %p179 = scmp.lt.s32.totalorder %s178, 63
        %s180 = scalar_select %p179, %s178, 63
        %p181 = scmp.lt.s32.totalorder %s18, 0
        %s182 = scalar_select %p181, %s18, 0
        %s183 = sadd.s32 %s182, %s180
        %s184 = smul.addr %s183, 4
        %s185 = scalar_lea.vmem %s0, %s184
        %s186 = smul.u32 32, %s16
      $region28: #{discriminator_feature_forward.15} parent=23 // pred_fallthru
        _
    $region24: #{discriminator_feature_forward.15} parent=5 // pred_fallthru
      _
    %p187 = scmp.le.s32.totalorder 1, %s9
    %p188 = scmp.lt.s32.totalorder %s9, 3
    %p189 = pnand %p187, %p188
    %p190 = pneg %p189
    // Predicated region
    $region29: #{discriminator_feature_forward.15} parent=5 // pred_check
      _
    $region30: #{discriminator_feature_forward.15} parent=5 // pred_check_branch
      %192 = sbr.rel (%p189) target = $region32
    $region31: #{discriminator_feature_forward.15} parent=5 // pred_region
      %s193 = ssub.s32 %s9, 1
      %s194 = smul.u32 32, %s19
      %p195 = scmp.lt.s32.totalorder %s194, 63
      %s196 = scalar_select %p195, %s194, 63
      %p197 = scmp.lt.s32.totalorder %s21, 0
      %s198 = scalar_select %p197, %s21, 0
      %s199 = sadd.s32 %s198, %s196
      %s200 = smul.addr %s199, 4
      %s201 = scalar_lea.vmem %s0, %s200
      %p202 = pneg %p56
      %p203 = pneg %p53
      %s204 = smul.u32 16, %s21
      %p205 = scmp.lt.s32.totalorder %s204, 15
      %s206 = scalar_select %p205, %s204, 15
      %p207 = scmp.lt.s32.totalorder %s20, 0
      %s208 = scalar_select %p207, %s20, 0
      %s209 = sadd.s32 %s208, %s206
      %s210 = smul.addr %s209, 4
      %s211 = scalar_lea.vmem %s1, %s210
      %p212 = pneg %p84
      %p213 = pneg %p81
      %p214 = scmp.lt.s32.totalorder %s20, 0
      %s215 = scalar_select %p214, %s20, 0
      %s216 = scalar_lea.vmem %s2, %s215
      %p217 = pneg %p110
      %p218 = pneg %p107
      %p219 = pneg %p138
      %p220 = pneg %p135
      %s221 = smul.u32 32, %s19
      %p222 = scmp.lt.s32.totalorder %s221, 63
      %s223 = scalar_select %p222, %s221, 63
      %p224 = scmp.lt.s32.totalorder %s20, 0
      %s225 = scalar_select %p224, %s20, 0
      %s226 = sadd.s32 %s225, %s223
      %s227 = smul.addr %s226, 8
      %s228 = scalar_lea.vmem %s3, %s227
      %s229 = smul.u32 32, %s19
      %p230 = scmp.lt.s32.totalorder %s229, 63
      %s231 = scalar_select %p230, %s229, 63
      %p232 = scmp.lt.s32.totalorder %s21, 0
      %s233 = scalar_select %p232, %s21, 0
      %s234 = sadd.s32 %s233, %s231
      %s235 = smul.addr %s234, 4
      %s236 = scalar_lea.vmem %s0, %s235
      %s237 = smul.u32 32, %s19
      %s238 = smul.u32 16, %s21
      %p239 = scmp.lt.s32.totalorder %s238, 15
      %s240 = scalar_select %p239, %s238, 15
      %p241 = scmp.lt.s32.totalorder %s20, 0
      %s242 = scalar_select %p241, %s20, 0
      %s243 = sadd.s32 %s242, %s240
      %s244 = smul.addr %s243, 4
      %s245 = scalar_lea.vmem %s1, %s244
      %s246 = smul.u32 16, %s21
      %p247 = scmp.lt.s32.totalorder %s20, 0
      %s248 = scalar_select %p247, %s20, 0
      %s249 = scalar_lea.vmem %s2, %s248
      %s250 = smul.u32 32, %s19
      %p251 = scmp.lt.s32.totalorder %s250, 63
      %s252 = scalar_select %p251, %s250, 63
      %p253 = scmp.lt.s32.totalorder %s20, 0
      %s254 = scalar_select %p253, %s20, 0
      %s255 = sadd.s32 %s254, %s252
      %s256 = smul.addr %s255, 8
      %s257 = scalar_lea.vmem %s3, %s256
      %s258 = smul.u32 32, %s19
      %p259 = scmp.eq.s32.totalorder %s21, 0
      // Predicated region
      $region33: #{discriminator_feature_forward.15} parent=31 // pred_check
        %p260 = pneg %p259
      $region34: #{discriminator_feature_forward.15} parent=31 // pred_check_branch
        %262 = sbr.rel (%p260) target = $region36
      $region35: #{discriminator_feature_forward.15} parent=31 // pred_region
        %263 = vst [vmem:[#allocation2] sm:$0xff] 0.0
        %264 = vst [vmem:[#allocation2 + $0x8] sm:$0xff] 0.0
        %265 = vst [vmem:[#allocation2 + $0x10] sm:$0xff] 0.0
        %266 = vst [vmem:[#allocation2 + $0x18] sm:$0xff] 0.0
        %267 = vst [vmem:[#allocation2 + $0x20] sm:$0xff] 0.0
        %268 = vst [vmem:[#allocation2 + $0x28] sm:$0xff] 0.0
        %269 = vst [vmem:[#allocation2 + $0x30] sm:$0xff] 0.0
        %270 = vst [vmem:[#allocation2 + $0x38] sm:$0xff] 0.0
        %271 = vst [vmem:[#allocation2 + $0x40] sm:$0xff] 0.0
        %272 = vst [vmem:[#allocation2 + $0x48] sm:$0xff] 0.0
        %273 = vst [vmem:[#allocation2 + $0x50] sm:$0xff] 0.0
        %274 = vst [vmem:[#allocation2 + $0x58] sm:$0xff] 0.0
        %275 = vst [vmem:[#allocation2 + $0x60] sm:$0xff] 0.0
        %276 = vst [vmem:[#allocation2 + $0x68] sm:$0xff] 0.0
        %277 = vst [vmem:[#allocation2 + $0x70] sm:$0xff] 0.0
        %278 = vst [vmem:[#allocation2 + $0x78] sm:$0xff] 0.0
        %279 = vst [vmem:[#allocation2 + $0x80] sm:$0xff] 0.0
        %280 = vst [vmem:[#allocation2 + $0x88] sm:$0xff] 0.0
        %281 = vst [vmem:[#allocation2 + $0x90] sm:$0xff] 0.0
        %282 = vst [vmem:[#allocation2 + $0x98] sm:$0xff] 0.0
        %283 = vst [vmem:[#allocation2 + $0xa0] sm:$0xff] 0.0
        %284 = vst [vmem:[#allocation2 + $0xa8] sm:$0xff] 0.0
        %285 = vst [vmem:[#allocation2 + $0xb0] sm:$0xff] 0.0
        %286 = vst [vmem:[#allocation2 + $0xb8] sm:$0xff] 0.0
        %287 = vst [vmem:[#allocation2 + $0xc0] sm:$0xff] 0.0
        %288 = vst [vmem:[#allocation2 + $0xc8] sm:$0xff] 0.0
        %289 = vst [vmem:[#allocation2 + $0xd0] sm:$0xff] 0.0
        %290 = vst [vmem:[#allocation2 + $0xd8] sm:$0xff] 0.0
        %291 = vst [vmem:[#allocation2 + $0xe0] sm:$0xff] 0.0
        %292 = vst [vmem:[#allocation2 + $0xe8] sm:$0xff] 0.0
        %293 = vst [vmem:[#allocation2 + $0xf0] sm:$0xff] 0.0
        %294 = vst [vmem:[#allocation2 + $0xf8] sm:$0xff] 0.0
      $region36: #{discriminator_feature_forward.15} parent=31 // pred_fallthru
        _
      %v295 = vld [vmem:[#allocation2] sm:$0xff]
      %v296 = vld [vmem:[#allocation2 + $0x8] sm:$0xff]
      %v297 = vld [vmem:[#allocation2 + $0x10] sm:$0xff]
      %v298 = vld [vmem:[#allocation2 + $0x18] sm:$0xff]
      %v299 = vld [vmem:[#allocation2 + $0x20] sm:$0xff]
      %v300 = vld [vmem:[#allocation2 + $0x28] sm:$0xff]
      %v301 = vld [vmem:[#allocation2 + $0x30] sm:$0xff]
      %v302 = vld [vmem:[#allocation2 + $0x38] sm:$0xff]
      %v303 = vld [vmem:[#allocation2 + $0x40] sm:$0xff]
      %v304 = vld [vmem:[#allocation2 + $0x48] sm:$0xff]
      %v305 = vld [vmem:[#allocation2 + $0x50] sm:$0xff]
      %v306 = vld [vmem:[#allocation2 + $0x58] sm:$0xff]
      %v307 = vld [vmem:[#allocation2 + $0x60] sm:$0xff]
      %v308 = vld [vmem:[#allocation2 + $0x68] sm:$0xff]
      %v309 = vld [vmem:[#allocation2 + $0x70] sm:$0xff]
      %v310 = vld [vmem:[#allocation2 + $0x78] sm:$0xff]
      %v311 = vld [vmem:[#allocation2 + $0x80] sm:$0xff]
      %v312 = vld [vmem:[#allocation2 + $0x88] sm:$0xff]
      %v313 = vld [vmem:[#allocation2 + $0x90] sm:$0xff]
      %v314 = vld [vmem:[#allocation2 + $0x98] sm:$0xff]
      %v315 = vld [vmem:[#allocation2 + $0xa0] sm:$0xff]
      %v316 = vld [vmem:[#allocation2 + $0xa8] sm:$0xff]
      %v317 = vld [vmem:[#allocation2 + $0xb0] sm:$0xff]
      %v318 = vld [vmem:[#allocation2 + $0xb8] sm:$0xff]
      %v319 = vld [vmem:[#allocation2 + $0xc0] sm:$0xff]
      %v320 = vld [vmem:[#allocation2 + $0xc8] sm:$0xff]
      %v321 = vld [vmem:[#allocation2 + $0xd0] sm:$0xff]
      %v322 = vld [vmem:[#allocation2 + $0xd8] sm:$0xff]
      %v323 = vld [vmem:[#allocation2 + $0xe0] sm:$0xff]
      %v324 = vld [vmem:[#allocation2 + $0xe8] sm:$0xff]
      %v325 = vld [vmem:[#allocation2 + $0xf0] sm:$0xff]
      %v326 = vld [vmem:[#allocation2 + $0xf8] sm:$0xff]
      %v327 = vld [vmem:[%s236] sm:$0xf]
      %v328 = vld [vmem:[%s236 + $0x4] sm:$0xf]
      %v329 = vld [vmem:[%s236 + $0x8] sm:$0xf]
      %v330 = vld [vmem:[%s236 + $0xc] sm:$0xf]
      %v331 = vld [vmem:[%s236 + $0x10] sm:$0xf]
      %v332 = vld [vmem:[%s236 + $0x14] sm:$0xf]
      %v333 = vld [vmem:[%s236 + $0x18] sm:$0xf]
      %v334 = vld [vmem:[%s236 + $0x1c] sm:$0xf]
      %v335 = vld [vmem:[%s236 + $0x20] sm:$0xf]
      %v336 = vld [vmem:[%s236 + $0x24] sm:$0xf]
      %v337 = vld [vmem:[%s236 + $0x28] sm:$0xf]
      %v338 = vld [vmem:[%s236 + $0x2c] sm:$0xf]
      %v339 = vld [vmem:[%s236 + $0x30] sm:$0xf]
      %v340 = vld [vmem:[%s236 + $0x34] sm:$0xf]
      %v341 = vld [vmem:[%s236 + $0x38] sm:$0xf]
      %v342 = vld [vmem:[%s236 + $0x3c] sm:$0xf]
      %v343 = vld [vmem:[%s236 + $0x40] sm:$0xf]
      %v344 = vld [vmem:[%s236 + $0x44] sm:$0xf]
      %v345 = vld [vmem:[%s236 + $0x48] sm:$0xf]
      %v346 = vld [vmem:[%s236 + $0x4c] sm:$0xf]
      %v347 = vld [vmem:[%s236 + $0x50] sm:$0xf]
      %v348 = vld [vmem:[%s236 + $0x54] sm:$0xf]
      %v349 = vld [vmem:[%s236 + $0x58] sm:$0xf]
      %v350 = vld [vmem:[%s236 + $0x5c] sm:$0xf]
      %v351 = vld [vmem:[%s236 + $0x60] sm:$0xf]
      %v352 = vld [vmem:[%s236 + $0x64] sm:$0xf]
      %v353 = vld [vmem:[%s236 + $0x68] sm:$0xf]
      %v354 = vld [vmem:[%s236 + $0x6c] sm:$0xf]
      %v355 = vld [vmem:[%s236 + $0x70] sm:$0xf]
      %v356 = vld [vmem:[%s236 + $0x74] sm:$0xf]
      %v357 = vld [vmem:[%s236 + $0x78] sm:$0xf]
      %v358 = vld [vmem:[%s236 + $0x7c] sm:$0xf]
      %v359 = vld [vmem:[%s245] sm:$0xf]
      %v360 = vld [vmem:[%s245 + $0x4] sm:$0xf]
      %v361 = vld [vmem:[%s245 + $0x8] sm:$0xf]
      %v362 = vld [vmem:[%s245 + $0xc] sm:$0xf]
      %v363 = vld [vmem:[%s245 + $0x10] sm:$0xf]
      %v364 = vld [vmem:[%s245 + $0x14] sm:$0xf]
      %v365 = vld [vmem:[%s245 + $0x18] sm:$0xf]
      %v366 = vld [vmem:[%s245 + $0x1c] sm:$0xf]
      %v367 = vld [vmem:[%s245 + $0x20] sm:$0xf]
      %v368 = vld [vmem:[%s245 + $0x24] sm:$0xf]
      %v369 = vld [vmem:[%s245 + $0x28] sm:$0xf]
      %v370 = vld [vmem:[%s245 + $0x2c] sm:$0xf]
      %v371 = vld [vmem:[%s245 + $0x30] sm:$0xf]
      %v372 = vld [vmem:[%s245 + $0x34] sm:$0xf]
      %v373 = vld [vmem:[%s245 + $0x38] sm:$0xf]
      %v374 = vld [vmem:[%s245 + $0x3c] sm:$0xf]
      %v407 = vunpack.c.l.b16 %v327
      %v408 = vunpack.c.l.b16 %v328
      %v409 = vunpack.c.l.b16 %v329
      %v410 = vunpack.c.l.b16 %v330
      %v411 = vunpack.c.l.b16 %v331
      %v412 = vunpack.c.l.b16 %v332
      %v413 = vunpack.c.l.b16 %v333
      %v414 = vunpack.c.l.b16 %v334
      %v415 = vunpack.c.l.b16 %v335
      %v416 = vunpack.c.l.b16 %v336
      %v417 = vunpack.c.l.b16 %v337
      %v418 = vunpack.c.l.b16 %v338
      %v419 = vunpack.c.l.b16 %v339
      %v420 = vunpack.c.l.b16 %v340
      %v421 = vunpack.c.l.b16 %v341
      %v422 = vunpack.c.l.b16 %v342
      %v423 = vunpack.c.l.b16 %v343
      %v424 = vunpack.c.l.b16 %v344
      %v425 = vunpack.c.l.b16 %v345
      %v426 = vunpack.c.l.b16 %v346
      %v427 = vunpack.c.l.b16 %v347
      %v428 = vunpack.c.l.b16 %v348
      %v429 = vunpack.c.l.b16 %v349
      %v430 = vunpack.c.l.b16 %v350
      %v431 = vunpack.c.l.b16 %v351
      %v432 = vunpack.c.l.b16 %v352
      %v433 = vunpack.c.l.b16 %v353
      %v434 = vunpack.c.l.b16 %v354
      %v435 = vunpack.c.l.b16 %v355
      %v436 = vunpack.c.l.b16 %v356
      %v437 = vunpack.c.l.b16 %v357
      %v438 = vunpack.c.l.b16 %v358
      %v439 = vpack.c.b16 %v408, %v407
      %v440 = vpack.c.b16 %v410, %v409
      %v441 = vpack.c.b16 %v412, %v411
      %v442 = vpack.c.b16 %v414, %v413
      %v443 = vpack.c.b16 %v416, %v415
      %v444 = vpack.c.b16 %v418, %v417
      %v445 = vpack.c.b16 %v420, %v419
      %v446 = vpack.c.b16 %v422, %v421
      %v447 = vpack.c.b16 %v424, %v423
      %v448 = vpack.c.b16 %v426, %v425
      %v449 = vpack.c.b16 %v428, %v427
      %v450 = vpack.c.b16 %v430, %v429
      %v451 = vpack.c.b16 %v432, %v431
      %v452 = vpack.c.b16 %v434, %v433
      %v453 = vpack.c.b16 %v436, %v435
      %v454 = vpack.c.b16 %v438, %v437
      %v487 = vunpack.c.l.b16 %v359
      %v488 = vunpack.c.l.b16 %v360
      %v489 = vunpack.c.l.b16 %v361
      %v490 = vunpack.c.l.b16 %v362
      %v491 = vunpack.c.l.b16 %v363
      %v492 = vunpack.c.l.b16 %v364
      %v493 = vunpack.c.l.b16 %v365
      %v494 = vunpack.c.l.b16 %v366
      %v495 = vunpack.c.l.b16 %v367
      %v496 = vunpack.c.l.b16 %v368
      %v497 = vunpack.c.l.b16 %v369
      %v498 = vunpack.c.l.b16 %v370
      %v499 = vunpack.c.l.b16 %v371
      %v500 = vunpack.c.l.b16 %v372
      %v501 = vunpack.c.l.b16 %v373
      %v502 = vunpack.c.l.b16 %v374
      %v503 = vpack.c.b16 %v488, %v487
      %v504 = vpack.c.b16 %v490, %v489
      %v505 = vpack.c.b16 %v492, %v491
      %v506 = vpack.c.b16 %v494, %v493
      %v507 = vpack.c.b16 %v496, %v495
      %v508 = vpack.c.b16 %v498, %v497
      %v509 = vpack.c.b16 %v500, %v499
      %v510 = vpack.c.b16 %v502, %v501
      %519 = vmatpush.bf16.msra.mxu0 %v510
      %520 = vmatpush.bf16.msra.mxu0 %v509
      %521 = vmatpush.bf16.msra.mxu0 %v508
      %522 = vmatpush.bf16.msra.mxu0 %v507
      %523 = vmatpush.bf16.msra.mxu0 %v506
      %524 = vmatpush.bf16.msra.mxu0 %v505
      %525 = vmatpush.bf16.msra.mxu0 %v504
      %526 = vmatpush.bf16.msra.mxu0 %v503
      %527 = vmatmul.bf16.gmra.mxu0 %v439
      %v528 = vpop.f32.mrf.mxu0
      %v529 = vadd.f32 0.0, %v528
      %v530 = vpop.f32.mrf.mxu0
      %v531 = vadd.f32 0.0, %v530
      %532 = vmatmul.bf16.gmra.mxu0 %v440
      %v533 = vpop.f32.mrf.mxu0
      %v534 = vadd.f32 0.0, %v533
      %v535 = vpop.f32.mrf.mxu0
      %v536 = vadd.f32 0.0, %v535
      %537 = vmatmul.bf16.gmra.mxu0 %v441
      %v538 = vpop.f32.mrf.mxu0
      %v539 = vadd.f32 0.0, %v538
      %v540 = vpop.f32.mrf.mxu0
      %v541 = vadd.f32 0.0, %v540
      %542 = vmatmul.bf16.gmra.mxu0 %v442
      %v543 = vpop.f32.mrf.mxu0
      %v544 = vadd.f32 0.0, %v543
      %v545 = vpop.f32.mrf.mxu0
      %v546 = vadd.f32 0.0, %v545
      %547 = vmatmul.bf16.gmra.mxu0 %v443
      %v548 = vpop.f32.mrf.mxu0
      %v549 = vadd.f32 0.0, %v548
      %v550 = vpop.f32.mrf.mxu0
      %v551 = vadd.f32 0.0, %v550
      %552 = vmatmul.bf16.gmra.mxu0 %v444
      %v553 = vpop.f32.mrf.mxu0
      %v554 = vadd.f32 0.0, %v553
      %v555 = vpop.f32.mrf.mxu0
      %v556 = vadd.f32 0.0, %v555
      %557 = vmatmul.bf16.gmra.mxu0 %v445
      %v558 = vpop.f32.mrf.mxu0
      %v559 = vadd.f32 0.0, %v558
      %v560 = vpop.f32.mrf.mxu0
      %v561 = vadd.f32 0.0, %v560
      %562 = vmatmul.bf16.gmra.mxu0 %v446
      %v563 = vpop.f32.mrf.mxu0
      %v564 = vadd.f32 0.0, %v563
      %v565 = vpop.f32.mrf.mxu0
      %v566 = vadd.f32 0.0, %v565
      %567 = vmatmul.bf16.gmra.mxu0 %v447
      %v568 = vpop.f32.mrf.mxu0
      %v569 = vadd.f32 0.0, %v568
      %v570 = vpop.f32.mrf.mxu0
      %v571 = vadd.f32 0.0, %v570
      %572 = vmatmul.bf16.gmra.mxu0 %v448
      %v573 = vpop.f32.mrf.mxu0
      %v574 = vadd.f32 0.0, %v573
      %v575 = vpop.f32.mrf.mxu0
      %v576 = vadd.f32 0.0, %v575
      %577 = vmatmul.bf16.gmra.mxu0 %v449
      %v578 = vpop.f32.mrf.mxu0
      %v579 = vadd.f32 0.0, %v578
      %v580 = vpop.f32.mrf.mxu0
      %v581 = vadd.f32 0.0, %v580
      %582 = vmatmul.bf16.gmra.mxu0 %v450
      %v583 = vpop.f32.mrf.mxu0
      %v584 = vadd.f32 0.0, %v583
      %v585 = vpop.f32.mrf.mxu0
      %v586 = vadd.f32 0.0, %v585
      %587 = vmatmul.bf16.gmra.mxu0 %v451
      %v588 = vpop.f32.mrf.mxu0
      %v589 = vadd.f32 0.0, %v588
      %v590 = vpop.f32.mrf.mxu0
      %v591 = vadd.f32 0.0, %v590
      %592 = vmatmul.bf16.gmra.mxu0 %v452
      %v593 = vpop.f32.mrf.mxu0
      %v594 = vadd.f32 0.0, %v593
      %v595 = vpop.f32.mrf.mxu0
      %v596 = vadd.f32 0.0, %v595
      %597 = vmatmul.bf16.gmra.mxu0 %v453
      %v598 = vpop.f32.mrf.mxu0
      %v599 = vadd.f32 0.0, %v598
      %v600 = vpop.f32.mrf.mxu0
      %v601 = vadd.f32 0.0, %v600
      %602 = vmatmul.bf16.gmra.mxu0 %v454
      %v603 = vpop.f32.mrf.mxu0
      %v604 = vadd.f32 0.0, %v603
      %v605 = vpop.f32.mrf.mxu0
      %v606 = vadd.f32 0.0, %v605
      %607 = vdwg.mxu0
      %v608 = vadd.f32 %v295, %v529
      %v609 = vadd.f32 %v296, %v531
      %v610 = vadd.f32 %v297, %v534
      %v611 = vadd.f32 %v298, %v536
      %v612 = vadd.f32 %v299, %v539
      %v613 = vadd.f32 %v300, %v541
      %v614 = vadd.f32 %v301, %v544
      %v615 = vadd.f32 %v302, %v546
      %v616 = vadd.f32 %v303, %v549
      %v617 = vadd.f32 %v304, %v551
      %v618 = vadd.f32 %v305, %v554
      %v619 = vadd.f32 %v306, %v556
      %v620 = vadd.f32 %v307, %v559
      %v621 = vadd.f32 %v308, %v561
      %v622 = vadd.f32 %v309, %v564
      %v623 = vadd.f32 %v310, %v566
      %v624 = vadd.f32 %v311, %v569
      %v625 = vadd.f32 %v312, %v571
      %v626 = vadd.f32 %v313, %v574
      %v627 = vadd.f32 %v314, %v576
      %v628 = vadd.f32 %v315, %v579
      %v629 = vadd.f32 %v316, %v581
      %v630 = vadd.f32 %v317, %v584
      %v631 = vadd.f32 %v318, %v586
      %v632 = vadd.f32 %v319, %v589
      %v633 = vadd.f32 %v320, %v591
      %v634 = vadd.f32 %v321, %v594
      %v635 = vadd.f32 %v322, %v596
      %v636 = vadd.f32 %v323, %v599
      %v637 = vadd.f32 %v324, %v601
      %v638 = vadd.f32 %v325, %v604
      %v639 = vadd.f32 %v326, %v606
      %640 = vst [vmem:[#allocation2] sm:$0xff] %v608
      %641 = vst [vmem:[#allocation2 + $0x8] sm:$0xff] %v609
      %642 = vst [vmem:[#allocation2 + $0x10] sm:$0xff] %v610
      %643 = vst [vmem:[#allocation2 + $0x18] sm:$0xff] %v611
      %644 = vst [vmem:[#allocation2 + $0x20] sm:$0xff] %v612
      %645 = vst [vmem:[#allocation2 + $0x28] sm:$0xff] %v613
      %646 = vst [vmem:[#allocation2 + $0x30] sm:$0xff] %v614
      %647 = vst [vmem:[#allocation2 + $0x38] sm:$0xff] %v615
      %648 = vst [vmem:[#allocation2 + $0x40] sm:$0xff] %v616
      %649 = vst [vmem:[#allocation2 + $0x48] sm:$0xff] %v617
      %650 = vst [vmem:[#allocation2 + $0x50] sm:$0xff] %v618
      %651 = vst [vmem:[#allocation2 + $0x58] sm:$0xff] %v619
      %652 = vst [vmem:[#allocation2 + $0x60] sm:$0xff] %v620
      %653 = vst [vmem:[#allocation2 + $0x68] sm:$0xff] %v621
      %654 = vst [vmem:[#allocation2 + $0x70] sm:$0xff] %v622
      %655 = vst [vmem:[#allocation2 + $0x78] sm:$0xff] %v623
      %656 = vst [vmem:[#allocation2 + $0x80] sm:$0xff] %v624
      %657 = vst [vmem:[#allocation2 + $0x88] sm:$0xff] %v625
      %658 = vst [vmem:[#allocation2 + $0x90] sm:$0xff] %v626
      %659 = vst [vmem:[#allocation2 + $0x98] sm:$0xff] %v627
      %660 = vst [vmem:[#allocation2 + $0xa0] sm:$0xff] %v628
      %661 = vst [vmem:[#allocation2 + $0xa8] sm:$0xff] %v629
      %662 = vst [vmem:[#allocation2 + $0xb0] sm:$0xff] %v630
      %663 = vst [vmem:[#allocation2 + $0xb8] sm:$0xff] %v631
      %664 = vst [vmem:[#allocation2 + $0xc0] sm:$0xff] %v632
      %665 = vst [vmem:[#allocation2 + $0xc8] sm:$0xff] %v633
      %666 = vst [vmem:[#allocation2 + $0xd0] sm:$0xff] %v634
      %667 = vst [vmem:[#allocation2 + $0xd8] sm:$0xff] %v635
      %668 = vst [vmem:[#allocation2 + $0xe0] sm:$0xff] %v636
      %669 = vst [vmem:[#allocation2 + $0xe8] sm:$0xff] %v637
      %670 = vst [vmem:[#allocation2 + $0xf0] sm:$0xff] %v638
      %671 = vst [vmem:[#allocation2 + $0xf8] sm:$0xff] %v639
      // Predicated region
      $region37: #{discriminator_feature_forward.15} parent=31 // pred_check
        %p672 = pneg %p259
      $region38: #{discriminator_feature_forward.15} parent=31 // pred_check_branch
        %674 = sbr.rel (%p672) target = $region40
      $region39: #{discriminator_feature_forward.15} parent=31 // pred_region
        %v675 = vld [vmem:[#allocation2] sm:$0xff]
        %v676 = vld [vmem:[#allocation2 + $0x8] sm:$0xff]
        %v677 = vld [vmem:[#allocation2 + $0x10] sm:$0xff]
        %v678 = vld [vmem:[#allocation2 + $0x18] sm:$0xff]
        %v679 = vld [vmem:[#allocation2 + $0x20] sm:$0xff]
        %v680 = vld [vmem:[#allocation2 + $0x28] sm:$0xff]
        %v681 = vld [vmem:[#allocation2 + $0x30] sm:$0xff]
        %v682 = vld [vmem:[#allocation2 + $0x38] sm:$0xff]
        %v683 = vld [vmem:[#allocation2 + $0x40] sm:$0xff]
        %v684 = vld [vmem:[#allocation2 + $0x48] sm:$0xff]
        %v685 = vld [vmem:[#allocation2 + $0x50] sm:$0xff]
        %v686 = vld [vmem:[#allocation2 + $0x58] sm:$0xff]
        %v687 = vld [vmem:[#allocation2 + $0x60] sm:$0xff]
        %v688 = vld [vmem:[#allocation2 + $0x68] sm:$0xff]
        %v689 = vld [vmem:[#allocation2 + $0x70] sm:$0xff]
        %v690 = vld [vmem:[#allocation2 + $0x78] sm:$0xff]
        %v691 = vld [vmem:[#allocation2 + $0x80] sm:$0xff]
        %v692 = vld [vmem:[#allocation2 + $0x88] sm:$0xff]
        %v693 = vld [vmem:[#allocation2 + $0x90] sm:$0xff]
        %v694 = vld [vmem:[#allocation2 + $0x98] sm:$0xff]
        %v695 = vld [vmem:[#allocation2 + $0xa0] sm:$0xff]
        %v696 = vld [vmem:[#allocation2 + $0xa8] sm:$0xff]
        %v697 = vld [vmem:[#allocation2 + $0xb0] sm:$0xff]
        %v698 = vld [vmem:[#allocation2 + $0xb8] sm:$0xff]
        %v699 = vld [vmem:[#allocation2 + $0xc0] sm:$0xff]
        %v700 = vld [vmem:[#allocation2 + $0xc8] sm:$0xff]
        %v701 = vld [vmem:[#allocation2 + $0xd0] sm:$0xff]
        %v702 = vld [vmem:[#allocation2 + $0xd8] sm:$0xff]
        %v703 = vld [vmem:[#allocation2 + $0xe0] sm:$0xff]
        %v704 = vld [vmem:[#allocation2 + $0xe8] sm:$0xff]
        %v705 = vld [vmem:[#allocation2 + $0xf0] sm:$0xff]
        %v706 = vld [vmem:[#allocation2 + $0xf8] sm:$0xff]
        %v707 = vld [vmem:[%s249] sm:$0x1]
        %v709 = vperm.slane %v707, 0
        %v711 = vadd.f32 %v675, %v709
        %v712 = vadd.f32 %v676, %v709
        %v713 = vadd.f32 %v677, %v709
        %v714 = vadd.f32 %v678, %v709
        %v715 = vadd.f32 %v679, %v709
        %v716 = vadd.f32 %v680, %v709
        %v717 = vadd.f32 %v681, %v709
        %v718 = vadd.f32 %v682, %v709
        %v719 = vadd.f32 %v683, %v709
        %v720 = vadd.f32 %v684, %v709
        %v721 = vadd.f32 %v685, %v709
        %v722 = vadd.f32 %v686, %v709
        %v723 = vadd.f32 %v687, %v709
        %v724 = vadd.f32 %v688, %v709
        %v725 = vadd.f32 %v689, %v709
        %v726 = vadd.f32 %v690, %v709
        %v727 = vadd.f32 %v691, %v709
        %v728 = vadd.f32 %v692, %v709
        %v729 = vadd.f32 %v693, %v709
        %v730 = vadd.f32 %v694, %v709
        %v731 = vadd.f32 %v695, %v709
        %v732 = vadd.f32 %v696, %v709
        %v733 = vadd.f32 %v697, %v709
        %v734 = vadd.f32 %v698, %v709
        %v735 = vadd.f32 %v699, %v709
        %v736 = vadd.f32 %v700, %v709
        %v737 = vadd.f32 %v701, %v709
        %v738 = vadd.f32 %v702, %v709
        %v739 = vadd.f32 %v703, %v709
        %v740 = vadd.f32 %v704, %v709
        %v741 = vadd.f32 %v705, %v709
        %v742 = vadd.f32 %v706, %v709
        %v743 = vsub.f32 0.0, %v711
        %v744 = vsub.f32 0.0, %v712
        %v745 = vsub.f32 0.0, %v713
        %v746 = vsub.f32 0.0, %v714
        %v747 = vsub.f32 0.0, %v715
        %v748 = vsub.f32 0.0, %v716
        %v749 = vsub.f32 0.0, %v717
        %v750 = vsub.f32 0.0, %v718
        %v751 = vsub.f32 0.0, %v719
        %v752 = vsub.f32 0.0, %v720
        %v753 = vsub.f32 0.0, %v721
        %v754 = vsub.f32 0.0, %v722
        %v755 = vsub.f32 0.0, %v723
        %v756 = vsub.f32 0.0, %v724
        %v757 = vsub.f32 0.0, %v725
        %v758 = vsub.f32 0.0, %v726
        %v759 = vsub.f32 0.0, %v727
        %v760 = vsub.f32 0.0, %v728
        %v761 = vsub.f32 0.0, %v729
        %v762 = vsub.f32 0.0, %v730
        %v763 = vsub.f32 0.0, %v731
        %v764 = vsub.f32 0.0, %v732
        %v765 = vsub.f32 0.0, %v733
        %v766 = vsub.f32 0.0, %v734
        %v767 = vsub.f32 0.0, %v735
        %v768 = vsub.f32 0.0, %v736
        %v769 = vsub.f32 0.0, %v737
        %v770 = vsub.f32 0.0, %v738
        %v771 = vsub.f32 0.0, %v739
        %v772 = vsub.f32 0.0, %v740
        %v773 = vsub.f32 0.0, %v741
        %v774 = vsub.f32 0.0, %v742
        %v775 = vmul.f32 %v743, 1.442695
        %v776 = vpow.pop %v775
        %v777 = vmul.f32 %v744, 1.442695
        %v778 = vpow.pop %v777
        %v779 = vmul.f32 %v745, 1.442695
        %v780 = vpow.pop %v779
        %v781 = vmul.f32 %v746, 1.442695
        %v782 = vpow.pop %v781
        %v783 = vmul.f32 %v747, 1.442695
        %v784 = vpow.pop %v783
        %v785 = vmul.f32 %v748, 1.442695
        %v786 = vpow.pop %v785
        %v787 = vmul.f32 %v749, 1.442695
        %v788 = vpow.pop %v787
        %v789 = vmul.f32 %v750, 1.442695
        %v790 = vpow.pop %v789
        %v791 = vmul.f32 %v751, 1.442695
        %v792 = vpow.pop %v791
        %v793 = vmul.f32 %v752, 1.442695
        %v794 = vpow.pop %v793
        %v795 = vmul.f32 %v753, 1.442695
        %v796 = vpow.pop %v795
        %v797 = vmul.f32 %v754, 1.442695
        %v798 = vpow.pop %v797
        %v799 = vmul.f32 %v755, 1.442695
        %v800 = vpow.pop %v799
        %v801 = vmul.f32 %v756, 1.442695
        %v802 = vpow.pop %v801
        %v803 = vmul.f32 %v757, 1.442695
        %v804 = vpow.pop %v803
        %v805 = vmul.f32 %v758, 1.442695
        %v806 = vpow.pop %v805
        %v807 = vmul.f32 %v759, 1.442695
        %v808 = vpow.pop %v807
        %v809 = vmul.f32 %v760, 1.442695
        %v810 = vpow.pop %v809
        %v811 = vmul.f32 %v761, 1.442695
        %v812 = vpow.pop %v811
        %v813 = vmul.f32 %v762, 1.442695
        %v814 = vpow.pop %v813
        %v815 = vmul.f32 %v763, 1.442695
        %v816 = vpow.pop %v815
        %v817 = vmul.f32 %v764, 1.442695
        %v818 = vpow.pop %v817
        %v819 = vmul.f32 %v765, 1.442695
        %v820 = vpow.pop %v819
        %v821 = vmul.f32 %v766, 1.442695
        %v822 = vpow.pop %v821
        %v823 = vmul.f32 %v767, 1.442695
        %v824 = vpow.pop %v823
        %v825 = vmul.f32 %v768, 1.442695
        %v826 = vpow.pop %v825
        %v827 = vmul.f32 %v769, 1.442695
        %v828 = vpow.pop %v827
        %v829 = vmul.f32 %v770, 1.442695
        %v830 = vpow.pop %v829
        %v831 = vmul.f32 %v771, 1.442695
        %v832 = vpow.pop %v831
        %v833 = vmul.f32 %v772, 1.442695
        %v834 = vpow.pop %v833
        %v835 = vmul.f32 %v773, 1.442695
        %v836 = vpow.pop %v835
        %v837 = vmul.f32 %v774, 1.442695
        %v838 = vpow.pop %v837
        %v839 = vadd.f32 %v776, 1.0
        %v840 = vadd.f32 %v778, 1.0
        %v841 = vadd.f32 %v780, 1.0
        %v842 = vadd.f32 %v782, 1.0
        %v843 = vadd.f32 %v784, 1.0
        %v844 = vadd.f32 %v786, 1.0
        %v845 = vadd.f32 %v788, 1.0
        %v846 = vadd.f32 %v790, 1.0
        %v847 = vadd.f32 %v792, 1.0
        %v848 = vadd.f32 %v794, 1.0
        %v849 = vadd.f32 %v796, 1.0
        %v850 = vadd.f32 %v798, 1.0
        %v851 = vadd.f32 %v800, 1.0
        %v852 = vadd.f32 %v802, 1.0
        %v853 = vadd.f32 %v804, 1.0
        %v854 = vadd.f32 %v806, 1.0
        %v855 = vadd.f32 %v808, 1.0
        %v856 = vadd.f32 %v810, 1.0
        %v857 = vadd.f32 %v812, 1.0
        %v858 = vadd.f32 %v814, 1.0
        %v859 = vadd.f32 %v816, 1.0
        %v860 = vadd.f32 %v818, 1.0
        %v861 = vadd.f32 %v820, 1.0
        %v862 = vadd.f32 %v822, 1.0
        %v863 = vadd.f32 %v824, 1.0
        %v864 = vadd.f32 %v826, 1.0
        %v865 = vadd.f32 %v828, 1.0
        %v866 = vadd.f32 %v830, 1.0
        %v867 = vadd.f32 %v832, 1.0
        %v868 = vadd.f32 %v834, 1.0
        %v869 = vadd.f32 %v836, 1.0
        %v870 = vadd.f32 %v838, 1.0
        %v871 = vrcp.pop %v839
        %v872 = vmul.f32 %v839, %v871
        %v873 = vsub.f32 1.0, %v872
        %v874 = vmul.f32 %v871, %v873
        %v875 = vadd.f32 %v871, %v874
        %vm876 = vweird.f32 %v839
        %vm877 = vweird.f32 %v871
        %vm878 = vmor %vm876, %vm877
        %v879 = vsel %vm878, %v871, %v875
        %v880 = vand.u32 2147483647, %v839
        %vm881 = vcmp.eq.f32.partialorder %v880, 8.507059e+37
        %v882 = vand.u32 %v839, 2147483648
        %v883 = vor.u32 1.1754944e-38, %v882
        %v884 = vsel %vm881, %v883, %v879
        %v885 = vmul.f32 1.0, %v884
        %v886 = vrcp.pop %v840
        %v887 = vmul.f32 %v840, %v886
        %v888 = vsub.f32 1.0, %v887
        %v889 = vmul.f32 %v886, %v888
        %v890 = vadd.f32 %v886, %v889
        %vm891 = vweird.f32 %v840
        %vm892 = vweird.f32 %v886
        %vm893 = vmor %vm891, %vm892
        %v894 = vsel %vm893, %v886, %v890
        %v895 = vand.u32 2147483647, %v840
        %vm896 = vcmp.eq.f32.partialorder %v895, 8.507059e+37
        %v897 = vand.u32 %v840, 2147483648
        %v898 = vor.u32 1.1754944e-38, %v897
        %v899 = vsel %vm896, %v898, %v894
        %v900 = vmul.f32 1.0, %v899
        %v901 = vrcp.pop %v841
        %v902 = vmul.f32 %v841, %v901
        %v903 = vsub.f32 1.0, %v902
        %v904 = vmul.f32 %v901, %v903
        %v905 = vadd.f32 %v901, %v904
        %vm906 = vweird.f32 %v841
        %vm907 = vweird.f32 %v901
        %vm908 = vmor %vm906, %vm907
        %v909 = vsel %vm908, %v901, %v905
        %v910 = vand.u32 2147483647, %v841
        %vm911 = vcmp.eq.f32.partialorder %v910, 8.507059e+37
        %v912 = vand.u32 %v841, 2147483648
        %v913 = vor.u32 1.1754944e-38, %v912
        %v914 = vsel %vm911, %v913, %v909
        %v915 = vmul.f32 1.0, %v914
        %v916 = vrcp.pop %v842
        %v917 = vmul.f32 %v842, %v916
        %v918 = vsub.f32 1.0, %v917
        %v919 = vmul.f32 %v916, %v918
        %v920 = vadd.f32 %v916, %v919
        %vm921 = vweird.f32 %v842
        %vm922 = vweird.f32 %v916
        %vm923 = vmor %vm921, %vm922
        %v924 = vsel %vm923, %v916, %v920
        %v925 = vand.u32 2147483647, %v842
        %vm926 = vcmp.eq.f32.partialorder %v925, 8.507059e+37
        %v927 = vand.u32 %v842, 2147483648
        %v928 = vor.u32 1.1754944e-38, %v927
        %v929 = vsel %vm926, %v928, %v924
        %v930 = vmul.f32 1.0, %v929
        %v931 = vrcp.pop %v843
        %v932 = vmul.f32 %v843, %v931
        %v933 = vsub.f32 1.0, %v932
        %v934 = vmul.f32 %v931, %v933
        %v935 = vadd.f32 %v931, %v934
        %vm936 = vweird.f32 %v843
        %vm937 = vweird.f32 %v931
        %vm938 = vmor %vm936, %vm937
        %v939 = vsel %vm938, %v931, %v935
        %v940 = vand.u32 2147483647, %v843
        %vm941 = vcmp.eq.f32.partialorder %v940, 8.507059e+37
        %v942 = vand.u32 %v843, 2147483648
        %v943 = vor.u32 1.1754944e-38, %v942
        %v944 = vsel %vm941, %v943, %v939
        %v945 = vmul.f32 1.0, %v944
        %v946 = vrcp.pop %v844
        %v947 = vmul.f32 %v844, %v946
        %v948 = vsub.f32 1.0, %v947
        %v949 = vmul.f32 %v946, %v948
        %v950 = vadd.f32 %v946, %v949
        %vm951 = vweird.f32 %v844
        %vm952 = vweird.f32 %v946
        %vm953 = vmor %vm951, %vm952
        %v954 = vsel %vm953, %v946, %v950
        %v955 = vand.u32 2147483647, %v844
        %vm956 = vcmp.eq.f32.partialorder %v955, 8.507059e+37
        %v957 = vand.u32 %v844, 2147483648
        %v958 = vor.u32 1.1754944e-38, %v957
        %v959 = vsel %vm956, %v958, %v954
        %v960 = vmul.f32 1.0, %v959
        %v961 = vrcp.pop %v845
        %v962 = vmul.f32 %v845, %v961
        %v963 = vsub.f32 1.0, %v962
        %v964 = vmul.f32 %v961, %v963
        %v965 = vadd.f32 %v961, %v964
        %vm966 = vweird.f32 %v845
        %vm967 = vweird.f32 %v961
        %vm968 = vmor %vm966, %vm967
        %v969 = vsel %vm968, %v961, %v965
        %v970 = vand.u32 2147483647, %v845
        %vm971 = vcmp.eq.f32.partialorder %v970, 8.507059e+37
        %v972 = vand.u32 %v845, 2147483648
        %v973 = vor.u32 1.1754944e-38, %v972
        %v974 = vsel %vm971, %v973, %v969
        %v975 = vmul.f32 1.0, %v974
        %v976 = vrcp.pop %v846
        %v977 = vmul.f32 %v846, %v976
        %v978 = vsub.f32 1.0, %v977
        %v979 = vmul.f32 %v976, %v978
        %v980 = vadd.f32 %v976, %v979
        %vm981 = vweird.f32 %v846
        %vm982 = vweird.f32 %v976
        %vm983 = vmor %vm981, %vm982
        %v984 = vsel %vm983, %v976, %v980
        %v985 = vand.u32 2147483647, %v846
        %vm986 = vcmp.eq.f32.partialorder %v985, 8.507059e+37
        %v987 = vand.u32 %v846, 2147483648
        %v988 = vor.u32 1.1754944e-38, %v987
        %v989 = vsel %vm986, %v988, %v984
        %v990 = vmul.f32 1.0, %v989
        %v991 = vrcp.pop %v847
        %v992 = vmul.f32 %v847, %v991
        %v993 = vsub.f32 1.0, %v992
        %v994 = vmul.f32 %v991, %v993
        %v995 = vadd.f32 %v991, %v994
        %vm996 = vweird.f32 %v847
        %vm997 = vweird.f32 %v991
        %vm998 = vmor %vm996, %vm997
        %v999 = vsel %vm998, %v991, %v995
        %v1000 = vand.u32 2147483647, %v847
        %vm1001 = vcmp.eq.f32.partialorder %v1000, 8.507059e+37
        %v1002 = vand.u32 %v847, 2147483648
        %v1003 = vor.u32 1.1754944e-38, %v1002
        %v1004 = vsel %vm1001, %v1003, %v999
        %v1005 = vmul.f32 1.0, %v1004
        %v1006 = vrcp.pop %v848
        %v1007 = vmul.f32 %v848, %v1006
        %v1008 = vsub.f32 1.0, %v1007
        %v1009 = vmul.f32 %v1006, %v1008
        %v1010 = vadd.f32 %v1006, %v1009
        %vm1011 = vweird.f32 %v848
        %vm1012 = vweird.f32 %v1006
        %vm1013 = vmor %vm1011, %vm1012
        %v1014 = vsel %vm1013, %v1006, %v1010
        %v1015 = vand.u32 2147483647, %v848
        %vm1016 = vcmp.eq.f32.partialorder %v1015, 8.507059e+37
        %v1017 = vand.u32 %v848, 2147483648
        %v1018 = vor.u32 1.1754944e-38, %v1017
        %v1019 = vsel %vm1016, %v1018, %v1014
        %v1020 = vmul.f32 1.0, %v1019
        %v1021 = vrcp.pop %v849
        %v1022 = vmul.f32 %v849, %v1021
        %v1023 = vsub.f32 1.0, %v1022
        %v1024 = vmul.f32 %v1021, %v1023
        %v1025 = vadd.f32 %v1021, %v1024
        %vm1026 = vweird.f32 %v849
        %vm1027 = vweird.f32 %v1021
        %vm1028 = vmor %vm1026, %vm1027
        %v1029 = vsel %vm1028, %v1021, %v1025
        %v1030 = vand.u32 2147483647, %v849
        %vm1031 = vcmp.eq.f32.partialorder %v1030, 8.507059e+37
        %v1032 = vand.u32 %v849, 2147483648
        %v1033 = vor.u32 1.1754944e-38, %v1032
        %v1034 = vsel %vm1031, %v1033, %v1029
        %v1035 = vmul.f32 1.0, %v1034
        %v1036 = vrcp.pop %v850
        %v1037 = vmul.f32 %v850, %v1036
        %v1038 = vsub.f32 1.0, %v1037
        %v1039 = vmul.f32 %v1036, %v1038
        %v1040 = vadd.f32 %v1036, %v1039
        %vm1041 = vweird.f32 %v850
        %vm1042 = vweird.f32 %v1036
        %vm1043 = vmor %vm1041, %vm1042
        %v1044 = vsel %vm1043, %v1036, %v1040
        %v1045 = vand.u32 2147483647, %v850
        %vm1046 = vcmp.eq.f32.partialorder %v1045, 8.507059e+37
        %v1047 = vand.u32 %v850, 2147483648
        %v1048 = vor.u32 1.1754944e-38, %v1047
        %v1049 = vsel %vm1046, %v1048, %v1044
        %v1050 = vmul.f32 1.0, %v1049
        %v1051 = vrcp.pop %v851
        %v1052 = vmul.f32 %v851, %v1051
        %v1053 = vsub.f32 1.0, %v1052
        %v1054 = vmul.f32 %v1051, %v1053
        %v1055 = vadd.f32 %v1051, %v1054
        %vm1056 = vweird.f32 %v851
        %vm1057 = vweird.f32 %v1051
        %vm1058 = vmor %vm1056, %vm1057
        %v1059 = vsel %vm1058, %v1051, %v1055
        %v1060 = vand.u32 2147483647, %v851
        %vm1061 = vcmp.eq.f32.partialorder %v1060, 8.507059e+37
        %v1062 = vand.u32 %v851, 2147483648
        %v1063 = vor.u32 1.1754944e-38, %v1062
        %v1064 = vsel %vm1061, %v1063, %v1059
        %v1065 = vmul.f32 1.0, %v1064
        %v1066 = vrcp.pop %v852
        %v1067 = vmul.f32 %v852, %v1066
        %v1068 = vsub.f32 1.0, %v1067
        %v1069 = vmul.f32 %v1066, %v1068
        %v1070 = vadd.f32 %v1066, %v1069
        %vm1071 = vweird.f32 %v852
        %vm1072 = vweird.f32 %v1066
        %vm1073 = vmor %vm1071, %vm1072
        %v1074 = vsel %vm1073, %v1066, %v1070
        %v1075 = vand.u32 2147483647, %v852
        %vm1076 = vcmp.eq.f32.partialorder %v1075, 8.507059e+37
        %v1077 = vand.u32 %v852, 2147483648
        %v1078 = vor.u32 1.1754944e-38, %v1077
        %v1079 = vsel %vm1076, %v1078, %v1074
        %v1080 = vmul.f32 1.0, %v1079
        %v1081 = vrcp.pop %v853
        %v1082 = vmul.f32 %v853, %v1081
        %v1083 = vsub.f32 1.0, %v1082
        %v1084 = vmul.f32 %v1081, %v1083
        %v1085 = vadd.f32 %v1081, %v1084
        %vm1086 = vweird.f32 %v853
        %vm1087 = vweird.f32 %v1081
        %vm1088 = vmor %vm1086, %vm1087
        %v1089 = vsel %vm1088, %v1081, %v1085
        %v1090 = vand.u32 2147483647, %v853
        %vm1091 = vcmp.eq.f32.partialorder %v1090, 8.507059e+37
        %v1092 = vand.u32 %v853, 2147483648
        %v1093 = vor.u32 1.1754944e-38, %v1092
        %v1094 = vsel %vm1091, %v1093, %v1089
        %v1095 = vmul.f32 1.0, %v1094
        %v1096 = vrcp.pop %v854
        %v1097 = vmul.f32 %v854, %v1096
        %v1098 = vsub.f32 1.0, %v1097
        %v1099 = vmul.f32 %v1096, %v1098
        %v1100 = vadd.f32 %v1096, %v1099
        %vm1101 = vweird.f32 %v854
        %vm1102 = vweird.f32 %v1096
        %vm1103 = vmor %vm1101, %vm1102
        %v1104 = vsel %vm1103, %v1096, %v1100
        %v1105 = vand.u32 2147483647, %v854
        %vm1106 = vcmp.eq.f32.partialorder %v1105, 8.507059e+37
        %v1107 = vand.u32 %v854, 2147483648
        %v1108 = vor.u32 1.1754944e-38, %v1107
        %v1109 = vsel %vm1106, %v1108, %v1104
        %v1110 = vmul.f32 1.0, %v1109
        %v1111 = vrcp.pop %v855
        %v1112 = vmul.f32 %v855, %v1111
        %v1113 = vsub.f32 1.0, %v1112
        %v1114 = vmul.f32 %v1111, %v1113
        %v1115 = vadd.f32 %v1111, %v1114
        %vm1116 = vweird.f32 %v855
        %vm1117 = vweird.f32 %v1111
        %vm1118 = vmor %vm1116, %vm1117
        %v1119 = vsel %vm1118, %v1111, %v1115
        %v1120 = vand.u32 2147483647, %v855
        %vm1121 = vcmp.eq.f32.partialorder %v1120, 8.507059e+37
        %v1122 = vand.u32 %v855, 2147483648
        %v1123 = vor.u32 1.1754944e-38, %v1122
        %v1124 = vsel %vm1121, %v1123, %v1119
        %v1125 = vmul.f32 1.0, %v1124
        %v1126 = vrcp.pop %v856
        %v1127 = vmul.f32 %v856, %v1126
        %v1128 = vsub.f32 1.0, %v1127
        %v1129 = vmul.f32 %v1126, %v1128
        %v1130 = vadd.f32 %v1126, %v1129
        %vm1131 = vweird.f32 %v856
        %vm1132 = vweird.f32 %v1126
        %vm1133 = vmor %vm1131, %vm1132
        %v1134 = vsel %vm1133, %v1126, %v1130
        %v1135 = vand.u32 2147483647, %v856
        %vm1136 = vcmp.eq.f32.partialorder %v1135, 8.507059e+37
        %v1137 = vand.u32 %v856, 2147483648
        %v1138 = vor.u32 1.1754944e-38, %v1137
        %v1139 = vsel %vm1136, %v1138, %v1134
        %v1140 = vmul.f32 1.0, %v1139
        %v1141 = vrcp.pop %v857
        %v1142 = vmul.f32 %v857, %v1141
        %v1143 = vsub.f32 1.0, %v1142
        %v1144 = vmul.f32 %v1141, %v1143
        %v1145 = vadd.f32 %v1141, %v1144
        %vm1146 = vweird.f32 %v857
        %vm1147 = vweird.f32 %v1141
        %vm1148 = vmor %vm1146, %vm1147
        %v1149 = vsel %vm1148, %v1141, %v1145
        %v1150 = vand.u32 2147483647, %v857
        %vm1151 = vcmp.eq.f32.partialorder %v1150, 8.507059e+37
        %v1152 = vand.u32 %v857, 2147483648
        %v1153 = vor.u32 1.1754944e-38, %v1152
        %v1154 = vsel %vm1151, %v1153, %v1149
        %v1155 = vmul.f32 1.0, %v1154
        %v1156 = vrcp.pop %v858
        %v1157 = vmul.f32 %v858, %v1156
        %v1158 = vsub.f32 1.0, %v1157
        %v1159 = vmul.f32 %v1156, %v1158
        %v1160 = vadd.f32 %v1156, %v1159
        %vm1161 = vweird.f32 %v858
        %vm1162 = vweird.f32 %v1156
        %vm1163 = vmor %vm1161, %vm1162
        %v1164 = vsel %vm1163, %v1156, %v1160
        %v1165 = vand.u32 2147483647, %v858
        %vm1166 = vcmp.eq.f32.partialorder %v1165, 8.507059e+37
        %v1167 = vand.u32 %v858, 2147483648
        %v1168 = vor.u32 1.1754944e-38, %v1167
        %v1169 = vsel %vm1166, %v1168, %v1164
        %v1170 = vmul.f32 1.0, %v1169
        %v1171 = vrcp.pop %v859
        %v1172 = vmul.f32 %v859, %v1171
        %v1173 = vsub.f32 1.0, %v1172
        %v1174 = vmul.f32 %v1171, %v1173
        %v1175 = vadd.f32 %v1171, %v1174
        %vm1176 = vweird.f32 %v859
        %vm1177 = vweird.f32 %v1171
        %vm1178 = vmor %vm1176, %vm1177
        %v1179 = vsel %vm1178, %v1171, %v1175
        %v1180 = vand.u32 2147483647, %v859
        %vm1181 = vcmp.eq.f32.partialorder %v1180, 8.507059e+37
        %v1182 = vand.u32 %v859, 2147483648
        %v1183 = vor.u32 1.1754944e-38, %v1182
        %v1184 = vsel %vm1181, %v1183, %v1179
        %v1185 = vmul.f32 1.0, %v1184
        %v1186 = vrcp.pop %v860
        %v1187 = vmul.f32 %v860, %v1186
        %v1188 = vsub.f32 1.0, %v1187
        %v1189 = vmul.f32 %v1186, %v1188
        %v1190 = vadd.f32 %v1186, %v1189
        %vm1191 = vweird.f32 %v860
        %vm1192 = vweird.f32 %v1186
        %vm1193 = vmor %vm1191, %vm1192
        %v1194 = vsel %vm1193, %v1186, %v1190
        %v1195 = vand.u32 2147483647, %v860
        %vm1196 = vcmp.eq.f32.partialorder %v1195, 8.507059e+37
        %v1197 = vand.u32 %v860, 2147483648
        %v1198 = vor.u32 1.1754944e-38, %v1197
        %v1199 = vsel %vm1196, %v1198, %v1194
        %v1200 = vmul.f32 1.0, %v1199
        %v1201 = vrcp.pop %v861
        %v1202 = vmul.f32 %v861, %v1201
        %v1203 = vsub.f32 1.0, %v1202
        %v1204 = vmul.f32 %v1201, %v1203
        %v1205 = vadd.f32 %v1201, %v1204
        %vm1206 = vweird.f32 %v861
        %vm1207 = vweird.f32 %v1201
        %vm1208 = vmor %vm1206, %vm1207
        %v1209 = vsel %vm1208, %v1201, %v1205
        %v1210 = vand.u32 2147483647, %v861
        %vm1211 = vcmp.eq.f32.partialorder %v1210, 8.507059e+37
        %v1212 = vand.u32 %v861, 2147483648
        %v1213 = vor.u32 1.1754944e-38, %v1212
        %v1214 = vsel %vm1211, %v1213, %v1209
        %v1215 = vmul.f32 1.0, %v1214
        %v1216 = vrcp.pop %v862
        %v1217 = vmul.f32 %v862, %v1216
        %v1218 = vsub.f32 1.0, %v1217
        %v1219 = vmul.f32 %v1216, %v1218
        %v1220 = vadd.f32 %v1216, %v1219
        %vm1221 = vweird.f32 %v862
        %vm1222 = vweird.f32 %v1216
        %vm1223 = vmor %vm1221, %vm1222
        %v1224 = vsel %vm1223, %v1216, %v1220
        %v1225 = vand.u32 2147483647, %v862
        %vm1226 = vcmp.eq.f32.partialorder %v1225, 8.507059e+37
        %v1227 = vand.u32 %v862, 2147483648
        %v1228 = vor.u32 1.1754944e-38, %v1227
        %v1229 = vsel %vm1226, %v1228, %v1224
        %v1230 = vmul.f32 1.0, %v1229
        %v1231 = vrcp.pop %v863
        %v1232 = vmul.f32 %v863, %v1231
        %v1233 = vsub.f32 1.0, %v1232
        %v1234 = vmul.f32 %v1231, %v1233
        %v1235 = vadd.f32 %v1231, %v1234
        %vm1236 = vweird.f32 %v863
        %vm1237 = vweird.f32 %v1231
        %vm1238 = vmor %vm1236, %vm1237
        %v1239 = vsel %vm1238, %v1231, %v1235
        %v1240 = vand.u32 2147483647, %v863
        %vm1241 = vcmp.eq.f32.partialorder %v1240, 8.507059e+37
        %v1242 = vand.u32 %v863, 2147483648
        %v1243 = vor.u32 1.1754944e-38, %v1242
        %v1244 = vsel %vm1241, %v1243, %v1239
        %v1245 = vmul.f32 1.0, %v1244
        %v1246 = vrcp.pop %v864
        %v1247 = vmul.f32 %v864, %v1246
        %v1248 = vsub.f32 1.0, %v1247
        %v1249 = vmul.f32 %v1246, %v1248
        %v1250 = vadd.f32 %v1246, %v1249
        %vm1251 = vweird.f32 %v864
        %vm1252 = vweird.f32 %v1246
        %vm1253 = vmor %vm1251, %vm1252
        %v1254 = vsel %vm1253, %v1246, %v1250
        %v1255 = vand.u32 2147483647, %v864
        %vm1256 = vcmp.eq.f32.partialorder %v1255, 8.507059e+37
        %v1257 = vand.u32 %v864, 2147483648
        %v1258 = vor.u32 1.1754944e-38, %v1257
        %v1259 = vsel %vm1256, %v1258, %v1254
        %v1260 = vmul.f32 1.0, %v1259
        %v1261 = vrcp.pop %v865
        %v1262 = vmul.f32 %v865, %v1261
        %v1263 = vsub.f32 1.0, %v1262
        %v1264 = vmul.f32 %v1261, %v1263
        %v1265 = vadd.f32 %v1261, %v1264
        %vm1266 = vweird.f32 %v865
        %vm1267 = vweird.f32 %v1261
        %vm1268 = vmor %vm1266, %vm1267
        %v1269 = vsel %vm1268, %v1261, %v1265
        %v1270 = vand.u32 2147483647, %v865
        %vm1271 = vcmp.eq.f32.partialorder %v1270, 8.507059e+37
        %v1272 = vand.u32 %v865, 2147483648
        %v1273 = vor.u32 1.1754944e-38, %v1272
        %v1274 = vsel %vm1271, %v1273, %v1269
        %v1275 = vmul.f32 1.0, %v1274
        %v1276 = vrcp.pop %v866
        %v1277 = vmul.f32 %v866, %v1276
        %v1278 = vsub.f32 1.0, %v1277
        %v1279 = vmul.f32 %v1276, %v1278
        %v1280 = vadd.f32 %v1276, %v1279
        %vm1281 = vweird.f32 %v866
        %vm1282 = vweird.f32 %v1276
        %vm1283 = vmor %vm1281, %vm1282
        %v1284 = vsel %vm1283, %v1276, %v1280
        %v1285 = vand.u32 2147483647, %v866
        %vm1286 = vcmp.eq.f32.partialorder %v1285, 8.507059e+37
        %v1287 = vand.u32 %v866, 2147483648
        %v1288 = vor.u32 1.1754944e-38, %v1287
        %v1289 = vsel %vm1286, %v1288, %v1284
        %v1290 = vmul.f32 1.0, %v1289
        %v1291 = vrcp.pop %v867
        %v1292 = vmul.f32 %v867, %v1291
        %v1293 = vsub.f32 1.0, %v1292
        %v1294 = vmul.f32 %v1291, %v1293
        %v1295 = vadd.f32 %v1291, %v1294
        %vm1296 = vweird.f32 %v867
        %vm1297 = vweird.f32 %v1291
        %vm1298 = vmor %vm1296, %vm1297
        %v1299 = vsel %vm1298, %v1291, %v1295
        %v1300 = vand.u32 2147483647, %v867
        %vm1301 = vcmp.eq.f32.partialorder %v1300, 8.507059e+37
        %v1302 = vand.u32 %v867, 2147483648
        %v1303 = vor.u32 1.1754944e-38, %v1302
        %v1304 = vsel %vm1301, %v1303, %v1299
        %v1305 = vmul.f32 1.0, %v1304
        %v1306 = vrcp.pop %v868
        %v1307 = vmul.f32 %v868, %v1306
        %v1308 = vsub.f32 1.0, %v1307
        %v1309 = vmul.f32 %v1306, %v1308
        %v1310 = vadd.f32 %v1306, %v1309
        %vm1311 = vweird.f32 %v868
        %vm1312 = vweird.f32 %v1306
        %vm1313 = vmor %vm1311, %vm1312
        %v1314 = vsel %vm1313, %v1306, %v1310
        %v1315 = vand.u32 2147483647, %v868
        %vm1316 = vcmp.eq.f32.partialorder %v1315, 8.507059e+37
        %v1317 = vand.u32 %v868, 2147483648
        %v1318 = vor.u32 1.1754944e-38, %v1317
        %v1319 = vsel %vm1316, %v1318, %v1314
        %v1320 = vmul.f32 1.0, %v1319
        %v1321 = vrcp.pop %v869
        %v1322 = vmul.f32 %v869, %v1321
        %v1323 = vsub.f32 1.0, %v1322
        %v1324 = vmul.f32 %v1321, %v1323
        %v1325 = vadd.f32 %v1321, %v1324
        %vm1326 = vweird.f32 %v869
        %vm1327 = vweird.f32 %v1321
        %vm1328 = vmor %vm1326, %vm1327
        %v1329 = vsel %vm1328, %v1321, %v1325
        %v1330 = vand.u32 2147483647, %v869
        %vm1331 = vcmp.eq.f32.partialorder %v1330, 8.507059e+37
        %v1332 = vand.u32 %v869, 2147483648
        %v1333 = vor.u32 1.1754944e-38, %v1332
        %v1334 = vsel %vm1331, %v1333, %v1329
        %v1335 = vmul.f32 1.0, %v1334
        %v1336 = vrcp.pop %v870
        %v1337 = vmul.f32 %v870, %v1336
        %v1338 = vsub.f32 1.0, %v1337
        %v1339 = vmul.f32 %v1336, %v1338
        %v1340 = vadd.f32 %v1336, %v1339
        %vm1341 = vweird.f32 %v870
        %vm1342 = vweird.f32 %v1336
        %vm1343 = vmor %vm1341, %vm1342
        %v1344 = vsel %vm1343, %v1336, %v1340
        %v1345 = vand.u32 2147483647, %v870
        %vm1346 = vcmp.eq.f32.partialorder %v1345, 8.507059e+37
        %v1347 = vand.u32 %v870, 2147483648
        %v1348 = vor.u32 1.1754944e-38, %v1347
        %v1349 = vsel %vm1346, %v1348, %v1344
        %v1350 = vmul.f32 1.0, %v1349
        %v1351 = vmul.f32 %v711, %v885
        %v1352 = vmul.f32 %v712, %v900
        %v1353 = vmul.f32 %v713, %v915
        %v1354 = vmul.f32 %v714, %v930
        %v1355 = vmul.f32 %v715, %v945
        %v1356 = vmul.f32 %v716, %v960
        %v1357 = vmul.f32 %v717, %v975
        %v1358 = vmul.f32 %v718, %v990
        %v1359 = vmul.f32 %v719, %v1005
        %v1360 = vmul.f32 %v720, %v1020
        %v1361 = vmul.f32 %v721, %v1035
        %v1362 = vmul.f32 %v722, %v1050
        %v1363 = vmul.f32 %v723, %v1065
        %v1364 = vmul.f32 %v724, %v1080
        %v1365 = vmul.f32 %v725, %v1095
        %v1366 = vmul.f32 %v726, %v1110
        %v1367 = vmul.f32 %v727, %v1125
        %v1368 = vmul.f32 %v728, %v1140
        %v1369 = vmul.f32 %v729, %v1155
        %v1370 = vmul.f32 %v730, %v1170
        %v1371 = vmul.f32 %v731, %v1185
        %v1372 = vmul.f32 %v732, %v1200
        %v1373 = vmul.f32 %v733, %v1215
        %v1374 = vmul.f32 %v734, %v1230
        %v1375 = vmul.f32 %v735, %v1245
        %v1376 = vmul.f32 %v736, %v1260
        %v1377 = vmul.f32 %v737, %v1275
        %v1378 = vmul.f32 %v738, %v1290
        %v1379 = vmul.f32 %v739, %v1305
        %v1380 = vmul.f32 %v740, %v1320
        %v1381 = vmul.f32 %v741, %v1335
        %v1382 = vmul.f32 %v742, %v1350
        %1383 = vst [vmem:[%s257] sm:$0xff] %v1351
        %1384 = vst [vmem:[%s257 + $0x8] sm:$0xff] %v1352
        %1385 = vst [vmem:[%s257 + $0x10] sm:$0xff] %v1353
        %1386 = vst [vmem:[%s257 + $0x18] sm:$0xff] %v1354
        %1387 = vst [vmem:[%s257 + $0x20] sm:$0xff] %v1355
        %1388 = vst [vmem:[%s257 + $0x28] sm:$0xff] %v1356
        %1389 = vst [vmem:[%s257 + $0x30] sm:$0xff] %v1357
        %1390 = vst [vmem:[%s257 + $0x38] sm:$0xff] %v1358
        %1391 = vst [vmem:[%s257 + $0x40] sm:$0xff] %v1359
        %1392 = vst [vmem:[%s257 + $0x48] sm:$0xff] %v1360
        %1393 = vst [vmem:[%s257 + $0x50] sm:$0xff] %v1361
        %1394 = vst [vmem:[%s257 + $0x58] sm:$0xff] %v1362
        %1395 = vst [vmem:[%s257 + $0x60] sm:$0xff] %v1363
        %1396 = vst [vmem:[%s257 + $0x68] sm:$0xff] %v1364
        %1397 = vst [vmem:[%s257 + $0x70] sm:$0xff] %v1365
        %1398 = vst [vmem:[%s257 + $0x78] sm:$0xff] %v1366
        %1399 = vst [vmem:[%s257 + $0x80] sm:$0xff] %v1367
        %1400 = vst [vmem:[%s257 + $0x88] sm:$0xff] %v1368
        %1401 = vst [vmem:[%s257 + $0x90] sm:$0xff] %v1369
        %1402 = vst [vmem:[%s257 + $0x98] sm:$0xff] %v1370
        %1403 = vst [vmem:[%s257 + $0xa0] sm:$0xff] %v1371
        %1404 = vst [vmem:[%s257 + $0xa8] sm:$0xff] %v1372
        %1405 = vst [vmem:[%s257 + $0xb0] sm:$0xff] %v1373
        %1406 = vst [vmem:[%s257 + $0xb8] sm:$0xff] %v1374
        %1407 = vst [vmem:[%s257 + $0xc0] sm:$0xff] %v1375
        %1408 = vst [vmem:[%s257 + $0xc8] sm:$0xff] %v1376
        %1409 = vst [vmem:[%s257 + $0xd0] sm:$0xff] %v1377
        %1410 = vst [vmem:[%s257 + $0xd8] sm:$0xff] %v1378
        %1411 = vst [vmem:[%s257 + $0xe0] sm:$0xff] %v1379
        %1412 = vst [vmem:[%s257 + $0xe8] sm:$0xff] %v1380
        %1413 = vst [vmem:[%s257 + $0xf0] sm:$0xff] %v1381
        %1414 = vst [vmem:[%s257 + $0xf8] sm:$0xff] %v1382
      $region40: #{discriminator_feature_forward.15} parent=31 // pred_fallthru
        _
      %s1415 = smul.u32 32, %s19
      %p1416 = scmp.lt.s32.totalorder %s1415, 63
      %s1417 = scalar_select %p1416, %s1415, 63
      %p1418 = scmp.lt.s32.totalorder %s20, 0
      %s1419 = scalar_select %p1418, %s20, 0
      %s1420 = sadd.s32 %s1419, %s1417
      %s1421 = smul.addr %s1420, 8
      %s1422 = scalar_lea.vmem %s3, %s1421
      // Predicated region
      $region41: #{discriminator_feature_forward.15} parent=31 // pred_check
        %p1423 = pneg %p135
      $region42: #{discriminator_feature_forward.15} parent=31 // pred_check_branch
        %1425 = sbr.rel (%p1423) target = $region44
      $region43: #{discriminator_feature_forward.15} parent=31 // pred_region
        %s1426 = smul.u32 32, %s19
      $region44: #{discriminator_feature_forward.15} parent=31 // pred_fallthru
        _
    $region32: #{discriminator_feature_forward.15} parent=5 // pred_fallthru
      _
    %p1427 = scmp.le.s32.totalorder 2, %s9
    // Predicated region
    $region45: #{discriminator_feature_forward.15} parent=5 // pred_check
      %p1428 = pneg %p1427
    $region46: #{discriminator_feature_forward.15} parent=5 // pred_check_branch
      %1430 = sbr.rel (%p1428) target = $region48
    $region47: #{discriminator_feature_forward.15} parent=5 // pred_region
      %s1431 = ssub.s32 %s9, 2
      // Predicated region
      $region49: #{discriminator_feature_forward.15} parent=47 // pred_check
        %p1432 = pneg %p141
      $region50: #{discriminator_feature_forward.15} parent=47 // pred_check_branch
        %1434 = sbr.rel (%p1432) target = $region52
      $region51: #{discriminator_feature_forward.15} parent=47 // pred_region
        %s1435 = smul.u32 32, %s22
        %p1436 = scmp.lt.s32.totalorder %s1435, 63
        %s1437 = scalar_select %p1436, %s1435, 63
        %p1438 = scmp.lt.s32.totalorder %s23, 0
        %s1439 = scalar_select %p1438, %s23, 0
        %s1440 = sadd.s32 %s1439, %s1437
        %s1441 = smul.addr %s1440, 8
        %s1442 = scalar_lea.vmem %s3, %s1441
      $region52: #{discriminator_feature_forward.15} parent=47 // pred_fallthru
        _
    $region48: #{discriminator_feature_forward.15} parent=5 // pred_fallthru
      _
  $region6: #{discriminator_feature_forward.15} parent=0 // loop_footer
    %s13 = sadd.s32 1, %s9
  $region7: #{discriminator_feature_forward.15} parent=0 // loop_footer_branch
    %8 = sbr.rel target = $region3
  $region8: #{discriminator_feature_forward.15} parent=0 // loop_exit
    _

// kernel: discriminator_feature_forward.16
$region0: #{discriminator_feature_forward.16}
  #allocation0 [shape = 'u32[]', space=smem, size = 0x4, offset = 0x4, fixed_abs, tag = 'smem constant byte address 0x4 - core index']
  #allocation1 [shape = 'u32[72,128]{1,0:T(1,128)}', space=vmem, size = 0x9000, scoped, tag = 'internal scratch']
  #allocation2 [shape = 'f32[128,128]{1,0:T(8,128)}', space=vmem, size = 0x10000, scoped, tag = 'scratch operand']
  %s0 = inlined_call_operand.vmem [shape: bf16[128,640], index: 0, kind: input, shape index: {}]
  %s1 = inlined_call_operand.vmem [shape: bf16[640,128], index: 1, kind: input, shape index: {}]
  %s2 = inlined_call_operand.vmem [shape: f32[1,128], index: 2, kind: input, shape index: {}]
  %s3 = inlined_call_operand.vmem [shape: f32[128,128], index: 3, kind: output, shape index: {0}]
  %s4 = inlined_call_operand.vmem [shape: f32[1,2,128], index: 4, kind: output, shape index: {1}]
  %5 = xla_tuple %s3, %s4
  %s6 = sld [smem:[#allocation0]]
  $region102: #{discriminator_feature_forward.16} parent=0
    _
  %s8 = ssub.s32 1, %s6
  %s9 = scalar_select 0, %s8, %s6
  $region1: #{discriminator_feature_forward.16} parent=0
    #allocation3 [shape = 'u8[65536]{0}', space=vmem, size = 0x10000, scoped, tag = 'input window, operand 0']
    loop: start=0, step=1, limit=7
    $region2: #{discriminator_feature_forward.16} parent=1 // loop_pre_header
      _
    $region3: #{discriminator_feature_forward.16} parent=1 // loop_header
      %s11 = sphi 0, %s15
      %p12 = scmp.ge.s32.totalorder %s11, 7
      %s18 = sphi 0, %s37
      %s19 = sphi 0, %s33
      %s20 = sphi 0, %s29
      %s21 = sphi 0, %s18
      %s22 = sphi 0, %s19
      %s23 = sphi 0, %s20
      %s24 = sphi 0, %s21
      %s25 = sphi 0, %s22
      %s26 = sphi 0, %s23
      %s42 = sphi 0, %s44
      %s45 = sphi 0, %s42
      %s46 = sphi 0, %s45
      %s62 = sphi 0, %s46
      %s70 = sphi 0, %s72
      %s73 = sphi 0, %s70
      %s74 = sphi 0, %s73
      %s90 = sphi 0, %s74
      %s96 = sphi 0, %s98
      %s99 = sphi 0, %s96
      %s100 = sphi 0, %s99
      %s116 = sphi 0, %s100
      %s124 = sphi 0, %s126
      %s127 = sphi 0, %s124
      %s128 = sphi 0, %s127
      %s144 = sphi 0, %s128
      %s152 = sphi 0, %s154
      %s155 = sphi 0, %s152
      %s156 = sphi 0, %s155
      %s172 = sphi 0, %s156
    $region4: #{discriminator_feature_forward.16} parent=1 // loop_header_branch
      %14 = sbr.rel (%p12) target = $region8
    $region5: #{discriminator_feature_forward.16} parent=1 // loop_body
      %s16 = ssub.s32 %s11, 1
      %s17 = ssub.s32 %s11, 2
      %s27 = sadd.s32 1, %s20
      %p28 = scmp.ge.s32.totalorder %s27, 5
      %s29 = scalar_select %p28, 0, %s27
      %s30 = sadd.s32 1, %s19
      %s31 = scalar_select %p28, %s30, %s19
      %p32 = scmp.ge.s32.totalorder %s31, 1
      %s33 = scalar_select %p32, 0, %s31
      %s34 = sadd.s32 1, %s18
      %s35 = scalar_select %p32, %s34, %s18
      %p36 = scmp.ge.s32.totalorder %s35, 1
      %s37 = scalar_select %p36, 0, %s35
      %s38 = ssub.s32 %s18, %s37
      %s39 = ssub.s32 %s20, %s29
      %s40 = sor.u32 %s38, %s39
      %p41 = scmp.eq.s32.totalorder %s40, 0
      %s43 = sadd.s32 %s42, 1
      %s44 = scalar_select %p41, %s42, %s43
      %p47 = pneg %p41
      %p48 = scmp.eq.s32.totalorder %s11, 4
      %p49 = por %p47, %p48
      %p50 = scmp.ne.s32.totalorder %s42, %s45
      %p51 = scmp.eq.s32.totalorder %s11, 0
      %p52 = por %p50, %p51
      %p53 = scmp.ne.s32.totalorder %s42, %s45
      %p54 = scmp.eq.s32.totalorder %s16, 4
      %p55 = por %p53, %p54
      %p56 = scmp.ne.s32.totalorder %s45, %s46
      %p57 = scmp.eq.s32.totalorder %s16, 0
      %p58 = por %p56, %p57
      %p59 = scmp.ne.s32.totalorder %s45, %s46
      %p60 = scmp.eq.s32.totalorder %s17, 4
      %p61 = por %p59, %p60
      %p63 = scmp.ne.s32.totalorder %s46, %s62
      %p64 = scmp.eq.s32.totalorder %s17, 0
      %p65 = por %p63, %p64
      %s66 = ssub.s32 %s20, %s29
      %s67 = ssub.s32 %s19, %s33
      %s68 = sor.u32 %s66, %s67
      %p69 = scmp.eq.s32.totalorder %s68, 0
      %s71 = sadd.s32 %s70, 1
      %s72 = scalar_select %p69, %s70, %s71
      %p75 = pneg %p69
      %p76 = scmp.eq.s32.totalorder %s11, 4
      %p77 = por %p75, %p76
      %p78 = scmp.ne.s32.totalorder %s70, %s73
      %p79 = scmp.eq.s32.totalorder %s11, 0
      %p80 = por %p78, %p79
      %p81 = scmp.ne.s32.totalorder %s70, %s73
      %p82 = scmp.eq.s32.totalorder %s16, 4
      %p83 = por %p81, %p82
      %p84 = scmp.ne.s32.totalorder %s73, %s74
      %p85 = scmp.eq.s32.totalorder %s16, 0
      %p86 = por %p84, %p85
      %p87 = scmp.ne.s32.totalorder %s73, %s74
      %p88 = scmp.eq.s32.totalorder %s17, 4
      %p89 = por %p87, %p88
      %p91 = scmp.ne.s32.totalorder %s74, %s90
      %p92 = scmp.eq.s32.totalorder %s17, 0
      %p93 = por %p91, %p92
      %s94 = ssub.s32 %s19, %s33
      %p95 = scmp.eq.s32.totalorder %s94, 0
      %s97 = sadd.s32 %s96, 1
      %s98 = scalar_select %p95, %s96, %s97
      %p101 = pneg %p95
      %p102 = scmp.eq.s32.totalorder %s11, 4
      %p103 = por %p101, %p102
      %p104 = scmp.ne.s32.totalorder %s96, %s99
      %p105 = scmp.eq.s32.totalorder %s11, 0
      %p106 = por %p104, %p105
      %p107 = scmp.ne.s32.totalorder %s96, %s99
      %p108 = scmp.eq.s32.totalorder %s16, 4
      %p109 = por %p107, %p108
      %p110 = scmp.ne.s32.totalorder %s99, %s100
      %p111 = scmp.eq.s32.totalorder %s16, 0
      %p112 = por %p110, %p111
      %p113 = scmp.ne.s32.totalorder %s99, %s100
      %p114 = scmp.eq.s32.totalorder %s17, 4
      %p115 = por %p113, %p114
      %p117 = scmp.ne.s32.totalorder %s100, %s116
      %p118 = scmp.eq.s32.totalorder %s17, 0
      %p119 = por %p117, %p118
      %s120 = ssub.s32 %s18, %s37
      %s121 = ssub.s32 %s19, %s33
      %s122 = sor.u32 %s120, %s121
      %p123 = scmp.eq.s32.totalorder %s122, 0
      %s125 = sadd.s32 %s124, 1
      %s126 = scalar_select %p123, %s124, %s125
      %p129 = pneg %p123
      %p130 = scmp.eq.s32.totalorder %s11, 4
      %p131 = por %p129, %p130
      %p132 = scmp.ne.s32.totalorder %s124, %s127
      %p133 = scmp.eq.s32.totalorder %s11, 0
      %p134 = por %p132, %p133
      %p135 = scmp.ne.s32.totalorder %s124, %s127
      %p136 = scmp.eq.s32.totalorder %s16, 4
      %p137 = por %p135, %p136
      %p138 = scmp.ne.s32.totalorder %s127, %s128
      %p139 = scmp.eq.s32.totalorder %s16, 0
      %p140 = por %p138, %p139
      %p141 = scmp.ne.s32.totalorder %s127, %s128
      %p142 = scmp.eq.s32.totalorder %s17, 4
      %p143 = por %p141, %p142
      %p145 = scmp.ne.s32.totalorder %s128, %s144
      %p146 = scmp.eq.s32.totalorder %s17, 0
      %p147 = por %p145, %p146
      %s148 = ssub.s32 %s18, %s37
      %s149 = ssub.s32 %s19, %s33
      %s150 = sor.u32 %s148, %s149
      %p151 = scmp.eq.s32.totalorder %s150, 0
      %s153 = sadd.s32 %s152, 1
      %s154 = scalar_select %p151, %s152, %s153
      %p157 = pneg %p151
      %p158 = scmp.eq.s32.totalorder %s11, 4
      %p159 = por %p157, %p158
      %p160 = scmp.ne.s32.totalorder %s152, %s155
      %p161 = scmp.eq.s32.totalorder %s11, 0
      %p162 = por %p160, %p161
      %p163 = scmp.ne.s32.totalorder %s152, %s155
      %p164 = scmp.eq.s32.totalorder %s16, 4
      %p165 = por %p163, %p164
      %p166 = scmp.ne.s32.totalorder %s155, %s156
      %p167 = scmp.eq.s32.totalorder %s16, 0
      %p168 = por %p166, %p167
      %p169 = scmp.ne.s32.totalorder %s155, %s156
      %p170 = scmp.eq.s32.totalorder %s17, 4
      %p171 = por %p169, %p170
      %p173 = scmp.ne.s32.totalorder %s156, %s172
      %p174 = scmp.eq.s32.totalorder %s17, 0
      %p175 = por %p173, %p174
      %p176 = scmp.le.s32.totalorder 1, %s11
      %p177 = scmp.lt.s32.totalorder %s11, 6
      %p178 = pnand %p176, %p177
      %p179 = pneg %p178
      // Predicated region
      $region9: #{discriminator_feature_forward.16} parent=5 // pred_check
        _
      $region10: #{discriminator_feature_forward.16} parent=5 // pred_check_branch
        %181 = sbr.rel (%p178) target = $region12
      $region11: #{discriminator_feature_forward.16} parent=5 // pred_region
        %s182 = ssub.s32 %s11, 1
        // Predicated region
        $region13: #{discriminator_feature_forward.16} parent=11 // pred_check
          %p183 = pneg %p112
        $region14: #{discriminator_feature_forward.16} parent=11 // pred_check_branch
          %185 = sbr.rel (%p183) target = $region16
        $region15: #{discriminator_feature_forward.16} parent=11 // pred_region
          %p186 = scmp.lt.s32.totalorder %s22, 0
          %s187 = scalar_select %p186, %s22, 0
          %s188 = scalar_lea.vmem %s2, %s187
        $region16: #{discriminator_feature_forward.16} parent=11 // pred_fallthru
          _
      $region12: #{discriminator_feature_forward.16} parent=5 // pred_fallthru
        _
      %p189 = scmp.lt.s32.totalorder %s11, 5
      // Predicated region
      $region17: #{discriminator_feature_forward.16} parent=5 // pred_check
        %p190 = pneg %p189
      $region18: #{discriminator_feature_forward.16} parent=5 // pred_check_branch
        %192 = sbr.rel (%p190) target = $region20
      $region19: #{discriminator_feature_forward.16} parent=5 // pred_region
        // Predicated region
        $region21: #{discriminator_feature_forward.16} parent=19 // pred_check
          %p193 = pneg %p52
        $region22: #{discriminator_feature_forward.16} parent=19 // pred_check_branch
          %195 = sbr.rel (%p193) target = $region24
        $region23: #{discriminator_feature_forward.16} parent=19 // pred_region
          %s196 = sand.u32 %s42, 1
          %s197 = sand.u32 %s42, 1
          %s198 = smul.addr %s197, 64
          %s199 = scalar_lea.vmem [#allocation3], %s198
          %s200 = smul.u32 16, %s18
          %s201 = smul.addr %s200, 5
          %s202 = sadd.s32 %s20, %s201
          %s203 = smul.addr %s202, 4
          %s204 = scalar_lea.vmem %s0, %s203
          // Predicated region
          $region25: #{discriminator_feature_forward.16} parent=23 // pred_check
            _
          $region26: #{discriminator_feature_forward.16} parent=23 // pred_check_branch
            %206 = sbr.rel (0) target = $region28
          $region27: #{discriminator_feature_forward.16} parent=23 // pred_region
            // Predicated region
            $region29: #{discriminator_feature_forward.16} parent=27 // pred_check
              _
            $region30: #{discriminator_feature_forward.16} parent=27 // pred_check_branch
              %208 = sbr.rel target = $region32
            $region31: #{discriminator_feature_forward.16} parent=27 // pred_region
              // Predicated region
              $region44: #{discriminator_feature_forward.16} parent=31 // pred_check
                _
              $region45: #{discriminator_feature_forward.16} parent=31 // pred_check_branch
                %254 = sbr.rel (0) target = $region47
              $region46: #{discriminator_feature_forward.16} parent=31 // pred_region
                loop: start=0, step=1, limit=1
                $region48: #{discriminator_feature_forward.16} parent=46 // loop_pre_header
                  _
                $region49: #{discriminator_feature_forward.16} parent=46 // loop_header
                  %s256 = sphi 0, %s260
                  %p257 = scmp.ge.s32.totalorder %s256, 1
                  %s261 = sphi %s204, %s204
                  %s262 = sphi %s199, %s199
                $region50: #{discriminator_feature_forward.16} parent=46 // loop_header_branch
                  %259 = sbr.rel (%p257) target = $region54
                $region51: #{discriminator_feature_forward.16} parent=46 // loop_body
                  _
                $region52: #{discriminator_feature_forward.16} parent=46 // loop_footer
                  %s260 = sadd.s32 1, %s256
                $region53: #{discriminator_feature_forward.16} parent=46 // loop_footer_branch
                  %255 = sbr.rel target = $region49
                $region54: #{discriminator_feature_forward.16} parent=46 // loop_exit
                  _
                %s264 = ssub.s32 16, 1
                loop: start=0, step=1, limit=1
                $region55: #{discriminator_feature_forward.16} parent=46 // loop_pre_header
                  _
                $region56: #{discriminator_feature_forward.16} parent=46 // loop_header
                  %s266 = sphi 0, %s270
                  %p267 = scmp.ge.s32.totalorder %s266, 1
                  %s271 = sphi %s204, %s204
                  %s272 = sphi %s199, %s199
                $region57: #{discriminator_feature_forward.16} parent=46 // loop_header_branch
                  %269 = sbr.rel (%p267) target = $region61
                $region58: #{discriminator_feature_forward.16} parent=46 // loop_body
                  %v273 = vld [vmem:[%s271] sm:%s264]
                  %274 = vst [vmem:[%s272] sm:%s264] %v273
                  %v275 = vld [vmem:[%s271 + $0x14] sm:%s264]
                  %276 = vst [vmem:[%s272 + $0x4] sm:%s264] %v275
                  %v277 = vld [vmem:[%s271 + $0x28] sm:%s264]
                  %278 = vst [vmem:[%s272 + $0x8] sm:%s264] %v277
                  %v279 = vld [vmem:[%s271 + $0x3c] sm:%s264]
                  %280 = vst [vmem:[%s272 + $0xc] sm:%s264] %v279
                  %v281 = vld [vmem:[%s271 + $0x50] sm:%s264]
                  %282 = vst [vmem:[%s272 + $0x10] sm:%s264] %v281
                  %v283 = vld [vmem:[%s271 + $0x64] sm:%s264]
                  %284 = vst [vmem:[%s272 + $0x14] sm:%s264] %v283
                  %v285 = vld [vmem:[%s271 + $0x78] sm:%s264]
                  %286 = vst [vmem:[%s272 + $0x18] sm:%s264] %v285
                  %v287 = vld [vmem:[%s271 + $0x8c] sm:%s264]
                  %288 = vst [vmem:[%s272 + $0x1c] sm:%s264] %v287
                  %v289 = vld [vmem:[%s271 + $0xa0] sm:%s264]
                  %290 = vst [vmem:[%s272 + $0x20] sm:%s264] %v289
                  %v291 = vld [vmem:[%s271 + $0xb4] sm:%s264]
                  %292 = vst [vmem:[%s272 + $0x24] sm:%s264] %v291
                  %v293 = vld [vmem:[%s271 + $0xc8] sm:%s264]
                  %294 = vst [vmem:[%s272 + $0x28] sm:%s264] %v293
                  %v295 = vld [vmem:[%s271 + $0xdc] sm:%s264]
                  %296 = vst [vmem:[%s272 + $0x2c] sm:%s264] %v295
                  %v297 = vld [vmem:[%s271 + $0xf0] sm:%s264]
                  %298 = vst [vmem:[%s272 + $0x30] sm:%s264] %v297
                  %v299 = vld [vmem:[%s271 + $0x104] sm:%s264]
                  %300 = vst [vmem:[%s272 + $0x34] sm:%s264] %v299
                  %v301 = vld [vmem:[%s271 + $0x118] sm:%s264]
                  %302 = vst [vmem:[%s272 + $0x38] sm:%s264] %v301
                  %v303 = vld [vmem:[%s271 + $0x12c] sm:%s264]
                  %304 = vst [vmem:[%s272 + $0x3c] sm:%s264] %v303
                $region59: #{discriminator_feature_forward.16} parent=46 // loop_footer
                  %s270 = sadd.s32 1, %s266
                $region60: #{discriminator_feature_forward.16} parent=46 // loop_footer_branch
                  %265 = sbr.rel target = $region56
                $region61: #{discriminator_feature_forward.16} parent=46 // loop_exit
                  _
              $region47: #{discriminator_feature_forward.16} parent=31 // pred_fallthru
                _
            $region32: #{discriminator_feature_forward.16} parent=27 // pred_fallthru
              _
            // Predicated region
            $region33: #{discriminator_feature_forward.16} parent=27 // pred_check
              _
            $region34: #{discriminator_feature_forward.16} parent=27 // pred_check_branch
              %210 = sbr.rel (0) target = $region36
            $region35: #{discriminator_feature_forward.16} parent=27 // pred_region
              %s212 = ssub.s32 16, 1
              loop: start=0, step=1, limit=1
              $region37: #{discriminator_feature_forward.16} parent=35 // loop_pre_header
                _
              $region38: #{discriminator_feature_forward.16} parent=35 // loop_header
                %s214 = sphi 0, %s218
                %p215 = scmp.ge.s32.totalorder %s214, 1
                %s219 = sphi %s204, %s204
                %s220 = sphi %s199, %s199
              $region39: #{discriminator_feature_forward.16} parent=35 // loop_header_branch
                %217 = sbr.rel (%p215) target = $region43
              $region40: #{discriminator_feature_forward.16} parent=35 // loop_body
                %v221 = vld [vmem:[%s219] sm:%s212]
                %222 = vst [vmem:[%s220] sm:%s212] %v221
                %v223 = vld [vmem:[%s219 + $0x14] sm:%s212]
                %224 = vst [vmem:[%s220 + $0x4] sm:%s212] %v223
                %v225 = vld [vmem:[%s219 + $0x28] sm:%s212]
                %226 = vst [vmem:[%s220 + $0x8] sm:%s212] %v225
                %v227 = vld [vmem:[%s219 + $0x3c] sm:%s212]
                %228 = vst [vmem:[%s220 + $0xc] sm:%s212] %v227
                %v229 = vld [vmem:[%s219 + $0x50] sm:%s212]
                %230 = vst [vmem:[%s220 + $0x10] sm:%s212] %v229
                %v231 = vld [vmem:[%s219 + $0x64] sm:%s212]
                %232 = vst [vmem:[%s220 + $0x14] sm:%s212] %v231
                %v233 = vld [vmem:[%s219 + $0x78] sm:%s212]
                %234 = vst [vmem:[%s220 + $0x18] sm:%s212] %v233
                %v235 = vld [vmem:[%s219 + $0x8c] sm:%s212]
                %236 = vst [vmem:[%s220 + $0x1c] sm:%s212] %v235
                %v237 = vld [vmem:[%s219 + $0xa0] sm:%s212]
                %238 = vst [vmem:[%s220 + $0x20] sm:%s212] %v237
                %v239 = vld [vmem:[%s219 + $0xb4] sm:%s212]
                %240 = vst [vmem:[%s220 + $0x24] sm:%s212] %v239
                %v241 = vld [vmem:[%s219 + $0xc8] sm:%s212]
                %242 = vst [vmem:[%s220 + $0x28] sm:%s212] %v241
                %v243 = vld [vmem:[%s219 + $0xdc] sm:%s212]
                %244 = vst [vmem:[%s220 + $0x2c] sm:%s212] %v243
                %v245 = vld [vmem:[%s219 + $0xf0] sm:%s212]
                %246 = vst [vmem:[%s220 + $0x30] sm:%s212] %v245
                %v247 = vld [vmem:[%s219 + $0x104] sm:%s212]
                %248 = vst [vmem:[%s220 + $0x34] sm:%s212] %v247
                %v249 = vld [vmem:[%s219 + $0x118] sm:%s212]
                %250 = vst [vmem:[%s220 + $0x38] sm:%s212] %v249
                %v251 = vld [vmem:[%s219 + $0x12c] sm:%s212]
                %252 = vst [vmem:[%s220 + $0x3c] sm:%s212] %v251
              $region41: #{discriminator_feature_forward.16} parent=35 // loop_footer
                %s218 = sadd.s32 1, %s214
              $region42: #{discriminator_feature_forward.16} parent=35 // loop_footer_branch
                %213 = sbr.rel target = $region38
              $region43: #{discriminator_feature_forward.16} parent=35 // loop_exit
                _
            $region36: #{discriminator_feature_forward.16} parent=27 // pred_fallthru
              _
          $region28: #{discriminator_feature_forward.16} parent=23 // pred_fallthru
            _
          %305 = vnop
        $region24: #{discriminator_feature_forward.16} parent=19 // pred_fallthru
          _
        // Predicated region
        $region62: #{discriminator_feature_forward.16} parent=19 // pred_check
          %p306 = pneg %p80
        $region63: #{discriminator_feature_forward.16} parent=19 // pred_check_branch
          %308 = sbr.rel (%p306) target = $region65
        $region64: #{discriminator_feature_forward.16} parent=19 // pred_region
          %s309 = smul.u32 16, %s20
          %p310 = scmp.lt.s32.totalorder %s309, 79
          %s311 = scalar_select %p310, %s309, 79
          %p312 = scmp.lt.s32.totalorder %s19, 0
          %s313 = scalar_select %p312, %s19, 0
          %s314 = sadd.s32 %s313, %s311
          %s315 = smul.addr %s314, 4
          %s316 = scalar_lea.vmem %s1, %s315
          %s317 = smul.u32 16, %s20
        $region65: #{discriminator_feature_forward.16} parent=19 // pred_fallthru
          _
      $region20: #{discriminator_feature_forward.16} parent=5 // pred_fallthru
        _
      %p318 = scmp.le.s32.totalorder 1, %s11
      %p319 = scmp.lt.s32.totalorder %s11, 6
      %p320 = pnand %p318, %p319
      %p321 = pneg %p320
      // Predicated region
      $region66: #{discriminator_feature_forward.16} parent=5 // pred_check
        _
      $region67: #{discriminator_feature_forward.16} parent=5 // pred_check_branch
        %323 = sbr.rel (%p320) target = $region69
      $region68: #{discriminator_feature_forward.16} parent=5 // pred_region
        %s324 = ssub.s32 %s11, 1
        %s325 = sand.u32 %s45, 1
        %s326 = sand.u32 %s45, 1
        %s327 = smul.addr %s326, 64
        %s328 = scalar_lea.vmem [#allocation3], %s327
        // Predicated region
        $region70: #{discriminator_feature_forward.16} parent=68 // pred_check
          %p329 = pneg %p58
        $region71: #{discriminator_feature_forward.16} parent=68 // pred_check_branch
          %331 = sbr.rel (%p329) target = $region73
        $region72: #{discriminator_feature_forward.16} parent=68 // pred_region
          _
        $region73: #{discriminator_feature_forward.16} parent=68 // pred_fallthru
          _
        %s332 = sand.u32 %s45, 1
        %s333 = sand.u32 %s45, 1
        %s334 = smul.addr %s333, 64
        %s335 = scalar_lea.vmem [#allocation3], %s334
        %p336 = pneg %p58
        %p337 = pneg %p55
        %s338 = smul.u32 16, %s23
        %p339 = scmp.lt.s32.totalorder %s338, 79
        %s340 = scalar_select %p339, %s338, 79
        %p341 = scmp.lt.s32.totalorder %s22, 0
        %s342 = scalar_select %p341, %s22, 0
        %s343 = sadd.s32 %s342, %s340
        %s344 = smul.addr %s343, 4
        %s345 = scalar_lea.vmem %s1, %s344
        %p346 = pneg %p86
        %p347 = pneg %p83
        %p348 = scmp.lt.s32.totalorder %s22, 0
        %s349 = scalar_select %p348, %s22, 0
        %s350 = scalar_lea.vmem %s2, %s349
        %p351 = pneg %p112
        %p352 = pneg %p109
        %p353 = pneg %p140
        %p354 = pneg %p137
        %s355 = smul.u32 16, %s21
        %p356 = scmp.lt.s32.totalorder %s355, 15
        %s357 = scalar_select %p356, %s355, 15
        %p358 = scmp.lt.s32.totalorder %s22, 0
        %s359 = scalar_select %p358, %s22, 0
        %s360 = sadd.s32 %s359, %s357
        %s361 = smul.addr %s360, 8
        %s362 = scalar_lea.vmem %s3, %s361
        %p363 = pneg %p168
        %p364 = pneg %p165
        %p365 = scmp.lt.s32.totalorder %s21, 0
        %s366 = scalar_select %p365, %s21, 0
        %p367 = scmp.lt.s32.totalorder %s22, 0
        %s368 = scalar_select %p367, %s22, 0
        %s369 = sadd.s32 %s368, %s366
        %s370 = smul.addr %s369, 2
        %s371 = scalar_lea.vmem %s4, %s370
        %s372 = smul.u32 16, %s21
        %s373 = smul.u32 16, %s23
        %p374 = scmp.lt.s32.totalorder %s373, 79
        %s375 = scalar_select %p374, %s373, 79
        %p376 = scmp.lt.s32.totalorder %s22, 0
        %s377 = scalar_select %p376, %s22, 0
        %s378 = sadd.s32 %s377, %s375
        %s379 = smul.addr %s378, 4
        %s380 = scalar_lea.vmem %s1, %s379
        %s381 = smul.u32 16, %s23
        %p382 = scmp.lt.s32.totalorder %s22, 0
        %s383 = scalar_select %p382, %s22, 0
        %s384 = scalar_lea.vmem %s2, %s383
        %s385 = smul.u32 16, %s21
        %p386 = scmp.lt.s32.totalorder %s385, 15
        %s387 = scalar_select %p386, %s385, 15
        %p388 = scmp.lt.s32.totalorder %s22, 0
        %s389 = scalar_select %p388, %s22, 0
        %s390 = sadd.s32 %s389, %s387
        %s391 = smul.addr %s390, 8
        %s392 = scalar_lea.vmem %s3, %s391
        %s393 = smul.u32 16, %s21
        %p394 = scmp.lt.s32.totalorder %s21, 0
        %s395 = scalar_select %p394, %s21, 0
        %p396 = scmp.lt.s32.totalorder %s22, 0
        %s397 = scalar_select %p396, %s22, 0
        %s398 = sadd.s32 %s397, %s395
        %s399 = smul.addr %s398, 2
        %s400 = scalar_lea.vmem %s4, %s399
        %p401 = scmp.eq.s32.totalorder %s23, 0
        // Predicated region
        $region74: #{discriminator_feature_forward.16} parent=68 // pred_check
          %p402 = pneg %p401
        $region75: #{discriminator_feature_forward.16} parent=68 // pred_check_branch
          %404 = sbr.rel (%p402) target = $region77
        $region76: #{discriminator_feature_forward.16} parent=68 // pred_region
          %405 = vst [vmem:[#allocation2] sm:$0xff] 0.0
          %406 = vst [vmem:[#allocation2 + $0x8] sm:$0xff] 0.0
          %407 = vst [vmem:[#allocation2 + $0x10] sm:$0xff] 0.0
          %408 = vst [vmem:[#allocation2 + $0x18] sm:$0xff] 0.0
          %409 = vst [vmem:[#allocation2 + $0x20] sm:$0xff] 0.0
          %410 = vst [vmem:[#allocation2 + $0x28] sm:$0xff] 0.0
          %411 = vst [vmem:[#allocation2 + $0x30] sm:$0xff] 0.0
          %412 = vst [vmem:[#allocation2 + $0x38] sm:$0xff] 0.0
          %413 = vst [vmem:[#allocation2 + $0x40] sm:$0xff] 0.0
          %414 = vst [vmem:[#allocation2 + $0x48] sm:$0xff] 0.0
          %415 = vst [vmem:[#allocation2 + $0x50] sm:$0xff] 0.0
          %416 = vst [vmem:[#allocation2 + $0x58] sm:$0xff] 0.0
          %417 = vst [vmem:[#allocation2 + $0x60] sm:$0xff] 0.0
          %418 = vst [vmem:[#allocation2 + $0x68] sm:$0xff] 0.0
          %419 = vst [vmem:[#allocation2 + $0x70] sm:$0xff] 0.0
          %420 = vst [vmem:[#allocation2 + $0x78] sm:$0xff] 0.0
        $region77: #{discriminator_feature_forward.16} parent=68 // pred_fallthru
          _
        %v421 = vld [vmem:[#allocation2] sm:$0xff]
        %v422 = vld [vmem:[#allocation2 + $0x8] sm:$0xff]
        %v423 = vld [vmem:[#allocation2 + $0x10] sm:$0xff]
        %v424 = vld [vmem:[#allocation2 + $0x18] sm:$0xff]
        %v425 = vld [vmem:[#allocation2 + $0x20] sm:$0xff]
        %v426 = vld [vmem:[#allocation2 + $0x28] sm:$0xff]
        %v427 = vld [vmem:[#allocation2 + $0x30] sm:$0xff]
        %v428 = vld [vmem:[#allocation2 + $0x38] sm:$0xff]
        %v429 = vld [vmem:[#allocation2 + $0x40] sm:$0xff]
        %v430 = vld [vmem:[#allocation2 + $0x48] sm:$0xff]
        %v431 = vld [vmem:[#allocation2 + $0x50] sm:$0xff]
        %v432 = vld [vmem:[#allocation2 + $0x58] sm:$0xff]
        %v433 = vld [vmem:[#allocation2 + $0x60] sm:$0xff]
        %v434 = vld [vmem:[#allocation2 + $0x68] sm:$0xff]
        %v435 = vld [vmem:[#allocation2 + $0x70] sm:$0xff]
        %v436 = vld [vmem:[#allocation2 + $0x78] sm:$0xff]
        %v437 = vld [vmem:[%s328] sm:$0xf]
        %v438 = vld [vmem:[%s328 + $0x4] sm:$0xf]
        %v439 = vld [vmem:[%s328 + $0x8] sm:$0xf]
        %v440 = vld [vmem:[%s328 + $0xc] sm:$0xf]
        %v441 = vld [vmem:[%s328 + $0x10] sm:$0xf]
        %v442 = vld [vmem:[%s328 + $0x14] sm:$0xf]
        %v443 = vld [vmem:[%s328 + $0x18] sm:$0xf]
        %v444 = vld [vmem:[%s328 + $0x1c] sm:$0xf]
        %v445 = vld [vmem:[%s328 + $0x20] sm:$0xf]
        %v446 = vld [vmem:[%s328 + $0x24] sm:$0xf]
        %v447 = vld [vmem:[%s328 + $0x28] sm:$0xf]
        %v448 = vld [vmem:[%s328 + $0x2c] sm:$0xf]
        %v449 = vld [vmem:[%s328 + $0x30] sm:$0xf]
        %v450 = vld [vmem:[%s328 + $0x34] sm:$0xf]
        %v451 = vld [vmem:[%s328 + $0x38] sm:$0xf]
        %v452 = vld [vmem:[%s328 + $0x3c] sm:$0xf]
        %v453 = vld [vmem:[%s380] sm:$0xf]
        %v454 = vld [vmem:[%s380 + $0x4] sm:$0xf]
        %v455 = vld [vmem:[%s380 + $0x8] sm:$0xf]
        %v456 = vld [vmem:[%s380 + $0xc] sm:$0xf]
        %v457 = vld [vmem:[%s380 + $0x10] sm:$0xf]
        %v458 = vld [vmem:[%s380 + $0x14] sm:$0xf]
        %v459 = vld [vmem:[%s380 + $0x18] sm:$0xf]
        %v460 = vld [vmem:[%s380 + $0x1c] sm:$0xf]
        %v461 = vld [vmem:[%s380 + $0x20] sm:$0xf]
        %v462 = vld [vmem:[%s380 + $0x24] sm:$0xf]
        %v463 = vld [vmem:[%s380 + $0x28] sm:$0xf]
        %v464 = vld [vmem:[%s380 + $0x2c] sm:$0xf]
        %v465 = vld [vmem:[%s380 + $0x30] sm:$0xf]
        %v466 = vld [vmem:[%s380 + $0x34] sm:$0xf]
        %v467 = vld [vmem:[%s380 + $0x38] sm:$0xf]
        %v468 = vld [vmem:[%s380 + $0x3c] sm:$0xf]
        %v485 = vunpack.c.l.b16 %v437
        %v486 = vunpack.c.l.b16 %v438
        %v487 = vunpack.c.l.b16 %v439
        %v488 = vunpack.c.l.b16 %v440
        %v489 = vunpack.c.l.b16 %v441
        %v490 = vunpack.c.l.b16 %v442
        %v491 = vunpack.c.l.b16 %v443
        %v492 = vunpack.c.l.b16 %v444
        %v493 = vunpack.c.l.b16 %v445
        %v494 = vunpack.c.l.b16 %v446
        %v495 = vunpack.c.l.b16 %v447
        %v496 = vunpack.c.l.b16 %v448
        %v497 = vunpack.c.l.b16 %v449
        %v498 = vunpack.c.l.b16 %v450
        %v499 = vunpack.c.l.b16 %v451
        %v500 = vunpack.c.l.b16 %v452
        %v501 = vpack.c.b16 %v486, %v485
        %v502 = vpack.c.b16 %v488, %v487
        %v503 = vpack.c.b16 %v490, %v489
        %v504 = vpack.c.b16 %v492, %v491
        %v505 = vpack.c.b16 %v494, %v493
        %v506 = vpack.c.b16 %v496, %v495
        %v507 = vpack.c.b16 %v498, %v497
        %v508 = vpack.c.b16 %v500, %v499
        %v533 = vunpack.c.l.b16 %v453
        %v534 = vunpack.c.l.b16 %v454
        %v535 = vunpack.c.l.b16 %v455
        %v536 = vunpack.c.l.b16 %v456
        %v537 = vunpack.c.l.b16 %v457
        %v538 = vunpack.c.l.b16 %v458
        %v539 = vunpack.c.l.b16 %v459
        %v540 = vunpack.c.l.b16 %v460
        %v541 = vunpack.c.l.b16 %v461
        %v542 = vunpack.c.l.b16 %v462
        %v543 = vunpack.c.l.b16 %v463
        %v544 = vunpack.c.l.b16 %v464
        %v545 = vunpack.c.l.b16 %v465
        %v546 = vunpack.c.l.b16 %v466
        %v547 = vunpack.c.l.b16 %v467
        %v548 = vunpack.c.l.b16 %v468
        %v549 = vpack.c.b16 %v534, %v533
        %v550 = vpack.c.b16 %v536, %v535
        %v551 = vpack.c.b16 %v538, %v537
        %v552 = vpack.c.b16 %v540, %v539
        %v553 = vpack.c.b16 %v542, %v541
        %v554 = vpack.c.b16 %v544, %v543
        %v555 = vpack.c.b16 %v546, %v545
        %v556 = vpack.c.b16 %v548, %v547
        %565 = vmatpush.bf16.msra.mxu0 %v556
        %566 = vmatpush.bf16.msra.mxu0 %v555
        %567 = vmatpush.bf16.msra.mxu0 %v554
        %568 = vmatpush.bf16.msra.mxu0 %v553
        %569 = vmatpush.bf16.msra.mxu0 %v552
        %570 = vmatpush.bf16.msra.mxu0 %v551
        %571 = vmatpush.bf16.msra.mxu0 %v550
        %572 = vmatpush.bf16.msra.mxu0 %v549
        %573 = vmatmul.bf16.gmra.mxu0 %v501
        %v574 = vpop.f32.mrf.mxu0
        %v575 = vadd.f32 0.0, %v574
        %v576 = vpop.f32.mrf.mxu0
        %v577 = vadd.f32 0.0, %v576
        %578 = vmatmul.bf16.gmra.mxu0 %v502
        %v579 = vpop.f32.mrf.mxu0
        %v580 = vadd.f32 0.0, %v579
        %v581 = vpop.f32.mrf.mxu0
        %v582 = vadd.f32 0.0, %v581
        %583 = vmatmul.bf16.gmra.mxu0 %v503
        %v584 = vpop.f32.mrf.mxu0
        %v585 = vadd.f32 0.0, %v584
        %v586 = vpop.f32.mrf.mxu0
        %v587 = vadd.f32 0.0, %v586
        %588 = vmatmul.bf16.gmra.mxu0 %v504
        %v589 = vpop.f32.mrf.mxu0
        %v590 = vadd.f32 0.0, %v589
        %v591 = vpop.f32.mrf.mxu0
        %v592 = vadd.f32 0.0, %v591
        %593 = vmatmul.bf16.gmra.mxu0 %v505
        %v594 = vpop.f32.mrf.mxu0
        %v595 = vadd.f32 0.0, %v594
        %v596 = vpop.f32.mrf.mxu0
        %v597 = vadd.f32 0.0, %v596
        %598 = vmatmul.bf16.gmra.mxu0 %v506
        %v599 = vpop.f32.mrf.mxu0
        %v600 = vadd.f32 0.0, %v599
        %v601 = vpop.f32.mrf.mxu0
        %v602 = vadd.f32 0.0, %v601
        %603 = vmatmul.bf16.gmra.mxu0 %v507
        %v604 = vpop.f32.mrf.mxu0
        %v605 = vadd.f32 0.0, %v604
        %v606 = vpop.f32.mrf.mxu0
        %v607 = vadd.f32 0.0, %v606
        %608 = vmatmul.bf16.gmra.mxu0 %v508
        %v609 = vpop.f32.mrf.mxu0
        %v610 = vadd.f32 0.0, %v609
        %v611 = vpop.f32.mrf.mxu0
        %v612 = vadd.f32 0.0, %v611
        %613 = vdwg.mxu0
        %v614 = vadd.f32 %v421, %v575
        %v615 = vadd.f32 %v422, %v577
        %v616 = vadd.f32 %v423, %v580
        %v617 = vadd.f32 %v424, %v582
        %v618 = vadd.f32 %v425, %v585
        %v619 = vadd.f32 %v426, %v587
        %v620 = vadd.f32 %v427, %v590
        %v621 = vadd.f32 %v428, %v592
        %v622 = vadd.f32 %v429, %v595
        %v623 = vadd.f32 %v430, %v597
        %v624 = vadd.f32 %v431, %v600
        %v625 = vadd.f32 %v432, %v602
        %v626 = vadd.f32 %v433, %v605
        %v627 = vadd.f32 %v434, %v607
        %v628 = vadd.f32 %v435, %v610
        %v629 = vadd.f32 %v436, %v612
        %630 = vst [vmem:[#allocation2] sm:$0xff] %v614
        %631 = vst [vmem:[#allocation2 + $0x8] sm:$0xff] %v615
        %632 = vst [vmem:[#allocation2 + $0x10] sm:$0xff] %v616
        %633 = vst [vmem:[#allocation2 + $0x18] sm:$0xff] %v617
        %634 = vst [vmem:[#allocation2 + $0x20] sm:$0xff] %v618
        %635 = vst [vmem:[#allocation2 + $0x28] sm:$0xff] %v619
        %636 = vst [vmem:[#allocation2 + $0x30] sm:$0xff] %v620
        %637 = vst [vmem:[#allocation2 + $0x38] sm:$0xff] %v621
        %638 = vst [vmem:[#allocation2 + $0x40] sm:$0xff] %v622
        %639 = vst [vmem:[#allocation2 + $0x48] sm:$0xff] %v623
        %640 = vst [vmem:[#allocation2 + $0x50] sm:$0xff] %v624
        %641 = vst [vmem:[#allocation2 + $0x58] sm:$0xff] %v625
        %642 = vst [vmem:[#allocation2 + $0x60] sm:$0xff] %v626
        %643 = vst [vmem:[#allocation2 + $0x68] sm:$0xff] %v627
        %644 = vst [vmem:[#allocation2 + $0x70] sm:$0xff] %v628
        %645 = vst [vmem:[#allocation2 + $0x78] sm:$0xff] %v629
        %p646 = scmp.eq.s32.totalorder %s23, 4
        // Predicated region
        $region78: #{discriminator_feature_forward.16} parent=68 // pred_check
          %p647 = pneg %p646
        $region79: #{discriminator_feature_forward.16} parent=68 // pred_check_branch
          %649 = sbr.rel (%p647) target = $region81
        $region80: #{discriminator_feature_forward.16} parent=68 // pred_region
          %v650 = vld [vmem:[#allocation2] sm:$0xff]
          %v651 = vld [vmem:[#allocation2 + $0x8] sm:$0xff]
          %v652 = vld [vmem:[#allocation2 + $0x10] sm:$0xff]
          %v653 = vld [vmem:[#allocation2 + $0x18] sm:$0xff]
          %v654 = vld [vmem:[#allocation2 + $0x20] sm:$0xff]
          %v655 = vld [vmem:[#allocation2 + $0x28] sm:$0xff]
          %v656 = vld [vmem:[#allocation2 + $0x30] sm:$0xff]
          %v657 = vld [vmem:[#allocation2 + $0x38] sm:$0xff]
          %v658 = vld [vmem:[#allocation2 + $0x40] sm:$0xff]
          %v659 = vld [vmem:[#allocation2 + $0x48] sm:$0xff]
          %v660 = vld [vmem:[#allocation2 + $0x50] sm:$0xff]
          %v661 = vld [vmem:[#allocation2 + $0x58] sm:$0xff]
          %v662 = vld [vmem:[#allocation2 + $0x60] sm:$0xff]
          %v663 = vld [vmem:[#allocation2 + $0x68] sm:$0xff]
          %v664 = vld [vmem:[#allocation2 + $0x70] sm:$0xff]
          %v665 = vld [vmem:[#allocation2 + $0x78] sm:$0xff]
          %v666 = vld [vmem:[%s384] sm:$0x1]
          %v668 = vperm.slane %v666, 0
          %v670 = vadd.f32 %v650, %v668
          %v671 = vadd.f32 %v651, %v668
          %v672 = vadd.f32 %v652, %v668
          %v673 = vadd.f32 %v653, %v668
          %v674 = vadd.f32 %v654, %v668
          %v675 = vadd.f32 %v655, %v668
          %v676 = vadd.f32 %v656, %v668
          %v677 = vadd.f32 %v657, %v668
          %v678 = vadd.f32 %v658, %v668
          %v679 = vadd.f32 %v659, %v668
          %v680 = vadd.f32 %v660, %v668
          %v681 = vadd.f32 %v661, %v668
          %v682 = vadd.f32 %v662, %v668
          %v683 = vadd.f32 %v663, %v668
          %v684 = vadd.f32 %v664, %v668
          %v685 = vadd.f32 %v665, %v668
          %686 = vst [vmem:[%s392] sm:$0xff] %v670
          %687 = vst [vmem:[%s392 + $0x8] sm:$0xff] %v671
          %688 = vst [vmem:[%s392 + $0x10] sm:$0xff] %v672
          %689 = vst [vmem:[%s392 + $0x18] sm:$0xff] %v673
          %690 = vst [vmem:[%s392 + $0x20] sm:$0xff] %v674
          %691 = vst [vmem:[%s392 + $0x28] sm:$0xff] %v675
          %692 = vst [vmem:[%s392 + $0x30] sm:$0xff] %v676
          %693 = vst [vmem:[%s392 + $0x38] sm:$0xff] %v677
          %694 = vst [vmem:[%s392 + $0x40] sm:$0xff] %v678
          %695 = vst [vmem:[%s392 + $0x48] sm:$0xff] %v679
          %696 = vst [vmem:[%s392 + $0x50] sm:$0xff] %v680
          %697 = vst [vmem:[%s392 + $0x58] sm:$0xff] %v681
          %698 = vst [vmem:[%s392 + $0x60] sm:$0xff] %v682
          %699 = vst [vmem:[%s392 + $0x68] sm:$0xff] %v683
          %700 = vst [vmem:[%s392 + $0x70] sm:$0xff] %v684
          %701 = vst [vmem:[%s392 + $0x78] sm:$0xff] %v685
          %v702 = vadd.f32 %v670, %v671
          %v703 = vadd.f32 %v702, %v672
          %v704 = vadd.f32 %v703, %v673
          %v705 = vadd.f32 %v704, %v674
          %v706 = vadd.f32 %v705, %v675
          %v707 = vadd.f32 %v706, %v676
          %v708 = vadd.f32 %v707, %v677
          %v709 = vadd.f32 %v708, %v678
          %v710 = vadd.f32 %v709, %v679
          %v711 = vadd.f32 %v710, %v680
          %v712 = vadd.f32 %v711, %v681
          %v713 = vadd.f32 %v712, %v682
          %v714 = vadd.f32 %v713, %v683
          %v715 = vadd.f32 %v714, %v684
          %v716 = vadd.f32 %v715, %v685
          %v717 = vrot.slane %v716, 4
          %v718 = vadd.f32 %v716, %v717
          %v719 = vrot.slane %v718, 2
          %v720 = vadd.f32 %v718, %v719
          %v721 = vrot.slane %v720, 1
          %v722 = vadd.f32 %v720, %v721
          %v723 = vmul.f32 %v670, %v670
          %v724 = vmul.f32 %v671, %v671
          %v725 = vmul.f32 %v672, %v672
          %v726 = vmul.f32 %v673, %v673
          %v727 = vmul.f32 %v674, %v674
          %v728 = vmul.f32 %v675, %v675
          %v729 = vmul.f32 %v676, %v676
          %v730 = vmul.f32 %v677, %v677
          %v731 = vmul.f32 %v678, %v678
          %v732 = vmul.f32 %v679, %v679
          %v733 = vmul.f32 %v680, %v680
          %v734 = vmul.f32 %v681, %v681
          %v735 = vmul.f32 %v682, %v682
          %v736 = vmul.f32 %v683, %v683
          %v737 = vmul.f32 %v684, %v684
          %v738 = vmul.f32 %v685, %v685
          %v739 = vadd.f32 %v723, %v724
          %v740 = vadd.f32 %v739, %v725
          %v741 = vadd.f32 %v740, %v726
          %v742 = vadd.f32 %v741, %v727
          %v743 = vadd.f32 %v742, %v728
          %v744 = vadd.f32 %v743, %v729
          %v745 = vadd.f32 %v744, %v730
          %v746 = vadd.f32 %v745, %v731
          %v747 = vadd.f32 %v746, %v732
          %v748 = vadd.f32 %v747, %v733
          %v749 = vadd.f32 %v748, %v734
          %v750 = vadd.f32 %v749, %v735
          %v751 = vadd.f32 %v750, %v736
          %v752 = vadd.f32 %v751, %v737
          %v753 = vadd.f32 %v752, %v738
          %v754 = vrot.slane %v753, 4
          %v755 = vadd.f32 %v753, %v754
          %v756 = vrot.slane %v755, 2
          %v757 = vadd.f32 %v755, %v756
          %v758 = vrot.slane %v757, 1
          %v759 = vadd.f32 %v757, %v758
          %vm760 = vcmask 1040384
          %v761 = vsel %vm760, %v722, %v759
          %762 = vst [vmem:[%s400] sm:$0x3] %v761
        $region81: #{discriminator_feature_forward.16} parent=68 // pred_fallthru
          _
        %s763 = smul.u32 16, %s21
        %p764 = scmp.lt.s32.totalorder %s763, 15
        %s765 = scalar_select %p764, %s763, 15
        %p766 = scmp.lt.s32.totalorder %s22, 0
        %s767 = scalar_select %p766, %s22, 0
        %s768 = sadd.s32 %s767, %s765
        %s769 = smul.addr %s768, 8
        %s770 = scalar_lea.vmem %s3, %s769
        %p771 = scmp.lt.s32.totalorder %s21, 0
        %s772 = scalar_select %p771, %s21, 0
        %p773 = scmp.lt.s32.totalorder %s22, 0
        %s774 = scalar_select %p773, %s22, 0
        %s775 = sadd.s32 %s774, %s772
        %s776 = smul.addr %s775, 2
        %s777 = scalar_lea.vmem %s4, %s776
        // Predicated region
        $region82: #{discriminator_feature_forward.16} parent=68 // pred_check
          %p778 = pneg %p137
        $region83: #{discriminator_feature_forward.16} parent=68 // pred_check_branch
          %780 = sbr.rel (%p778) target = $region85
        $region84: #{discriminator_feature_forward.16} parent=68 // pred_region
          %s781 = smul.u32 16, %s21
        $region85: #{discriminator_feature_forward.16} parent=68 // pred_fallthru
          _
        // Predicated region
        $region86: #{discriminator_feature_forward.16} parent=68 // pred_check
          %p782 = pneg %p165
        $region87: #{discriminator_feature_forward.16} parent=68 // pred_check_branch
          %784 = sbr.rel (%p782) target = $region89
        $region88: #{discriminator_feature_forward.16} parent=68 // pred_region
          _
        $region89: #{discriminator_feature_forward.16} parent=68 // pred_fallthru
          _
        // Predicated region
        $region90: #{discriminator_feature_forward.16} parent=68 // pred_check
          %p785 = pneg %p137
        $region91: #{discriminator_feature_forward.16} parent=68 // pred_check_branch
          %787 = sbr.rel (%p785) target = $region93
        $region92: #{discriminator_feature_forward.16} parent=68 // pred_region
          %s788 = smul.u32 16, %s21
          %p789 = scmp.lt.s32.totalorder %s788, 15
          %s790 = scalar_select %p789, %s788, 15
          %p791 = scmp.lt.s32.totalorder %s22, 0
          %s792 = scalar_select %p791, %s22, 0
          %s793 = sadd.s32 %s792, %s790
          %s794 = smul.addr %s793, 8
          %s795 = scalar_lea.vmem %s3, %s794
        $region93: #{discriminator_feature_forward.16} parent=68 // pred_fallthru
          _
        // Predicated region
        $region94: #{discriminator_feature_forward.16} parent=68 // pred_check
          %p796 = pneg %p165
        $region95: #{discriminator_feature_forward.16} parent=68 // pred_check_branch
          %798 = sbr.rel (%p796) target = $region97
        $region96: #{discriminator_feature_forward.16} parent=68 // pred_region
          %p799 = scmp.lt.s32.totalorder %s21, 0
          %s800 = scalar_select %p799, %s21, 0
          %p801 = scmp.lt.s32.totalorder %s22, 0
          %s802 = scalar_select %p801, %s22, 0
          %s803 = sadd.s32 %s802, %s800
          %s804 = smul.addr %s803, 2
          %s805 = scalar_lea.vmem %s4, %s804
        $region97: #{discriminator_feature_forward.16} parent=68 // pred_fallthru
          _
      $region69: #{discriminator_feature_forward.16} parent=5 // pred_fallthru
        _
      %p806 = scmp.le.s32.totalorder 2, %s11
      // Predicated region
      $region98: #{discriminator_feature_forward.16} parent=5 // pred_check
        %p807 = pneg %p806
      $region99: #{discriminator_feature_forward.16} parent=5 // pred_check_branch
        %809 = sbr.rel (%p807) target = $region101
      $region100: #{discriminator_feature_forward.16} parent=5 // pred_region
        %s810 = ssub.s32 %s11, 2
      $region101: #{discriminator_feature_forward.16} parent=5 // pred_fallthru
        _
    $region6: #{discriminator_feature_forward.16} parent=1 // loop_footer
      %s15 = sadd.s32 1, %s11
    $region7: #{discriminator_feature_forward.16} parent=1 // loop_footer_branch
      %10 = sbr.rel target = $region3
    $region8: #{discriminator_feature_forward.16} parent=1 // loop_exit
      _

// kernel: discriminator_feature_forward.17
$region0: #{discriminator_feature_forward.17}
  #allocation0 [shape = 'u32[]', space=smem, size = 0x4, offset = 0x4, fixed_abs, tag = 'smem constant byte address 0x4 - core index']
  #allocation1 [shape = 'u32[72,128]{1,0:T(1,128)}', space=vmem, size = 0x9000, scoped, tag = 'internal scratch']
  %s0 = inlined_call_operand.vmem [shape: f32[128,128], index: 0, kind: input, shape index: {}]
  %s1 = inlined_call_operand.vmem [shape: f32[1,128], index: 1, kind: input, shape index: {}]
  %s2 = inlined_call_operand.vmem [shape: f32[1,128], index: 2, kind: input, shape index: {}]
  %s3 = inlined_call_operand.vmem [shape: f32[128,128], index: 3, kind: output, shape index: {}]
  %s4 = sld [smem:[#allocation0]]
  $region22: #{discriminator_feature_forward.17} parent=0
    _
  %s6 = ssub.s32 1, %s4
  %s7 = scalar_select 0, %s6, %s4
  // Predicated region
  $region2: #{discriminator_feature_forward.17} parent=0 // pred_check
    _
  $region3: #{discriminator_feature_forward.17} parent=0 // pred_check_branch
    %9 = sbr.rel (0) target = $region5
  $region4: #{discriminator_feature_forward.17} parent=0 // pred_region
    _
  $region5: #{discriminator_feature_forward.17} parent=0 // pred_fallthru
    _
  // Predicated region
  $region6: #{discriminator_feature_forward.17} parent=0 // pred_check
    _
  $region7: #{discriminator_feature_forward.17} parent=0 // pred_check_branch
    %11 = sbr.rel (0) target = $region9
  $region8: #{discriminator_feature_forward.17} parent=0 // pred_region
    _
  $region9: #{discriminator_feature_forward.17} parent=0 // pred_fallthru
    _
  // Predicated region
  $region10: #{discriminator_feature_forward.17} parent=0 // pred_check
    _
  $region11: #{discriminator_feature_forward.17} parent=0 // pred_check_branch
    %13 = sbr.rel (0) target = $region13
  $region12: #{discriminator_feature_forward.17} parent=0 // pred_region
    _
  $region13: #{discriminator_feature_forward.17} parent=0 // pred_fallthru
    _
  %v14 = vld [vmem:[%s0] sm:$0xff]
  %v15 = vld [vmem:[%s0 + $0x8] sm:$0xff]
  %v16 = vld [vmem:[%s0 + $0x10] sm:$0xff]
  %v17 = vld [vmem:[%s0 + $0x18] sm:$0xff]
  %v18 = vld [vmem:[%s0 + $0x20] sm:$0xff]
  %v19 = vld [vmem:[%s0 + $0x28] sm:$0xff]
  %v20 = vld [vmem:[%s0 + $0x30] sm:$0xff]
  %v21 = vld [vmem:[%s0 + $0x38] sm:$0xff]
  %v22 = vld [vmem:[%s0 + $0x40] sm:$0xff]
  %v23 = vld [vmem:[%s0 + $0x48] sm:$0xff]
  %v24 = vld [vmem:[%s0 + $0x50] sm:$0xff]
  %v25 = vld [vmem:[%s0 + $0x58] sm:$0xff]
  %v26 = vld [vmem:[%s0 + $0x60] sm:$0xff]
  %v27 = vld [vmem:[%s0 + $0x68] sm:$0xff]
  %v28 = vld [vmem:[%s0 + $0x70] sm:$0xff]
  %v29 = vld [vmem:[%s0 + $0x78] sm:$0xff]
  %v30 = vld [vmem:[%s1] sm:$0x1]
  %v32 = vperm.slane %v30, 0
  %v34 = vmul.f32 %v14, %v32
  %v35 = vmul.f32 %v15, %v32
  %v36 = vmul.f32 %v16, %v32
  %v37 = vmul.f32 %v17, %v32
  %v38 = vmul.f32 %v18, %v32
  %v39 = vmul.f32 %v19, %v32
  %v40 = vmul.f32 %v20, %v32
  %v41 = vmul.f32 %v21, %v32
  %v42 = vmul.f32 %v22, %v32
  %v43 = vmul.f32 %v23, %v32
  %v44 = vmul.f32 %v24, %v32
  %v45 = vmul.f32 %v25, %v32
  %v46 = vmul.f32 %v26, %v32
  %v47 = vmul.f32 %v27, %v32
  %v48 = vmul.f32 %v28, %v32
  %v49 = vmul.f32 %v29, %v32
  %v50 = vld [vmem:[%s2] sm:$0x1]
  %v52 = vperm.slane %v50, 0
  %v54 = vadd.f32 %v34, %v52
  %v55 = vadd.f32 %v35, %v52
  %v56 = vadd.f32 %v36, %v52
  %v57 = vadd.f32 %v37, %v52
  %v58 = vadd.f32 %v38, %v52
  %v59 = vadd.f32 %v39, %v52
  %v60 = vadd.f32 %v40, %v52
  %v61 = vadd.f32 %v41, %v52
  %v62 = vadd.f32 %v42, %v52
  %v63 = vadd.f32 %v43, %v52
  %v64 = vadd.f32 %v44, %v52
  %v65 = vadd.f32 %v45, %v52
  %v66 = vadd.f32 %v46, %v52
  %v67 = vadd.f32 %v47, %v52
  %v68 = vadd.f32 %v48, %v52
  %v69 = vadd.f32 %v49, %v52
  %v70 = vsub.f32 0.0, %v54
  %v71 = vsub.f32 0.0, %v55
  %v72 = vsub.f32 0.0, %v56
  %v73 = vsub.f32 0.0, %v57
  %v74 = vsub.f32 0.0, %v58
  %v75 = vsub.f32 0.0, %v59
  %v76 = vsub.f32 0.0, %v60
  %v77 = vsub.f32 0.0, %v61
  %v78 = vsub.f32 0.0, %v62
  %v79 = vsub.f32 0.0, %v63
  %v80 = vsub.f32 0.0, %v64
  %v81 = vsub.f32 0.0, %v65
  %v82 = vsub.f32 0.0, %v66
  %v83 = vsub.f32 0.0, %v67
  %v84 = vsub.f32 0.0, %v68
  %v85 = vsub.f32 0.0, %v69
  %v86 = vmul.f32 %v70, 1.442695
  %v87 = vpow.pop %v86
  %v88 = vmul.f32 %v71, 1.442695
  %v89 = vpow.pop %v88
  %v90 = vmul.f32 %v72, 1.442695
  %v91 = vpow.pop %v90
  %v92 = vmul.f32 %v73, 1.442695
  %v93 = vpow.pop %v92
  %v94 = vmul.f32 %v74, 1.442695
  %v95 = vpow.pop %v94
  %v96 = vmul.f32 %v75, 1.442695
  %v97 = vpow.pop %v96
  %v98 = vmul.f32 %v76, 1.442695
  %v99 = vpow.pop %v98
  %v100 = vmul.f32 %v77, 1.442695
  %v101 = vpow.pop %v100
  %v102 = vmul.f32 %v78, 1.442695
  %v103 = vpow.pop %v102
  %v104 = vmul.f32 %v79, 1.442695
  %v105 = vpow.pop %v104
  %v106 = vmul.f32 %v80, 1.442695
  %v107 = vpow.pop %v106
  %v108 = vmul.f32 %v81, 1.442695
  %v109 = vpow.pop %v108
  %v110 = vmul.f32 %v82, 1.442695
  %v111 = vpow.pop %v110
  %v112 = vmul.f32 %v83, 1.442695
  %v113 = vpow.pop %v112
  %v114 = vmul.f32 %v84, 1.442695
  %v115 = vpow.pop %v114
  %v116 = vmul.f32 %v85, 1.442695
  %v117 = vpow.pop %v116
  %v118 = vadd.f32 %v87, 1.0
  %v119 = vadd.f32 %v89, 1.0
  %v120 = vadd.f32 %v91, 1.0
  %v121 = vadd.f32 %v93, 1.0
  %v122 = vadd.f32 %v95, 1.0
  %v123 = vadd.f32 %v97, 1.0
  %v124 = vadd.f32 %v99, 1.0
  %v125 = vadd.f32 %v101, 1.0
  %v126 = vadd.f32 %v103, 1.0
  %v127 = vadd.f32 %v105, 1.0
  %v128 = vadd.f32 %v107, 1.0
  %v129 = vadd.f32 %v109, 1.0
  %v130 = vadd.f32 %v111, 1.0
  %v131 = vadd.f32 %v113, 1.0
  %v132 = vadd.f32 %v115, 1.0
  %v133 = vadd.f32 %v117, 1.0
  %v134 = vrcp.pop %v118
  %v135 = vmul.f32 %v118, %v134
  %v136 = vsub.f32 1.0, %v135
  %v137 = vmul.f32 %v134, %v136
  %v138 = vadd.f32 %v134, %v137
  %vm139 = vweird.f32 %v118
  %vm140 = vweird.f32 %v134
  %vm141 = vmor %vm139, %vm140
  %v142 = vsel %vm141, %v134, %v138
  %v143 = vand.u32 2147483647, %v118
  %vm144 = vcmp.eq.f32.partialorder %v143, 8.507059e+37
  %v145 = vand.u32 %v118, 2147483648
  %v146 = vor.u32 1.1754944e-38, %v145
  %v147 = vsel %vm144, %v146, %v142
  %v148 = vmul.f32 1.0, %v147
  %v149 = vrcp.pop %v119
  %v150 = vmul.f32 %v119, %v149
  %v151 = vsub.f32 1.0, %v150
  %v152 = vmul.f32 %v149, %v151
  %v153 = vadd.f32 %v149, %v152
  %vm154 = vweird.f32 %v119
  %vm155 = vweird.f32 %v149
  %vm156 = vmor %vm154, %vm155
  %v157 = vsel %vm156, %v149, %v153
  %v158 = vand.u32 2147483647, %v119
  %vm159 = vcmp.eq.f32.partialorder %v158, 8.507059e+37
  %v160 = vand.u32 %v119, 2147483648
  %v161 = vor.u32 1.1754944e-38, %v160
  %v162 = vsel %vm159, %v161, %v157
  %v163 = vmul.f32 1.0, %v162
  %v164 = vrcp.pop %v120
  %v165 = vmul.f32 %v120, %v164
  %v166 = vsub.f32 1.0, %v165
  %v167 = vmul.f32 %v164, %v166
  %v168 = vadd.f32 %v164, %v167
  %vm169 = vweird.f32 %v120
  %vm170 = vweird.f32 %v164
  %vm171 = vmor %vm169, %vm170
  %v172 = vsel %vm171, %v164, %v168
  %v173 = vand.u32 2147483647, %v120
  %vm174 = vcmp.eq.f32.partialorder %v173, 8.507059e+37
  %v175 = vand.u32 %v120, 2147483648
  %v176 = vor.u32 1.1754944e-38, %v175
  %v177 = vsel %vm174, %v176, %v172
  %v178 = vmul.f32 1.0, %v177
  %v179 = vrcp.pop %v121
  %v180 = vmul.f32 %v121, %v179
  %v181 = vsub.f32 1.0, %v180
  %v182 = vmul.f32 %v179, %v181
  %v183 = vadd.f32 %v179, %v182
  %vm184 = vweird.f32 %v121
  %vm185 = vweird.f32 %v179
  %vm186 = vmor %vm184, %vm185
  %v187 = vsel %vm186, %v179, %v183
  %v188 = vand.u32 2147483647, %v121
  %vm189 = vcmp.eq.f32.partialorder %v188, 8.507059e+37
  %v190 = vand.u32 %v121, 2147483648
  %v191 = vor.u32 1.1754944e-38, %v190
  %v192 = vsel %vm189, %v191, %v187
  %v193 = vmul.f32 1.0, %v192
  %v194 = vrcp.pop %v122
  %v195 = vmul.f32 %v122, %v194
  %v196 = vsub.f32 1.0, %v195
  %v197 = vmul.f32 %v194, %v196
  %v198 = vadd.f32 %v194, %v197
  %vm199 = vweird.f32 %v122
  %vm200 = vweird.f32 %v194
  %vm201 = vmor %vm199, %vm200
  %v202 = vsel %vm201, %v194, %v198
  %v203 = vand.u32 2147483647, %v122
  %vm204 = vcmp.eq.f32.partialorder %v203, 8.507059e+37
  %v205 = vand.u32 %v122, 2147483648
  %v206 = vor.u32 1.1754944e-38, %v205
  %v207 = vsel %vm204, %v206, %v202
  %v208 = vmul.f32 1.0, %v207
  %v209 = vrcp.pop %v123
  %v210 = vmul.f32 %v123, %v209
  %v211 = vsub.f32 1.0, %v210
  %v212 = vmul.f32 %v209, %v211
  %v213 = vadd.f32 %v209, %v212
  %vm214 = vweird.f32 %v123
  %vm215 = vweird.f32 %v209
  %vm216 = vmor %vm214, %vm215
  %v217 = vsel %vm216, %v209, %v213
  %v218 = vand.u32 2147483647, %v123
  %vm219 = vcmp.eq.f32.partialorder %v218, 8.507059e+37
  %v220 = vand.u32 %v123, 2147483648
  %v221 = vor.u32 1.1754944e-38, %v220
  %v222 = vsel %vm219, %v221, %v217
  %v223 = vmul.f32 1.0, %v222
  %v224 = vrcp.pop %v124
  %v225 = vmul.f32 %v124, %v224
  %v226 = vsub.f32 1.0, %v225
  %v227 = vmul.f32 %v224, %v226
  %v228 = vadd.f32 %v224, %v227
  %vm229 = vweird.f32 %v124
  %vm230 = vweird.f32 %v224
  %vm231 = vmor %vm229, %vm230
  %v232 = vsel %vm231, %v224, %v228
  %v233 = vand.u32 2147483647, %v124
  %vm234 = vcmp.eq.f32.partialorder %v233, 8.507059e+37
  %v235 = vand.u32 %v124, 2147483648
  %v236 = vor.u32 1.1754944e-38, %v235
  %v237 = vsel %vm234, %v236, %v232
  %v238 = vmul.f32 1.0, %v237
  %v239 = vrcp.pop %v125
  %v240 = vmul.f32 %v125, %v239
  %v241 = vsub.f32 1.0, %v240
  %v242 = vmul.f32 %v239, %v241
  %v243 = vadd.f32 %v239, %v242
  %vm244 = vweird.f32 %v125
  %vm245 = vweird.f32 %v239
  %vm246 = vmor %vm244, %vm245
  %v247 = vsel %vm246, %v239, %v243
  %v248 = vand.u32 2147483647, %v125
  %vm249 = vcmp.eq.f32.partialorder %v248, 8.507059e+37
  %v250 = vand.u32 %v125, 2147483648
  %v251 = vor.u32 1.1754944e-38, %v250
  %v252 = vsel %vm249, %v251, %v247
  %v253 = vmul.f32 1.0, %v252
  %v254 = vrcp.pop %v126
  %v255 = vmul.f32 %v126, %v254
  %v256 = vsub.f32 1.0, %v255
  %v257 = vmul.f32 %v254, %v256
  %v258 = vadd.f32 %v254, %v257
  %vm259 = vweird.f32 %v126
  %vm260 = vweird.f32 %v254
  %vm261 = vmor %vm259, %vm260
  %v262 = vsel %vm261, %v254, %v258
  %v263 = vand.u32 2147483647, %v126
  %vm264 = vcmp.eq.f32.partialorder %v263, 8.507059e+37
  %v265 = vand.u32 %v126, 2147483648
  %v266 = vor.u32 1.1754944e-38, %v265
  %v267 = vsel %vm264, %v266, %v262
  %v268 = vmul.f32 1.0, %v267
  %v269 = vrcp.pop %v127
  %v270 = vmul.f32 %v127, %v269
  %v271 = vsub.f32 1.0, %v270
  %v272 = vmul.f32 %v269, %v271
  %v273 = vadd.f32 %v269, %v272
  %vm274 = vweird.f32 %v127
  %vm275 = vweird.f32 %v269
  %vm276 = vmor %vm274, %vm275
  %v277 = vsel %vm276, %v269, %v273
  %v278 = vand.u32 2147483647, %v127
  %vm279 = vcmp.eq.f32.partialorder %v278, 8.507059e+37
  %v280 = vand.u32 %v127, 2147483648
  %v281 = vor.u32 1.1754944e-38, %v280
  %v282 = vsel %vm279, %v281, %v277
  %v283 = vmul.f32 1.0, %v282
  %v284 = vrcp.pop %v128
  %v285 = vmul.f32 %v128, %v284
  %v286 = vsub.f32 1.0, %v285
  %v287 = vmul.f32 %v284, %v286
  %v288 = vadd.f32 %v284, %v287
  %vm289 = vweird.f32 %v128
  %vm290 = vweird.f32 %v284
  %vm291 = vmor %vm289, %vm290
  %v292 = vsel %vm291, %v284, %v288
  %v293 = vand.u32 2147483647, %v128
  %vm294 = vcmp.eq.f32.partialorder %v293, 8.507059e+37
  %v295 = vand.u32 %v128, 2147483648
  %v296 = vor.u32 1.1754944e-38, %v295
  %v297 = vsel %vm294, %v296, %v292
  %v298 = vmul.f32 1.0, %v297
  %v299 = vrcp.pop %v129
  %v300 = vmul.f32 %v129, %v299
  %v301 = vsub.f32 1.0, %v300
  %v302 = vmul.f32 %v299, %v301
  %v303 = vadd.f32 %v299, %v302
  %vm304 = vweird.f32 %v129
  %vm305 = vweird.f32 %v299
  %vm306 = vmor %vm304, %vm305
  %v307 = vsel %vm306, %v299, %v303
  %v308 = vand.u32 2147483647, %v129
  %vm309 = vcmp.eq.f32.partialorder %v308, 8.507059e+37
  %v310 = vand.u32 %v129, 2147483648
  %v311 = vor.u32 1.1754944e-38, %v310
  %v312 = vsel %vm309, %v311, %v307
  %v313 = vmul.f32 1.0, %v312
  %v314 = vrcp.pop %v130
  %v315 = vmul.f32 %v130, %v314
  %v316 = vsub.f32 1.0, %v315
  %v317 = vmul.f32 %v314, %v316
  %v318 = vadd.f32 %v314, %v317
  %vm319 = vweird.f32 %v130
  %vm320 = vweird.f32 %v314
  %vm321 = vmor %vm319, %vm320
  %v322 = vsel %vm321, %v314, %v318
  %v323 = vand.u32 2147483647, %v130
  %vm324 = vcmp.eq.f32.partialorder %v323, 8.507059e+37
  %v325 = vand.u32 %v130, 2147483648
  %v326 = vor.u32 1.1754944e-38, %v325
  %v327 = vsel %vm324, %v326, %v322
  %v328 = vmul.f32 1.0, %v327
  %v329 = vrcp.pop %v131
  %v330 = vmul.f32 %v131, %v329
  %v331 = vsub.f32 1.0, %v330
  %v332 = vmul.f32 %v329, %v331
  %v333 = vadd.f32 %v329, %v332
  %vm334 = vweird.f32 %v131
  %vm335 = vweird.f32 %v329
  %vm336 = vmor %vm334, %vm335
  %v337 = vsel %vm336, %v329, %v333
  %v338 = vand.u32 2147483647, %v131
  %vm339 = vcmp.eq.f32.partialorder %v338, 8.507059e+37
  %v340 = vand.u32 %v131, 2147483648
  %v341 = vor.u32 1.1754944e-38, %v340
  %v342 = vsel %vm339, %v341, %v337
  %v343 = vmul.f32 1.0, %v342
  %v344 = vrcp.pop %v132
  %v345 = vmul.f32 %v132, %v344
  %v346 = vsub.f32 1.0, %v345
  %v347 = vmul.f32 %v344, %v346
  %v348 = vadd.f32 %v344, %v347
  %vm349 = vweird.f32 %v132
  %vm350 = vweird.f32 %v344
  %vm351 = vmor %vm349, %vm350
  %v352 = vsel %vm351, %v344, %v348
  %v353 = vand.u32 2147483647, %v132
  %vm354 = vcmp.eq.f32.partialorder %v353, 8.507059e+37
  %v355 = vand.u32 %v132, 2147483648
  %v356 = vor.u32 1.1754944e-38, %v355
  %v357 = vsel %vm354, %v356, %v352
  %v358 = vmul.f32 1.0, %v357
  %v359 = vrcp.pop %v133
  %v360 = vmul.f32 %v133, %v359
  %v361 = vsub.f32 1.0, %v360
  %v362 = vmul.f32 %v359, %v361
  %v363 = vadd.f32 %v359, %v362
  %vm364 = vweird.f32 %v133
  %vm365 = vweird.f32 %v359
  %vm366 = vmor %vm364, %vm365
  %v367 = vsel %vm366, %v359, %v363
  %v368 = vand.u32 2147483647, %v133
  %vm369 = vcmp.eq.f32.partialorder %v368, 8.507059e+37
  %v370 = vand.u32 %v133, 2147483648
  %v371 = vor.u32 1.1754944e-38, %v370
  %v372 = vsel %vm369, %v371, %v367
  %v373 = vmul.f32 1.0, %v372
  %v374 = vmul.f32 %v54, %v148
  %v375 = vmul.f32 %v55, %v163
  %v376 = vmul.f32 %v56, %v178
  %v377 = vmul.f32 %v57, %v193
  %v378 = vmul.f32 %v58, %v208
  %v379 = vmul.f32 %v59, %v223
  %v380 = vmul.f32 %v60, %v238
  %v381 = vmul.f32 %v61, %v253
  %v382 = vmul.f32 %v62, %v268
  %v383 = vmul.f32 %v63, %v283
  %v384 = vmul.f32 %v64, %v298
  %v385 = vmul.f32 %v65, %v313
  %v386 = vmul.f32 %v66, %v328
  %v387 = vmul.f32 %v67, %v343
  %v388 = vmul.f32 %v68, %v358
  %v389 = vmul.f32 %v69, %v373
  %390 = vst [vmem:[%s3] sm:$0xff] %v374
  %391 = vst [vmem:[%s3 + $0x8] sm:$0xff] %v375
  %392 = vst [vmem:[%s3 + $0x10] sm:$0xff] %v376
  %393 = vst [vmem:[%s3 + $0x18] sm:$0xff] %v377
  %394 = vst [vmem:[%s3 + $0x20] sm:$0xff] %v378
  %395 = vst [vmem:[%s3 + $0x28] sm:$0xff] %v379
  %396 = vst [vmem:[%s3 + $0x30] sm:$0xff] %v380
  %397 = vst [vmem:[%s3 + $0x38] sm:$0xff] %v381
  %398 = vst [vmem:[%s3 + $0x40] sm:$0xff] %v382
  %399 = vst [vmem:[%s3 + $0x48] sm:$0xff] %v383
  %400 = vst [vmem:[%s3 + $0x50] sm:$0xff] %v384
  %401 = vst [vmem:[%s3 + $0x58] sm:$0xff] %v385
  %402 = vst [vmem:[%s3 + $0x60] sm:$0xff] %v386
  %403 = vst [vmem:[%s3 + $0x68] sm:$0xff] %v387
  %404 = vst [vmem:[%s3 + $0x70] sm:$0xff] %v388
  %405 = vst [vmem:[%s3 + $0x78] sm:$0xff] %v389
  // Predicated region
  $region14: #{discriminator_feature_forward.17} parent=0 // pred_check
    _
  $region15: #{discriminator_feature_forward.17} parent=0 // pred_check_branch
    %407 = sbr.rel (0) target = $region17
  $region16: #{discriminator_feature_forward.17} parent=0 // pred_region
    _
  $region17: #{discriminator_feature_forward.17} parent=0 // pred_fallthru
    _
  // Predicated region
  $region18: #{discriminator_feature_forward.17} parent=0 // pred_check
    _
  $region19: #{discriminator_feature_forward.17} parent=0 // pred_check_branch
    %409 = sbr.rel (0) target = $region21
  $region20: #{discriminator_feature_forward.17} parent=0 // pred_region
    _
  $region21: #{discriminator_feature_forward.17} parent=0 // pred_fallthru
    _

// kernel: discriminator_feature_forward.21
$region0: #{discriminator_feature_forward.21}
  #allocation0 [shape = 'u32[]', space=smem, size = 0x4, offset = 0x4, fixed_abs, tag = 'smem constant byte address 0x4 - core index']
  #allocation1 [shape = 'u32[72,128]{1,0:T(1,128)}', space=vmem, size = 0x9000, scoped, tag = 'internal scratch']
  %s0 = inlined_call_operand.vmem [shape: f32[32,128], index: 0, kind: input, shape index: {}]
  %s1 = inlined_call_operand.vmem [shape: f32[1,128], index: 1, kind: input, shape index: {}]
  %s2 = inlined_call_operand.vmem [shape: f32[1,128], index: 2, kind: input, shape index: {}]
  %s3 = inlined_call_operand.vmem [shape: f32[32,128], index: 3, kind: output, shape index: {}]
  %s4 = sld [smem:[#allocation0]]
  $region22: #{discriminator_feature_forward.21} parent=0
    _
  %s6 = ssub.s32 1, %s4
  %s7 = scalar_select 0, %s6, %s4
  // Predicated region
  $region2: #{discriminator_feature_forward.21} parent=0 // pred_check
    _
  $region3: #{discriminator_feature_forward.21} parent=0 // pred_check_branch
    %9 = sbr.rel (0) target = $region5
  $region4: #{discriminator_feature_forward.21} parent=0 // pred_region
    _
  $region5: #{discriminator_feature_forward.21} parent=0 // pred_fallthru
    _
  // Predicated region
  $region6: #{discriminator_feature_forward.21} parent=0 // pred_check
    _
  $region7: #{discriminator_feature_forward.21} parent=0 // pred_check_branch
    %11 = sbr.rel (0) target = $region9
  $region8: #{discriminator_feature_forward.21} parent=0 // pred_region
    _
  $region9: #{discriminator_feature_forward.21} parent=0 // pred_fallthru
    _
  // Predicated region
  $region10: #{discriminator_feature_forward.21} parent=0 // pred_check
    _
  $region11: #{discriminator_feature_forward.21} parent=0 // pred_check_branch
    %13 = sbr.rel (0) target = $region13
  $region12: #{discriminator_feature_forward.21} parent=0 // pred_region
    _
  $region13: #{discriminator_feature_forward.21} parent=0 // pred_fallthru
    _
  %v14 = vld [vmem:[%s0] sm:$0xff]
  %v15 = vld [vmem:[%s0 + $0x8] sm:$0xff]
  %v16 = vld [vmem:[%s0 + $0x10] sm:$0xff]
  %v17 = vld [vmem:[%s0 + $0x18] sm:$0xff]
  %v18 = vld [vmem:[%s1] sm:$0x1]
  %v20 = vperm.slane %v18, 0
  %v22 = vmul.f32 %v14, %v20
  %v23 = vmul.f32 %v15, %v20
  %v24 = vmul.f32 %v16, %v20
  %v25 = vmul.f32 %v17, %v20
  %v26 = vld [vmem:[%s2] sm:$0x1]
  %v28 = vperm.slane %v26, 0
  %v30 = vadd.f32 %v22, %v28
  %v31 = vadd.f32 %v23, %v28
  %v32 = vadd.f32 %v24, %v28
  %v33 = vadd.f32 %v25, %v28
  %v34 = vsub.f32 0.0, %v30
  %v35 = vsub.f32 0.0, %v31
  %v36 = vsub.f32 0.0, %v32
  %v37 = vsub.f32 0.0, %v33
  %v38 = vmul.f32 %v34, 1.442695
  %v39 = vpow.pop %v38
  %v40 = vmul.f32 %v35, 1.442695
  %v41 = vpow.pop %v40
  %v42 = vmul.f32 %v36, 1.442695
  %v43 = vpow.pop %v42
  %v44 = vmul.f32 %v37, 1.442695
  %v45 = vpow.pop %v44
  %v46 = vadd.f32 %v39, 1.0
  %v47 = vadd.f32 %v41, 1.0
  %v48 = vadd.f32 %v43, 1.0
  %v49 = vadd.f32 %v45, 1.0
  %v50 = vrcp.pop %v46
  %v51 = vmul.f32 %v46, %v50
  %v52 = vsub.f32 1.0, %v51
  %v53 = vmul.f32 %v50, %v52
  %v54 = vadd.f32 %v50, %v53
  %vm55 = vweird.f32 %v46
  %vm56 = vweird.f32 %v50
  %vm57 = vmor %vm55, %vm56
  %v58 = vsel %vm57, %v50, %v54
  %v59 = vand.u32 2147483647, %v46
  %vm60 = vcmp.eq.f32.partialorder %v59, 8.507059e+37
  %v61 = vand.u32 %v46, 2147483648
  %v62 = vor.u32 1.1754944e-38, %v61
  %v63 = vsel %vm60, %v62, %v58
  %v64 = vmul.f32 1.0, %v63
  %v65 = vrcp.pop %v47
  %v66 = vmul.f32 %v47, %v65
  %v67 = vsub.f32 1.0, %v66
  %v68 = vmul.f32 %v65, %v67
  %v69 = vadd.f32 %v65, %v68
  %vm70 = vweird.f32 %v47
  %vm71 = vweird.f32 %v65
  %vm72 = vmor %vm70, %vm71
  %v73 = vsel %vm72, %v65, %v69
  %v74 = vand.u32 2147483647, %v47
  %vm75 = vcmp.eq.f32.partialorder %v74, 8.507059e+37
  %v76 = vand.u32 %v47, 2147483648
  %v77 = vor.u32 1.1754944e-38, %v76
  %v78 = vsel %vm75, %v77, %v73
  %v79 = vmul.f32 1.0, %v78
  %v80 = vrcp.pop %v48
  %v81 = vmul.f32 %v48, %v80
  %v82 = vsub.f32 1.0, %v81
  %v83 = vmul.f32 %v80, %v82
  %v84 = vadd.f32 %v80, %v83
  %vm85 = vweird.f32 %v48
  %vm86 = vweird.f32 %v80
  %vm87 = vmor %vm85, %vm86
  %v88 = vsel %vm87, %v80, %v84
  %v89 = vand.u32 2147483647, %v48
  %vm90 = vcmp.eq.f32.partialorder %v89, 8.507059e+37
  %v91 = vand.u32 %v48, 2147483648
  %v92 = vor.u32 1.1754944e-38, %v91
  %v93 = vsel %vm90, %v92, %v88
  %v94 = vmul.f32 1.0, %v93
  %v95 = vrcp.pop %v49
  %v96 = vmul.f32 %v49, %v95
  %v97 = vsub.f32 1.0, %v96
  %v98 = vmul.f32 %v95, %v97
  %v99 = vadd.f32 %v95, %v98
  %vm100 = vweird.f32 %v49
  %vm101 = vweird.f32 %v95
  %vm102 = vmor %vm100, %vm101
  %v103 = vsel %vm102, %v95, %v99
  %v104 = vand.u32 2147483647, %v49
  %vm105 = vcmp.eq.f32.partialorder %v104, 8.507059e+37
  %v106 = vand.u32 %v49, 2147483648
  %v107 = vor.u32 1.1754944e-38, %v106
  %v108 = vsel %vm105, %v107, %v103
  %v109 = vmul.f32 1.0, %v108
  %v110 = vmul.f32 %v30, %v64
  %v111 = vmul.f32 %v31, %v79
  %v112 = vmul.f32 %v32, %v94
  %v113 = vmul.f32 %v33, %v109
  %114 = vst [vmem:[%s3] sm:$0xff] %v110
  %115 = vst [vmem:[%s3 + $0x8] sm:$0xff] %v111
  %116 = vst [vmem:[%s3 + $0x10] sm:$0xff] %v112
  %117 = vst [vmem:[%s3 + $0x18] sm:$0xff] %v113
  // Predicated region
  $region14: #{discriminator_feature_forward.21} parent=0 // pred_check
    _
  $region15: #{discriminator_feature_forward.21} parent=0 // pred_check_branch
    %119 = sbr.rel (0) target = $region17
  $region16: #{discriminator_feature_forward.21} parent=0 // pred_region
    _
  $region17: #{discriminator_feature_forward.21} parent=0 // pred_fallthru
    _
  // Predicated region
  $region18: #{discriminator_feature_forward.21} parent=0 // pred_check
    _
  $region19: #{discriminator_feature_forward.21} parent=0 // pred_check_branch
    %121 = sbr.rel (0) target = $region21
  $region20: #{discriminator_feature_forward.21} parent=0 // pred_region
    _
  $region21: #{discriminator_feature_forward.21} parent=0 // pred_fallthru
    _

// kernel: discriminator_feature_forward.20
$region0: #{discriminator_feature_forward.20}
  #allocation0 [shape = 'u32[]', space=smem, size = 0x4, offset = 0x4, fixed_abs, tag = 'smem constant byte address 0x4 - core index']
  #allocation1 [shape = 'u32[72,128]{1,0:T(1,128)}', space=vmem, size = 0x9000, scoped, tag = 'internal scratch']
  #allocation2 [shape = 'f32[32,128]{1,0:T(8,128)}', space=vmem, size = 0x4000, scoped, tag = 'scratch operand']
  %s0 = inlined_call_operand.vmem [shape: bf16[32,1152], index: 0, kind: input, shape index: {}]
  %s1 = inlined_call_operand.vmem [shape: bf16[1152,128], index: 1, kind: input, shape index: {}]
  %s2 = inlined_call_operand.vmem [shape: f32[1,128], index: 2, kind: input, shape index: {}]
  %s3 = inlined_call_operand.vmem [shape: f32[32,128], index: 3, kind: output, shape index: {0}]
  %s4 = inlined_call_operand.vmem [shape: f32[1,2,128], index: 4, kind: output, shape index: {1}]
  %5 = xla_tuple %s3, %s4
  %s6 = sld [smem:[#allocation0]]
  $region87: #{discriminator_feature_forward.20} parent=0
    _
  %s8 = ssub.s32 1, %s6
  %s9 = scalar_select 0, %s8, %s6
  $region1: #{discriminator_feature_forward.20} parent=0
    #allocation3 [shape = 'u8[49152]{0}', space=vmem, size = 0xc000, scoped, tag = 'input window, operand 0']
    loop: start=0, step=1, limit=5
    $region2: #{discriminator_feature_forward.20} parent=1 // loop_pre_header
      _
    $region3: #{discriminator_feature_forward.20} parent=1 // loop_header
      %s11 = sphi 0, %s15
      %p12 = scmp.ge.s32.totalorder %s11, 5
      %s18 = sphi 0, %s37
      %s19 = sphi 0, %s33
      %s20 = sphi 0, %s29
      %s21 = sphi 0, %s18
      %s22 = sphi 0, %s19
      %s23 = sphi 0, %s20
      %s24 = sphi 0, %s21
      %s25 = sphi 0, %s22
      %s26 = sphi 0, %s23
      %s42 = sphi 0, %s44
      %s45 = sphi 0, %s42
      %s46 = sphi 0, %s45
      %s62 = sphi 0, %s46
      %s70 = sphi 0, %s72
      %s73 = sphi 0, %s70
      %s74 = sphi 0, %s73
      %s90 = sphi 0, %s74
      %s96 = sphi 0, %s98
      %s99 = sphi 0, %s96
      %s100 = sphi 0, %s99
      %s116 = sphi 0, %s100
      %s124 = sphi 0, %s126
      %s127 = sphi 0, %s124
      %s128 = sphi 0, %s127
      %s144 = sphi 0, %s128
      %s152 = sphi 0, %s154
      %s155 = sphi 0, %s152
      %s156 = sphi 0, %s155
      %s172 = sphi 0, %s156
    $region4: #{discriminator_feature_forward.20} parent=1 // loop_header_branch
      %14 = sbr.rel (%p12) target = $region8
    $region5: #{discriminator_feature_forward.20} parent=1 // loop_body
      %s16 = ssub.s32 %s11, 1
      %s17 = ssub.s32 %s11, 2
      %s27 = sadd.s32 1, %s20
      %p28 = scmp.ge.s32.totalorder %s27, 3
      %s29 = scalar_select %p28, 0, %s27
      %s30 = sadd.s32 1, %s19
      %s31 = scalar_select %p28, %s30, %s19
      %p32 = scmp.ge.s32.totalorder %s31, 1
      %s33 = scalar_select %p32, 0, %s31
      %s34 = sadd.s32 1, %s18
      %s35 = scalar_select %p32, %s34, %s18
      %p36 = scmp.ge.s32.totalorder %s35, 1
      %s37 = scalar_select %p36, 0, %s35
      %s38 = ssub.s32 %s18, %s37
      %s39 = ssub.s32 %s20, %s29
      %s40 = sor.u32 %s38, %s39
      %p41 = scmp.eq.s32.totalorder %s40, 0
      %s43 = sadd.s32 %s42, 1
      %s44 = scalar_select %p41, %s42, %s43
      %p47 = pneg %p41
      %p48 = scmp.eq.s32.totalorder %s11, 2
      %p49 = por %p47, %p48
      %p50 = scmp.ne.s32.totalorder %s42, %s45
      %p51 = scmp.eq.s32.totalorder %s11, 0
      %p52 = por %p50, %p51
      %p53 = scmp.ne.s32.totalorder %s42, %s45
      %p54 = scmp.eq.s32.totalorder %s16, 2
      %p55 = por %p53, %p54
      %p56 = scmp.ne.s32.totalorder %s45, %s46
      %p57 = scmp.eq.s32.totalorder %s16, 0
      %p58 = por %p56, %p57
      %p59 = scmp.ne.s32.totalorder %s45, %s46
      %p60 = scmp.eq.s32.totalorder %s17, 2
      %p61 = por %p59, %p60
      %p63 = scmp.ne.s32.totalorder %s46, %s62
      %p64 = scmp.eq.s32.totalorder %s17, 0
      %p65 = por %p63, %p64
      %s66 = ssub.s32 %s20, %s29
      %s67 = ssub.s32 %s19, %s33
      %s68 = sor.u32 %s66, %s67
      %p69 = scmp.eq.s32.totalorder %s68, 0
      %s71 = sadd.s32 %s70, 1
      %s72 = scalar_select %p69, %s70, %s71
      %p75 = pneg %p69
      %p76 = scmp.eq.s32.totalorder %s11, 2
      %p77 = por %p75, %p76
      %p78 = scmp.ne.s32.totalorder %s70, %s73
      %p79 = scmp.eq.s32.totalorder %s11, 0
      %p80 = por %p78, %p79
      %p81 = scmp.ne.s32.totalorder %s70, %s73
      %p82 = scmp.eq.s32.totalorder %s16, 2
      %p83 = por %p81, %p82
      %p84 = scmp.ne.s32.totalorder %s73, %s74
      %p85 = scmp.eq.s32.totalorder %s16, 0
      %p86 = por %p84, %p85
      %p87 = scmp.ne.s32.totalorder %s73, %s74
      %p88 = scmp.eq.s32.totalorder %s17, 2
      %p89 = por %p87, %p88
      %p91 = scmp.ne.s32.totalorder %s74, %s90
      %p92 = scmp.eq.s32.totalorder %s17, 0
      %p93 = por %p91, %p92
      %s94 = ssub.s32 %s19, %s33
      %p95 = scmp.eq.s32.totalorder %s94, 0
      %s97 = sadd.s32 %s96, 1
      %s98 = scalar_select %p95, %s96, %s97
      %p101 = pneg %p95
      %p102 = scmp.eq.s32.totalorder %s11, 2
      %p103 = por %p101, %p102
      %p104 = scmp.ne.s32.totalorder %s96, %s99
      %p105 = scmp.eq.s32.totalorder %s11, 0
      %p106 = por %p104, %p105
      %p107 = scmp.ne.s32.totalorder %s96, %s99
      %p108 = scmp.eq.s32.totalorder %s16, 2
      %p109 = por %p107, %p108
      %p110 = scmp.ne.s32.totalorder %s99, %s100
      %p111 = scmp.eq.s32.totalorder %s16, 0
      %p112 = por %p110, %p111
      %p113 = scmp.ne.s32.totalorder %s99, %s100
      %p114 = scmp.eq.s32.totalorder %s17, 2
      %p115 = por %p113, %p114
      %p117 = scmp.ne.s32.totalorder %s100, %s116
      %p118 = scmp.eq.s32.totalorder %s17, 0
      %p119 = por %p117, %p118
      %s120 = ssub.s32 %s18, %s37
      %s121 = ssub.s32 %s19, %s33
      %s122 = sor.u32 %s120, %s121
      %p123 = scmp.eq.s32.totalorder %s122, 0
      %s125 = sadd.s32 %s124, 1
      %s126 = scalar_select %p123, %s124, %s125
      %p129 = pneg %p123
      %p130 = scmp.eq.s32.totalorder %s11, 2
      %p131 = por %p129, %p130
      %p132 = scmp.ne.s32.totalorder %s124, %s127
      %p133 = scmp.eq.s32.totalorder %s11, 0
      %p134 = por %p132, %p133
      %p135 = scmp.ne.s32.totalorder %s124, %s127
      %p136 = scmp.eq.s32.totalorder %s16, 2
      %p137 = por %p135, %p136
      %p138 = scmp.ne.s32.totalorder %s127, %s128
      %p139 = scmp.eq.s32.totalorder %s16, 0
      %p140 = por %p138, %p139
      %p141 = scmp.ne.s32.totalorder %s127, %s128
      %p142 = scmp.eq.s32.totalorder %s17, 2
      %p143 = por %p141, %p142
      %p145 = scmp.ne.s32.totalorder %s128, %s144
      %p146 = scmp.eq.s32.totalorder %s17, 0
      %p147 = por %p145, %p146
      %s148 = ssub.s32 %s18, %s37
      %s149 = ssub.s32 %s19, %s33
      %s150 = sor.u32 %s148, %s149
      %p151 = scmp.eq.s32.totalorder %s150, 0
      %s153 = sadd.s32 %s152, 1
      %s154 = scalar_select %p151, %s152, %s153
      %p157 = pneg %p151
      %p158 = scmp.eq.s32.totalorder %s11, 2
      %p159 = por %p157, %p158
      %p160 = scmp.ne.s32.totalorder %s152, %s155
      %p161 = scmp.eq.s32.totalorder %s11, 0
      %p162 = por %p160, %p161
      %p163 = scmp.ne.s32.totalorder %s152, %s155
      %p164 = scmp.eq.s32.totalorder %s16, 2
      %p165 = por %p163, %p164
      %p166 = scmp.ne.s32.totalorder %s155, %s156
      %p167 = scmp.eq.s32.totalorder %s16, 0
      %p168 = por %p166, %p167
      %p169 = scmp.ne.s32.totalorder %s155, %s156
      %p170 = scmp.eq.s32.totalorder %s17, 2
      %p171 = por %p169, %p170
      %p173 = scmp.ne.s32.totalorder %s156, %s172
      %p174 = scmp.eq.s32.totalorder %s17, 0
      %p175 = por %p173, %p174
      %p176 = scmp.le.s32.totalorder 1, %s11
      %p177 = scmp.lt.s32.totalorder %s11, 4
      %p178 = pnand %p176, %p177
      %p179 = pneg %p178
      // Predicated region
      $region9: #{discriminator_feature_forward.20} parent=5 // pred_check
        _
      $region10: #{discriminator_feature_forward.20} parent=5 // pred_check_branch
        %181 = sbr.rel (%p178) target = $region12
      $region11: #{discriminator_feature_forward.20} parent=5 // pred_region
        %s182 = ssub.s32 %s11, 1
        // Predicated region
        $region13: #{discriminator_feature_forward.20} parent=11 // pred_check
          %p183 = pneg %p112
        $region14: #{discriminator_feature_forward.20} parent=11 // pred_check_branch
          %185 = sbr.rel (%p183) target = $region16
        $region15: #{discriminator_feature_forward.20} parent=11 // pred_region
          %p186 = scmp.lt.s32.totalorder %s22, 0
          %s187 = scalar_select %p186, %s22, 0
          %s188 = scalar_lea.vmem %s2, %s187
        $region16: #{discriminator_feature_forward.20} parent=11 // pred_fallthru
          _
      $region12: #{discriminator_feature_forward.20} parent=5 // pred_fallthru
        _
      %p189 = scmp.lt.s32.totalorder %s11, 3
      // Predicated region
      $region17: #{discriminator_feature_forward.20} parent=5 // pred_check
        %p190 = pneg %p189
      $region18: #{discriminator_feature_forward.20} parent=5 // pred_check_branch
        %192 = sbr.rel (%p190) target = $region20
      $region19: #{discriminator_feature_forward.20} parent=5 // pred_region
        // Predicated region
        $region21: #{discriminator_feature_forward.20} parent=19 // pred_check
          %p193 = pneg %p52
        $region22: #{discriminator_feature_forward.20} parent=19 // pred_check_branch
          %195 = sbr.rel (%p193) target = $region24
        $region23: #{discriminator_feature_forward.20} parent=19 // pred_region
          %s196 = sand.u32 %s42, 1
          %s197 = sand.u32 %s42, 1
          %s198 = smul.addr %s197, 48
          %s199 = scalar_lea.vmem [#allocation3], %s198
          %s200 = smul.u32 4, %s18
          %s201 = smul.u32 3, %s20
          %s202 = smul.addr %s200, 9
          %s203 = sadd.s32 %s201, %s202
          %s204 = smul.addr %s203, 4
          %s205 = scalar_lea.vmem %s0, %s204
          // Predicated region
          $region25: #{discriminator_feature_forward.20} parent=23 // pred_check
            _
          $region26: #{discriminator_feature_forward.20} parent=23 // pred_check_branch
            %207 = sbr.rel (0) target = $region28
          $region27: #{discriminator_feature_forward.20} parent=23 // pred_region
            // Predicated region
            $region29: #{discriminator_feature_forward.20} parent=27 // pred_check
              _
            $region30: #{discriminator_feature_forward.20} parent=27 // pred_check_branch
              %209 = sbr.rel (0) target = $region32
            $region31: #{discriminator_feature_forward.20} parent=27 // pred_region
              %s210 = scalar_lea.vmem %s205, 8
              %s211 = scalar_lea.vmem %s199, 8 [#allocation3]
              loop: start=0, step=1, limit=1
              $region33: #{discriminator_feature_forward.20} parent=31 // loop_pre_header
                _
              $region34: #{discriminator_feature_forward.20} parent=31 // loop_header
                %s213 = sphi 0, %s217
                %p214 = scmp.ge.s32.totalorder %s213, 1
                %s218 = sphi %s205, %s205
                %s219 = sphi %s199, %s199
              $region35: #{discriminator_feature_forward.20} parent=31 // loop_header_branch
                %216 = sbr.rel (%p214) target = $region39
              $region36: #{discriminator_feature_forward.20} parent=31 // loop_body
                %v220 = vld [vmem:[%s218] sm:$0xff]
                %221 = vst [vmem:[%s219] sm:$0xff] %v220
                %v222 = vld [vmem:[%s218 + $0x24] sm:$0xff]
                %223 = vst [vmem:[%s219 + $0xc] sm:$0xff] %v222
                %v224 = vld [vmem:[%s218 + $0x48] sm:$0xff]
                %225 = vst [vmem:[%s219 + $0x18] sm:$0xff] %v224
                %v226 = vld [vmem:[%s218 + $0x6c] sm:$0xff]
                %227 = vst [vmem:[%s219 + $0x24] sm:$0xff] %v226
              $region37: #{discriminator_feature_forward.20} parent=31 // loop_footer
                %s217 = sadd.s32 1, %s213
              $region38: #{discriminator_feature_forward.20} parent=31 // loop_footer_branch
                %212 = sbr.rel target = $region34
              $region39: #{discriminator_feature_forward.20} parent=31 // loop_exit
                _
              %s229 = ssub.s32 16, 1
              loop: start=0, step=1, limit=1
              $region40: #{discriminator_feature_forward.20} parent=31 // loop_pre_header
                _
              $region41: #{discriminator_feature_forward.20} parent=31 // loop_header
                %s231 = sphi 0, %s235
                %p232 = scmp.ge.s32.totalorder %s231, 1
                %s236 = sphi %s210, %s210
                %s237 = sphi %s211, %s211
              $region42: #{discriminator_feature_forward.20} parent=31 // loop_header_branch
                %234 = sbr.rel (%p232) target = $region46
              $region43: #{discriminator_feature_forward.20} parent=31 // loop_body
                %v238 = vld [vmem:[%s236] sm:%s229]
                %239 = vst [vmem:[%s237] sm:%s229] %v238
                %v240 = vld [vmem:[%s236 + $0x24] sm:%s229]
                %241 = vst [vmem:[%s237 + $0xc] sm:%s229] %v240
                %v242 = vld [vmem:[%s236 + $0x48] sm:%s229]
                %243 = vst [vmem:[%s237 + $0x18] sm:%s229] %v242
                %v244 = vld [vmem:[%s236 + $0x6c] sm:%s229]
                %245 = vst [vmem:[%s237 + $0x24] sm:%s229] %v244
              $region44: #{discriminator_feature_forward.20} parent=31 // loop_footer
                %s235 = sadd.s32 1, %s231
              $region45: #{discriminator_feature_forward.20} parent=31 // loop_footer_branch
                %230 = sbr.rel target = $region41
              $region46: #{discriminator_feature_forward.20} parent=31 // loop_exit
                _
            $region32: #{discriminator_feature_forward.20} parent=27 // pred_fallthru
              _
          $region28: #{discriminator_feature_forward.20} parent=23 // pred_fallthru
            _
          %246 = vnop
        $region24: #{discriminator_feature_forward.20} parent=19 // pred_fallthru
          _
        // Predicated region
        $region47: #{discriminator_feature_forward.20} parent=19 // pred_check
          %p247 = pneg %p80
        $region48: #{discriminator_feature_forward.20} parent=19 // pred_check_branch
          %249 = sbr.rel (%p247) target = $region50
        $region49: #{discriminator_feature_forward.20} parent=19 // pred_region
          %s250 = smul.u32 48, %s20
          %p251 = scmp.lt.s32.totalorder %s250, 143
          %s252 = scalar_select %p251, %s250, 143
          %p253 = scmp.lt.s32.totalorder %s19, 0
          %s254 = scalar_select %p253, %s19, 0
          %s255 = sadd.s32 %s254, %s252
          %s256 = smul.addr %s255, 4
          %s257 = scalar_lea.vmem %s1, %s256
          %s258 = smul.u32 48, %s20
        $region50: #{discriminator_feature_forward.20} parent=19 // pred_fallthru
          _
      $region20: #{discriminator_feature_forward.20} parent=5 // pred_fallthru
        _
      %p259 = scmp.le.s32.totalorder 1, %s11
      %p260 = scmp.lt.s32.totalorder %s11, 4
      %p261 = pnand %p259, %p260
      %p262 = pneg %p261
      // Predicated region
      $region51: #{discriminator_feature_forward.20} parent=5 // pred_check
        _
      $region52: #{discriminator_feature_forward.20} parent=5 // pred_check_branch
        %264 = sbr.rel (%p261) target = $region54
      $region53: #{discriminator_feature_forward.20} parent=5 // pred_region
        %s265 = ssub.s32 %s11, 1
        %s266 = sand.u32 %s45, 1
        %s267 = sand.u32 %s45, 1
        %s268 = smul.addr %s267, 48
        %s269 = scalar_lea.vmem [#allocation3], %s268
        // Predicated region
        $region55: #{discriminator_feature_forward.20} parent=53 // pred_check
          %p270 = pneg %p58
        $region56: #{discriminator_feature_forward.20} parent=53 // pred_check_branch
          %272 = sbr.rel (%p270) target = $region58
        $region57: #{discriminator_feature_forward.20} parent=53 // pred_region
          _
        $region58: #{discriminator_feature_forward.20} parent=53 // pred_fallthru
          _
        %s273 = sand.u32 %s45, 1
        %s274 = sand.u32 %s45, 1
        %s275 = smul.addr %s274, 48
        %s276 = scalar_lea.vmem [#allocation3], %s275
        %p277 = pneg %p58
        %p278 = pneg %p55
        %s279 = smul.u32 48, %s23
        %p280 = scmp.lt.s32.totalorder %s279, 143
        %s281 = scalar_select %p280, %s279, 143
        %p282 = scmp.lt.s32.totalorder %s22, 0
        %s283 = scalar_select %p282, %s22, 0
        %s284 = sadd.s32 %s283, %s281
        %s285 = smul.addr %s284, 4
        %s286 = scalar_lea.vmem %s1, %s285
        %p287 = pneg %p86
        %p288 = pneg %p83
        %p289 = scmp.lt.s32.totalorder %s22, 0
        %s290 = scalar_select %p289, %s22, 0
        %s291 = scalar_lea.vmem %s2, %s290
        %p292 = pneg %p112
        %p293 = pneg %p109
        %p294 = pneg %p140
        %p295 = pneg %p137
        %s296 = smul.u32 4, %s21
        %p297 = scmp.lt.s32.totalorder %s296, 3
        %s298 = scalar_select %p297, %s296, 3
        %p299 = scmp.lt.s32.totalorder %s22, 0
        %s300 = scalar_select %p299, %s22, 0
        %s301 = sadd.s32 %s300, %s298
        %s302 = smul.addr %s301, 8
        %s303 = scalar_lea.vmem %s3, %s302
        %p304 = pneg %p168
        %p305 = pneg %p165
        %p306 = scmp.lt.s32.totalorder %s21, 0
        %s307 = scalar_select %p306, %s21, 0
        %p308 = scmp.lt.s32.totalorder %s22, 0
        %s309 = scalar_select %p308, %s22, 0
        %s310 = sadd.s32 %s309, %s307
        %s311 = smul.addr %s310, 2
        %s312 = scalar_lea.vmem %s4, %s311
        %s313 = smul.u32 4, %s21
        %s314 = smul.u32 3, %s23
        %s315 = smul.u32 48, %s23
        %p316 = scmp.lt.s32.totalorder %s315, 143
        %s317 = scalar_select %p316, %s315, 143
        %p318 = scmp.lt.s32.totalorder %s22, 0
        %s319 = scalar_select %p318, %s22, 0
        %s320 = sadd.s32 %s319, %s317
        %s321 = smul.addr %s320, 4
        %s322 = scalar_lea.vmem %s1, %s321
        %s323 = smul.u32 48, %s23
        %p324 = scmp.lt.s32.totalorder %s22, 0
        %s325 = scalar_select %p324, %s22, 0
        %s326 = scalar_lea.vmem %s2, %s325
        %s327 = smul.u32 4, %s21
        %p328 = scmp.lt.s32.totalorder %s327, 3
        %s329 = scalar_select %p328, %s327, 3
        %p330 = scmp.lt.s32.totalorder %s22, 0
        %s331 = scalar_select %p330, %s22, 0
        %s332 = sadd.s32 %s331, %s329
        %s333 = smul.addr %s332, 8
        %s334 = scalar_lea.vmem %s3, %s333
        %s335 = smul.u32 4, %s21
        %p336 = scmp.lt.s32.totalorder %s21, 0
        %s337 = scalar_select %p336, %s21, 0
        %p338 = scmp.lt.s32.totalorder %s22, 0
        %s339 = scalar_select %p338, %s22, 0
        %s340 = sadd.s32 %s339, %s337
        %s341 = smul.addr %s340, 2
        %s342 = scalar_lea.vmem %s4, %s341
        %p343 = scmp.eq.s32.totalorder %s23, 0
        // Predicated region
        $region59: #{discriminator_feature_forward.20} parent=53 // pred_check
          %p344 = pneg %p343
        $region60: #{discriminator_feature_forward.20} parent=53 // pred_check_branch
          %346 = sbr.rel (%p344) target = $region62
        $region61: #{discriminator_feature_forward.20} parent=53 // pred_region
          %347 = vst [vmem:[#allocation2] sm:$0xff] 0.0
          %348 = vst [vmem:[#allocation2 + $0x8] sm:$0xff] 0.0
          %349 = vst [vmem:[#allocation2 + $0x10] sm:$0xff] 0.0
          %350 = vst [vmem:[#allocation2 + $0x18] sm:$0xff] 0.0
        $region62: #{discriminator_feature_forward.20} parent=53 // pred_fallthru
          _
        %v351 = vld [vmem:[#allocation2] sm:$0xff]
        %v352 = vld [vmem:[#allocation2 + $0x8] sm:$0xff]
        %v353 = vld [vmem:[#allocation2 + $0x10] sm:$0xff]
        %v354 = vld [vmem:[#allocation2 + $0x18] sm:$0xff]
        %v355 = vld [vmem:[%s269] sm:$0xff]
        %v356 = vld [vmem:[%s269 + $0x8] sm:$0xf]
        %v357 = vld [vmem:[%s269 + $0xc] sm:$0xff]
        %v358 = vld [vmem:[%s269 + $0x14] sm:$0xf]
        %v359 = vld [vmem:[%s269 + $0x18] sm:$0xff]
        %v360 = vld [vmem:[%s269 + $0x20] sm:$0xf]
        %v361 = vld [vmem:[%s269 + $0x24] sm:$0xff]
        %v362 = vld [vmem:[%s269 + $0x2c] sm:$0xf]
        %v363 = vld [vmem:[%s322] sm:$0xf]
        %v364 = vld [vmem:[%s322 + $0x4] sm:$0xf]
        %v365 = vld [vmem:[%s322 + $0x8] sm:$0xf]
        %v366 = vld [vmem:[%s322 + $0xc] sm:$0xf]
        %v367 = vld [vmem:[%s322 + $0x10] sm:$0xf]
        %v368 = vld [vmem:[%s322 + $0x14] sm:$0xf]
        %v369 = vld [vmem:[%s322 + $0x18] sm:$0xf]
        %v370 = vld [vmem:[%s322 + $0x1c] sm:$0xf]
        %v371 = vld [vmem:[%s322 + $0x20] sm:$0xf]
        %v372 = vld [vmem:[%s322 + $0x24] sm:$0xf]
        %v373 = vld [vmem:[%s322 + $0x28] sm:$0xf]
        %v374 = vld [vmem:[%s322 + $0x2c] sm:$0xf]
        %v375 = vld [vmem:[%s322 + $0x30] sm:$0xf]
        %v376 = vld [vmem:[%s322 + $0x34] sm:$0xf]
        %v377 = vld [vmem:[%s322 + $0x38] sm:$0xf]
        %v378 = vld [vmem:[%s322 + $0x3c] sm:$0xf]
        %v379 = vld [vmem:[%s322 + $0x40] sm:$0xf]
        %v380 = vld [vmem:[%s322 + $0x44] sm:$0xf]
        %v381 = vld [vmem:[%s322 + $0x48] sm:$0xf]
        %v382 = vld [vmem:[%s322 + $0x4c] sm:$0xf]
        %v383 = vld [vmem:[%s322 + $0x50] sm:$0xf]
        %v384 = vld [vmem:[%s322 + $0x54] sm:$0xf]
        %v385 = vld [vmem:[%s322 + $0x58] sm:$0xf]
        %v386 = vld [vmem:[%s322 + $0x5c] sm:$0xf]
        %v387 = vld [vmem:[%s322 + $0x60] sm:$0xf]
        %v388 = vld [vmem:[%s322 + $0x64] sm:$0xf]
        %v389 = vld [vmem:[%s322 + $0x68] sm:$0xf]
        %v390 = vld [vmem:[%s322 + $0x6c] sm:$0xf]
        %v391 = vld [vmem:[%s322 + $0x70] sm:$0xf]
        %v392 = vld [vmem:[%s322 + $0x74] sm:$0xf]
        %v393 = vld [vmem:[%s322 + $0x78] sm:$0xf]
        %v394 = vld [vmem:[%s322 + $0x7c] sm:$0xf]
        %v395 = vld [vmem:[%s322 + $0x80] sm:$0xf]
        %v396 = vld [vmem:[%s322 + $0x84] sm:$0xf]
        %v397 = vld [vmem:[%s322 + $0x88] sm:$0xf]
        %v398 = vld [vmem:[%s322 + $0x8c] sm:$0xf]
        %v399 = vld [vmem:[%s322 + $0x90] sm:$0xf]
        %v400 = vld [vmem:[%s322 + $0x94] sm:$0xf]
        %v401 = vld [vmem:[%s322 + $0x98] sm:$0xf]
        %v402 = vld [vmem:[%s322 + $0x9c] sm:$0xf]
        %v403 = vld [vmem:[%s322 + $0xa0] sm:$0xf]
        %v404 = vld [vmem:[%s322 + $0xa4] sm:$0xf]
        %v405 = vld [vmem:[%s322 + $0xa8] sm:$0xf]
        %v406 = vld [vmem:[%s322 + $0xac] sm:$0xf]
        %v407 = vld [vmem:[%s322 + $0xb0] sm:$0xf]
        %v408 = vld [vmem:[%s322 + $0xb4] sm:$0xf]
        %v409 = vld [vmem:[%s322 + $0xb8] sm:$0xf]
        %v410 = vld [vmem:[%s322 + $0xbc] sm:$0xf]
        %v419 = vunpack.c.l.b16 %v355
        %v420 = vunpack.c.h.b16 %v355
        %v421 = vunpack.c.l.b16 %v356
        %v422 = vunpack.c.l.b16 %v357
        %v423 = vunpack.c.h.b16 %v357
        %v424 = vunpack.c.l.b16 %v358
        %v425 = vunpack.c.l.b16 %v359
        %v426 = vunpack.c.h.b16 %v359
        %v427 = vunpack.c.l.b16 %v360
        %v428 = vunpack.c.l.b16 %v361
        %v429 = vunpack.c.h.b16 %v361
        %v430 = vunpack.c.l.b16 %v362
        %v431 = vpack.c.b16 %v422, %v419
        %v432 = vpack.c.b16 %v423, %v420
        %v433 = vpack.c.b16 %v424, %v421
        %v434 = vpack.c.b16 %v428, %v425
        %v435 = vpack.c.b16 %v429, %v426
        %v436 = vpack.c.b16 %v430, %v427
        %v491 = vunpack.c.l.b16 %v363
        %v492 = vunpack.c.l.b16 %v364
        %v493 = vunpack.c.l.b16 %v365
        %v494 = vunpack.c.l.b16 %v366
        %v495 = vunpack.c.l.b16 %v367
        %v496 = vunpack.c.l.b16 %v368
        %v497 = vunpack.c.l.b16 %v369
        %v498 = vunpack.c.l.b16 %v370
        %v499 = vunpack.c.l.b16 %v371
        %v500 = vunpack.c.l.b16 %v372
        %v501 = vunpack.c.l.b16 %v373
        %v502 = vunpack.c.l.b16 %v374
        %v503 = vunpack.c.l.b16 %v375
        %v504 = vunpack.c.l.b16 %v376
        %v505 = vunpack.c.l.b16 %v377
        %v506 = vunpack.c.l.b16 %v378
        %v507 = vunpack.c.l.b16 %v379
        %v508 = vunpack.c.l.b16 %v380
        %v509 = vunpack.c.l.b16 %v381
        %v510 = vunpack.c.l.b16 %v382
        %v511 = vunpack.c.l.b16 %v383
        %v512 = vunpack.c.l.b16 %v384
        %v513 = vunpack.c.l.b16 %v385
        %v514 = vunpack.c.l.b16 %v386
        %v515 = vunpack.c.l.b16 %v387
        %v516 = vunpack.c.l.b16 %v388
        %v517 = vunpack.c.l.b16 %v389
        %v518 = vunpack.c.l.b16 %v390
        %v519 = vunpack.c.l.b16 %v391
        %v520 = vunpack.c.l.b16 %v392
        %v521 = vunpack.c.l.b16 %v393
        %v522 = vunpack.c.l.b16 %v394
        %v523 = vunpack.c.l.b16 %v395
        %v524 = vunpack.c.l.b16 %v396
        %v525 = vunpack.c.l.b16 %v397
        %v526 = vunpack.c.l.b16 %v398
        %v527 = vunpack.c.l.b16 %v399
        %v528 = vunpack.c.l.b16 %v400
        %v529 = vunpack.c.l.b16 %v401
        %v530 = vunpack.c.l.b16 %v402
        %v531 = vunpack.c.l.b16 %v403
        %v532 = vunpack.c.l.b16 %v404
        %v533 = vunpack.c.l.b16 %v405
        %v534 = vunpack.c.l.b16 %v406
        %v535 = vunpack.c.l.b16 %v407
        %v536 = vunpack.c.l.b16 %v408
        %v537 = vunpack.c.l.b16 %v409
        %v538 = vunpack.c.l.b16 %v410
        %v539 = vpack.c.b16 %v492, %v491
        %v540 = vpack.c.b16 %v494, %v493
        %v541 = vpack.c.b16 %v496, %v495
        %v542 = vpack.c.b16 %v498, %v497
        %v543 = vpack.c.b16 %v500, %v499
        %v544 = vpack.c.b16 %v502, %v501
        %v545 = vpack.c.b16 %v504, %v503
        %v546 = vpack.c.b16 %v506, %v505
        %v547 = vpack.c.b16 %v508, %v507
        %v548 = vpack.c.b16 %v510, %v509
        %v549 = vpack.c.b16 %v512, %v511
        %v550 = vpack.c.b16 %v514, %v513
        %v551 = vpack.c.b16 %v516, %v515
        %v552 = vpack.c.b16 %v518, %v517
        %v553 = vpack.c.b16 %v520, %v519
        %v554 = vpack.c.b16 %v522, %v521
        %v555 = vpack.c.b16 %v524, %v523
        %v556 = vpack.c.b16 %v526, %v525
        %v557 = vpack.c.b16 %v528, %v527
        %v558 = vpack.c.b16 %v530, %v529
        %v559 = vpack.c.b16 %v532, %v531
        %v560 = vpack.c.b16 %v534, %v533
        %v561 = vpack.c.b16 %v536, %v535
        %v562 = vpack.c.b16 %v538, %v537
        %587 = vmatpush.bf16.msra.mxu0 %v546
        %588 = vmatpush.bf16.msra.mxu0 %v545
        %589 = vmatpush.bf16.msra.mxu0 %v544
        %590 = vmatpush.bf16.msra.mxu0 %v543
        %591 = vmatpush.bf16.msra.mxu0 %v542
        %592 = vmatpush.bf16.msra.mxu0 %v541
        %593 = vmatpush.bf16.msra.mxu0 %v540
        %594 = vmatpush.bf16.msra.mxu0 %v539
        %595 = vmatmul.bf16.gmra.mxu0 %v431
        %v596 = vpop.f32.mrf.mxu0
        %v597 = vadd.f32 0.0, %v596
        %v598 = vpop.f32.mrf.mxu0
        %v599 = vadd.f32 0.0, %v598
        %600 = vmatmul.bf16.gmra.mxu0 %v434
        %v601 = vpop.f32.mrf.mxu0
        %v602 = vadd.f32 0.0, %v601
        %v603 = vpop.f32.mrf.mxu0
        %v604 = vadd.f32 0.0, %v603
        %605 = vdwg.mxu0
        %606 = vmatpush.bf16.msra.mxu0 %v554
        %607 = vmatpush.bf16.msra.mxu0 %v553
        %608 = vmatpush.bf16.msra.mxu0 %v552
        %609 = vmatpush.bf16.msra.mxu0 %v551
        %610 = vmatpush.bf16.msra.mxu0 %v550
        %611 = vmatpush.bf16.msra.mxu0 %v549
        %612 = vmatpush.bf16.msra.mxu0 %v548
        %613 = vmatpush.bf16.msra.mxu0 %v547
        %614 = vmatmul.bf16.gmra.mxu0 %v432
        %v615 = vpop.f32.mrf.mxu0
        %v616 = vadd.f32 %v597, %v615
        %v617 = vpop.f32.mrf.mxu0
        %v618 = vadd.f32 %v599, %v617
        %619 = vmatmul.bf16.gmra.mxu0 %v435
        %v620 = vpop.f32.mrf.mxu0
        %v621 = vadd.f32 %v602, %v620
        %v622 = vpop.f32.mrf.mxu0
        %v623 = vadd.f32 %v604, %v622
        %624 = vdwg.mxu0
        %625 = vmatpush.bf16.msra.mxu0 %v562
        %626 = vmatpush.bf16.msra.mxu0 %v561
        %627 = vmatpush.bf16.msra.mxu0 %v560
        %628 = vmatpush.bf16.msra.mxu0 %v559
        %629 = vmatpush.bf16.msra.mxu0 %v558
        %630 = vmatpush.bf16.msra.mxu0 %v557
        %631 = vmatpush.bf16.msra.mxu0 %v556
        %632 = vmatpush.bf16.msra.mxu0 %v555
        %633 = vmatmul.bf16.gmra.mxu0 %v433
        %v634 = vpop.f32.mrf.mxu0
        %v635 = vadd.f32 %v616, %v634
        %v636 = vpop.f32.mrf.mxu0
        %v637 = vadd.f32 %v618, %v636
        %638 = vmatmul.bf16.gmra.mxu0 %v436
        %v639 = vpop.f32.mrf.mxu0
        %v640 = vadd.f32 %v621, %v639
        %v641 = vpop.f32.mrf.mxu0
        %v642 = vadd.f32 %v623, %v641
        %643 = vdwg.mxu0
        %v644 = vadd.f32 %v351, %v635
        %v645 = vadd.f32 %v352, %v637
        %v646 = vadd.f32 %v353, %v640
        %v647 = vadd.f32 %v354, %v642
        %648 = vst [vmem:[#allocation2] sm:$0xff] %v644
        %649 = vst [vmem:[#allocation2 + $0x8] sm:$0xff] %v645
        %650 = vst [vmem:[#allocation2 + $0x10] sm:$0xff] %v646
        %651 = vst [vmem:[#allocation2 + $0x18] sm:$0xff] %v647
        %p652 = scmp.eq.s32.totalorder %s23, 2
        // Predicated region
        $region63: #{discriminator_feature_forward.20} parent=53 // pred_check
          %p653 = pneg %p652
        $region64: #{discriminator_feature_forward.20} parent=53 // pred_check_branch
          %655 = sbr.rel (%p653) target = $region66
        $region65: #{discriminator_feature_forward.20} parent=53 // pred_region
          %v656 = vld [vmem:[#allocation2] sm:$0xff]
          %v657 = vld [vmem:[#allocation2 + $0x8] sm:$0xff]
          %v658 = vld [vmem:[#allocation2 + $0x10] sm:$0xff]
          %v659 = vld [vmem:[#allocation2 + $0x18] sm:$0xff]
          %v660 = vld [vmem:[%s326] sm:$0x1]
          %v662 = vperm.slane %v660, 0
          %v664 = vadd.f32 %v656, %v662
          %v665 = vadd.f32 %v657, %v662
          %v666 = vadd.f32 %v658, %v662
          %v667 = vadd.f32 %v659, %v662
          %668 = vst [vmem:[%s334] sm:$0xff] %v664
          %669 = vst [vmem:[%s334 + $0x8] sm:$0xff] %v665
          %670 = vst [vmem:[%s334 + $0x10] sm:$0xff] %v666
          %671 = vst [vmem:[%s334 + $0x18] sm:$0xff] %v667
          %v672 = vadd.f32 %v664, %v665
          %v673 = vadd.f32 %v672, %v666
          %v674 = vadd.f32 %v673, %v667
          %v675 = vrot.slane %v674, 4
          %v676 = vadd.f32 %v674, %v675
          %v677 = vrot.slane %v676, 2
          %v678 = vadd.f32 %v676, %v677
          %v679 = vrot.slane %v678, 1
          %v680 = vadd.f32 %v678, %v679
          %v681 = vmul.f32 %v664, %v664
          %v682 = vmul.f32 %v665, %v665
          %v683 = vmul.f32 %v666, %v666
          %v684 = vmul.f32 %v667, %v667
          %v685 = vadd.f32 %v681, %v682
          %v686 = vadd.f32 %v685, %v683
          %v687 = vadd.f32 %v686, %v684
          %v688 = vrot.slane %v687, 4
          %v689 = vadd.f32 %v687, %v688
          %v690 = vrot.slane %v689, 2
          %v691 = vadd.f32 %v689, %v690
          %v692 = vrot.slane %v691, 1
          %v693 = vadd.f32 %v691, %v692
          %vm694 = vcmask 1040384
          %v695 = vsel %vm694, %v680, %v693
          %696 = vst [vmem:[%s342] sm:$0x3] %v695
        $region66: #{discriminator_feature_forward.20} parent=53 // pred_fallthru
          _
        %s697 = smul.u32 4, %s21
        %p698 = scmp.lt.s32.totalorder %s697, 3
        %s699 = scalar_select %p698, %s697, 3
        %p700 = scmp.lt.s32.totalorder %s22, 0
        %s701 = scalar_select %p700, %s22, 0
        %s702 = sadd.s32 %s701, %s699
        %s703 = smul.addr %s702, 8
        %s704 = scalar_lea.vmem %s3, %s703
        %p705 = scmp.lt.s32.totalorder %s21, 0
        %s706 = scalar_select %p705, %s21, 0
        %p707 = scmp.lt.s32.totalorder %s22, 0
        %s708 = scalar_select %p707, %s22, 0
        %s709 = sadd.s32 %s708, %s706
        %s710 = smul.addr %s709, 2
        %s711 = scalar_lea.vmem %s4, %s710
        // Predicated region
        $region67: #{discriminator_feature_forward.20} parent=53 // pred_check
          %p712 = pneg %p137
        $region68: #{discriminator_feature_forward.20} parent=53 // pred_check_branch
          %714 = sbr.rel (%p712) target = $region70
        $region69: #{discriminator_feature_forward.20} parent=53 // pred_region
          %s715 = smul.u32 4, %s21
        $region70: #{discriminator_feature_forward.20} parent=53 // pred_fallthru
          _
        // Predicated region
        $region71: #{discriminator_feature_forward.20} parent=53 // pred_check
          %p716 = pneg %p165
        $region72: #{discriminator_feature_forward.20} parent=53 // pred_check_branch
          %718 = sbr.rel (%p716) target = $region74
        $region73: #{discriminator_feature_forward.20} parent=53 // pred_region
          _
        $region74: #{discriminator_feature_forward.20} parent=53 // pred_fallthru
          _
        // Predicated region
        $region75: #{discriminator_feature_forward.20} parent=53 // pred_check
          %p719 = pneg %p137
        $region76: #{discriminator_feature_forward.20} parent=53 // pred_check_branch
          %721 = sbr.rel (%p719) target = $region78
        $region77: #{discriminator_feature_forward.20} parent=53 // pred_region
          %s722 = smul.u32 4, %s21
          %p723 = scmp.lt.s32.totalorder %s722, 3
          %s724 = scalar_select %p723, %s722, 3
          %p725 = scmp.lt.s32.totalorder %s22, 0
          %s726 = scalar_select %p725, %s22, 0
          %s727 = sadd.s32 %s726, %s724
          %s728 = smul.addr %s727, 8
          %s729 = scalar_lea.vmem %s3, %s728
        $region78: #{discriminator_feature_forward.20} parent=53 // pred_fallthru
          _
        // Predicated region
        $region79: #{discriminator_feature_forward.20} parent=53 // pred_check
          %p730 = pneg %p165
        $region80: #{discriminator_feature_forward.20} parent=53 // pred_check_branch
          %732 = sbr.rel (%p730) target = $region82
        $region81: #{discriminator_feature_forward.20} parent=53 // pred_region
          %p733 = scmp.lt.s32.totalorder %s21, 0
          %s734 = scalar_select %p733, %s21, 0
          %p735 = scmp.lt.s32.totalorder %s22, 0
          %s736 = scalar_select %p735, %s22, 0
          %s737 = sadd.s32 %s736, %s734
          %s738 = smul.addr %s737, 2
          %s739 = scalar_lea.vmem %s4, %s738
        $region82: #{discriminator_feature_forward.20} parent=53 // pred_fallthru
          _
      $region54: #{discriminator_feature_forward.20} parent=5 // pred_fallthru
        _
      %p740 = scmp.le.s32.totalorder 2, %s11
      // Predicated region
      $region83: #{discriminator_feature_forward.20} parent=5 // pred_check
        %p741 = pneg %p740
      $region84: #{discriminator_feature_forward.20} parent=5 // pred_check_branch
        %743 = sbr.rel (%p741) target = $region86
      $region85: #{discriminator_feature_forward.20} parent=5 // pred_region
        %s744 = ssub.s32 %s11, 2
      $region86: #{discriminator_feature_forward.20} parent=5 // pred_fallthru
        _
    $region6: #{discriminator_feature_forward.20} parent=1 // loop_footer
      %s15 = sadd.s32 1, %s11
    $region7: #{discriminator_feature_forward.20} parent=1 // loop_footer_branch
      %10 = sbr.rel target = $region3
    $region8: #{discriminator_feature_forward.20} parent=1 // loop_exit
      _

// kernel: discriminator_feature_forward.23
$region0: #{discriminator_feature_forward.23}
  #allocation0 [shape = 'u32[]', space=smem, size = 0x4, offset = 0x4, fixed_abs, tag = 'smem constant byte address 0x4 - core index']
  #allocation1 [shape = 'u32[72,128]{1,0:T(1,128)}', space=vmem, size = 0x9000, scoped, tag = 'internal scratch']
  %s0 = inlined_call_operand.vmem [shape: f32[32,256], index: 0, kind: input, shape index: {}]
  %s1 = inlined_call_operand.vmem [shape: f32[1,256], index: 1, kind: input, shape index: {}]
  %s2 = inlined_call_operand.vmem [shape: f32[1,256], index: 2, kind: input, shape index: {}]
  %s3 = inlined_call_operand.vmem [shape: f32[32,256], index: 3, kind: output, shape index: {}]
  %s4 = sld [smem:[#allocation0]]
  $region22: #{discriminator_feature_forward.23} parent=0
    _
  %s6 = ssub.s32 1, %s4
  %s7 = scalar_select 0, %s6, %s4
  // Predicated region
  $region2: #{discriminator_feature_forward.23} parent=0 // pred_check
    _
  $region3: #{discriminator_feature_forward.23} parent=0 // pred_check_branch
    %9 = sbr.rel (0) target = $region5
  $region4: #{discriminator_feature_forward.23} parent=0 // pred_region
    _
  $region5: #{discriminator_feature_forward.23} parent=0 // pred_fallthru
    _
  // Predicated region
  $region6: #{discriminator_feature_forward.23} parent=0 // pred_check
    _
  $region7: #{discriminator_feature_forward.23} parent=0 // pred_check_branch
    %11 = sbr.rel (0) target = $region9
  $region8: #{discriminator_feature_forward.23} parent=0 // pred_region
    _
  $region9: #{discriminator_feature_forward.23} parent=0 // pred_fallthru
    _
  // Predicated region
  $region10: #{discriminator_feature_forward.23} parent=0 // pred_check
    _
  $region11: #{discriminator_feature_forward.23} parent=0 // pred_check_branch
    %13 = sbr.rel (0) target = $region13
  $region12: #{discriminator_feature_forward.23} parent=0 // pred_region
    _
  $region13: #{discriminator_feature_forward.23} parent=0 // pred_fallthru
    _
  %v14 = vld [vmem:[%s0] sm:$0xff]
  %v15 = vld [vmem:[%s0 + $0x8] sm:$0xff]
  %v16 = vld [vmem:[%s0 + $0x10] sm:$0xff]
  %v17 = vld [vmem:[%s0 + $0x18] sm:$0xff]
  %v18 = vld [vmem:[%s0 + $0x20] sm:$0xff]
  %v19 = vld [vmem:[%s0 + $0x28] sm:$0xff]
  %v20 = vld [vmem:[%s0 + $0x30] sm:$0xff]
  %v21 = vld [vmem:[%s0 + $0x38] sm:$0xff]
  %v22 = vld [vmem:[%s1] sm:$0x3]
  %v24 = vperm.slane %v22, 0
  %v25 = vperm.slane %v22, 1
  %v28 = vmul.f32 %v14, %v24
  %v29 = vmul.f32 %v15, %v25
  %v30 = vmul.f32 %v16, %v24
  %v31 = vmul.f32 %v17, %v25
  %v32 = vmul.f32 %v18, %v24
  %v33 = vmul.f32 %v19, %v25
  %v34 = vmul.f32 %v20, %v24
  %v35 = vmul.f32 %v21, %v25
  %v36 = vld [vmem:[%s2] sm:$0x3]
  %v38 = vperm.slane %v36, 0
  %v39 = vperm.slane %v36, 1
  %v42 = vadd.f32 %v28, %v38
  %v43 = vadd.f32 %v29, %v39
  %v44 = vadd.f32 %v30, %v38
  %v45 = vadd.f32 %v31, %v39
  %v46 = vadd.f32 %v32, %v38
  %v47 = vadd.f32 %v33, %v39
  %v48 = vadd.f32 %v34, %v38
  %v49 = vadd.f32 %v35, %v39
  %v50 = vsub.f32 0.0, %v42
  %v51 = vsub.f32 0.0, %v43
  %v52 = vsub.f32 0.0, %v44
  %v53 = vsub.f32 0.0, %v45
  %v54 = vsub.f32 0.0, %v46
  %v55 = vsub.f32 0.0, %v47
  %v56 = vsub.f32 0.0, %v48
  %v57 = vsub.f32 0.0, %v49
  %v58 = vmul.f32 %v50, 1.442695
  %v59 = vpow.pop %v58
  %v60 = vmul.f32 %v51, 1.442695
  %v61 = vpow.pop %v60
  %v62 = vmul.f32 %v52, 1.442695
  %v63 = vpow.pop %v62
  %v64 = vmul.f32 %v53, 1.442695
  %v65 = vpow.pop %v64
  %v66 = vmul.f32 %v54, 1.442695
  %v67 = vpow.pop %v66
  %v68 = vmul.f32 %v55, 1.442695
  %v69 = vpow.pop %v68
  %v70 = vmul.f32 %v56, 1.442695
  %v71 = vpow.pop %v70
  %v72 = vmul.f32 %v57, 1.442695
  %v73 = vpow.pop %v72
  %v74 = vadd.f32 %v59, 1.0
  %v75 = vadd.f32 %v61, 1.0
  %v76 = vadd.f32 %v63, 1.0
  %v77 = vadd.f32 %v65, 1.0
  %v78 = vadd.f32 %v67, 1.0
  %v79 = vadd.f32 %v69, 1.0
  %v80 = vadd.f32 %v71, 1.0
  %v81 = vadd.f32 %v73, 1.0
  %v82 = vrcp.pop %v74
  %v83 = vmul.f32 %v74, %v82
  %v84 = vsub.f32 1.0, %v83
  %v85 = vmul.f32 %v82, %v84
  %v86 = vadd.f32 %v82, %v85
  %vm87 = vweird.f32 %v74
  %vm88 = vweird.f32 %v82
  %vm89 = vmor %vm87, %vm88
  %v90 = vsel %vm89, %v82, %v86
  %v91 = vand.u32 2147483647, %v74
  %vm92 = vcmp.eq.f32.partialorder %v91, 8.507059e+37
  %v93 = vand.u32 %v74, 2147483648
  %v94 = vor.u32 1.1754944e-38, %v93
  %v95 = vsel %vm92, %v94, %v90
  %v96 = vmul.f32 1.0, %v95
  %v97 = vrcp.pop %v75
  %v98 = vmul.f32 %v75, %v97
  %v99 = vsub.f32 1.0, %v98
  %v100 = vmul.f32 %v97, %v99
  %v101 = vadd.f32 %v97, %v100
  %vm102 = vweird.f32 %v75
  %vm103 = vweird.f32 %v97
  %vm104 = vmor %vm102, %vm103
  %v105 = vsel %vm104, %v97, %v101
  %v106 = vand.u32 2147483647, %v75
  %vm107 = vcmp.eq.f32.partialorder %v106, 8.507059e+37
  %v108 = vand.u32 %v75, 2147483648
  %v109 = vor.u32 1.1754944e-38, %v108
  %v110 = vsel %vm107, %v109, %v105
  %v111 = vmul.f32 1.0, %v110
  %v112 = vrcp.pop %v76
  %v113 = vmul.f32 %v76, %v112
  %v114 = vsub.f32 1.0, %v113
  %v115 = vmul.f32 %v112, %v114
  %v116 = vadd.f32 %v112, %v115
  %vm117 = vweird.f32 %v76
  %vm118 = vweird.f32 %v112
  %vm119 = vmor %vm117, %vm118
  %v120 = vsel %vm119, %v112, %v116
  %v121 = vand.u32 2147483647, %v76
  %vm122 = vcmp.eq.f32.partialorder %v121, 8.507059e+37
  %v123 = vand.u32 %v76, 2147483648
  %v124 = vor.u32 1.1754944e-38, %v123
  %v125 = vsel %vm122, %v124, %v120
  %v126 = vmul.f32 1.0, %v125
  %v127 = vrcp.pop %v77
  %v128 = vmul.f32 %v77, %v127
  %v129 = vsub.f32 1.0, %v128
  %v130 = vmul.f32 %v127, %v129
  %v131 = vadd.f32 %v127, %v130
  %vm132 = vweird.f32 %v77
  %vm133 = vweird.f32 %v127
  %vm134 = vmor %vm132, %vm133
  %v135 = vsel %vm134, %v127, %v131
  %v136 = vand.u32 2147483647, %v77
  %vm137 = vcmp.eq.f32.partialorder %v136, 8.507059e+37
  %v138 = vand.u32 %v77, 2147483648
  %v139 = vor.u32 1.1754944e-38, %v138
  %v140 = vsel %vm137, %v139, %v135
  %v141 = vmul.f32 1.0, %v140
  %v142 = vrcp.pop %v78
  %v143 = vmul.f32 %v78, %v142
  %v144 = vsub.f32 1.0, %v143
  %v145 = vmul.f32 %v142, %v144
  %v146 = vadd.f32 %v142, %v145
  %vm147 = vweird.f32 %v78
  %vm148 = vweird.f32 %v142
  %vm149 = vmor %vm147, %vm148
  %v150 = vsel %vm149, %v142, %v146
  %v151 = vand.u32 2147483647, %v78
  %vm152 = vcmp.eq.f32.partialorder %v151, 8.507059e+37
  %v153 = vand.u32 %v78, 2147483648
  %v154 = vor.u32 1.1754944e-38, %v153
  %v155 = vsel %vm152, %v154, %v150
  %v156 = vmul.f32 1.0, %v155
  %v157 = vrcp.pop %v79
  %v158 = vmul.f32 %v79, %v157
  %v159 = vsub.f32 1.0, %v158
  %v160 = vmul.f32 %v157, %v159
  %v161 = vadd.f32 %v157, %v160
  %vm162 = vweird.f32 %v79
  %vm163 = vweird.f32 %v157
  %vm164 = vmor %vm162, %vm163
  %v165 = vsel %vm164, %v157, %v161
  %v166 = vand.u32 2147483647, %v79
  %vm167 = vcmp.eq.f32.partialorder %v166, 8.507059e+37
  %v168 = vand.u32 %v79, 2147483648
  %v169 = vor.u32 1.1754944e-38, %v168
  %v170 = vsel %vm167, %v169, %v165
  %v171 = vmul.f32 1.0, %v170
  %v172 = vrcp.pop %v80
  %v173 = vmul.f32 %v80, %v172
  %v174 = vsub.f32 1.0, %v173
  %v175 = vmul.f32 %v172, %v174
  %v176 = vadd.f32 %v172, %v175
  %vm177 = vweird.f32 %v80
  %vm178 = vweird.f32 %v172
  %vm179 = vmor %vm177, %vm178
  %v180 = vsel %vm179, %v172, %v176
  %v181 = vand.u32 2147483647, %v80
  %vm182 = vcmp.eq.f32.partialorder %v181, 8.507059e+37
  %v183 = vand.u32 %v80, 2147483648
  %v184 = vor.u32 1.1754944e-38, %v183
  %v185 = vsel %vm182, %v184, %v180
  %v186 = vmul.f32 1.0, %v185
  %v187 = vrcp.pop %v81
  %v188 = vmul.f32 %v81, %v187
  %v189 = vsub.f32 1.0, %v188
  %v190 = vmul.f32 %v187, %v189
  %v191 = vadd.f32 %v187, %v190
  %vm192 = vweird.f32 %v81
  %vm193 = vweird.f32 %v187
  %vm194 = vmor %vm192, %vm193
  %v195 = vsel %vm194, %v187, %v191
  %v196 = vand.u32 2147483647, %v81
  %vm197 = vcmp.eq.f32.partialorder %v196, 8.507059e+37
  %v198 = vand.u32 %v81, 2147483648
  %v199 = vor.u32 1.1754944e-38, %v198
  %v200 = vsel %vm197, %v199, %v195
  %v201 = vmul.f32 1.0, %v200
  %v202 = vmul.f32 %v42, %v96
  %v203 = vmul.f32 %v43, %v111
  %v204 = vmul.f32 %v44, %v126
  %v205 = vmul.f32 %v45, %v141
  %v206 = vmul.f32 %v46, %v156
  %v207 = vmul.f32 %v47, %v171
  %v208 = vmul.f32 %v48, %v186
  %v209 = vmul.f32 %v49, %v201
  %210 = vst [vmem:[%s3] sm:$0xff] %v202
  %211 = vst [vmem:[%s3 + $0x8] sm:$0xff] %v203
  %212 = vst [vmem:[%s3 + $0x10] sm:$0xff] %v204
  %213 = vst [vmem:[%s3 + $0x18] sm:$0xff] %v205
  %214 = vst [vmem:[%s3 + $0x20] sm:$0xff] %v206
  %215 = vst [vmem:[%s3 + $0x28] sm:$0xff] %v207
  %216 = vst [vmem:[%s3 + $0x30] sm:$0xff] %v208
  %217 = vst [vmem:[%s3 + $0x38] sm:$0xff] %v209
  // Predicated region
  $region14: #{discriminator_feature_forward.23} parent=0 // pred_check
    _
  $region15: #{discriminator_feature_forward.23} parent=0 // pred_check_branch
    %219 = sbr.rel (0) target = $region17
  $region16: #{discriminator_feature_forward.23} parent=0 // pred_region
    _
  $region17: #{discriminator_feature_forward.23} parent=0 // pred_fallthru
    _
  // Predicated region
  $region18: #{discriminator_feature_forward.23} parent=0 // pred_check
    _
  $region19: #{discriminator_feature_forward.23} parent=0 // pred_check_branch
    %221 = sbr.rel (0) target = $region21
  $region20: #{discriminator_feature_forward.23} parent=0 // pred_region
    _
  $region21: #{discriminator_feature_forward.23} parent=0 // pred_fallthru
    _

// kernel: discriminator_feature_forward.22
$region0: #{discriminator_feature_forward.22}
  #allocation0 [shape = 'u32[]', space=smem, size = 0x4, offset = 0x4, fixed_abs, tag = 'smem constant byte address 0x4 - core index']
  #allocation1 [shape = 'u32[72,128]{1,0:T(1,128)}', space=vmem, size = 0x9000, scoped, tag = 'internal scratch']
  #allocation2 [shape = 'f32[32,128]{1,0:T(8,128)}', space=vmem, size = 0x4000, scoped, tag = 'scratch operand']
  %s0 = inlined_call_operand.vmem [shape: bf16[32,1152], index: 0, kind: input, shape index: {}]
  %s1 = inlined_call_operand.vmem [shape: bf16[1152,256], index: 1, kind: input, shape index: {}]
  %s2 = inlined_call_operand.vmem [shape: f32[1,256], index: 2, kind: input, shape index: {}]
  %s3 = inlined_call_operand.vmem [shape: f32[32,256], index: 3, kind: output, shape index: {0}]
  %s4 = inlined_call_operand.vmem [shape: f32[1,2,256], index: 4, kind: output, shape index: {1}]
  %5 = xla_tuple %s3, %s4
  %s6 = sld [smem:[#allocation0]]
  $region162: #{discriminator_feature_forward.22} parent=0
    _
  %s8 = ssub.s32 1, %s6
  %s9 = scalar_select 0, %s8, %s6
  $region1: #{discriminator_feature_forward.22} parent=0
    #allocation3 [shape = 'u8[49152]{0}', space=vmem, size = 0xc000, scoped, tag = 'input window, operand 0']
    #allocation4 [shape = 'u8[196608]{0}', space=vmem, size = 0x30000, scoped, tag = 'input window, operand 1']
    #allocation5 [shape = 'u8[32768]{0}', space=vmem, size = 0x8000, scoped, tag = 'output window, operand 0']
    loop: start=0, step=1, limit=8
    $region2: #{discriminator_feature_forward.22} parent=1 // loop_pre_header
      _
    $region3: #{discriminator_feature_forward.22} parent=1 // loop_header
      %s11 = sphi 0, %s15
      %p12 = scmp.ge.s32.totalorder %s11, 8
      %s18 = sphi 0, %s37
      %s19 = sphi 0, %s33
      %s20 = sphi 0, %s29
      %s21 = sphi 0, %s18
      %s22 = sphi 0, %s19
      %s23 = sphi 0, %s20
      %s24 = sphi 0, %s21
      %s25 = sphi 0, %s22
      %s26 = sphi 0, %s23
      %s42 = sphi 0, %s44
      %s45 = sphi 0, %s42
      %s46 = sphi 0, %s45
      %s62 = sphi 0, %s46
      %s70 = sphi 0, %s72
      %s73 = sphi 0, %s70
      %s74 = sphi 0, %s73
      %s90 = sphi 0, %s74
      %s96 = sphi 0, %s98
      %s99 = sphi 0, %s96
      %s100 = sphi 0, %s99
      %s116 = sphi 0, %s100
      %s124 = sphi 0, %s126
      %s127 = sphi 0, %s124
      %s128 = sphi 0, %s127
      %s144 = sphi 0, %s128
      %s152 = sphi 0, %s154
      %s155 = sphi 0, %s152
      %s156 = sphi 0, %s155
      %s172 = sphi 0, %s156
    $region4: #{discriminator_feature_forward.22} parent=1 // loop_header_branch
      %14 = sbr.rel (%p12) target = $region8
    $region5: #{discriminator_feature_forward.22} parent=1 // loop_body
      %s16 = ssub.s32 %s11, 1
      %s17 = ssub.s32 %s11, 2
      %s27 = sadd.s32 1, %s20
      %p28 = scmp.ge.s32.totalorder %s27, 3
      %s29 = scalar_select %p28, 0, %s27
      %s30 = sadd.s32 1, %s19
      %s31 = scalar_select %p28, %s30, %s19
      %p32 = scmp.ge.s32.totalorder %s31, 2
      %s33 = scalar_select %p32, 0, %s31
      %s34 = sadd.s32 1, %s18
      %s35 = scalar_select %p32, %s34, %s18
      %p36 = scmp.ge.s32.totalorder %s35, 1
      %s37 = scalar_select %p36, 0, %s35
      %s38 = ssub.s32 %s18, %s37
      %s39 = ssub.s32 %s20, %s29
      %s40 = sor.u32 %s38, %s39
      %p41 = scmp.eq.s32.totalorder %s40, 0
      %s43 = sadd.s32 %s42, 1
      %s44 = scalar_select %p41, %s42, %s43
      %p47 = pneg %p41
      %p48 = scmp.eq.s32.totalorder %s11, 5
      %p49 = por %p47, %p48
      %p50 = scmp.ne.s32.totalorder %s42, %s45
      %p51 = scmp.eq.s32.totalorder %s11, 0
      %p52 = por %p50, %p51
      %p53 = scmp.ne.s32.totalorder %s42, %s45
      %p54 = scmp.eq.s32.totalorder %s16, 5
      %p55 = por %p53, %p54
      %p56 = scmp.ne.s32.totalorder %s45, %s46
      %p57 = scmp.eq.s32.totalorder %s16, 0
      %p58 = por %p56, %p57
      %p59 = scmp.ne.s32.totalorder %s45, %s46
      %p60 = scmp.eq.s32.totalorder %s17, 5
      %p61 = por %p59, %p60
      %p63 = scmp.ne.s32.totalorder %s46, %s62
      %p64 = scmp.eq.s32.totalorder %s17, 0
      %p65 = por %p63, %p64
      %s66 = ssub.s32 %s20, %s29
      %s67 = ssub.s32 %s19, %s33
      %s68 = sor.u32 %s66, %s67
      %p69 = scmp.eq.s32.totalorder %s68, 0
      %s71 = sadd.s32 %s70, 1
      %s72 = scalar_select %p69, %s70, %s71
      %p75 = pneg %p69
      %p76 = scmp.eq.s32.totalorder %s11, 5
      %p77 = por %p75, %p76
      %p78 = scmp.ne.s32.totalorder %s70, %s73
      %p79 = scmp.eq.s32.totalorder %s11, 0
      %p80 = por %p78, %p79
      %p81 = scmp.ne.s32.totalorder %s70, %s73
      %p82 = scmp.eq.s32.totalorder %s16, 5
      %p83 = por %p81, %p82
      %p84 = scmp.ne.s32.totalorder %s73, %s74
      %p85 = scmp.eq.s32.totalorder %s16, 0
      %p86 = por %p84, %p85
      %p87 = scmp.ne.s32.totalorder %s73, %s74
      %p88 = scmp.eq.s32.totalorder %s17, 5
      %p89 = por %p87, %p88
      %p91 = scmp.ne.s32.totalorder %s74, %s90
      %p92 = scmp.eq.s32.totalorder %s17, 0
      %p93 = por %p91, %p92
      %s94 = ssub.s32 %s19, %s33
      %p95 = scmp.eq.s32.totalorder %s94, 0
      %s97 = sadd.s32 %s96, 1
      %s98 = scalar_select %p95, %s96, %s97
      %p101 = pneg %p95
      %p102 = scmp.eq.s32.totalorder %s11, 5
      %p103 = por %p101, %p102
      %p104 = scmp.ne.s32.totalorder %s96, %s99
      %p105 = scmp.eq.s32.totalorder %s11, 0
      %p106 = por %p104, %p105
      %p107 = scmp.ne.s32.totalorder %s96, %s99
      %p108 = scmp.eq.s32.totalorder %s16, 5
      %p109 = por %p107, %p108
      %p110 = scmp.ne.s32.totalorder %s99, %s100
      %p111 = scmp.eq.s32.totalorder %s16, 0
      %p112 = por %p110, %p111
      %p113 = scmp.ne.s32.totalorder %s99, %s100
      %p114 = scmp.eq.s32.totalorder %s17, 5
      %p115 = por %p113, %p114
      %p117 = scmp.ne.s32.totalorder %s100, %s116
      %p118 = scmp.eq.s32.totalorder %s17, 0
      %p119 = por %p117, %p118
      %s120 = ssub.s32 %s18, %s37
      %s121 = ssub.s32 %s19, %s33
      %s122 = sor.u32 %s120, %s121
      %p123 = scmp.eq.s32.totalorder %s122, 0
      %s125 = sadd.s32 %s124, 1
      %s126 = scalar_select %p123, %s124, %s125
      %p129 = pneg %p123
      %p130 = scmp.eq.s32.totalorder %s11, 5
      %p131 = por %p129, %p130
      %p132 = scmp.ne.s32.totalorder %s124, %s127
      %p133 = scmp.eq.s32.totalorder %s11, 0
      %p134 = por %p132, %p133
      %p135 = scmp.ne.s32.totalorder %s124, %s127
      %p136 = scmp.eq.s32.totalorder %s16, 5
      %p137 = por %p135, %p136
      %p138 = scmp.ne.s32.totalorder %s127, %s128
      %p139 = scmp.eq.s32.totalorder %s16, 0
      %p140 = por %p138, %p139
      %p141 = scmp.ne.s32.totalorder %s127, %s128
      %p142 = scmp.eq.s32.totalorder %s17, 5
      %p143 = por %p141, %p142
      %p145 = scmp.ne.s32.totalorder %s128, %s144
      %p146 = scmp.eq.s32.totalorder %s17, 0
      %p147 = por %p145, %p146
      %s148 = ssub.s32 %s18, %s37
      %s149 = ssub.s32 %s19, %s33
      %s150 = sor.u32 %s148, %s149
      %p151 = scmp.eq.s32.totalorder %s150, 0
      %s153 = sadd.s32 %s152, 1
      %s154 = scalar_select %p151, %s152, %s153
      %p157 = pneg %p151
      %p158 = scmp.eq.s32.totalorder %s11, 5
      %p159 = por %p157, %p158
      %p160 = scmp.ne.s32.totalorder %s152, %s155
      %p161 = scmp.eq.s32.totalorder %s11, 0
      %p162 = por %p160, %p161
      %p163 = scmp.ne.s32.totalorder %s152, %s155
      %p164 = scmp.eq.s32.totalorder %s16, 5
      %p165 = por %p163, %p164
      %p166 = scmp.ne.s32.totalorder %s155, %s156
      %p167 = scmp.eq.s32.totalorder %s16, 0
      %p168 = por %p166, %p167
      %p169 = scmp.ne.s32.totalorder %s155, %s156
      %p170 = scmp.eq.s32.totalorder %s17, 5
      %p171 = por %p169, %p170
      %p173 = scmp.ne.s32.totalorder %s156, %s172
      %p174 = scmp.eq.s32.totalorder %s17, 0
      %p175 = por %p173, %p174
      %p176 = scmp.le.s32.totalorder 1, %s11
      %p177 = scmp.lt.s32.totalorder %s11, 7
      %p178 = pnand %p176, %p177
      %p179 = pneg %p178
      // Predicated region
      $region9: #{discriminator_feature_forward.22} parent=5 // pred_check
        _
      $region10: #{discriminator_feature_forward.22} parent=5 // pred_check_branch
        %181 = sbr.rel (%p178) target = $region12
      $region11: #{discriminator_feature_forward.22} parent=5 // pred_region
        %s182 = ssub.s32 %s11, 1
      $region12: #{discriminator_feature_forward.22} parent=5 // pred_fallthru
        _
      %p183 = scmp.lt.s32.totalorder %s11, 6
      // Predicated region
      $region13: #{discriminator_feature_forward.22} parent=5 // pred_check
        %p184 = pneg %p183
      $region14: #{discriminator_feature_forward.22} parent=5 // pred_check_branch
        %186 = sbr.rel (%p184) target = $region16
      $region15: #{discriminator_feature_forward.22} parent=5 // pred_region
        // Predicated region
        $region17: #{discriminator_feature_forward.22} parent=15 // pred_check
          %p187 = pneg %p52
        $region18: #{discriminator_feature_forward.22} parent=15 // pred_check_branch
          %189 = sbr.rel (%p187) target = $region20
        $region19: #{discriminator_feature_forward.22} parent=15 // pred_region
          %s190 = sand.u32 %s42, 1
          %s191 = sand.u32 %s42, 1
          %s192 = smul.addr %s191, 48
          %s193 = scalar_lea.vmem [#allocation3], %s192
          %s194 = smul.u32 4, %s18
          %s195 = smul.u32 3, %s20
          %s196 = smul.addr %s194, 9
          %s197 = sadd.s32 %s195, %s196
          %s198 = smul.addr %s197, 4
          %s199 = scalar_lea.vmem %s0, %s198
          // Predicated region
          $region21: #{discriminator_feature_forward.22} parent=19 // pred_check
            _
          $region22: #{discriminator_feature_forward.22} parent=19 // pred_check_branch
            %201 = sbr.rel (0) target = $region24
          $region23: #{discriminator_feature_forward.22} parent=19 // pred_region
            // Predicated region
            $region25: #{discriminator_feature_forward.22} parent=23 // pred_check
              _
            $region26: #{discriminator_feature_forward.22} parent=23 // pred_check_branch
              %203 = sbr.rel (0) target = $region28
            $region27: #{discriminator_feature_forward.22} parent=23 // pred_region
              %s204 = scalar_lea.vmem %s199, 8
              %s205 = scalar_lea.vmem %s193, 8 [#allocation3]
              loop: start=0, step=1, limit=1
              $region29: #{discriminator_feature_forward.22} parent=27 // loop_pre_header
                _
              $region30: #{discriminator_feature_forward.22} parent=27 // loop_header
                %s207 = sphi 0, %s211
                %p208 = scmp.ge.s32.totalorder %s207, 1
                %s212 = sphi %s199, %s199
                %s213 = sphi %s193, %s193
              $region31: #{discriminator_feature_forward.22} parent=27 // loop_header_branch
                %210 = sbr.rel (%p208) target = $region35
              $region32: #{discriminator_feature_forward.22} parent=27 // loop_body
                %v214 = vld [vmem:[%s212] sm:$0xff]
                %215 = vst [vmem:[%s213] sm:$0xff] %v214
                %v216 = vld [vmem:[%s212 + $0x24] sm:$0xff]
                %217 = vst [vmem:[%s213 + $0xc] sm:$0xff] %v216
                %v218 = vld [vmem:[%s212 + $0x48] sm:$0xff]
                %219 = vst [vmem:[%s213 + $0x18] sm:$0xff] %v218
                %v220 = vld [vmem:[%s212 + $0x6c] sm:$0xff]
                %221 = vst [vmem:[%s213 + $0x24] sm:$0xff] %v220
              $region33: #{discriminator_feature_forward.22} parent=27 // loop_footer
                %s211 = sadd.s32 1, %s207
              $region34: #{discriminator_feature_forward.22} parent=27 // loop_footer_branch
                %206 = sbr.rel target = $region30
              $region35: #{discriminator_feature_forward.22} parent=27 // loop_exit
                _
              %s223 = ssub.s32 16, 1
              loop: start=0, step=1, limit=1
              $region36: #{discriminator_feature_forward.22} parent=27 // loop_pre_header
                _
              $region37: #{discriminator_feature_forward.22} parent=27 // loop_header
                %s225 = sphi 0, %s229
                %p226 = scmp.ge.s32.totalorder %s225, 1
                %s230 = sphi %s204, %s204
                %s231 = sphi %s205, %s205
              $region38: #{discriminator_feature_forward.22} parent=27 // loop_header_branch
                %228 = sbr.rel (%p226) target = $region42
              $region39: #{discriminator_feature_forward.22} parent=27 // loop_body
                %v232 = vld [vmem:[%s230] sm:%s223]
                %233 = vst [vmem:[%s231] sm:%s223] %v232
                %v234 = vld [vmem:[%s230 + $0x24] sm:%s223]
                %235 = vst [vmem:[%s231 + $0xc] sm:%s223] %v234
                %v236 = vld [vmem:[%s230 + $0x48] sm:%s223]
                %237 = vst [vmem:[%s231 + $0x18] sm:%s223] %v236
                %v238 = vld [vmem:[%s230 + $0x6c] sm:%s223]
                %239 = vst [vmem:[%s231 + $0x24] sm:%s223] %v238
              $region40: #{discriminator_feature_forward.22} parent=27 // loop_footer
                %s229 = sadd.s32 1, %s225
              $region41: #{discriminator_feature_forward.22} parent=27 // loop_footer_branch
                %224 = sbr.rel target = $region37
              $region42: #{discriminator_feature_forward.22} parent=27 // loop_exit
                _
            $region28: #{discriminator_feature_forward.22} parent=23 // pred_fallthru
              _
          $region24: #{discriminator_feature_forward.22} parent=19 // pred_fallthru
            _
          %240 = vnop
        $region20: #{discriminator_feature_forward.22} parent=15 // pred_fallthru
          _
        // Predicated region
        $region43: #{discriminator_feature_forward.22} parent=15 // pred_check
          %p241 = pneg %p80
        $region44: #{discriminator_feature_forward.22} parent=15 // pred_check_branch
          %243 = sbr.rel (%p241) target = $region46
        $region45: #{discriminator_feature_forward.22} parent=15 // pred_region
          %s244 = sand.u32 %s70, 1
          %s245 = sand.u32 %s70, 1
          %s246 = smul.addr %s245, 192
          %s247 = scalar_lea.vmem [#allocation4], %s246
          %s248 = smul.u32 48, %s20
          %s249 = smul.addr %s248, 2
          %s250 = sadd.s32 %s19, %s249
          %s251 = smul.addr %s250, 4
          %s252 = scalar_lea.vmem %s1, %s251
          // Predicated region
          $region47: #{discriminator_feature_forward.22} parent=45 // pred_check
            _
          $region48: #{discriminator_feature_forward.22} parent=45 // pred_check_branch
            %254 = sbr.rel (0) target = $region50
          $region49: #{discriminator_feature_forward.22} parent=45 // pred_region
            // Predicated region
            $region51: #{discriminator_feature_forward.22} parent=49 // pred_check
              _
            $region52: #{discriminator_feature_forward.22} parent=49 // pred_check_branch
              %256 = sbr.rel target = $region54
            $region53: #{discriminator_feature_forward.22} parent=49 // pred_region
              // Predicated region
              $region66: #{discriminator_feature_forward.22} parent=53 // pred_check
                _
              $region67: #{discriminator_feature_forward.22} parent=53 // pred_check_branch
                %366 = sbr.rel (0) target = $region69
              $region68: #{discriminator_feature_forward.22} parent=53 // pred_region
                loop: start=0, step=1, limit=1
                $region70: #{discriminator_feature_forward.22} parent=68 // loop_pre_header
                  _
                $region71: #{discriminator_feature_forward.22} parent=68 // loop_header
                  %s368 = sphi 0, %s372
                  %p369 = scmp.ge.s32.totalorder %s368, 1
                  %s373 = sphi %s252, %s252
                  %s374 = sphi %s247, %s247
                $region72: #{discriminator_feature_forward.22} parent=68 // loop_header_branch
                  %371 = sbr.rel (%p369) target = $region76
                $region73: #{discriminator_feature_forward.22} parent=68 // loop_body
                  _
                $region74: #{discriminator_feature_forward.22} parent=68 // loop_footer
                  %s372 = sadd.s32 1, %s368
                $region75: #{discriminator_feature_forward.22} parent=68 // loop_footer_branch
                  %367 = sbr.rel target = $region71
                $region76: #{discriminator_feature_forward.22} parent=68 // loop_exit
                  _
                %s376 = ssub.s32 16, 1
                loop: start=0, step=1, limit=1
                $region77: #{discriminator_feature_forward.22} parent=68 // loop_pre_header
                  _
                $region78: #{discriminator_feature_forward.22} parent=68 // loop_header
                  %s378 = sphi 0, %s382
                  %p379 = scmp.ge.s32.totalorder %s378, 1
                  %s383 = sphi %s252, %s252
                  %s384 = sphi %s247, %s247
                $region79: #{discriminator_feature_forward.22} parent=68 // loop_header_branch
                  %381 = sbr.rel (%p379) target = $region83
                $region80: #{discriminator_feature_forward.22} parent=68 // loop_body
                  %v385 = vld [vmem:[%s383] sm:%s376]
                  %386 = vst [vmem:[%s384] sm:%s376] %v385
                  %v387 = vld [vmem:[%s383 + $0x8] sm:%s376]
                  %388 = vst [vmem:[%s384 + $0x4] sm:%s376] %v387
                  %v389 = vld [vmem:[%s383 + $0x10] sm:%s376]
                  %390 = vst [vmem:[%s384 + $0x8] sm:%s376] %v389
                  %v391 = vld [vmem:[%s383 + $0x18] sm:%s376]
                  %392 = vst [vmem:[%s384 + $0xc] sm:%s376] %v391
                  %v393 = vld [vmem:[%s383 + $0x20] sm:%s376]
                  %394 = vst [vmem:[%s384 + $0x10] sm:%s376] %v393
                  %v395 = vld [vmem:[%s383 + $0x28] sm:%s376]
                  %396 = vst [vmem:[%s384 + $0x14] sm:%s376] %v395
                  %v397 = vld [vmem:[%s383 + $0x30] sm:%s376]
                  %398 = vst [vmem:[%s384 + $0x18] sm:%s376] %v397
                  %v399 = vld [vmem:[%s383 + $0x38] sm:%s376]
                  %400 = vst [vmem:[%s384 + $0x1c] sm:%s376] %v399
                  %v401 = vld [vmem:[%s383 + $0x40] sm:%s376]
                  %402 = vst [vmem:[%s384 + $0x20] sm:%s376] %v401
                  %v403 = vld [vmem:[%s383 + $0x48] sm:%s376]
                  %404 = vst [vmem:[%s384 + $0x24] sm:%s376] %v403
                  %v405 = vld [vmem:[%s383 + $0x50] sm:%s376]
                  %406 = vst [vmem:[%s384 + $0x28] sm:%s376] %v405
                  %v407 = vld [vmem:[%s383 + $0x58] sm:%s376]
                  %408 = vst [vmem:[%s384 + $0x2c] sm:%s376] %v407
                  %v409 = vld [vmem:[%s383 + $0x60] sm:%s376]
                  %410 = vst [vmem:[%s384 + $0x30] sm:%s376] %v409
                  %v411 = vld [vmem:[%s383 + $0x68] sm:%s376]
                  %412 = vst [vmem:[%s384 + $0x34] sm:%s376] %v411
                  %v413 = vld [vmem:[%s383 + $0x70] sm:%s376]
                  %414 = vst [vmem:[%s384 + $0x38] sm:%s376] %v413
                  %v415 = vld [vmem:[%s383 + $0x78] sm:%s376]
                  %416 = vst [vmem:[%s384 + $0x3c] sm:%s376] %v415
                  %v417 = vld [vmem:[%s383 + $0x80] sm:%s376]
                  %418 = vst [vmem:[%s384 + $0x40] sm:%s376] %v417
                  %v419 = vld [vmem:[%s383 + $0x88] sm:%s376]
                  %420 = vst [vmem:[%s384 + $0x44] sm:%s376] %v419
                  %v421 = vld [vmem:[%s383 + $0x90] sm:%s376]
                  %422 = vst [vmem:[%s384 + $0x48] sm:%s376] %v421
                  %v423 = vld [vmem:[%s383 + $0x98] sm:%s376]
                  %424 = vst [vmem:[%s384 + $0x4c] sm:%s376] %v423
                  %v425 = vld [vmem:[%s383 + $0xa0] sm:%s376]
                  %426 = vst [vmem:[%s384 + $0x50] sm:%s376] %v425
                  %v427 = vld [vmem:[%s383 + $0xa8] sm:%s376]
                  %428 = vst [vmem:[%s384 + $0x54] sm:%s376] %v427
                  %v429 = vld [vmem:[%s383 + $0xb0] sm:%s376]
                  %430 = vst [vmem:[%s384 + $0x58] sm:%s376] %v429
                  %v431 = vld [vmem:[%s383 + $0xb8] sm:%s376]
                  %432 = vst [vmem:[%s384 + $0x5c] sm:%s376] %v431
                  %v433 = vld [vmem:[%s383 + $0xc0] sm:%s376]
                  %434 = vst [vmem:[%s384 + $0x60] sm:%s376] %v433
                  %v435 = vld [vmem:[%s383 + $0xc8] sm:%s376]
                  %436 = vst [vmem:[%s384 + $0x64] sm:%s376] %v435
                  %v437 = vld [vmem:[%s383 + $0xd0] sm:%s376]
                  %438 = vst [vmem:[%s384 + $0x68] sm:%s376] %v437
                  %v439 = vld [vmem:[%s383 + $0xd8] sm:%s376]
                  %440 = vst [vmem:[%s384 + $0x6c] sm:%s376] %v439
                  %v441 = vld [vmem:[%s383 + $0xe0] sm:%s376]
                  %442 = vst [vmem:[%s384 + $0x70] sm:%s376] %v441
                  %v443 = vld [vmem:[%s383 + $0xe8] sm:%s376]
                  %444 = vst [vmem:[%s384 + $0x74] sm:%s376] %v443
                  %v445 = vld [vmem:[%s383 + $0xf0] sm:%s376]
                  %446 = vst [vmem:[%s384 + $0x78] sm:%s376] %v445
                  %v447 = vld [vmem:[%s383 + $0xf8] sm:%s376]
                  %448 = vst [vmem:[%s384 + $0x7c] sm:%s376] %v447
                  %v449 = vld [vmem:[%s383 + $0x100] sm:%s376]
                  %450 = vst [vmem:[%s384 + $0x80] sm:%s376] %v449
                  %v451 = vld [vmem:[%s383 + $0x108] sm:%s376]
                  %452 = vst [vmem:[%s384 + $0x84] sm:%s376] %v451
                  %v453 = vld [vmem:[%s383 + $0x110] sm:%s376]
                  %454 = vst [vmem:[%s384 + $0x88] sm:%s376] %v453
                  %v455 = vld [vmem:[%s383 + $0x118] sm:%s376]
                  %456 = vst [vmem:[%s384 + $0x8c] sm:%s376] %v455
                  %v457 = vld [vmem:[%s383 + $0x120] sm:%s376]
                  %458 = vst [vmem:[%s384 + $0x90] sm:%s376] %v457
                  %v459 = vld [vmem:[%s383 + $0x128] sm:%s376]
                  %460 = vst [vmem:[%s384 + $0x94] sm:%s376] %v459
                  %v461 = vld [vmem:[%s383 + $0x130] sm:%s376]
                  %462 = vst [vmem:[%s384 + $0x98] sm:%s376] %v461
                  %v463 = vld [vmem:[%s383 + $0x138] sm:%s376]
                  %464 = vst [vmem:[%s384 + $0x9c] sm:%s376] %v463
                  %v465 = vld [vmem:[%s383 + $0x140] sm:%s376]
                  %466 = vst [vmem:[%s384 + $0xa0] sm:%s376] %v465
                  %v467 = vld [vmem:[%s383 + $0x148] sm:%s376]
                  %468 = vst [vmem:[%s384 + $0xa4] sm:%s376] %v467
                  %v469 = vld [vmem:[%s383 + $0x150] sm:%s376]
                  %470 = vst [vmem:[%s384 + $0xa8] sm:%s376] %v469
                  %v471 = vld [vmem:[%s383 + $0x158] sm:%s376]
                  %472 = vst [vmem:[%s384 + $0xac] sm:%s376] %v471
                  %v473 = vld [vmem:[%s383 + $0x160] sm:%s376]
                  %474 = vst [vmem:[%s384 + $0xb0] sm:%s376] %v473
                  %v475 = vld [vmem:[%s383 + $0x168] sm:%s376]
                  %476 = vst [vmem:[%s384 + $0xb4] sm:%s376] %v475
                  %v477 = vld [vmem:[%s383 + $0x170] sm:%s376]
                  %478 = vst [vmem:[%s384 + $0xb8] sm:%s376] %v477
                  %v479 = vld [vmem:[%s383 + $0x178] sm:%s376]
                  %480 = vst [vmem:[%s384 + $0xbc] sm:%s376] %v479
                $region81: #{discriminator_feature_forward.22} parent=68 // loop_footer
                  %s382 = sadd.s32 1, %s378
                $region82: #{discriminator_feature_forward.22} parent=68 // loop_footer_branch
                  %377 = sbr.rel target = $region78
                $region83: #{discriminator_feature_forward.22} parent=68 // loop_exit
                  _
              $region69: #{discriminator_feature_forward.22} parent=53 // pred_fallthru
                _
            $region54: #{discriminator_feature_forward.22} parent=49 // pred_fallthru
              _
            // Predicated region
            $region55: #{discriminator_feature_forward.22} parent=49 // pred_check
              _
            $region56: #{discriminator_feature_forward.22} parent=49 // pred_check_branch
              %258 = sbr.rel (0) target = $region58
            $region57: #{discriminator_feature_forward.22} parent=49 // pred_region
              %s260 = ssub.s32 16, 1
              loop: start=0, step=1, limit=1
              $region59: #{discriminator_feature_forward.22} parent=57 // loop_pre_header
                _
              $region60: #{discriminator_feature_forward.22} parent=57 // loop_header
                %s262 = sphi 0, %s266
                %p263 = scmp.ge.s32.totalorder %s262, 1
                %s267 = sphi %s252, %s252
                %s268 = sphi %s247, %s247
              $region61: #{discriminator_feature_forward.22} parent=57 // loop_header_branch
                %265 = sbr.rel (%p263) target = $region65
              $region62: #{discriminator_feature_forward.22} parent=57 // loop_body
                %v269 = vld [vmem:[%s267] sm:%s260]
                %270 = vst [vmem:[%s268] sm:%s260] %v269
                %v271 = vld [vmem:[%s267 + $0x8] sm:%s260]
                %272 = vst [vmem:[%s268 + $0x4] sm:%s260] %v271
                %v273 = vld [vmem:[%s267 + $0x10] sm:%s260]
                %274 = vst [vmem:[%s268 + $0x8] sm:%s260] %v273
                %v275 = vld [vmem:[%s267 + $0x18] sm:%s260]
                %276 = vst [vmem:[%s268 + $0xc] sm:%s260] %v275
                %v277 = vld [vmem:[%s267 + $0x20] sm:%s260]
                %278 = vst [vmem:[%s268 + $0x10] sm:%s260] %v277
                %v279 = vld [vmem:[%s267 + $0x28] sm:%s260]
                %280 = vst [vmem:[%s268 + $0x14] sm:%s260] %v279
                %v281 = vld [vmem:[%s267 + $0x30] sm:%s260]
                %282 = vst [vmem:[%s268 + $0x18] sm:%s260] %v281
                %v283 = vld [vmem:[%s267 + $0x38] sm:%s260]
                %284 = vst [vmem:[%s268 + $0x1c] sm:%s260] %v283
                %v285 = vld [vmem:[%s267 + $0x40] sm:%s260]
                %286 = vst [vmem:[%s268 + $0x20] sm:%s260] %v285
                %v287 = vld [vmem:[%s267 + $0x48] sm:%s260]
                %288 = vst [vmem:[%s268 + $0x24] sm:%s260] %v287
                %v289 = vld [vmem:[%s267 + $0x50] sm:%s260]
                %290 = vst [vmem:[%s268 + $0x28] sm:%s260] %v289
                %v291 = vld [vmem:[%s267 + $0x58] sm:%s260]
                %292 = vst [vmem:[%s268 + $0x2c] sm:%s260] %v291
                %v293 = vld [vmem:[%s267 + $0x60] sm:%s260]
                %294 = vst [vmem:[%s268 + $0x30] sm:%s260] %v293
                %v295 = vld [vmem:[%s267 + $0x68] sm:%s260]
                %296 = vst [vmem:[%s268 + $0x34] sm:%s260] %v295
                %v297 = vld [vmem:[%s267 + $0x70] sm:%s260]
                %298 = vst [vmem:[%s268 + $0x38] sm:%s260] %v297
                %v299 = vld [vmem:[%s267 + $0x78] sm:%s260]
                %300 = vst [vmem:[%s268 + $0x3c] sm:%s260] %v299
                %v301 = vld [vmem:[%s267 + $0x80] sm:%s260]
                %302 = vst [vmem:[%s268 + $0x40] sm:%s260] %v301
                %v303 = vld [vmem:[%s267 + $0x88] sm:%s260]
                %304 = vst [vmem:[%s268 + $0x44] sm:%s260] %v303
                %v305 = vld [vmem:[%s267 + $0x90] sm:%s260]
                %306 = vst [vmem:[%s268 + $0x48] sm:%s260] %v305
                %v307 = vld [vmem:[%s267 + $0x98] sm:%s260]
                %308 = vst [vmem:[%s268 + $0x4c] sm:%s260] %v307
                %v309 = vld [vmem:[%s267 + $0xa0] sm:%s260]
                %310 = vst [vmem:[%s268 + $0x50] sm:%s260] %v309
                %v311 = vld [vmem:[%s267 + $0xa8] sm:%s260]
                %312 = vst [vmem:[%s268 + $0x54] sm:%s260] %v311
                %v313 = vld [vmem:[%s267 + $0xb0] sm:%s260]
                %314 = vst [vmem:[%s268 + $0x58] sm:%s260] %v313
                %v315 = vld [vmem:[%s267 + $0xb8] sm:%s260]
                %316 = vst [vmem:[%s268 + $0x5c] sm:%s260] %v315
                %v317 = vld [vmem:[%s267 + $0xc0] sm:%s260]
                %318 = vst [vmem:[%s268 + $0x60] sm:%s260] %v317
                %v319 = vld [vmem:[%s267 + $0xc8] sm:%s260]
                %320 = vst [vmem:[%s268 + $0x64] sm:%s260] %v319
                %v321 = vld [vmem:[%s267 + $0xd0] sm:%s260]
                %322 = vst [vmem:[%s268 + $0x68] sm:%s260] %v321
                %v323 = vld [vmem:[%s267 + $0xd8] sm:%s260]
                %324 = vst [vmem:[%s268 + $0x6c] sm:%s260] %v323
                %v325 = vld [vmem:[%s267 + $0xe0] sm:%s260]
                %326 = vst [vmem:[%s268 + $0x70] sm:%s260] %v325
                %v327 = vld [vmem:[%s267 + $0xe8] sm:%s260]
                %328 = vst [vmem:[%s268 + $0x74] sm:%s260] %v327
                %v329 = vld [vmem:[%s267 + $0xf0] sm:%s260]
                %330 = vst [vmem:[%s268 + $0x78] sm:%s260] %v329
                %v331 = vld [vmem:[%s267 + $0xf8] sm:%s260]
                %332 = vst [vmem:[%s268 + $0x7c] sm:%s260] %v331
                %v333 = vld [vmem:[%s267 + $0x100] sm:%s260]
                %334 = vst [vmem:[%s268 + $0x80] sm:%s260] %v333
                %v335 = vld [vmem:[%s267 + $0x108] sm:%s260]
                %336 = vst [vmem:[%s268 + $0x84] sm:%s260] %v335
                %v337 = vld [vmem:[%s267 + $0x110] sm:%s260]
                %338 = vst [vmem:[%s268 + $0x88] sm:%s260] %v337
                %v339 = vld [vmem:[%s267 + $0x118] sm:%s260]
                %340 = vst [vmem:[%s268 + $0x8c] sm:%s260] %v339
                %v341 = vld [vmem:[%s267 + $0x120] sm:%s260]
                %342 = vst [vmem:[%s268 + $0x90] sm:%s260] %v341
                %v343 = vld [vmem:[%s267 + $0x128] sm:%s260]
                %344 = vst [vmem:[%s268 + $0x94] sm:%s260] %v343
                %v345 = vld [vmem:[%s267 + $0x130] sm:%s260]
                %346 = vst [vmem:[%s268 + $0x98] sm:%s260] %v345
                %v347 = vld [vmem:[%s267 + $0x138] sm:%s260]
                %348 = vst [vmem:[%s268 + $0x9c] sm:%s260] %v347
                %v349 = vld [vmem:[%s267 + $0x140] sm:%s260]
                %350 = vst [vmem:[%s268 + $0xa0] sm:%s260] %v349
                %v351 = vld [vmem:[%s267 + $0x148] sm:%s260]
                %352 = vst [vmem:[%s268 + $0xa4] sm:%s260] %v351
                %v353 = vld [vmem:[%s267 + $0x150] sm:%s260]
                %354 = vst [vmem:[%s268 + $0xa8] sm:%s260] %v353
                %v355 = vld [vmem:[%s267 + $0x158] sm:%s260]
                %356 = vst [vmem:[%s268 + $0xac] sm:%s260] %v355
                %v357 = vld [vmem:[%s267 + $0x160] sm:%s260]
                %358 = vst [vmem:[%s268 + $0xb0] sm:%s260] %v357
                %v359 = vld [vmem:[%s267 + $0x168] sm:%s260]
                %360 = vst [vmem:[%s268 + $0xb4] sm:%s260] %v359
                %v361 = vld [vmem:[%s267 + $0x170] sm:%s260]
                %362 = vst [vmem:[%s268 + $0xb8] sm:%s260] %v361
                %v363 = vld [vmem:[%s267 + $0x178] sm:%s260]
                %364 = vst [vmem:[%s268 + $0xbc] sm:%s260] %v363
              $region63: #{discriminator_feature_forward.22} parent=57 // loop_footer
                %s266 = sadd.s32 1, %s262
              $region64: #{discriminator_feature_forward.22} parent=57 // loop_footer_branch
                %261 = sbr.rel target = $region60
              $region65: #{discriminator_feature_forward.22} parent=57 // loop_exit
                _
            $region58: #{discriminator_feature_forward.22} parent=49 // pred_fallthru
              _
          $region50: #{discriminator_feature_forward.22} parent=45 // pred_fallthru
            _
          %481 = vnop
        $region46: #{discriminator_feature_forward.22} parent=15 // pred_fallthru
          _
        // Predicated region
        $region84: #{discriminator_feature_forward.22} parent=15 // pred_check
          %p482 = pneg %p106
        $region85: #{discriminator_feature_forward.22} parent=15 // pred_check_branch
          %484 = sbr.rel (%p482) target = $region87
        $region86: #{discriminator_feature_forward.22} parent=15 // pred_region
          %p485 = scmp.lt.s32.totalorder %s19, 1
          %s486 = scalar_select %p485, %s19, 1
          %s487 = scalar_lea.vmem %s2, %s486
        $region87: #{discriminator_feature_forward.22} parent=15 // pred_fallthru
          _
      $region16: #{discriminator_feature_forward.22} parent=5 // pred_fallthru
        _
      %p488 = scmp.le.s32.totalorder 1, %s11
      %p489 = scmp.lt.s32.totalorder %s11, 7
      %p490 = pnand %p488, %p489
      %p491 = pneg %p490
      // Predicated region
      $region88: #{discriminator_feature_forward.22} parent=5 // pred_check
        _
      $region89: #{discriminator_feature_forward.22} parent=5 // pred_check_branch
        %493 = sbr.rel (%p490) target = $region91
      $region90: #{discriminator_feature_forward.22} parent=5 // pred_region
        %s494 = ssub.s32 %s11, 1
        %s495 = sand.u32 %s45, 1
        %s496 = sand.u32 %s45, 1
        %s497 = smul.addr %s496, 48
        %s498 = scalar_lea.vmem [#allocation3], %s497
        // Predicated region
        $region92: #{discriminator_feature_forward.22} parent=90 // pred_check
          %p499 = pneg %p58
        $region93: #{discriminator_feature_forward.22} parent=90 // pred_check_branch
          %501 = sbr.rel (%p499) target = $region95
        $region94: #{discriminator_feature_forward.22} parent=90 // pred_region
          _
        $region95: #{discriminator_feature_forward.22} parent=90 // pred_fallthru
          _
        %s502 = sand.u32 %s73, 1
        %s503 = sand.u32 %s73, 1
        %s504 = smul.addr %s503, 192
        %s505 = scalar_lea.vmem [#allocation4], %s504
        // Predicated region
        $region96: #{discriminator_feature_forward.22} parent=90 // pred_check
          %p506 = pneg %p86
        $region97: #{discriminator_feature_forward.22} parent=90 // pred_check_branch
          %508 = sbr.rel (%p506) target = $region99
        $region98: #{discriminator_feature_forward.22} parent=90 // pred_region
          _
        $region99: #{discriminator_feature_forward.22} parent=90 // pred_fallthru
          _
        %s509 = sand.u32 %s45, 1
        %s510 = sand.u32 %s45, 1
        %s511 = smul.addr %s510, 48
        %s512 = scalar_lea.vmem [#allocation3], %s511
        %p513 = pneg %p58
        %p514 = pneg %p55
        %s515 = sand.u32 %s73, 1
        %s516 = sand.u32 %s73, 1
        %s517 = smul.addr %s516, 192
        %s518 = scalar_lea.vmem [#allocation4], %s517
        %p519 = pneg %p86
        %p520 = pneg %p83
        %p521 = scmp.lt.s32.totalorder %s22, 1
        %s522 = scalar_select %p521, %s22, 1
        %s523 = scalar_lea.vmem %s2, %s522
        %p524 = pneg %p112
        %p525 = pneg %p109
        %p526 = pneg %p140
        %p527 = pneg %p137
        %s528 = sand.u32 %s127, 1
        %s529 = sand.u32 %s127, 1
        %s530 = smul.addr %s529, 32
        %s531 = scalar_lea.vmem [#allocation5], %s530
        %p532 = pneg %p168
        %p533 = pneg %p165
        %p534 = scmp.lt.s32.totalorder %s21, 0
        %s535 = scalar_select %p534, %s21, 0
        %p536 = scmp.lt.s32.totalorder %s22, 1
        %s537 = scalar_select %p536, %s22, 1
        %s538 = smul.addr %s535, 2
        %s539 = sadd.s32 %s537, %s538
        %s540 = smul.addr %s539, 2
        %s541 = scalar_lea.vmem %s4, %s540
        %s542 = smul.u32 4, %s21
        %s543 = smul.u32 3, %s23
        %s544 = smul.u32 48, %s23
        %p545 = scmp.lt.s32.totalorder %s22, 1
        %s546 = scalar_select %p545, %s22, 1
        %s547 = scalar_lea.vmem %s2, %s546
        %s548 = smul.u32 4, %s21
        %p549 = scmp.lt.s32.totalorder %s21, 0
        %s550 = scalar_select %p549, %s21, 0
        %p551 = scmp.lt.s32.totalorder %s22, 1
        %s552 = scalar_select %p551, %s22, 1
        %s553 = smul.addr %s550, 2
        %s554 = sadd.s32 %s552, %s553
        %s555 = smul.addr %s554, 2
        %s556 = scalar_lea.vmem %s4, %s555
        %p557 = scmp.eq.s32.totalorder %s23, 0
        // Predicated region
        $region100: #{discriminator_feature_forward.22} parent=90 // pred_check
          %p558 = pneg %p557
        $region101: #{discriminator_feature_forward.22} parent=90 // pred_check_branch
          %560 = sbr.rel (%p558) target = $region103
        $region102: #{discriminator_feature_forward.22} parent=90 // pred_region
          %561 = vst [vmem:[#allocation2] sm:$0xff] 0.0
          %562 = vst [vmem:[#allocation2 + $0x8] sm:$0xff] 0.0
          %563 = vst [vmem:[#allocation2 + $0x10] sm:$0xff] 0.0
          %564 = vst [vmem:[#allocation2 + $0x18] sm:$0xff] 0.0
        $region103: #{discriminator_feature_forward.22} parent=90 // pred_fallthru
          _
        %v565 = vld [vmem:[#allocation2] sm:$0xff]
        %v566 = vld [vmem:[#allocation2 + $0x8] sm:$0xff]
        %v567 = vld [vmem:[#allocation2 + $0x10] sm:$0xff]
        %v568 = vld [vmem:[#allocation2 + $0x18] sm:$0xff]
        %v569 = vld [vmem:[%s498] sm:$0xff]
        %v570 = vld [vmem:[%s498 + $0x8] sm:$0xf]
        %v571 = vld [vmem:[%s498 + $0xc] sm:$0xff]
        %v572 = vld [vmem:[%s498 + $0x14] sm:$0xf]
        %v573 = vld [vmem:[%s498 + $0x18] sm:$0xff]
        %v574 = vld [vmem:[%s498 + $0x20] sm:$0xf]
        %v575 = vld [vmem:[%s498 + $0x24] sm:$0xff]
        %v576 = vld [vmem:[%s498 + $0x2c] sm:$0xf]
        %v577 = vld [vmem:[%s505] sm:$0xf]
        %v578 = vld [vmem:[%s505 + $0x4] sm:$0xf]
        %v579 = vld [vmem:[%s505 + $0x8] sm:$0xf]
        %v580 = vld [vmem:[%s505 + $0xc] sm:$0xf]
        %v581 = vld [vmem:[%s505 + $0x10] sm:$0xf]
        %v582 = vld [vmem:[%s505 + $0x14] sm:$0xf]
        %v583 = vld [vmem:[%s505 + $0x18] sm:$0xf]
        %v584 = vld [vmem:[%s505 + $0x1c] sm:$0xf]
        %v585 = vld [vmem:[%s505 + $0x20] sm:$0xf]
        %v586 = vld [vmem:[%s505 + $0x24] sm:$0xf]
        %v587 = vld [vmem:[%s505 + $0x28] sm:$0xf]
        %v588 = vld [vmem:[%s505 + $0x2c] sm:$0xf]
        %v589 = vld [vmem:[%s505 + $0x30] sm:$0xf]
        %v590 = vld [vmem:[%s505 + $0x34] sm:$0xf]
        %v591 = vld [vmem:[%s505 + $0x38] sm:$0xf]
        %v592 = vld [vmem:[%s505 + $0x3c] sm:$0xf]
        %v593 = vld [vmem:[%s505 + $0x40] sm:$0xf]
        %v594 = vld [vmem:[%s505 + $0x44] sm:$0xf]
        %v595 = vld [vmem:[%s505 + $0x48] sm:$0xf]
        %v596 = vld [vmem:[%s505 + $0x4c] sm:$0xf]
        %v597 = vld [vmem:[%s505 + $0x50] sm:$0xf]
        %v598 = vld [vmem:[%s505 + $0x54] sm:$0xf]
        %v599 = vld [vmem:[%s505 + $0x58] sm:$0xf]
        %v600 = vld [vmem:[%s505 + $0x5c] sm:$0xf]
        %v601 = vld [vmem:[%s505 + $0x60] sm:$0xf]
        %v602 = vld [vmem:[%s505 + $0x64] sm:$0xf]
        %v603 = vld [vmem:[%s505 + $0x68] sm:$0xf]
        %v604 = vld [vmem:[%s505 + $0x6c] sm:$0xf]
        %v605 = vld [vmem:[%s505 + $0x70] sm:$0xf]
        %v606 = vld [vmem:[%s505 + $0x74] sm:$0xf]
        %v607 = vld [vmem:[%s505 + $0x78] sm:$0xf]
        %v608 = vld [vmem:[%s505 + $0x7c] sm:$0xf]
        %v609 = vld [vmem:[%s505 + $0x80] sm:$0xf]
        %v610 = vld [vmem:[%s505 + $0x84] sm:$0xf]
        %v611 = vld [vmem:[%s505 + $0x88] sm:$0xf]
        %v612 = vld [vmem:[%s505 + $0x8c] sm:$0xf]
        %v613 = vld [vmem:[%s505 + $0x90] sm:$0xf]
        %v614 = vld [vmem:[%s505 + $0x94] sm:$0xf]
        %v615 = vld [vmem:[%s505 + $0x98] sm:$0xf]
        %v616 = vld [vmem:[%s505 + $0x9c] sm:$0xf]
        %v617 = vld [vmem:[%s505 + $0xa0] sm:$0xf]
        %v618 = vld [vmem:[%s505 + $0xa4] sm:$0xf]
        %v619 = vld [vmem:[%s505 + $0xa8] sm:$0xf]
        %v620 = vld [vmem:[%s505 + $0xac] sm:$0xf]
        %v621 = vld [vmem:[%s505 + $0xb0] sm:$0xf]
        %v622 = vld [vmem:[%s505 + $0xb4] sm:$0xf]
        %v623 = vld [vmem:[%s505 + $0xb8] sm:$0xf]
        %v624 = vld [vmem:[%s505 + $0xbc] sm:$0xf]
        %v633 = vunpack.c.l.b16 %v569
        %v634 = vunpack.c.h.b16 %v569
        %v635 = vunpack.c.l.b16 %v570
        %v636 = vunpack.c.l.b16 %v571
        %v637 = vunpack.c.h.b16 %v571
        %v638 = vunpack.c.l.b16 %v572
        %v639 = vunpack.c.l.b16 %v573
        %v640 = vunpack.c.h.b16 %v573
        %v641 = vunpack.c.l.b16 %v574
        %v642 = vunpack.c.l.b16 %v575
        %v643 = vunpack.c.h.b16 %v575
        %v644 = vunpack.c.l.b16 %v576
        %v645 = vpack.c.b16 %v636, %v633
        %v646 = vpack.c.b16 %v637, %v634
        %v647 = vpack.c.b16 %v638, %v635
        %v648 = vpack.c.b16 %v642, %v639
        %v649 = vpack.c.b16 %v643, %v640
        %v650 = vpack.c.b16 %v644, %v641
        %v705 = vunpack.c.l.b16 %v577
        %v706 = vunpack.c.l.b16 %v578
        %v707 = vunpack.c.l.b16 %v579
        %v708 = vunpack.c.l.b16 %v580
        %v709 = vunpack.c.l.b16 %v581
        %v710 = vunpack.c.l.b16 %v582
        %v711 = vunpack.c.l.b16 %v583
        %v712 = vunpack.c.l.b16 %v584
        %v713 = vunpack.c.l.b16 %v585
        %v714 = vunpack.c.l.b16 %v586
        %v715 = vunpack.c.l.b16 %v587
        %v716 = vunpack.c.l.b16 %v588
        %v717 = vunpack.c.l.b16 %v589
        %v718 = vunpack.c.l.b16 %v590
        %v719 = vunpack.c.l.b16 %v591
        %v720 = vunpack.c.l.b16 %v592
        %v721 = vunpack.c.l.b16 %v593
        %v722 = vunpack.c.l.b16 %v594
        %v723 = vunpack.c.l.b16 %v595
        %v724 = vunpack.c.l.b16 %v596
        %v725 = vunpack.c.l.b16 %v597
        %v726 = vunpack.c.l.b16 %v598
        %v727 = vunpack.c.l.b16 %v599
        %v728 = vunpack.c.l.b16 %v600
        %v729 = vunpack.c.l.b16 %v601
        %v730 = vunpack.c.l.b16 %v602
        %v731 = vunpack.c.l.b16 %v603
        %v732 = vunpack.c.l.b16 %v604
        %v733 = vunpack.c.l.b16 %v605
        %v734 = vunpack.c.l.b16 %v606
        %v735 = vunpack.c.l.b16 %v607
        %v736 = vunpack.c.l.b16 %v608
        %v737 = vunpack.c.l.b16 %v609
        %v738 = vunpack.c.l.b16 %v610
        %v739 = vunpack.c.l.b16 %v611
        %v740 = vunpack.c.l.b16 %v612
        %v741 = vunpack.c.l.b16 %v613
        %v742 = vunpack.c.l.b16 %v614
        %v743 = vunpack.c.l.b16 %v615
        %v744 = vunpack.c.l.b16 %v616
        %v745 = vunpack.c.l.b16 %v617
        %v746 = vunpack.c.l.b16 %v618
        %v747 = vunpack.c.l.b16 %v619
        %v748 = vunpack.c.l.b16 %v620
        %v749 = vunpack.c.l.b16 %v621
        %v750 = vunpack.c.l.b16 %v622
        %v751 = vunpack.c.l.b16 %v623
        %v752 = vunpack.c.l.b16 %v624
        %v753 = vpack.c.b16 %v706, %v705
        %v754 = vpack.c.b16 %v708, %v707
        %v755 = vpack.c.b16 %v710, %v709
        %v756 = vpack.c.b16 %v712, %v711
        %v757 = vpack.c.b16 %v714, %v713
        %v758 = vpack.c.b16 %v716, %v715
        %v759 = vpack.c.b16 %v718, %v717
        %v760 = vpack.c.b16 %v720, %v719
        %v761 = vpack.c.b16 %v722, %v721
        %v762 = vpack.c.b16 %v724, %v723
        %v763 = vpack.c.b16 %v726, %v725
        %v764 = vpack.c.b16 %v728, %v727
        %v765 = vpack.c.b16 %v730, %v729
        %v766 = vpack.c.b16 %v732, %v731
        %v767 = vpack.c.b16 %v734, %v733
        %v768 = vpack.c.b16 %v736, %v735
        %v769 = vpack.c.b16 %v738, %v737
        %v770 = vpack.c.b16 %v740, %v739
        %v771 = vpack.c.b16 %v742, %v741
        %v772 = vpack.c.b16 %v744, %v743
        %v773 = vpack.c.b16 %v746, %v745
        %v774 = vpack.c.b16 %v748, %v747
        %v775 = vpack.c.b16 %v750, %v749
        %v776 = vpack.c.b16 %v752, %v751
        %801 = vmatpush.bf16.msra.mxu0 %v760
        %802 = vmatpush.bf16.msra.mxu0 %v759
        %803 = vmatpush.bf16.msra.mxu0 %v758
        %804 = vmatpush.bf16.msra.mxu0 %v757
        %805 = vmatpush.bf16.msra.mxu0 %v756
        %806 = vmatpush.bf16.msra.mxu0 %v755
        %807 = vmatpush.bf16.msra.mxu0 %v754
        %808 = vmatpush.bf16.msra.mxu0 %v753
        %809 = vmatmul.bf16.gmra.mxu0 %v645
        %v810 = vpop.f32.mrf.mxu0
        %v811 = vadd.f32 0.0, %v810
        %v812 = vpop.f32.mrf.mxu0
        %v813 = vadd.f32 0.0, %v812
        %814 = vmatmul.bf16.gmra.mxu0 %v648
        %v815 = vpop.f32.mrf.mxu0
        %v816 = vadd.f32 0.0, %v815
        %v817 = vpop.f32.mrf.mxu0
        %v818 = vadd.f32 0.0, %v817
        %819 = vdwg.mxu0
        %820 = vmatpush.bf16.msra.mxu0 %v768
        %821 = vmatpush.bf16.msra.mxu0 %v767
        %822 = vmatpush.bf16.msra.mxu0 %v766
        %823 = vmatpush.bf16.msra.mxu0 %v765
        %824 = vmatpush.bf16.msra.mxu0 %v764
        %825 = vmatpush.bf16.msra.mxu0 %v763
        %826 = vmatpush.bf16.msra.mxu0 %v762
        %827 = vmatpush.bf16.msra.mxu0 %v761
        %828 = vmatmul.bf16.gmra.mxu0 %v646
        %v829 = vpop.f32.mrf.mxu0
        %v830 = vadd.f32 %v811, %v829
        %v831 = vpop.f32.mrf.mxu0
        %v832 = vadd.f32 %v813, %v831
        %833 = vmatmul.bf16.gmra.mxu0 %v649
        %v834 = vpop.f32.mrf.mxu0
        %v835 = vadd.f32 %v816, %v834
        %v836 = vpop.f32.mrf.mxu0
        %v837 = vadd.f32 %v818, %v836
        %838 = vdwg.mxu0
        %839 = vmatpush.bf16.msra.mxu0 %v776
        %840 = vmatpush.bf16.msra.mxu0 %v775
        %841 = vmatpush.bf16.msra.mxu0 %v774
        %842 = vmatpush.bf16.msra.mxu0 %v773
        %843 = vmatpush.bf16.msra.mxu0 %v772
        %844 = vmatpush.bf16.msra.mxu0 %v771
        %845 = vmatpush.bf16.msra.mxu0 %v770
        %846 = vmatpush.bf16.msra.mxu0 %v769
        %847 = vmatmul.bf16.gmra.mxu0 %v647
        %v848 = vpop.f32.mrf.mxu0
        %v849 = vadd.f32 %v830, %v848
        %v850 = vpop.f32.mrf.mxu0
        %v851 = vadd.f32 %v832, %v850
        %852 = vmatmul.bf16.gmra.mxu0 %v650
        %v853 = vpop.f32.mrf.mxu0
        %v854 = vadd.f32 %v835, %v853
        %v855 = vpop.f32.mrf.mxu0
        %v856 = vadd.f32 %v837, %v855
        %857 = vdwg.mxu0
        %v858 = vadd.f32 %v565, %v849
        %v859 = vadd.f32 %v566, %v851
        %v860 = vadd.f32 %v567, %v854
        %v861 = vadd.f32 %v568, %v856
        %862 = vst [vmem:[#allocation2] sm:$0xff] %v858
        %863 = vst [vmem:[#allocation2 + $0x8] sm:$0xff] %v859
        %864 = vst [vmem:[#allocation2 + $0x10] sm:$0xff] %v860
        %865 = vst [vmem:[#allocation2 + $0x18] sm:$0xff] %v861
        %p866 = scmp.eq.s32.totalorder %s23, 2
        // Predicated region
        $region104: #{discriminator_feature_forward.22} parent=90 // pred_check
          %p867 = pneg %p866
        $region105: #{discriminator_feature_forward.22} parent=90 // pred_check_branch
          %869 = sbr.rel (%p867) target = $region107
        $region106: #{discriminator_feature_forward.22} parent=90 // pred_region
          %v870 = vld [vmem:[#allocation2] sm:$0xff]
          %v871 = vld [vmem:[#allocation2 + $0x8] sm:$0xff]
          %v872 = vld [vmem:[#allocation2 + $0x10] sm:$0xff]
          %v873 = vld [vmem:[#allocation2 + $0x18] sm:$0xff]
          %v874 = vld [vmem:[%s547] sm:$0x1]
          %v876 = vperm.slane %v874, 0
          %v878 = vadd.f32 %v870, %v876
          %v879 = vadd.f32 %v871, %v876
          %v880 = vadd.f32 %v872, %v876
          %v881 = vadd.f32 %v873, %v876
          %882 = vst [vmem:[%s531] sm:$0xff] %v878
          %883 = vst [vmem:[%s531 + $0x8] sm:$0xff] %v879
          %884 = vst [vmem:[%s531 + $0x10] sm:$0xff] %v880
          %885 = vst [vmem:[%s531 + $0x18] sm:$0xff] %v881
          %v886 = vadd.f32 %v878, %v879
          %v887 = vadd.f32 %v886, %v880
          %v888 = vadd.f32 %v887, %v881
          %v889 = vrot.slane %v888, 4
          %v890 = vadd.f32 %v888, %v889
          %v891 = vrot.slane %v890, 2
          %v892 = vadd.f32 %v890, %v891
          %v893 = vrot.slane %v892, 1
          %v894 = vadd.f32 %v892, %v893
          %v895 = vmul.f32 %v878, %v878
          %v896 = vmul.f32 %v879, %v879
          %v897 = vmul.f32 %v880, %v880
          %v898 = vmul.f32 %v881, %v881
          %v899 = vadd.f32 %v895, %v896
          %v900 = vadd.f32 %v899, %v897
          %v901 = vadd.f32 %v900, %v898
          %v902 = vrot.slane %v901, 4
          %v903 = vadd.f32 %v901, %v902
          %v904 = vrot.slane %v903, 2
          %v905 = vadd.f32 %v903, %v904
          %v906 = vrot.slane %v905, 1
          %v907 = vadd.f32 %v905, %v906
          %vm908 = vcmask 1040384
          %v909 = vsel %vm908, %v894, %v907
          %910 = vst [vmem:[%s556] sm:$0x3] %v909
        $region107: #{discriminator_feature_forward.22} parent=90 // pred_fallthru
          _
        %s911 = sand.u32 %s127, 1
        %s912 = sand.u32 %s127, 1
        %s913 = smul.addr %s912, 32
        %s914 = scalar_lea.vmem [#allocation5], %s913
        %p915 = scmp.lt.s32.totalorder %s21, 0
        %s916 = scalar_select %p915, %s21, 0
        %p917 = scmp.lt.s32.totalorder %s22, 1
        %s918 = scalar_select %p917, %s22, 1
        %s919 = smul.addr %s916, 2
        %s920 = sadd.s32 %s918, %s919
        %s921 = smul.addr %s920, 2
        %s922 = scalar_lea.vmem %s4, %s921
        // Predicated region
        $region108: #{discriminator_feature_forward.22} parent=90 // pred_check
          %p923 = pneg %p137
        $region109: #{discriminator_feature_forward.22} parent=90 // pred_check_branch
          %925 = sbr.rel (%p923) target = $region111
        $region110: #{discriminator_feature_forward.22} parent=90 // pred_region
          %s926 = smul.u32 4, %s21
          %s927 = smul.addr %s926, 2
          %s928 = sadd.s32 %s22, %s927
          %s929 = smul.addr %s928, 8
          %s930 = scalar_lea.vmem %s3, %s929
          // Predicated region
          $region112: #{discriminator_feature_forward.22} parent=110 // pred_check
            _
          $region113: #{discriminator_feature_forward.22} parent=110 // pred_check_branch
            %932 = sbr.rel (0) target = $region115
          $region114: #{discriminator_feature_forward.22} parent=110 // pred_region
            // Predicated region
            $region116: #{discriminator_feature_forward.22} parent=114 // pred_check
              _
            $region117: #{discriminator_feature_forward.22} parent=114 // pred_check_branch
              %934 = sbr.rel (0) target = $region119
            $region118: #{discriminator_feature_forward.22} parent=114 // pred_region
              // Predicated region
              $region131: #{discriminator_feature_forward.22} parent=118 // pred_check
                _
              $region132: #{discriminator_feature_forward.22} parent=118 // pred_check_branch
                %956 = sbr.rel (0) target = $region134
              $region133: #{discriminator_feature_forward.22} parent=118 // pred_region
                loop: start=0, step=1, limit=1
                $region135: #{discriminator_feature_forward.22} parent=133 // loop_pre_header
                  _
                $region136: #{discriminator_feature_forward.22} parent=133 // loop_header
                  %s958 = sphi 0, %s962
                  %p959 = scmp.ge.s32.totalorder %s958, 1
                  %s963 = sphi %s914, %s914
                  %s964 = sphi %s930, %s930
                $region137: #{discriminator_feature_forward.22} parent=133 // loop_header_branch
                  %961 = sbr.rel (%p959) target = $region141
                $region138: #{discriminator_feature_forward.22} parent=133 // loop_body
                  %v965 = vld [vmem:[%s963] sm:$0xff]
                  %966 = vst [vmem:[%s964] sm:$0xff] %v965
                  %v967 = vld [vmem:[%s963 + $0x8] sm:$0xff]
                  %968 = vst [vmem:[%s964 + $0x10] sm:$0xff] %v967
                  %v969 = vld [vmem:[%s963 + $0x10] sm:$0xff]
                  %970 = vst [vmem:[%s964 + $0x20] sm:$0xff] %v969
                  %v971 = vld [vmem:[%s963 + $0x18] sm:$0xff]
                  %972 = vst [vmem:[%s964 + $0x30] sm:$0xff] %v971
                $region139: #{discriminator_feature_forward.22} parent=133 // loop_footer
                  %s962 = sadd.s32 1, %s958
                $region140: #{discriminator_feature_forward.22} parent=133 // loop_footer_branch
                  %957 = sbr.rel target = $region136
                $region141: #{discriminator_feature_forward.22} parent=133 // loop_exit
                  _
              $region134: #{discriminator_feature_forward.22} parent=118 // pred_fallthru
                _
              // Predicated region
              $region142: #{discriminator_feature_forward.22} parent=118 // pred_check
                _
              $region143: #{discriminator_feature_forward.22} parent=118 // pred_check_branch
                %974 = sbr.rel target = $region145
              $region144: #{discriminator_feature_forward.22} parent=118 // pred_region
                _
              $region145: #{discriminator_feature_forward.22} parent=118 // pred_fallthru
                _
            $region119: #{discriminator_feature_forward.22} parent=114 // pred_fallthru
              _
            // Predicated region
            $region120: #{discriminator_feature_forward.22} parent=114 // pred_check
              _
            $region121: #{discriminator_feature_forward.22} parent=114 // pred_check_branch
              %936 = sbr.rel target = $region123
            $region122: #{discriminator_feature_forward.22} parent=114 // pred_region
              %s938 = ssub.s32 256, 1
              loop: start=0, step=1, limit=1
              $region124: #{discriminator_feature_forward.22} parent=122 // loop_pre_header
                _
              $region125: #{discriminator_feature_forward.22} parent=122 // loop_header
                %s940 = sphi 0, %s944
                %p941 = scmp.ge.s32.totalorder %s940, 1
                %s945 = sphi %s914, %s914
                %s946 = sphi %s930, %s930
              $region126: #{discriminator_feature_forward.22} parent=122 // loop_header_branch
                %943 = sbr.rel (%p941) target = $region130
              $region127: #{discriminator_feature_forward.22} parent=122 // loop_body
                %v947 = vld [vmem:[%s945] sm:%s938]
                %948 = vst [vmem:[%s946] sm:%s938] %v947
                %v949 = vld [vmem:[%s945 + $0x8] sm:%s938]
                %950 = vst [vmem:[%s946 + $0x10] sm:%s938] %v949
                %v951 = vld [vmem:[%s945 + $0x10] sm:%s938]
                %952 = vst [vmem:[%s946 + $0x20] sm:%s938] %v951
                %v953 = vld [vmem:[%s945 + $0x18] sm:%s938]
                %954 = vst [vmem:[%s946 + $0x30] sm:%s938] %v953
              $region128: #{discriminator_feature_forward.22} parent=122 // loop_footer
                %s944 = sadd.s32 1, %s940
              $region129: #{discriminator_feature_forward.22} parent=122 // loop_footer_branch
                %939 = sbr.rel target = $region125
              $region130: #{discriminator_feature_forward.22} parent=122 // loop_exit
                _
            $region123: #{discriminator_feature_forward.22} parent=114 // pred_fallthru
              _
          $region115: #{discriminator_feature_forward.22} parent=110 // pred_fallthru
            _
          %975 = vnop
        $region111: #{discriminator_feature_forward.22} parent=90 // pred_fallthru
          _
        // Predicated region
        $region146: #{discriminator_feature_forward.22} parent=90 // pred_check
          %p976 = pneg %p165
        $region147: #{discriminator_feature_forward.22} parent=90 // pred_check_branch
          %978 = sbr.rel (%p976) target = $region149
        $region148: #{discriminator_feature_forward.22} parent=90 // pred_region
          _
        $region149: #{discriminator_feature_forward.22} parent=90 // pred_fallthru
          _
      $region91: #{discriminator_feature_forward.22} parent=5 // pred_fallthru
        _
      %p979 = scmp.le.s32.totalorder 2, %s11
      // Predicated region
      $region150: #{discriminator_feature_forward.22} parent=5 // pred_check
        %p980 = pneg %p979
      $region151: #{discriminator_feature_forward.22} parent=5 // pred_check_branch
        %982 = sbr.rel (%p980) target = $region153
      $region152: #{discriminator_feature_forward.22} parent=5 // pred_region
        %s983 = ssub.s32 %s11, 2
        // Predicated region
        $region154: #{discriminator_feature_forward.22} parent=152 // pred_check
          %p984 = pneg %p143
        $region155: #{discriminator_feature_forward.22} parent=152 // pred_check_branch
          %986 = sbr.rel (%p984) target = $region157
        $region156: #{discriminator_feature_forward.22} parent=152 // pred_region
          %s987 = sand.u32 %s128, 1
          %s988 = sand.u32 %s128, 1
          %s989 = smul.addr %s988, 32
          %s990 = scalar_lea.vmem [#allocation5], %s989
        $region157: #{discriminator_feature_forward.22} parent=152 // pred_fallthru
          _
        // Predicated region
        $region158: #{discriminator_feature_forward.22} parent=152 // pred_check
          %p991 = pneg %p171
        $region159: #{discriminator_feature_forward.22} parent=152 // pred_check_branch
          %993 = sbr.rel (%p991) target = $region161
        $region160: #{discriminator_feature_forward.22} parent=152 // pred_region
          %p994 = scmp.lt.s32.totalorder %s24, 0
          %s995 = scalar_select %p994, %s24, 0
          %p996 = scmp.lt.s32.totalorder %s25, 1
          %s997 = scalar_select %p996, %s25, 1
          %s998 = smul.addr %s995, 2
          %s999 = sadd.s32 %s997, %s998
          %s1000 = smul.addr %s999, 2
          %s1001 = scalar_lea.vmem %s4, %s1000
        $region161: #{discriminator_feature_forward.22} parent=152 // pred_fallthru
          _
      $region153: #{discriminator_feature_forward.22} parent=5 // pred_fallthru
        _
    $region6: #{discriminator_feature_forward.22} parent=1 // loop_footer
      %s15 = sadd.s32 1, %s11
    $region7: #{discriminator_feature_forward.22} parent=1 // loop_footer_branch
      %10 = sbr.rel target = $region3
    $region8: #{discriminator_feature_forward.22} parent=1 // loop_exit
      _

// kernel: discriminator_feature_forward.25
$region0: #{discriminator_feature_forward.25}
  #allocation0 [shape = 'u32[]', space=smem, size = 0x4, offset = 0x4, fixed_abs, tag = 'smem constant byte address 0x4 - core index']
  #allocation1 [shape = 'u32[72,128]{1,0:T(1,128)}', space=vmem, size = 0x9000, scoped, tag = 'internal scratch']
  %s0 = inlined_call_operand.vmem [shape: f32[8,256], index: 0, kind: input, shape index: {}]
  %s1 = inlined_call_operand.vmem [shape: f32[1,256], index: 1, kind: input, shape index: {}]
  %s2 = inlined_call_operand.vmem [shape: f32[1,256], index: 2, kind: input, shape index: {}]
  %s3 = inlined_call_operand.vmem [shape: f32[8,256], index: 3, kind: output, shape index: {}]
  %s4 = sld [smem:[#allocation0]]
  $region22: #{discriminator_feature_forward.25} parent=0
    _
  %s6 = ssub.s32 1, %s4
  %s7 = scalar_select 0, %s6, %s4
  // Predicated region
  $region2: #{discriminator_feature_forward.25} parent=0 // pred_check
    _
  $region3: #{discriminator_feature_forward.25} parent=0 // pred_check_branch
    %9 = sbr.rel (0) target = $region5
  $region4: #{discriminator_feature_forward.25} parent=0 // pred_region
    _
  $region5: #{discriminator_feature_forward.25} parent=0 // pred_fallthru
    _
  // Predicated region
  $region6: #{discriminator_feature_forward.25} parent=0 // pred_check
    _
  $region7: #{discriminator_feature_forward.25} parent=0 // pred_check_branch
    %11 = sbr.rel (0) target = $region9
  $region8: #{discriminator_feature_forward.25} parent=0 // pred_region
    _
  $region9: #{discriminator_feature_forward.25} parent=0 // pred_fallthru
    _
  // Predicated region
  $region10: #{discriminator_feature_forward.25} parent=0 // pred_check
    _
  $region11: #{discriminator_feature_forward.25} parent=0 // pred_check_branch
    %13 = sbr.rel (0) target = $region13
  $region12: #{discriminator_feature_forward.25} parent=0 // pred_region
    _
  $region13: #{discriminator_feature_forward.25} parent=0 // pred_fallthru
    _
  %v14 = vld [vmem:[%s0] sm:$0xff]
  %v15 = vld [vmem:[%s0 + $0x8] sm:$0xff]
  %v16 = vld [vmem:[%s1] sm:$0x3]
  %v18 = vperm.slane %v16, 0
  %v19 = vperm.slane %v16, 1
  %v22 = vmul.f32 %v14, %v18
  %v23 = vmul.f32 %v15, %v19
  %v24 = vld [vmem:[%s2] sm:$0x3]
  %v26 = vperm.slane %v24, 0
  %v27 = vperm.slane %v24, 1
  %v30 = vadd.f32 %v22, %v26
  %v31 = vadd.f32 %v23, %v27
  %v32 = vsub.f32 0.0, %v30
  %v33 = vsub.f32 0.0, %v31
  %v34 = vmul.f32 %v32, 1.442695
  %v35 = vpow.pop %v34
  %v36 = vmul.f32 %v33, 1.442695
  %v37 = vpow.pop %v36
  %v38 = vadd.f32 %v35, 1.0
  %v39 = vadd.f32 %v37, 1.0
  %v40 = vrcp.pop %v38
  %v41 = vmul.f32 %v38, %v40
  %v42 = vsub.f32 1.0, %v41
  %v43 = vmul.f32 %v40, %v42
  %v44 = vadd.f32 %v40, %v43
  %vm45 = vweird.f32 %v38
  %vm46 = vweird.f32 %v40
  %vm47 = vmor %vm45, %vm46
  %v48 = vsel %vm47, %v40, %v44
  %v49 = vand.u32 2147483647, %v38
  %vm50 = vcmp.eq.f32.partialorder %v49, 8.507059e+37
  %v51 = vand.u32 %v38, 2147483648
  %v52 = vor.u32 1.1754944e-38, %v51
  %v53 = vsel %vm50, %v52, %v48
  %v54 = vmul.f32 1.0, %v53
  %v55 = vrcp.pop %v39
  %v56 = vmul.f32 %v39, %v55
  %v57 = vsub.f32 1.0, %v56
  %v58 = vmul.f32 %v55, %v57
  %v59 = vadd.f32 %v55, %v58
  %vm60 = vweird.f32 %v39
  %vm61 = vweird.f32 %v55
  %vm62 = vmor %vm60, %vm61
  %v63 = vsel %vm62, %v55, %v59
  %v64 = vand.u32 2147483647, %v39
  %vm65 = vcmp.eq.f32.partialorder %v64, 8.507059e+37
  %v66 = vand.u32 %v39, 2147483648
  %v67 = vor.u32 1.1754944e-38, %v66
  %v68 = vsel %vm65, %v67, %v63
  %v69 = vmul.f32 1.0, %v68
  %v70 = vmul.f32 %v30, %v54
  %v71 = vmul.f32 %v31, %v69
  %72 = vst [vmem:[%s3] sm:$0xff] %v70
  %73 = vst [vmem:[%s3 + $0x8] sm:$0xff] %v71
  // Predicated region
  $region14: #{discriminator_feature_forward.25} parent=0 // pred_check
    _
  $region15: #{discriminator_feature_forward.25} parent=0 // pred_check_branch
    %75 = sbr.rel (0) target = $region17
  $region16: #{discriminator_feature_forward.25} parent=0 // pred_region
    _
  $region17: #{discriminator_feature_forward.25} parent=0 // pred_fallthru
    _
  // Predicated region
  $region18: #{discriminator_feature_forward.25} parent=0 // pred_check
    _
  $region19: #{discriminator_feature_forward.25} parent=0 // pred_check_branch
    %77 = sbr.rel (0) target = $region21
  $region20: #{discriminator_feature_forward.25} parent=0 // pred_region
    _
  $region21: #{discriminator_feature_forward.25} parent=0 // pred_fallthru
    _

// kernel: discriminator_feature_forward.24
$region0: #{discriminator_feature_forward.24}
  #allocation0 [shape = 'u32[]', space=smem, size = 0x4, offset = 0x4, fixed_abs, tag = 'smem constant byte address 0x4 - core index']
  #allocation1 [shape = 'u32[72,128]{1,0:T(1,128)}', space=vmem, size = 0x9000, scoped, tag = 'internal scratch']
  #allocation2 [shape = 'f32[8,128]{1,0:T(8,128)}', space=vmem, size = 0x1000, scoped, tag = 'scratch operand']
  %s0 = inlined_call_operand.vmem [shape: bf16[8,2304], index: 0, kind: input, shape index: {}]
  %s1 = inlined_call_operand.vmem [shape: bf16[2304,256], index: 1, kind: input, shape index: {}]
  %s2 = inlined_call_operand.vmem [shape: f32[1,256], index: 2, kind: input, shape index: {}]
  %s3 = inlined_call_operand.vmem [shape: f32[8,256], index: 3, kind: output, shape index: {0}]
  %s4 = inlined_call_operand.vmem [shape: f32[1,2,256], index: 4, kind: output, shape index: {1}]
  %5 = xla_tuple %s3, %s4
  %s6 = sld [smem:[#allocation0]]
  $region102: #{discriminator_feature_forward.24} parent=0
    _
  %s8 = ssub.s32 1, %s6
  %s9 = scalar_select 0, %s8, %s6
  $region1: #{discriminator_feature_forward.24} parent=0
    #allocation3 [shape = 'u8[196608]{0}', space=vmem, size = 0x30000, scoped, tag = 'input window, operand 1']
    loop: start=0, step=1, limit=14
    $region2: #{discriminator_feature_forward.24} parent=1 // loop_pre_header
      _
    $region3: #{discriminator_feature_forward.24} parent=1 // loop_header
      %s11 = sphi 0, %s15
      %p12 = scmp.ge.s32.totalorder %s11, 14
      %s18 = sphi 0, %s37
      %s19 = sphi 0, %s33
      %s20 = sphi 0, %s29
      %s21 = sphi 0, %s18
      %s22 = sphi 0, %s19
      %s23 = sphi 0, %s20
      %s24 = sphi 0, %s21
      %s25 = sphi 0, %s22
      %s26 = sphi 0, %s23
      %s42 = sphi 0, %s44
      %s45 = sphi 0, %s42
      %s46 = sphi 0, %s45
      %s62 = sphi 0, %s46
      %s70 = sphi 0, %s72
      %s73 = sphi 0, %s70
      %s74 = sphi 0, %s73
      %s90 = sphi 0, %s74
      %s96 = sphi 0, %s98
      %s99 = sphi 0, %s96
      %s100 = sphi 0, %s99
      %s116 = sphi 0, %s100
      %s124 = sphi 0, %s126
      %s127 = sphi 0, %s124
      %s128 = sphi 0, %s127
      %s144 = sphi 0, %s128
      %s152 = sphi 0, %s154
      %s155 = sphi 0, %s152
      %s156 = sphi 0, %s155
      %s172 = sphi 0, %s156
    $region4: #{discriminator_feature_forward.24} parent=1 // loop_header_branch
      %14 = sbr.rel (%p12) target = $region8
    $region5: #{discriminator_feature_forward.24} parent=1 // loop_body
      %s16 = ssub.s32 %s11, 1
      %s17 = ssub.s32 %s11, 2
      %s27 = sadd.s32 1, %s20
      %p28 = scmp.ge.s32.totalorder %s27, 6
      %s29 = scalar_select %p28, 0, %s27
      %s30 = sadd.s32 1, %s19
      %s31 = scalar_select %p28, %s30, %s19
      %p32 = scmp.ge.s32.totalorder %s31, 2
      %s33 = scalar_select %p32, 0, %s31
      %s34 = sadd.s32 1, %s18
      %s35 = scalar_select %p32, %s34, %s18
      %p36 = scmp.ge.s32.totalorder %s35, 1
      %s37 = scalar_select %p36, 0, %s35
      %s38 = ssub.s32 %s18, %s37
      %s39 = ssub.s32 %s20, %s29
      %s40 = sor.u32 %s38, %s39
      %p41 = scmp.eq.s32.totalorder %s40, 0
      %s43 = sadd.s32 %s42, 1
      %s44 = scalar_select %p41, %s42, %s43
      %p47 = pneg %p41
      %p48 = scmp.eq.s32.totalorder %s11, 11
      %p49 = por %p47, %p48
      %p50 = scmp.ne.s32.totalorder %s42, %s45
      %p51 = scmp.eq.s32.totalorder %s11, 0
      %p52 = por %p50, %p51
      %p53 = scmp.ne.s32.totalorder %s42, %s45
      %p54 = scmp.eq.s32.totalorder %s16, 11
      %p55 = por %p53, %p54
      %p56 = scmp.ne.s32.totalorder %s45, %s46
      %p57 = scmp.eq.s32.totalorder %s16, 0
      %p58 = por %p56, %p57
      %p59 = scmp.ne.s32.totalorder %s45, %s46
      %p60 = scmp.eq.s32.totalorder %s17, 11
      %p61 = por %p59, %p60
      %p63 = scmp.ne.s32.totalorder %s46, %s62
      %p64 = scmp.eq.s32.totalorder %s17, 0
      %p65 = por %p63, %p64
      %s66 = ssub.s32 %s20, %s29
      %s67 = ssub.s32 %s19, %s33
      %s68 = sor.u32 %s66, %s67
      %p69 = scmp.eq.s32.totalorder %s68, 0
      %s71 = sadd.s32 %s70, 1
      %s72 = scalar_select %p69, %s70, %s71
      %p75 = pneg %p69
      %p76 = scmp.eq.s32.totalorder %s11, 11
      %p77 = por %p75, %p76
      %p78 = scmp.ne.s32.totalorder %s70, %s73
      %p79 = scmp.eq.s32.totalorder %s11, 0
      %p80 = por %p78, %p79
      %p81 = scmp.ne.s32.totalorder %s70, %s73
      %p82 = scmp.eq.s32.totalorder %s16, 11
      %p83 = por %p81, %p82
      %p84 = scmp.ne.s32.totalorder %s73, %s74
      %p85 = scmp.eq.s32.totalorder %s16, 0
      %p86 = por %p84, %p85
      %p87 = scmp.ne.s32.totalorder %s73, %s74
      %p88 = scmp.eq.s32.totalorder %s17, 11
      %p89 = por %p87, %p88
      %p91 = scmp.ne.s32.totalorder %s74, %s90
      %p92 = scmp.eq.s32.totalorder %s17, 0
      %p93 = por %p91, %p92
      %s94 = ssub.s32 %s19, %s33
      %p95 = scmp.eq.s32.totalorder %s94, 0
      %s97 = sadd.s32 %s96, 1
      %s98 = scalar_select %p95, %s96, %s97
      %p101 = pneg %p95
      %p102 = scmp.eq.s32.totalorder %s11, 11
      %p103 = por %p101, %p102
      %p104 = scmp.ne.s32.totalorder %s96, %s99
      %p105 = scmp.eq.s32.totalorder %s11, 0
      %p106 = por %p104, %p105
      %p107 = scmp.ne.s32.totalorder %s96, %s99
      %p108 = scmp.eq.s32.totalorder %s16, 11
      %p109 = por %p107, %p108
      %p110 = scmp.ne.s32.totalorder %s99, %s100
      %p111 = scmp.eq.s32.totalorder %s16, 0
      %p112 = por %p110, %p111
      %p113 = scmp.ne.s32.totalorder %s99, %s100
      %p114 = scmp.eq.s32.totalorder %s17, 11
      %p115 = por %p113, %p114
      %p117 = scmp.ne.s32.totalorder %s100, %s116
      %p118 = scmp.eq.s32.totalorder %s17, 0
      %p119 = por %p117, %p118
      %s120 = ssub.s32 %s18, %s37
      %s121 = ssub.s32 %s19, %s33
      %s122 = sor.u32 %s120, %s121
      %p123 = scmp.eq.s32.totalorder %s122, 0
      %s125 = sadd.s32 %s124, 1
      %s126 = scalar_select %p123, %s124, %s125
      %p129 = pneg %p123
      %p130 = scmp.eq.s32.totalorder %s11, 11
      %p131 = por %p129, %p130
      %p132 = scmp.ne.s32.totalorder %s124, %s127
      %p133 = scmp.eq.s32.totalorder %s11, 0
      %p134 = por %p132, %p133
      %p135 = scmp.ne.s32.totalorder %s124, %s127
      %p136 = scmp.eq.s32.totalorder %s16, 11
      %p137 = por %p135, %p136
      %p138 = scmp.ne.s32.totalorder %s127, %s128
      %p139 = scmp.eq.s32.totalorder %s16, 0
      %p140 = por %p138, %p139
      %p141 = scmp.ne.s32.totalorder %s127, %s128
      %p142 = scmp.eq.s32.totalorder %s17, 11
      %p143 = por %p141, %p142
      %p145 = scmp.ne.s32.totalorder %s128, %s144
      %p146 = scmp.eq.s32.totalorder %s17, 0
      %p147 = por %p145, %p146
      %s148 = ssub.s32 %s18, %s37
      %s149 = ssub.s32 %s19, %s33
      %s150 = sor.u32 %s148, %s149
      %p151 = scmp.eq.s32.totalorder %s150, 0
      %s153 = sadd.s32 %s152, 1
      %s154 = scalar_select %p151, %s152, %s153
      %p157 = pneg %p151
      %p158 = scmp.eq.s32.totalorder %s11, 11
      %p159 = por %p157, %p158
      %p160 = scmp.ne.s32.totalorder %s152, %s155
      %p161 = scmp.eq.s32.totalorder %s11, 0
      %p162 = por %p160, %p161
      %p163 = scmp.ne.s32.totalorder %s152, %s155
      %p164 = scmp.eq.s32.totalorder %s16, 11
      %p165 = por %p163, %p164
      %p166 = scmp.ne.s32.totalorder %s155, %s156
      %p167 = scmp.eq.s32.totalorder %s16, 0
      %p168 = por %p166, %p167
      %p169 = scmp.ne.s32.totalorder %s155, %s156
      %p170 = scmp.eq.s32.totalorder %s17, 11
      %p171 = por %p169, %p170
      %p173 = scmp.ne.s32.totalorder %s156, %s172
      %p174 = scmp.eq.s32.totalorder %s17, 0
      %p175 = por %p173, %p174
      %p176 = scmp.le.s32.totalorder 1, %s11
      %p177 = scmp.lt.s32.totalorder %s11, 13
      %p178 = pnand %p176, %p177
      %p179 = pneg %p178
      // Predicated region
      $region9: #{discriminator_feature_forward.24} parent=5 // pred_check
        _
      $region10: #{discriminator_feature_forward.24} parent=5 // pred_check_branch
        %181 = sbr.rel (%p178) target = $region12
      $region11: #{discriminator_feature_forward.24} parent=5 // pred_region
        %s182 = ssub.s32 %s11, 1
      $region12: #{discriminator_feature_forward.24} parent=5 // pred_fallthru
        _
      %p183 = scmp.lt.s32.totalorder %s11, 12
      // Predicated region
      $region13: #{discriminator_feature_forward.24} parent=5 // pred_check
        %p184 = pneg %p183
      $region14: #{discriminator_feature_forward.24} parent=5 // pred_check_branch
        %186 = sbr.rel (%p184) target = $region16
      $region15: #{discriminator_feature_forward.24} parent=5 // pred_region
        // Predicated region
        $region17: #{discriminator_feature_forward.24} parent=15 // pred_check
          %p187 = pneg %p52
        $region18: #{discriminator_feature_forward.24} parent=15 // pred_check_branch
          %189 = sbr.rel (%p187) target = $region20
        $region19: #{discriminator_feature_forward.24} parent=15 // pred_region
          %s190 = smul.u32 3, %s20
          %p191 = scmp.lt.s32.totalorder %s18, 0
          %s192 = scalar_select %p191, %s18, 0
          %p193 = scmp.lt.s32.totalorder %s190, 17
          %s194 = scalar_select %p193, %s190, 17
          %s195 = smul.addr %s192, 18
          %s196 = sadd.s32 %s194, %s195
          %s197 = smul.addr %s196, 4
          %s198 = scalar_lea.vmem %s0, %s197
          %s199 = smul.u32 3, %s20
        $region20: #{discriminator_feature_forward.24} parent=15 // pred_fallthru
          _
        // Predicated region
        $region21: #{discriminator_feature_forward.24} parent=15 // pred_check
          %p200 = pneg %p80
        $region22: #{discriminator_feature_forward.24} parent=15 // pred_check_branch
          %202 = sbr.rel (%p200) target = $region24
        $region23: #{discriminator_feature_forward.24} parent=15 // pred_region
          %s203 = sand.u32 %s70, 1
          %s204 = sand.u32 %s70, 1
          %s205 = smul.addr %s204, 192
          %s206 = scalar_lea.vmem [#allocation3], %s205
          %s207 = smul.u32 48, %s20
          %s208 = smul.addr %s207, 2
          %s209 = sadd.s32 %s19, %s208
          %s210 = smul.addr %s209, 4
          %s211 = scalar_lea.vmem %s1, %s210
          // Predicated region
          $region25: #{discriminator_feature_forward.24} parent=23 // pred_check
            _
          $region26: #{discriminator_feature_forward.24} parent=23 // pred_check_branch
            %213 = sbr.rel (0) target = $region28
          $region27: #{discriminator_feature_forward.24} parent=23 // pred_region
            // Predicated region
            $region29: #{discriminator_feature_forward.24} parent=27 // pred_check
              _
            $region30: #{discriminator_feature_forward.24} parent=27 // pred_check_branch
              %215 = sbr.rel target = $region32
            $region31: #{discriminator_feature_forward.24} parent=27 // pred_region
              // Predicated region
              $region44: #{discriminator_feature_forward.24} parent=31 // pred_check
                _
              $region45: #{discriminator_feature_forward.24} parent=31 // pred_check_branch
                %325 = sbr.rel (0) target = $region47
              $region46: #{discriminator_feature_forward.24} parent=31 // pred_region
                loop: start=0, step=1, limit=1
                $region48: #{discriminator_feature_forward.24} parent=46 // loop_pre_header
                  _
                $region49: #{discriminator_feature_forward.24} parent=46 // loop_header
                  %s327 = sphi 0, %s331
                  %p328 = scmp.ge.s32.totalorder %s327, 1
                  %s332 = sphi %s211, %s211
                  %s333 = sphi %s206, %s206
                $region50: #{discriminator_feature_forward.24} parent=46 // loop_header_branch
                  %330 = sbr.rel (%p328) target = $region54
                $region51: #{discriminator_feature_forward.24} parent=46 // loop_body
                  _
                $region52: #{discriminator_feature_forward.24} parent=46 // loop_footer
                  %s331 = sadd.s32 1, %s327
                $region53: #{discriminator_feature_forward.24} parent=46 // loop_footer_branch
                  %326 = sbr.rel target = $region49
                $region54: #{discriminator_feature_forward.24} parent=46 // loop_exit
                  _
                %s335 = ssub.s32 16, 1
                loop: start=0, step=1, limit=1
                $region55: #{discriminator_feature_forward.24} parent=46 // loop_pre_header
                  _
                $region56: #{discriminator_feature_forward.24} parent=46 // loop_header
                  %s337 = sphi 0, %s341
                  %p338 = scmp.ge.s32.totalorder %s337, 1
                  %s342 = sphi %s211, %s211
                  %s343 = sphi %s206, %s206
                $region57: #{discriminator_feature_forward.24} parent=46 // loop_header_branch
                  %340 = sbr.rel (%p338) target = $region61
                $region58: #{discriminator_feature_forward.24} parent=46 // loop_body
                  %v344 = vld [vmem:[%s342] sm:%s335]
                  %345 = vst [vmem:[%s343] sm:%s335] %v344
                  %v346 = vld [vmem:[%s342 + $0x8] sm:%s335]
                  %347 = vst [vmem:[%s343 + $0x4] sm:%s335] %v346
                  %v348 = vld [vmem:[%s342 + $0x10] sm:%s335]
                  %349 = vst [vmem:[%s343 + $0x8] sm:%s335] %v348
                  %v350 = vld [vmem:[%s342 + $0x18] sm:%s335]
                  %351 = vst [vmem:[%s343 + $0xc] sm:%s335] %v350
                  %v352 = vld [vmem:[%s342 + $0x20] sm:%s335]
                  %353 = vst [vmem:[%s343 + $0x10] sm:%s335] %v352
                  %v354 = vld [vmem:[%s342 + $0x28] sm:%s335]
                  %355 = vst [vmem:[%s343 + $0x14] sm:%s335] %v354
                  %v356 = vld [vmem:[%s342 + $0x30] sm:%s335]
                  %357 = vst [vmem:[%s343 + $0x18] sm:%s335] %v356
                  %v358 = vld [vmem:[%s342 + $0x38] sm:%s335]
                  %359 = vst [vmem:[%s343 + $0x1c] sm:%s335] %v358
                  %v360 = vld [vmem:[%s342 + $0x40] sm:%s335]
                  %361 = vst [vmem:[%s343 + $0x20] sm:%s335] %v360
                  %v362 = vld [vmem:[%s342 + $0x48] sm:%s335]
                  %363 = vst [vmem:[%s343 + $0x24] sm:%s335] %v362
                  %v364 = vld [vmem:[%s342 + $0x50] sm:%s335]
                  %365 = vst [vmem:[%s343 + $0x28] sm:%s335] %v364
                  %v366 = vld [vmem:[%s342 + $0x58] sm:%s335]
                  %367 = vst [vmem:[%s343 + $0x2c] sm:%s335] %v366
                  %v368 = vld [vmem:[%s342 + $0x60] sm:%s335]
                  %369 = vst [vmem:[%s343 + $0x30] sm:%s335] %v368
                  %v370 = vld [vmem:[%s342 + $0x68] sm:%s335]
                  %371 = vst [vmem:[%s343 + $0x34] sm:%s335] %v370
                  %v372 = vld [vmem:[%s342 + $0x70] sm:%s335]
                  %373 = vst [vmem:[%s343 + $0x38] sm:%s335] %v372
                  %v374 = vld [vmem:[%s342 + $0x78] sm:%s335]
                  %375 = vst [vmem:[%s343 + $0x3c] sm:%s335] %v374
                  %v376 = vld [vmem:[%s342 + $0x80] sm:%s335]
                  %377 = vst [vmem:[%s343 + $0x40] sm:%s335] %v376
                  %v378 = vld [vmem:[%s342 + $0x88] sm:%s335]
                  %379 = vst [vmem:[%s343 + $0x44] sm:%s335] %v378
                  %v380 = vld [vmem:[%s342 + $0x90] sm:%s335]
                  %381 = vst [vmem:[%s343 + $0x48] sm:%s335] %v380
                  %v382 = vld [vmem:[%s342 + $0x98] sm:%s335]
                  %383 = vst [vmem:[%s343 + $0x4c] sm:%s335] %v382
                  %v384 = vld [vmem:[%s342 + $0xa0] sm:%s335]
                  %385 = vst [vmem:[%s343 + $0x50] sm:%s335] %v384
                  %v386 = vld [vmem:[%s342 + $0xa8] sm:%s335]
                  %387 = vst [vmem:[%s343 + $0x54] sm:%s335] %v386
                  %v388 = vld [vmem:[%s342 + $0xb0] sm:%s335]
                  %389 = vst [vmem:[%s343 + $0x58] sm:%s335] %v388
                  %v390 = vld [vmem:[%s342 + $0xb8] sm:%s335]
                  %391 = vst [vmem:[%s343 + $0x5c] sm:%s335] %v390
                  %v392 = vld [vmem:[%s342 + $0xc0] sm:%s335]
                  %393 = vst [vmem:[%s343 + $0x60] sm:%s335] %v392
                  %v394 = vld [vmem:[%s342 + $0xc8] sm:%s335]
                  %395 = vst [vmem:[%s343 + $0x64] sm:%s335] %v394
                  %v396 = vld [vmem:[%s342 + $0xd0] sm:%s335]
                  %397 = vst [vmem:[%s343 + $0x68] sm:%s335] %v396
                  %v398 = vld [vmem:[%s342 + $0xd8] sm:%s335]
                  %399 = vst [vmem:[%s343 + $0x6c] sm:%s335] %v398
                  %v400 = vld [vmem:[%s342 + $0xe0] sm:%s335]
                  %401 = vst [vmem:[%s343 + $0x70] sm:%s335] %v400
                  %v402 = vld [vmem:[%s342 + $0xe8] sm:%s335]
                  %403 = vst [vmem:[%s343 + $0x74] sm:%s335] %v402
                  %v404 = vld [vmem:[%s342 + $0xf0] sm:%s335]
                  %405 = vst [vmem:[%s343 + $0x78] sm:%s335] %v404
                  %v406 = vld [vmem:[%s342 + $0xf8] sm:%s335]
                  %407 = vst [vmem:[%s343 + $0x7c] sm:%s335] %v406
                  %v408 = vld [vmem:[%s342 + $0x100] sm:%s335]
                  %409 = vst [vmem:[%s343 + $0x80] sm:%s335] %v408
                  %v410 = vld [vmem:[%s342 + $0x108] sm:%s335]
                  %411 = vst [vmem:[%s343 + $0x84] sm:%s335] %v410
                  %v412 = vld [vmem:[%s342 + $0x110] sm:%s335]
                  %413 = vst [vmem:[%s343 + $0x88] sm:%s335] %v412
                  %v414 = vld [vmem:[%s342 + $0x118] sm:%s335]
                  %415 = vst [vmem:[%s343 + $0x8c] sm:%s335] %v414
                  %v416 = vld [vmem:[%s342 + $0x120] sm:%s335]
                  %417 = vst [vmem:[%s343 + $0x90] sm:%s335] %v416
                  %v418 = vld [vmem:[%s342 + $0x128] sm:%s335]
                  %419 = vst [vmem:[%s343 + $0x94] sm:%s335] %v418
                  %v420 = vld [vmem:[%s342 + $0x130] sm:%s335]
                  %421 = vst [vmem:[%s343 + $0x98] sm:%s335] %v420
                  %v422 = vld [vmem:[%s342 + $0x138] sm:%s335]
                  %423 = vst [vmem:[%s343 + $0x9c] sm:%s335] %v422
                  %v424 = vld [vmem:[%s342 + $0x140] sm:%s335]
                  %425 = vst [vmem:[%s343 + $0xa0] sm:%s335] %v424
                  %v426 = vld [vmem:[%s342 + $0x148] sm:%s335]
                  %427 = vst [vmem:[%s343 + $0xa4] sm:%s335] %v426
                  %v428 = vld [vmem:[%s342 + $0x150] sm:%s335]
                  %429 = vst [vmem:[%s343 + $0xa8] sm:%s335] %v428
                  %v430 = vld [vmem:[%s342 + $0x158] sm:%s335]
                  %431 = vst [vmem:[%s343 + $0xac] sm:%s335] %v430
                  %v432 = vld [vmem:[%s342 + $0x160] sm:%s335]
                  %433 = vst [vmem:[%s343 + $0xb0] sm:%s335] %v432
                  %v434 = vld [vmem:[%s342 + $0x168] sm:%s335]
                  %435 = vst [vmem:[%s343 + $0xb4] sm:%s335] %v434
                  %v436 = vld [vmem:[%s342 + $0x170] sm:%s335]
                  %437 = vst [vmem:[%s343 + $0xb8] sm:%s335] %v436
                  %v438 = vld [vmem:[%s342 + $0x178] sm:%s335]
                  %439 = vst [vmem:[%s343 + $0xbc] sm:%s335] %v438
                $region59: #{discriminator_feature_forward.24} parent=46 // loop_footer
                  %s341 = sadd.s32 1, %s337
                $region60: #{discriminator_feature_forward.24} parent=46 // loop_footer_branch
                  %336 = sbr.rel target = $region56
                $region61: #{discriminator_feature_forward.24} parent=46 // loop_exit
                  _
              $region47: #{discriminator_feature_forward.24} parent=31 // pred_fallthru
                _
            $region32: #{discriminator_feature_forward.24} parent=27 // pred_fallthru
              _
            // Predicated region
            $region33: #{discriminator_feature_forward.24} parent=27 // pred_check
              _
            $region34: #{discriminator_feature_forward.24} parent=27 // pred_check_branch
              %217 = sbr.rel (0) target = $region36
            $region35: #{discriminator_feature_forward.24} parent=27 // pred_region
              %s219 = ssub.s32 16, 1
              loop: start=0, step=1, limit=1
              $region37: #{discriminator_feature_forward.24} parent=35 // loop_pre_header
                _
              $region38: #{discriminator_feature_forward.24} parent=35 // loop_header
                %s221 = sphi 0, %s225
                %p222 = scmp.ge.s32.totalorder %s221, 1
                %s226 = sphi %s211, %s211
                %s227 = sphi %s206, %s206
              $region39: #{discriminator_feature_forward.24} parent=35 // loop_header_branch
                %224 = sbr.rel (%p222) target = $region43
              $region40: #{discriminator_feature_forward.24} parent=35 // loop_body
                %v228 = vld [vmem:[%s226] sm:%s219]
                %229 = vst [vmem:[%s227] sm:%s219] %v228
                %v230 = vld [vmem:[%s226 + $0x8] sm:%s219]
                %231 = vst [vmem:[%s227 + $0x4] sm:%s219] %v230
                %v232 = vld [vmem:[%s226 + $0x10] sm:%s219]
                %233 = vst [vmem:[%s227 + $0x8] sm:%s219] %v232
                %v234 = vld [vmem:[%s226 + $0x18] sm:%s219]
                %235 = vst [vmem:[%s227 + $0xc] sm:%s219] %v234
                %v236 = vld [vmem:[%s226 + $0x20] sm:%s219]
                %237 = vst [vmem:[%s227 + $0x10] sm:%s219] %v236
                %v238 = vld [vmem:[%s226 + $0x28] sm:%s219]
                %239 = vst [vmem:[%s227 + $0x14] sm:%s219] %v238
                %v240 = vld [vmem:[%s226 + $0x30] sm:%s219]
                %241 = vst [vmem:[%s227 + $0x18] sm:%s219] %v240
                %v242 = vld [vmem:[%s226 + $0x38] sm:%s219]
                %243 = vst [vmem:[%s227 + $0x1c] sm:%s219] %v242
                %v244 = vld [vmem:[%s226 + $0x40] sm:%s219]
                %245 = vst [vmem:[%s227 + $0x20] sm:%s219] %v244
                %v246 = vld [vmem:[%s226 + $0x48] sm:%s219]
                %247 = vst [vmem:[%s227 + $0x24] sm:%s219] %v246
                %v248 = vld [vmem:[%s226 + $0x50] sm:%s219]
                %249 = vst [vmem:[%s227 + $0x28] sm:%s219] %v248
                %v250 = vld [vmem:[%s226 + $0x58] sm:%s219]
                %251 = vst [vmem:[%s227 + $0x2c] sm:%s219] %v250
                %v252 = vld [vmem:[%s226 + $0x60] sm:%s219]
                %253 = vst [vmem:[%s227 + $0x30] sm:%s219] %v252
                %v254 = vld [vmem:[%s226 + $0x68] sm:%s219]
                %255 = vst [vmem:[%s227 + $0x34] sm:%s219] %v254
                %v256 = vld [vmem:[%s226 + $0x70] sm:%s219]
                %257 = vst [vmem:[%s227 + $0x38] sm:%s219] %v256
                %v258 = vld [vmem:[%s226 + $0x78] sm:%s219]
                %259 = vst [vmem:[%s227 + $0x3c] sm:%s219] %v258
                %v260 = vld [vmem:[%s226 + $0x80] sm:%s219]
                %261 = vst [vmem:[%s227 + $0x40] sm:%s219] %v260
                %v262 = vld [vmem:[%s226 + $0x88] sm:%s219]
                %263 = vst [vmem:[%s227 + $0x44] sm:%s219] %v262
                %v264 = vld [vmem:[%s226 + $0x90] sm:%s219]
                %265 = vst [vmem:[%s227 + $0x48] sm:%s219] %v264
                %v266 = vld [vmem:[%s226 + $0x98] sm:%s219]
                %267 = vst [vmem:[%s227 + $0x4c] sm:%s219] %v266
                %v268 = vld [vmem:[%s226 + $0xa0] sm:%s219]
                %269 = vst [vmem:[%s227 + $0x50] sm:%s219] %v268
                %v270 = vld [vmem:[%s226 + $0xa8] sm:%s219]
                %271 = vst [vmem:[%s227 + $0x54] sm:%s219] %v270
                %v272 = vld [vmem:[%s226 + $0xb0] sm:%s219]
                %273 = vst [vmem:[%s227 + $0x58] sm:%s219] %v272
                %v274 = vld [vmem:[%s226 + $0xb8] sm:%s219]
                %275 = vst [vmem:[%s227 + $0x5c] sm:%s219] %v274
                %v276 = vld [vmem:[%s226 + $0xc0] sm:%s219]
                %277 = vst [vmem:[%s227 + $0x60] sm:%s219] %v276
                %v278 = vld [vmem:[%s226 + $0xc8] sm:%s219]
                %279 = vst [vmem:[%s227 + $0x64] sm:%s219] %v278
                %v280 = vld [vmem:[%s226 + $0xd0] sm:%s219]
                %281 = vst [vmem:[%s227 + $0x68] sm:%s219] %v280
                %v282 = vld [vmem:[%s226 + $0xd8] sm:%s219]
                %283 = vst [vmem:[%s227 + $0x6c] sm:%s219] %v282
                %v284 = vld [vmem:[%s226 + $0xe0] sm:%s219]
                %285 = vst [vmem:[%s227 + $0x70] sm:%s219] %v284
                %v286 = vld [vmem:[%s226 + $0xe8] sm:%s219]
                %287 = vst [vmem:[%s227 + $0x74] sm:%s219] %v286
                %v288 = vld [vmem:[%s226 + $0xf0] sm:%s219]
                %289 = vst [vmem:[%s227 + $0x78] sm:%s219] %v288
                %v290 = vld [vmem:[%s226 + $0xf8] sm:%s219]
                %291 = vst [vmem:[%s227 + $0x7c] sm:%s219] %v290
                %v292 = vld [vmem:[%s226 + $0x100] sm:%s219]
                %293 = vst [vmem:[%s227 + $0x80] sm:%s219] %v292
                %v294 = vld [vmem:[%s226 + $0x108] sm:%s219]
                %295 = vst [vmem:[%s227 + $0x84] sm:%s219] %v294
                %v296 = vld [vmem:[%s226 + $0x110] sm:%s219]
                %297 = vst [vmem:[%s227 + $0x88] sm:%s219] %v296
                %v298 = vld [vmem:[%s226 + $0x118] sm:%s219]
                %299 = vst [vmem:[%s227 + $0x8c] sm:%s219] %v298
                %v300 = vld [vmem:[%s226 + $0x120] sm:%s219]
                %301 = vst [vmem:[%s227 + $0x90] sm:%s219] %v300
                %v302 = vld [vmem:[%s226 + $0x128] sm:%s219]
                %303 = vst [vmem:[%s227 + $0x94] sm:%s219] %v302
                %v304 = vld [vmem:[%s226 + $0x130] sm:%s219]
                %305 = vst [vmem:[%s227 + $0x98] sm:%s219] %v304
                %v306 = vld [vmem:[%s226 + $0x138] sm:%s219]
                %307 = vst [vmem:[%s227 + $0x9c] sm:%s219] %v306
                %v308 = vld [vmem:[%s226 + $0x140] sm:%s219]
                %309 = vst [vmem:[%s227 + $0xa0] sm:%s219] %v308
                %v310 = vld [vmem:[%s226 + $0x148] sm:%s219]
                %311 = vst [vmem:[%s227 + $0xa4] sm:%s219] %v310
                %v312 = vld [vmem:[%s226 + $0x150] sm:%s219]
                %313 = vst [vmem:[%s227 + $0xa8] sm:%s219] %v312
                %v314 = vld [vmem:[%s226 + $0x158] sm:%s219]
                %315 = vst [vmem:[%s227 + $0xac] sm:%s219] %v314
                %v316 = vld [vmem:[%s226 + $0x160] sm:%s219]
                %317 = vst [vmem:[%s227 + $0xb0] sm:%s219] %v316
                %v318 = vld [vmem:[%s226 + $0x168] sm:%s219]
                %319 = vst [vmem:[%s227 + $0xb4] sm:%s219] %v318
                %v320 = vld [vmem:[%s226 + $0x170] sm:%s219]
                %321 = vst [vmem:[%s227 + $0xb8] sm:%s219] %v320
                %v322 = vld [vmem:[%s226 + $0x178] sm:%s219]
                %323 = vst [vmem:[%s227 + $0xbc] sm:%s219] %v322
              $region41: #{discriminator_feature_forward.24} parent=35 // loop_footer
                %s225 = sadd.s32 1, %s221
              $region42: #{discriminator_feature_forward.24} parent=35 // loop_footer_branch
                %220 = sbr.rel target = $region38
              $region43: #{discriminator_feature_forward.24} parent=35 // loop_exit
                _
            $region36: #{discriminator_feature_forward.24} parent=27 // pred_fallthru
              _
          $region28: #{discriminator_feature_forward.24} parent=23 // pred_fallthru
            _
          %440 = vnop
        $region24: #{discriminator_feature_forward.24} parent=15 // pred_fallthru
          _
        // Predicated region
        $region62: #{discriminator_feature_forward.24} parent=15 // pred_check
          %p441 = pneg %p106
        $region63: #{discriminator_feature_forward.24} parent=15 // pred_check_branch
          %443 = sbr.rel (%p441) target = $region65
        $region64: #{discriminator_feature_forward.24} parent=15 // pred_region
          %p444 = scmp.lt.s32.totalorder %s19, 1
          %s445 = scalar_select %p444, %s19, 1
          %s446 = scalar_lea.vmem %s2, %s445
        $region65: #{discriminator_feature_forward.24} parent=15 // pred_fallthru
          _
      $region16: #{discriminator_feature_forward.24} parent=5 // pred_fallthru
        _
      %p447 = scmp.le.s32.totalorder 1, %s11
      %p448 = scmp.lt.s32.totalorder %s11, 13
      %p449 = pnand %p447, %p448
      %p450 = pneg %p449
      // Predicated region
      $region66: #{discriminator_feature_forward.24} parent=5 // pred_check
        _
      $region67: #{discriminator_feature_forward.24} parent=5 // pred_check_branch
        %452 = sbr.rel (%p449) target = $region69
      $region68: #{discriminator_feature_forward.24} parent=5 // pred_region
        %s453 = ssub.s32 %s11, 1
        %s454 = sand.u32 %s73, 1
        %s455 = sand.u32 %s73, 1
        %s456 = smul.addr %s455, 192
        %s457 = scalar_lea.vmem [#allocation3], %s456
        // Predicated region
        $region70: #{discriminator_feature_forward.24} parent=68 // pred_check
          %p458 = pneg %p86
        $region71: #{discriminator_feature_forward.24} parent=68 // pred_check_branch
          %460 = sbr.rel (%p458) target = $region73
        $region72: #{discriminator_feature_forward.24} parent=68 // pred_region
          _
        $region73: #{discriminator_feature_forward.24} parent=68 // pred_fallthru
          _
        %s461 = smul.u32 3, %s23
        %p462 = scmp.lt.s32.totalorder %s21, 0
        %s463 = scalar_select %p462, %s21, 0
        %p464 = scmp.lt.s32.totalorder %s461, 17
        %s465 = scalar_select %p464, %s461, 17
        %s466 = smul.addr %s463, 18
        %s467 = sadd.s32 %s465, %s466
        %s468 = smul.addr %s467, 4
        %s469 = scalar_lea.vmem %s0, %s468
        %p470 = pneg %p58
        %p471 = pneg %p55
        %s472 = sand.u32 %s73, 1
        %s473 = sand.u32 %s73, 1
        %s474 = smul.addr %s473, 192
        %s475 = scalar_lea.vmem [#allocation3], %s474
        %p476 = pneg %p86
        %p477 = pneg %p83
        %p478 = scmp.lt.s32.totalorder %s22, 1
        %s479 = scalar_select %p478, %s22, 1
        %s480 = scalar_lea.vmem %s2, %s479
        %p481 = pneg %p112
        %p482 = pneg %p109
        %p483 = pneg %p140
        %p484 = pneg %p137
        %p485 = scmp.lt.s32.totalorder %s21, 0
        %s486 = scalar_select %p485, %s21, 0
        %p487 = scmp.lt.s32.totalorder %s22, 1
        %s488 = scalar_select %p487, %s22, 1
        %s489 = smul.addr %s486, 2
        %s490 = sadd.s32 %s488, %s489
        %s491 = smul.addr %s490, 8
        %s492 = scalar_lea.vmem %s3, %s491
        %p493 = pneg %p168
        %p494 = pneg %p165
        %p495 = scmp.lt.s32.totalorder %s21, 0
        %s496 = scalar_select %p495, %s21, 0
        %p497 = scmp.lt.s32.totalorder %s22, 1
        %s498 = scalar_select %p497, %s22, 1
        %s499 = smul.addr %s496, 2
        %s500 = sadd.s32 %s498, %s499
        %s501 = smul.addr %s500, 2
        %s502 = scalar_lea.vmem %s4, %s501
        %s503 = smul.u32 3, %s23
        %p504 = scmp.lt.s32.totalorder %s21, 0
        %s505 = scalar_select %p504, %s21, 0
        %p506 = scmp.lt.s32.totalorder %s503, 17
        %s507 = scalar_select %p506, %s503, 17
        %s508 = smul.addr %s505, 18
        %s509 = sadd.s32 %s507, %s508
        %s510 = smul.addr %s509, 4
        %s511 = scalar_lea.vmem %s0, %s510
        %s512 = smul.u32 3, %s23
        %s513 = smul.u32 48, %s23
        %p514 = scmp.lt.s32.totalorder %s22, 1
        %s515 = scalar_select %p514, %s22, 1
        %s516 = scalar_lea.vmem %s2, %s515
        %p517 = scmp.lt.s32.totalorder %s21, 0
        %s518 = scalar_select %p517, %s21, 0
        %p519 = scmp.lt.s32.totalorder %s22, 1
        %s520 = scalar_select %p519, %s22, 1
        %s521 = smul.addr %s518, 2
        %s522 = sadd.s32 %s520, %s521
        %s523 = smul.addr %s522, 8
        %s524 = scalar_lea.vmem %s3, %s523
        %p525 = scmp.lt.s32.totalorder %s21, 0
        %s526 = scalar_select %p525, %s21, 0
        %p527 = scmp.lt.s32.totalorder %s22, 1
        %s528 = scalar_select %p527, %s22, 1
        %s529 = smul.addr %s526, 2
        %s530 = sadd.s32 %s528, %s529
        %s531 = smul.addr %s530, 2
        %s532 = scalar_lea.vmem %s4, %s531
        %p533 = scmp.eq.s32.totalorder %s23, 0
        // Predicated region
        $region74: #{discriminator_feature_forward.24} parent=68 // pred_check
          %p534 = pneg %p533
        $region75: #{discriminator_feature_forward.24} parent=68 // pred_check_branch
          %536 = sbr.rel (%p534) target = $region77
        $region76: #{discriminator_feature_forward.24} parent=68 // pred_region
          %537 = vst [vmem:[#allocation2] sm:$0xff] 0.0
        $region77: #{discriminator_feature_forward.24} parent=68 // pred_fallthru
          _
        %v538 = vld [vmem:[#allocation2] sm:$0xff]
        %v539 = vld [vmem:[%s511] sm:$0xff]
        %v540 = vld [vmem:[%s511 + $0x8] sm:$0xf]
        %v541 = vld [vmem:[%s457] sm:$0xf]
        %v542 = vld [vmem:[%s457 + $0x4] sm:$0xf]
        %v543 = vld [vmem:[%s457 + $0x8] sm:$0xf]
        %v544 = vld [vmem:[%s457 + $0xc] sm:$0xf]
        %v545 = vld [vmem:[%s457 + $0x10] sm:$0xf]
        %v546 = vld [vmem:[%s457 + $0x14] sm:$0xf]
        %v547 = vld [vmem:[%s457 + $0x18] sm:$0xf]
        %v548 = vld [vmem:[%s457 + $0x1c] sm:$0xf]
        %v549 = vld [vmem:[%s457 + $0x20] sm:$0xf]
        %v550 = vld [vmem:[%s457 + $0x24] sm:$0xf]
        %v551 = vld [vmem:[%s457 + $0x28] sm:$0xf]
        %v552 = vld [vmem:[%s457 + $0x2c] sm:$0xf]
        %v553 = vld [vmem:[%s457 + $0x30] sm:$0xf]
        %v554 = vld [vmem:[%s457 + $0x34] sm:$0xf]
        %v555 = vld [vmem:[%s457 + $0x38] sm:$0xf]
        %v556 = vld [vmem:[%s457 + $0x3c] sm:$0xf]
        %v557 = vld [vmem:[%s457 + $0x40] sm:$0xf]
        %v558 = vld [vmem:[%s457 + $0x44] sm:$0xf]
        %v559 = vld [vmem:[%s457 + $0x48] sm:$0xf]
        %v560 = vld [vmem:[%s457 + $0x4c] sm:$0xf]
        %v561 = vld [vmem:[%s457 + $0x50] sm:$0xf]
        %v562 = vld [vmem:[%s457 + $0x54] sm:$0xf]
        %v563 = vld [vmem:[%s457 + $0x58] sm:$0xf]
        %v564 = vld [vmem:[%s457 + $0x5c] sm:$0xf]
        %v565 = vld [vmem:[%s457 + $0x60] sm:$0xf]
        %v566 = vld [vmem:[%s457 + $0x64] sm:$0xf]
        %v567 = vld [vmem:[%s457 + $0x68] sm:$0xf]
        %v568 = vld [vmem:[%s457 + $0x6c] sm:$0xf]
        %v569 = vld [vmem:[%s457 + $0x70] sm:$0xf]
        %v570 = vld [vmem:[%s457 + $0x74] sm:$0xf]
        %v571 = vld [vmem:[%s457 + $0x78] sm:$0xf]
        %v572 = vld [vmem:[%s457 + $0x7c] sm:$0xf]
        %v573 = vld [vmem:[%s457 + $0x80] sm:$0xf]
        %v574 = vld [vmem:[%s457 + $0x84] sm:$0xf]
        %v575 = vld [vmem:[%s457 + $0x88] sm:$0xf]
        %v576 = vld [vmem:[%s457 + $0x8c] sm:$0xf]
        %v577 = vld [vmem:[%s457 + $0x90] sm:$0xf]
        %v578 = vld [vmem:[%s457 + $0x94] sm:$0xf]
        %v579 = vld [vmem:[%s457 + $0x98] sm:$0xf]
        %v580 = vld [vmem:[%s457 + $0x9c] sm:$0xf]
        %v581 = vld [vmem:[%s457 + $0xa0] sm:$0xf]
        %v582 = vld [vmem:[%s457 + $0xa4] sm:$0xf]
        %v583 = vld [vmem:[%s457 + $0xa8] sm:$0xf]
        %v584 = vld [vmem:[%s457 + $0xac] sm:$0xf]
        %v585 = vld [vmem:[%s457 + $0xb0] sm:$0xf]
        %v586 = vld [vmem:[%s457 + $0xb4] sm:$0xf]
        %v587 = vld [vmem:[%s457 + $0xb8] sm:$0xf]
        %v588 = vld [vmem:[%s457 + $0xbc] sm:$0xf]
        %v591 = vunpack.c.l.b16 %v539
        %v592 = vunpack.c.h.b16 %v539
        %v593 = vunpack.c.l.b16 %v540
        %v594 = vpack.c.b16 %v591, %v591
        %v595 = vpack.c.b16 %v592, %v592
        %v596 = vpack.c.b16 %v593, %v593
        %v648 = vunpack.c.l.b16 %v541
        %v649 = vunpack.c.l.b16 %v542
        %v650 = vunpack.c.l.b16 %v543
        %v651 = vunpack.c.l.b16 %v544
        %v652 = vunpack.c.l.b16 %v545
        %v653 = vunpack.c.l.b16 %v546
        %v654 = vunpack.c.l.b16 %v547
        %v655 = vunpack.c.l.b16 %v548
        %v656 = vunpack.c.l.b16 %v549
        %v657 = vunpack.c.l.b16 %v550
        %v658 = vunpack.c.l.b16 %v551
        %v659 = vunpack.c.l.b16 %v552
        %v660 = vunpack.c.l.b16 %v553
        %v661 = vunpack.c.l.b16 %v554
        %v662 = vunpack.c.l.b16 %v555
        %v663 = vunpack.c.l.b16 %v556
        %v664 = vunpack.c.l.b16 %v557
        %v665 = vunpack.c.l.b16 %v558
        %v666 = vunpack.c.l.b16 %v559
        %v667 = vunpack.c.l.b16 %v560
        %v668 = vunpack.c.l.b16 %v561
        %v669 = vunpack.c.l.b16 %v562
        %v670 = vunpack.c.l.b16 %v563
        %v671 = vunpack.c.l.b16 %v564
        %v672 = vunpack.c.l.b16 %v565
        %v673 = vunpack.c.l.b16 %v566
        %v674 = vunpack.c.l.b16 %v567
        %v675 = vunpack.c.l.b16 %v568
        %v676 = vunpack.c.l.b16 %v569
        %v677 = vunpack.c.l.b16 %v570
        %v678 = vunpack.c.l.b16 %v571
        %v679 = vunpack.c.l.b16 %v572
        %v680 = vunpack.c.l.b16 %v573
        %v681 = vunpack.c.l.b16 %v574
        %v682 = vunpack.c.l.b16 %v575
        %v683 = vunpack.c.l.b16 %v576
        %v684 = vunpack.c.l.b16 %v577
        %v685 = vunpack.c.l.b16 %v578
        %v686 = vunpack.c.l.b16 %v579
        %v687 = vunpack.c.l.b16 %v580
        %v688 = vunpack.c.l.b16 %v581
        %v689 = vunpack.c.l.b16 %v582
        %v690 = vunpack.c.l.b16 %v583
        %v691 = vunpack.c.l.b16 %v584
        %v692 = vunpack.c.l.b16 %v585
        %v693 = vunpack.c.l.b16 %v586
        %v694 = vunpack.c.l.b16 %v587
        %v695 = vunpack.c.l.b16 %v588
        %v696 = vpack.c.b16 %v649, %v648
        %v697 = vpack.c.b16 %v651, %v650
        %v698 = vpack.c.b16 %v653, %v652
        %v699 = vpack.c.b16 %v655, %v654
        %v700 = vpack.c.b16 %v657, %v656
        %v701 = vpack.c.b16 %v659, %v658
        %v702 = vpack.c.b16 %v661, %v660
        %v703 = vpack.c.b16 %v663, %v662
        %v704 = vpack.c.b16 %v665, %v664
        %v705 = vpack.c.b16 %v667, %v666
        %v706 = vpack.c.b16 %v669, %v668
        %v707 = vpack.c.b16 %v671, %v670
        %v708 = vpack.c.b16 %v673, %v672
        %v709 = vpack.c.b16 %v675, %v674
        %v710 = vpack.c.b16 %v677, %v676
        %v711 = vpack.c.b16 %v679, %v678
        %v712 = vpack.c.b16 %v681, %v680
        %v713 = vpack.c.b16 %v683, %v682
        %v714 = vpack.c.b16 %v685, %v684
        %v715 = vpack.c.b16 %v687, %v686
        %v716 = vpack.c.b16 %v689, %v688
        %v717 = vpack.c.b16 %v691, %v690
        %v718 = vpack.c.b16 %v693, %v692
        %v719 = vpack.c.b16 %v695, %v694
        %744 = vmatpush.bf16.msra.mxu0 %v703
        %745 = vmatpush.bf16.msra.mxu0 %v702
        %746 = vmatpush.bf16.msra.mxu0 %v701
        %747 = vmatpush.bf16.msra.mxu0 %v700
        %748 = vmatpush.bf16.msra.mxu0 %v699
        %749 = vmatpush.bf16.msra.mxu0 %v698
        %750 = vmatpush.bf16.msra.mxu0 %v697
        %751 = vmatpush.bf16.msra.mxu0 %v696
        %752 = vmatmul.bf16.gmra.mxu0 %v594
        %v753 = vpop.f32.mrf.mxu0
        %v754 = vadd.f32 0.0, %v753
        %v755 = vpop.f32.mrf.mxu0
        %756 = vdwg.mxu0
        %757 = vmatpush.bf16.msra.mxu0 %v711
        %758 = vmatpush.bf16.msra.mxu0 %v710
        %759 = vmatpush.bf16.msra.mxu0 %v709
        %760 = vmatpush.bf16.msra.mxu0 %v708
        %761 = vmatpush.bf16.msra.mxu0 %v707
        %762 = vmatpush.bf16.msra.mxu0 %v706
        %763 = vmatpush.bf16.msra.mxu0 %v705
        %764 = vmatpush.bf16.msra.mxu0 %v704
        %765 = vmatmul.bf16.gmra.mxu0 %v595
        %v766 = vpop.f32.mrf.mxu0
        %v767 = vadd.f32 %v754, %v766
        %v768 = vpop.f32.mrf.mxu0
        %769 = vdwg.mxu0
        %770 = vmatpush.bf16.msra.mxu0 %v719
        %771 = vmatpush.bf16.msra.mxu0 %v718
        %772 = vmatpush.bf16.msra.mxu0 %v717
        %773 = vmatpush.bf16.msra.mxu0 %v716
        %774 = vmatpush.bf16.msra.mxu0 %v715
        %775 = vmatpush.bf16.msra.mxu0 %v714
        %776 = vmatpush.bf16.msra.mxu0 %v713
        %777 = vmatpush.bf16.msra.mxu0 %v712
        %778 = vmatmul.bf16.gmra.mxu0 %v596
        %v779 = vpop.f32.mrf.mxu0
        %v780 = vadd.f32 %v767, %v779
        %v781 = vpop.f32.mrf.mxu0
        %782 = vdwg.mxu0
        %v783 = vadd.f32 %v538, %v780
        %784 = vst [vmem:[#allocation2] sm:$0xff] %v783
        %p785 = scmp.eq.s32.totalorder %s23, 5
        // Predicated region
        $region78: #{discriminator_feature_forward.24} parent=68 // pred_check
          %p786 = pneg %p785
        $region79: #{discriminator_feature_forward.24} parent=68 // pred_check_branch
          %788 = sbr.rel (%p786) target = $region81
        $region80: #{discriminator_feature_forward.24} parent=68 // pred_region
          %v789 = vld [vmem:[#allocation2] sm:$0xff]
          %v790 = vld [vmem:[%s516] sm:$0x1]
          %v792 = vperm.slane %v790, 0
          %v794 = vadd.f32 %v789, %v792
          %795 = vst [vmem:[%s524] sm:$0xff] %v794
          %v796 = vrot.slane %v794, 4
          %v797 = vadd.f32 %v794, %v796
          %v798 = vrot.slane %v797, 2
          %v799 = vadd.f32 %v797, %v798
          %v800 = vrot.slane %v799, 1
          %v801 = vadd.f32 %v799, %v800
          %v802 = vmul.f32 %v794, %v794
          %v803 = vrot.slane %v802, 4
          %v804 = vadd.f32 %v802, %v803
          %v805 = vrot.slane %v804, 2
          %v806 = vadd.f32 %v804, %v805
          %v807 = vrot.slane %v806, 1
          %v808 = vadd.f32 %v806, %v807
          %vm809 = vcmask 1040384
          %v810 = vsel %vm809, %v801, %v808
          %811 = vst [vmem:[%s532] sm:$0x3] %v810
        $region81: #{discriminator_feature_forward.24} parent=68 // pred_fallthru
          _
        %p812 = scmp.lt.s32.totalorder %s21, 0
        %s813 = scalar_select %p812, %s21, 0
        %p814 = scmp.lt.s32.totalorder %s22, 1
        %s815 = scalar_select %p814, %s22, 1
        %s816 = smul.addr %s813, 2
        %s817 = sadd.s32 %s815, %s816
        %s818 = smul.addr %s817, 8
        %s819 = scalar_lea.vmem %s3, %s818
        %p820 = scmp.lt.s32.totalorder %s21, 0
        %s821 = scalar_select %p820, %s21, 0
        %p822 = scmp.lt.s32.totalorder %s22, 1
        %s823 = scalar_select %p822, %s22, 1
        %s824 = smul.addr %s821, 2
        %s825 = sadd.s32 %s823, %s824
        %s826 = smul.addr %s825, 2
        %s827 = scalar_lea.vmem %s4, %s826
        // Predicated region
        $region82: #{discriminator_feature_forward.24} parent=68 // pred_check
          %p828 = pneg %p137
        $region83: #{discriminator_feature_forward.24} parent=68 // pred_check_branch
          %830 = sbr.rel (%p828) target = $region85
        $region84: #{discriminator_feature_forward.24} parent=68 // pred_region
          _
        $region85: #{discriminator_feature_forward.24} parent=68 // pred_fallthru
          _
        // Predicated region
        $region86: #{discriminator_feature_forward.24} parent=68 // pred_check
          %p831 = pneg %p165
        $region87: #{discriminator_feature_forward.24} parent=68 // pred_check_branch
          %833 = sbr.rel (%p831) target = $region89
        $region88: #{discriminator_feature_forward.24} parent=68 // pred_region
          _
        $region89: #{discriminator_feature_forward.24} parent=68 // pred_fallthru
          _
      $region69: #{discriminator_feature_forward.24} parent=5 // pred_fallthru
        _
      %p834 = scmp.le.s32.totalorder 2, %s11
      // Predicated region
      $region90: #{discriminator_feature_forward.24} parent=5 // pred_check
        %p835 = pneg %p834
      $region91: #{discriminator_feature_forward.24} parent=5 // pred_check_branch
        %837 = sbr.rel (%p835) target = $region93
      $region92: #{discriminator_feature_forward.24} parent=5 // pred_region
        %s838 = ssub.s32 %s11, 2
        // Predicated region
        $region94: #{discriminator_feature_forward.24} parent=92 // pred_check
          %p839 = pneg %p143
        $region95: #{discriminator_feature_forward.24} parent=92 // pred_check_branch
          %841 = sbr.rel (%p839) target = $region97
        $region96: #{discriminator_feature_forward.24} parent=92 // pred_region
          %p842 = scmp.lt.s32.totalorder %s24, 0
          %s843 = scalar_select %p842, %s24, 0
          %p844 = scmp.lt.s32.totalorder %s25, 1
          %s845 = scalar_select %p844, %s25, 1
          %s846 = smul.addr %s843, 2
          %s847 = sadd.s32 %s845, %s846
          %s848 = smul.addr %s847, 8
          %s849 = scalar_lea.vmem %s3, %s848
        $region97: #{discriminator_feature_forward.24} parent=92 // pred_fallthru
          _
        // Predicated region
        $region98: #{discriminator_feature_forward.24} parent=92 // pred_check
          %p850 = pneg %p171
        $region99: #{discriminator_feature_forward.24} parent=92 // pred_check_branch
          %852 = sbr.rel (%p850) target = $region101
        $region100: #{discriminator_feature_forward.24} parent=92 // pred_region
          %p853 = scmp.lt.s32.totalorder %s24, 0
          %s854 = scalar_select %p853, %s24, 0
          %p855 = scmp.lt.s32.totalorder %s25, 1
          %s856 = scalar_select %p855, %s25, 1
          %s857 = smul.addr %s854, 2
          %s858 = sadd.s32 %s856, %s857
          %s859 = smul.addr %s858, 2
          %s860 = scalar_lea.vmem %s4, %s859
        $region101: #{discriminator_feature_forward.24} parent=92 // pred_fallthru
          _
      $region93: #{discriminator_feature_forward.24} parent=5 // pred_fallthru
        _
    $region6: #{discriminator_feature_forward.24} parent=1 // loop_footer
      %s15 = sadd.s32 1, %s11
    $region7: #{discriminator_feature_forward.24} parent=1 // loop_footer_branch
      %10 = sbr.rel target = $region3
    $region8: #{discriminator_feature_forward.24} parent=1 // loop_exit
      _

// kernel: discriminator_feature_forward.27
$region0: #{discriminator_feature_forward.27}
  #allocation0 [shape = 'u32[]', space=smem, size = 0x4, offset = 0x4, fixed_abs, tag = 'smem constant byte address 0x4 - core index']
  #allocation1 [shape = 'u32[72,128]{1,0:T(1,128)}', space=vmem, size = 0x9000, scoped, tag = 'internal scratch']
  %s0 = inlined_call_operand.vmem [shape: f32[8,512], index: 0, kind: input, shape index: {}]
  %s1 = inlined_call_operand.vmem [shape: f32[1,512], index: 1, kind: input, shape index: {}]
  %s2 = inlined_call_operand.vmem [shape: f32[1,512], index: 2, kind: input, shape index: {}]
  %s3 = inlined_call_operand.vmem [shape: f32[8,512], index: 3, kind: output, shape index: {}]
  %s4 = sld [smem:[#allocation0]]
  $region22: #{discriminator_feature_forward.27} parent=0
    _
  %s6 = ssub.s32 1, %s4
  %s7 = scalar_select 0, %s6, %s4
  // Predicated region
  $region2: #{discriminator_feature_forward.27} parent=0 // pred_check
    _
  $region3: #{discriminator_feature_forward.27} parent=0 // pred_check_branch
    %9 = sbr.rel (0) target = $region5
  $region4: #{discriminator_feature_forward.27} parent=0 // pred_region
    _
  $region5: #{discriminator_feature_forward.27} parent=0 // pred_fallthru
    _
  // Predicated region
  $region6: #{discriminator_feature_forward.27} parent=0 // pred_check
    _
  $region7: #{discriminator_feature_forward.27} parent=0 // pred_check_branch
    %11 = sbr.rel (0) target = $region9
  $region8: #{discriminator_feature_forward.27} parent=0 // pred_region
    _
  $region9: #{discriminator_feature_forward.27} parent=0 // pred_fallthru
    _
  // Predicated region
  $region10: #{discriminator_feature_forward.27} parent=0 // pred_check
    _
  $region11: #{discriminator_feature_forward.27} parent=0 // pred_check_branch
    %13 = sbr.rel (0) target = $region13
  $region12: #{discriminator_feature_forward.27} parent=0 // pred_region
    _
  $region13: #{discriminator_feature_forward.27} parent=0 // pred_fallthru
    _
  %v14 = vld [vmem:[%s0] sm:$0xff]
  %v15 = vld [vmem:[%s0 + $0x8] sm:$0xff]
  %v16 = vld [vmem:[%s0 + $0x10] sm:$0xff]
  %v17 = vld [vmem:[%s0 + $0x18] sm:$0xff]
  %v18 = vld [vmem:[%s1] sm:$0xf]
  %v20 = vperm.slane %v18, 0
  %v21 = vperm.slane %v18, 1
  %v22 = vperm.slane %v18, 2
  %v23 = vperm.slane %v18, 3
  %v28 = vmul.f32 %v14, %v20
  %v29 = vmul.f32 %v15, %v21
  %v30 = vmul.f32 %v16, %v22
  %v31 = vmul.f32 %v17, %v23
  %v32 = vld [vmem:[%s2] sm:$0xf]
  %v34 = vperm.slane %v32, 0
  %v35 = vperm.slane %v32, 1
  %v36 = vperm.slane %v32, 2
  %v37 = vperm.slane %v32, 3
  %v42 = vadd.f32 %v28, %v34
  %v43 = vadd.f32 %v29, %v35
  %v44 = vadd.f32 %v30, %v36
  %v45 = vadd.f32 %v31, %v37
  %v46 = vsub.f32 0.0, %v42
  %v47 = vsub.f32 0.0, %v43
  %v48 = vsub.f32 0.0, %v44
  %v49 = vsub.f32 0.0, %v45
  %v50 = vmul.f32 %v46, 1.442695
  %v51 = vpow.pop %v50
  %v52 = vmul.f32 %v47, 1.442695
  %v53 = vpow.pop %v52
  %v54 = vmul.f32 %v48, 1.442695
  %v55 = vpow.pop %v54
  %v56 = vmul.f32 %v49, 1.442695
  %v57 = vpow.pop %v56
  %v58 = vadd.f32 %v51, 1.0
  %v59 = vadd.f32 %v53, 1.0
  %v60 = vadd.f32 %v55, 1.0
  %v61 = vadd.f32 %v57, 1.0
  %v62 = vrcp.pop %v58
  %v63 = vmul.f32 %v58, %v62
  %v64 = vsub.f32 1.0, %v63
  %v65 = vmul.f32 %v62, %v64
  %v66 = vadd.f32 %v62, %v65
  %vm67 = vweird.f32 %v58
  %vm68 = vweird.f32 %v62
  %vm69 = vmor %vm67, %vm68
  %v70 = vsel %vm69, %v62, %v66
  %v71 = vand.u32 2147483647, %v58
  %vm72 = vcmp.eq.f32.partialorder %v71, 8.507059e+37
  %v73 = vand.u32 %v58, 2147483648
  %v74 = vor.u32 1.1754944e-38, %v73
  %v75 = vsel %vm72, %v74, %v70
  %v76 = vmul.f32 1.0, %v75
  %v77 = vrcp.pop %v59
  %v78 = vmul.f32 %v59, %v77
  %v79 = vsub.f32 1.0, %v78
  %v80 = vmul.f32 %v77, %v79
  %v81 = vadd.f32 %v77, %v80
  %vm82 = vweird.f32 %v59
  %vm83 = vweird.f32 %v77
  %vm84 = vmor %vm82, %vm83
  %v85 = vsel %vm84, %v77, %v81
  %v86 = vand.u32 2147483647, %v59
  %vm87 = vcmp.eq.f32.partialorder %v86, 8.507059e+37
  %v88 = vand.u32 %v59, 2147483648
  %v89 = vor.u32 1.1754944e-38, %v88
  %v90 = vsel %vm87, %v89, %v85
  %v91 = vmul.f32 1.0, %v90
  %v92 = vrcp.pop %v60
  %v93 = vmul.f32 %v60, %v92
  %v94 = vsub.f32 1.0, %v93
  %v95 = vmul.f32 %v92, %v94
  %v96 = vadd.f32 %v92, %v95
  %vm97 = vweird.f32 %v60
  %vm98 = vweird.f32 %v92
  %vm99 = vmor %vm97, %vm98
  %v100 = vsel %vm99, %v92, %v96
  %v101 = vand.u32 2147483647, %v60
  %vm102 = vcmp.eq.f32.partialorder %v101, 8.507059e+37
  %v103 = vand.u32 %v60, 2147483648
  %v104 = vor.u32 1.1754944e-38, %v103
  %v105 = vsel %vm102, %v104, %v100
  %v106 = vmul.f32 1.0, %v105
  %v107 = vrcp.pop %v61
  %v108 = vmul.f32 %v61, %v107
  %v109 = vsub.f32 1.0, %v108
  %v110 = vmul.f32 %v107, %v109
  %v111 = vadd.f32 %v107, %v110
  %vm112 = vweird.f32 %v61
  %vm113 = vweird.f32 %v107
  %vm114 = vmor %vm112, %vm113
  %v115 = vsel %vm114, %v107, %v111
  %v116 = vand.u32 2147483647, %v61
  %vm117 = vcmp.eq.f32.partialorder %v116, 8.507059e+37
  %v118 = vand.u32 %v61, 2147483648
  %v119 = vor.u32 1.1754944e-38, %v118
  %v120 = vsel %vm117, %v119, %v115
  %v121 = vmul.f32 1.0, %v120
  %v122 = vmul.f32 %v42, %v76
  %v123 = vmul.f32 %v43, %v91
  %v124 = vmul.f32 %v44, %v106
  %v125 = vmul.f32 %v45, %v121
  %126 = vst [vmem:[%s3] sm:$0xff] %v122
  %127 = vst [vmem:[%s3 + $0x8] sm:$0xff] %v123
  %128 = vst [vmem:[%s3 + $0x10] sm:$0xff] %v124
  %129 = vst [vmem:[%s3 + $0x18] sm:$0xff] %v125
  // Predicated region
  $region14: #{discriminator_feature_forward.27} parent=0 // pred_check
    _
  $region15: #{discriminator_feature_forward.27} parent=0 // pred_check_branch
    %131 = sbr.rel (0) target = $region17
  $region16: #{discriminator_feature_forward.27} parent=0 // pred_region
    _
  $region17: #{discriminator_feature_forward.27} parent=0 // pred_fallthru
    _
  // Predicated region
  $region18: #{discriminator_feature_forward.27} parent=0 // pred_check
    _
  $region19: #{discriminator_feature_forward.27} parent=0 // pred_check_branch
    %133 = sbr.rel (0) target = $region21
  $region20: #{discriminator_feature_forward.27} parent=0 // pred_region
    _
  $region21: #{discriminator_feature_forward.27} parent=0 // pred_fallthru
    _

// kernel: discriminator_feature_forward.26
$region0: #{discriminator_feature_forward.26}
  #allocation0 [shape = 'u32[]', space=smem, size = 0x4, offset = 0x4, fixed_abs, tag = 'smem constant byte address 0x4 - core index']
  #allocation1 [shape = 'u32[72,128]{1,0:T(1,128)}', space=vmem, size = 0x9000, scoped, tag = 'internal scratch']
  #allocation2 [shape = 'f32[8,128]{1,0:T(8,128)}', space=vmem, size = 0x1000, scoped, tag = 'scratch operand']
  %s0 = inlined_call_operand.vmem [shape: bf16[8,2304], index: 0, kind: input, shape index: {}]
  %s1 = inlined_call_operand.vmem [shape: bf16[2304,512], index: 1, kind: input, shape index: {}]
  %s2 = inlined_call_operand.vmem [shape: f32[1,512], index: 2, kind: input, shape index: {}]
  %s3 = inlined_call_operand.vmem [shape: f32[8,512], index: 3, kind: output, shape index: {0}]
  %s4 = inlined_call_operand.vmem [shape: f32[1,2,512], index: 4, kind: output, shape index: {1}]
  %5 = xla_tuple %s3, %s4
  %s6 = sld [smem:[#allocation0]]
  $region102: #{discriminator_feature_forward.26} parent=0
    _
  %s8 = ssub.s32 1, %s6
  %s9 = scalar_select 0, %s8, %s6
  $region1: #{discriminator_feature_forward.26} parent=0
    #allocation3 [shape = 'u8[196608]{0}', space=vmem, size = 0x30000, scoped, tag = 'input window, operand 1']
    loop: start=0, step=1, limit=26
    $region2: #{discriminator_feature_forward.26} parent=1 // loop_pre_header
      _
    $region3: #{discriminator_feature_forward.26} parent=1 // loop_header
      %s11 = sphi 0, %s15
      %p12 = scmp.ge.s32.totalorder %s11, 26
      %s18 = sphi 0, %s37
      %s19 = sphi 0, %s33
      %s20 = sphi 0, %s29
      %s21 = sphi 0, %s18
      %s22 = sphi 0, %s19
      %s23 = sphi 0, %s20
      %s24 = sphi 0, %s21
      %s25 = sphi 0, %s22
      %s26 = sphi 0, %s23
      %s42 = sphi 0, %s44
      %s45 = sphi 0, %s42
      %s46 = sphi 0, %s45
      %s62 = sphi 0, %s46
      %s70 = sphi 0, %s72
      %s73 = sphi 0, %s70
      %s74 = sphi 0, %s73
      %s90 = sphi 0, %s74
      %s96 = sphi 0, %s98
      %s99 = sphi 0, %s96
      %s100 = sphi 0, %s99
      %s116 = sphi 0, %s100
      %s124 = sphi 0, %s126
      %s127 = sphi 0, %s124
      %s128 = sphi 0, %s127
      %s144 = sphi 0, %s128
      %s152 = sphi 0, %s154
      %s155 = sphi 0, %s152
      %s156 = sphi 0, %s155
      %s172 = sphi 0, %s156
    $region4: #{discriminator_feature_forward.26} parent=1 // loop_header_branch
      %14 = sbr.rel (%p12) target = $region8
    $region5: #{discriminator_feature_forward.26} parent=1 // loop_body
      %s16 = ssub.s32 %s11, 1
      %s17 = ssub.s32 %s11, 2
      %s27 = sadd.s32 1, %s20
      %p28 = scmp.ge.s32.totalorder %s27, 6
      %s29 = scalar_select %p28, 0, %s27
      %s30 = sadd.s32 1, %s19
      %s31 = scalar_select %p28, %s30, %s19
      %p32 = scmp.ge.s32.totalorder %s31, 4
      %s33 = scalar_select %p32, 0, %s31
      %s34 = sadd.s32 1, %s18
      %s35 = scalar_select %p32, %s34, %s18
      %p36 = scmp.ge.s32.totalorder %s35, 1
      %s37 = scalar_select %p36, 0, %s35
      %s38 = ssub.s32 %s18, %s37
      %s39 = ssub.s32 %s20, %s29
      %s40 = sor.u32 %s38, %s39
      %p41 = scmp.eq.s32.totalorder %s40, 0
      %s43 = sadd.s32 %s42, 1
      %s44 = scalar_select %p41, %s42, %s43
      %p47 = pneg %p41
      %p48 = scmp.eq.s32.totalorder %s11, 23
      %p49 = por %p47, %p48
      %p50 = scmp.ne.s32.totalorder %s42, %s45
      %p51 = scmp.eq.s32.totalorder %s11, 0
      %p52 = por %p50, %p51
      %p53 = scmp.ne.s32.totalorder %s42, %s45
      %p54 = scmp.eq.s32.totalorder %s16, 23
      %p55 = por %p53, %p54
      %p56 = scmp.ne.s32.totalorder %s45, %s46
      %p57 = scmp.eq.s32.totalorder %s16, 0
      %p58 = por %p56, %p57
      %p59 = scmp.ne.s32.totalorder %s45, %s46
      %p60 = scmp.eq.s32.totalorder %s17, 23
      %p61 = por %p59, %p60
      %p63 = scmp.ne.s32.totalorder %s46, %s62
      %p64 = scmp.eq.s32.totalorder %s17, 0
      %p65 = por %p63, %p64
      %s66 = ssub.s32 %s20, %s29
      %s67 = ssub.s32 %s19, %s33
      %s68 = sor.u32 %s66, %s67
      %p69 = scmp.eq.s32.totalorder %s68, 0
      %s71 = sadd.s32 %s70, 1
      %s72 = scalar_select %p69, %s70, %s71
      %p75 = pneg %p69
      %p76 = scmp.eq.s32.totalorder %s11, 23
      %p77 = por %p75, %p76
      %p78 = scmp.ne.s32.totalorder %s70, %s73
      %p79 = scmp.eq.s32.totalorder %s11, 0
      %p80 = por %p78, %p79
      %p81 = scmp.ne.s32.totalorder %s70, %s73
      %p82 = scmp.eq.s32.totalorder %s16, 23
      %p83 = por %p81, %p82
      %p84 = scmp.ne.s32.totalorder %s73, %s74
      %p85 = scmp.eq.s32.totalorder %s16, 0
      %p86 = por %p84, %p85
      %p87 = scmp.ne.s32.totalorder %s73, %s74
      %p88 = scmp.eq.s32.totalorder %s17, 23
      %p89 = por %p87, %p88
      %p91 = scmp.ne.s32.totalorder %s74, %s90
      %p92 = scmp.eq.s32.totalorder %s17, 0
      %p93 = por %p91, %p92
      %s94 = ssub.s32 %s19, %s33
      %p95 = scmp.eq.s32.totalorder %s94, 0
      %s97 = sadd.s32 %s96, 1
      %s98 = scalar_select %p95, %s96, %s97
      %p101 = pneg %p95
      %p102 = scmp.eq.s32.totalorder %s11, 23
      %p103 = por %p101, %p102
      %p104 = scmp.ne.s32.totalorder %s96, %s99
      %p105 = scmp.eq.s32.totalorder %s11, 0
      %p106 = por %p104, %p105
      %p107 = scmp.ne.s32.totalorder %s96, %s99
      %p108 = scmp.eq.s32.totalorder %s16, 23
      %p109 = por %p107, %p108
      %p110 = scmp.ne.s32.totalorder %s99, %s100
      %p111 = scmp.eq.s32.totalorder %s16, 0
      %p112 = por %p110, %p111
      %p113 = scmp.ne.s32.totalorder %s99, %s100
      %p114 = scmp.eq.s32.totalorder %s17, 23
      %p115 = por %p113, %p114
      %p117 = scmp.ne.s32.totalorder %s100, %s116
      %p118 = scmp.eq.s32.totalorder %s17, 0
      %p119 = por %p117, %p118
      %s120 = ssub.s32 %s18, %s37
      %s121 = ssub.s32 %s19, %s33
      %s122 = sor.u32 %s120, %s121
      %p123 = scmp.eq.s32.totalorder %s122, 0
      %s125 = sadd.s32 %s124, 1
      %s126 = scalar_select %p123, %s124, %s125
      %p129 = pneg %p123
      %p130 = scmp.eq.s32.totalorder %s11, 23
      %p131 = por %p129, %p130
      %p132 = scmp.ne.s32.totalorder %s124, %s127
      %p133 = scmp.eq.s32.totalorder %s11, 0
      %p134 = por %p132, %p133
      %p135 = scmp.ne.s32.totalorder %s124, %s127
      %p136 = scmp.eq.s32.totalorder %s16, 23
      %p137 = por %p135, %p136
      %p138 = scmp.ne.s32.totalorder %s127, %s128
      %p139 = scmp.eq.s32.totalorder %s16, 0
      %p140 = por %p138, %p139
      %p141 = scmp.ne.s32.totalorder %s127, %s128
      %p142 = scmp.eq.s32.totalorder %s17, 23
      %p143 = por %p141, %p142
      %p145 = scmp.ne.s32.totalorder %s128, %s144
      %p146 = scmp.eq.s32.totalorder %s17, 0
      %p147 = por %p145, %p146
      %s148 = ssub.s32 %s18, %s37
      %s149 = ssub.s32 %s19, %s33
      %s150 = sor.u32 %s148, %s149
      %p151 = scmp.eq.s32.totalorder %s150, 0
      %s153 = sadd.s32 %s152, 1
      %s154 = scalar_select %p151, %s152, %s153
      %p157 = pneg %p151
      %p158 = scmp.eq.s32.totalorder %s11, 23
      %p159 = por %p157, %p158
      %p160 = scmp.ne.s32.totalorder %s152, %s155
      %p161 = scmp.eq.s32.totalorder %s11, 0
      %p162 = por %p160, %p161
      %p163 = scmp.ne.s32.totalorder %s152, %s155
      %p164 = scmp.eq.s32.totalorder %s16, 23
      %p165 = por %p163, %p164
      %p166 = scmp.ne.s32.totalorder %s155, %s156
      %p167 = scmp.eq.s32.totalorder %s16, 0
      %p168 = por %p166, %p167
      %p169 = scmp.ne.s32.totalorder %s155, %s156
      %p170 = scmp.eq.s32.totalorder %s17, 23
      %p171 = por %p169, %p170
      %p173 = scmp.ne.s32.totalorder %s156, %s172
      %p174 = scmp.eq.s32.totalorder %s17, 0
      %p175 = por %p173, %p174
      %p176 = scmp.le.s32.totalorder 1, %s11
      %p177 = scmp.lt.s32.totalorder %s11, 25
      %p178 = pnand %p176, %p177
      %p179 = pneg %p178
      // Predicated region
      $region9: #{discriminator_feature_forward.26} parent=5 // pred_check
        _
      $region10: #{discriminator_feature_forward.26} parent=5 // pred_check_branch
        %181 = sbr.rel (%p178) target = $region12
      $region11: #{discriminator_feature_forward.26} parent=5 // pred_region
        %s182 = ssub.s32 %s11, 1
      $region12: #{discriminator_feature_forward.26} parent=5 // pred_fallthru
        _
      %p183 = scmp.lt.s32.totalorder %s11, 24
      // Predicated region
      $region13: #{discriminator_feature_forward.26} parent=5 // pred_check
        %p184 = pneg %p183
      $region14: #{discriminator_feature_forward.26} parent=5 // pred_check_branch
        %186 = sbr.rel (%p184) target = $region16
      $region15: #{discriminator_feature_forward.26} parent=5 // pred_region
        // Predicated region
        $region17: #{discriminator_feature_forward.26} parent=15 // pred_check
          %p187 = pneg %p52
        $region18: #{discriminator_feature_forward.26} parent=15 // pred_check_branch
          %189 = sbr.rel (%p187) target = $region20
        $region19: #{discriminator_feature_forward.26} parent=15 // pred_region
          %s190 = smul.u32 3, %s20
          %p191 = scmp.lt.s32.totalorder %s18, 0
          %s192 = scalar_select %p191, %s18, 0
          %p193 = scmp.lt.s32.totalorder %s190, 17
          %s194 = scalar_select %p193, %s190, 17
          %s195 = smul.addr %s192, 18
          %s196 = sadd.s32 %s194, %s195
          %s197 = smul.addr %s196, 4
          %s198 = scalar_lea.vmem %s0, %s197
          %s199 = smul.u32 3, %s20
        $region20: #{discriminator_feature_forward.26} parent=15 // pred_fallthru
          _
        // Predicated region
        $region21: #{discriminator_feature_forward.26} parent=15 // pred_check
          %p200 = pneg %p80
        $region22: #{discriminator_feature_forward.26} parent=15 // pred_check_branch
          %202 = sbr.rel (%p200) target = $region24
        $region23: #{discriminator_feature_forward.26} parent=15 // pred_region
          %s203 = sand.u32 %s70, 1
          %s204 = sand.u32 %s70, 1
          %s205 = smul.addr %s204, 192
          %s206 = scalar_lea.vmem [#allocation3], %s205
          %s207 = smul.u32 48, %s20
          %s208 = smul.addr %s207, 4
          %s209 = sadd.s32 %s19, %s208
          %s210 = smul.addr %s209, 4
          %s211 = scalar_lea.vmem %s1, %s210
          // Predicated region
          $region25: #{discriminator_feature_forward.26} parent=23 // pred_check
            _
          $region26: #{discriminator_feature_forward.26} parent=23 // pred_check_branch
            %213 = sbr.rel (0) target = $region28
          $region27: #{discriminator_feature_forward.26} parent=23 // pred_region
            // Predicated region
            $region29: #{discriminator_feature_forward.26} parent=27 // pred_check
              _
            $region30: #{discriminator_feature_forward.26} parent=27 // pred_check_branch
              %215 = sbr.rel target = $region32
            $region31: #{discriminator_feature_forward.26} parent=27 // pred_region
              // Predicated region
              $region44: #{discriminator_feature_forward.26} parent=31 // pred_check
                _
              $region45: #{discriminator_feature_forward.26} parent=31 // pred_check_branch
                %325 = sbr.rel (0) target = $region47
              $region46: #{discriminator_feature_forward.26} parent=31 // pred_region
                loop: start=0, step=1, limit=1
                $region48: #{discriminator_feature_forward.26} parent=46 // loop_pre_header
                  _
                $region49: #{discriminator_feature_forward.26} parent=46 // loop_header
                  %s327 = sphi 0, %s331
                  %p328 = scmp.ge.s32.totalorder %s327, 1
                  %s332 = sphi %s211, %s211
                  %s333 = sphi %s206, %s206
                $region50: #{discriminator_feature_forward.26} parent=46 // loop_header_branch
                  %330 = sbr.rel (%p328) target = $region54
                $region51: #{discriminator_feature_forward.26} parent=46 // loop_body
                  _
                $region52: #{discriminator_feature_forward.26} parent=46 // loop_footer
                  %s331 = sadd.s32 1, %s327
                $region53: #{discriminator_feature_forward.26} parent=46 // loop_footer_branch
                  %326 = sbr.rel target = $region49
                $region54: #{discriminator_feature_forward.26} parent=46 // loop_exit
                  _
                %s335 = ssub.s32 16, 1
                loop: start=0, step=1, limit=1
                $region55: #{discriminator_feature_forward.26} parent=46 // loop_pre_header
                  _
                $region56: #{discriminator_feature_forward.26} parent=46 // loop_header
                  %s337 = sphi 0, %s341
                  %p338 = scmp.ge.s32.totalorder %s337, 1
                  %s342 = sphi %s211, %s211
                  %s343 = sphi %s206, %s206
                $region57: #{discriminator_feature_forward.26} parent=46 // loop_header_branch
                  %340 = sbr.rel (%p338) target = $region61
                $region58: #{discriminator_feature_forward.26} parent=46 // loop_body
                  %v344 = vld [vmem:[%s342] sm:%s335]
                  %345 = vst [vmem:[%s343] sm:%s335] %v344
                  %v346 = vld [vmem:[%s342 + $0x10] sm:%s335]
                  %347 = vst [vmem:[%s343 + $0x4] sm:%s335] %v346
                  %v348 = vld [vmem:[%s342 + $0x20] sm:%s335]
                  %349 = vst [vmem:[%s343 + $0x8] sm:%s335] %v348
                  %v350 = vld [vmem:[%s342 + $0x30] sm:%s335]
                  %351 = vst [vmem:[%s343 + $0xc] sm:%s335] %v350
                  %v352 = vld [vmem:[%s342 + $0x40] sm:%s335]
                  %353 = vst [vmem:[%s343 + $0x10] sm:%s335] %v352
                  %v354 = vld [vmem:[%s342 + $0x50] sm:%s335]
                  %355 = vst [vmem:[%s343 + $0x14] sm:%s335] %v354
                  %v356 = vld [vmem:[%s342 + $0x60] sm:%s335]
                  %357 = vst [vmem:[%s343 + $0x18] sm:%s335] %v356
                  %v358 = vld [vmem:[%s342 + $0x70] sm:%s335]
                  %359 = vst [vmem:[%s343 + $0x1c] sm:%s335] %v358
                  %v360 = vld [vmem:[%s342 + $0x80] sm:%s335]
                  %361 = vst [vmem:[%s343 + $0x20] sm:%s335] %v360
                  %v362 = vld [vmem:[%s342 + $0x90] sm:%s335]
                  %363 = vst [vmem:[%s343 + $0x24] sm:%s335] %v362
                  %v364 = vld [vmem:[%s342 + $0xa0] sm:%s335]
                  %365 = vst [vmem:[%s343 + $0x28] sm:%s335] %v364
                  %v366 = vld [vmem:[%s342 + $0xb0] sm:%s335]
                  %367 = vst [vmem:[%s343 + $0x2c] sm:%s335] %v366
                  %v368 = vld [vmem:[%s342 + $0xc0] sm:%s335]
                  %369 = vst [vmem:[%s343 + $0x30] sm:%s335] %v368
                  %v370 = vld [vmem:[%s342 + $0xd0] sm:%s335]
                  %371 = vst [vmem:[%s343 + $0x34] sm:%s335] %v370
                  %v372 = vld [vmem:[%s342 + $0xe0] sm:%s335]
                  %373 = vst [vmem:[%s343 + $0x38] sm:%s335] %v372
                  %v374 = vld [vmem:[%s342 + $0xf0] sm:%s335]
                  %375 = vst [vmem:[%s343 + $0x3c] sm:%s335] %v374
                  %v376 = vld [vmem:[%s342 + $0x100] sm:%s335]
                  %377 = vst [vmem:[%s343 + $0x40] sm:%s335] %v376
                  %v378 = vld [vmem:[%s342 + $0x110] sm:%s335]
                  %379 = vst [vmem:[%s343 + $0x44] sm:%s335] %v378
                  %v380 = vld [vmem:[%s342 + $0x120] sm:%s335]
                  %381 = vst [vmem:[%s343 + $0x48] sm:%s335] %v380
                  %v382 = vld [vmem:[%s342 + $0x130] sm:%s335]
                  %383 = vst [vmem:[%s343 + $0x4c] sm:%s335] %v382
                  %v384 = vld [vmem:[%s342 + $0x140] sm:%s335]
                  %385 = vst [vmem:[%s343 + $0x50] sm:%s335] %v384
                  %v386 = vld [vmem:[%s342 + $0x150] sm:%s335]
                  %387 = vst [vmem:[%s343 + $0x54] sm:%s335] %v386
                  %v388 = vld [vmem:[%s342 + $0x160] sm:%s335]
                  %389 = vst [vmem:[%s343 + $0x58] sm:%s335] %v388
                  %v390 = vld [vmem:[%s342 + $0x170] sm:%s335]
                  %391 = vst [vmem:[%s343 + $0x5c] sm:%s335] %v390
                  %v392 = vld [vmem:[%s342 + $0x180] sm:%s335]
                  %393 = vst [vmem:[%s343 + $0x60] sm:%s335] %v392
                  %v394 = vld [vmem:[%s342 + $0x190] sm:%s335]
                  %395 = vst [vmem:[%s343 + $0x64] sm:%s335] %v394
                  %v396 = vld [vmem:[%s342 + $0x1a0] sm:%s335]
                  %397 = vst [vmem:[%s343 + $0x68] sm:%s335] %v396
                  %v398 = vld [vmem:[%s342 + $0x1b0] sm:%s335]
                  %399 = vst [vmem:[%s343 + $0x6c] sm:%s335] %v398
                  %v400 = vld [vmem:[%s342 + $0x1c0] sm:%s335]
                  %401 = vst [vmem:[%s343 + $0x70] sm:%s335] %v400
                  %v402 = vld [vmem:[%s342 + $0x1d0] sm:%s335]
                  %403 = vst [vmem:[%s343 + $0x74] sm:%s335] %v402
                  %v404 = vld [vmem:[%s342 + $0x1e0] sm:%s335]
                  %405 = vst [vmem:[%s343 + $0x78] sm:%s335] %v404
                  %v406 = vld [vmem:[%s342 + $0x1f0] sm:%s335]
                  %407 = vst [vmem:[%s343 + $0x7c] sm:%s335] %v406
                  %v408 = vld [vmem:[%s342 + $0x200] sm:%s335]
                  %409 = vst [vmem:[%s343 + $0x80] sm:%s335] %v408
                  %v410 = vld [vmem:[%s342 + $0x210] sm:%s335]
                  %411 = vst [vmem:[%s343 + $0x84] sm:%s335] %v410
                  %v412 = vld [vmem:[%s342 + $0x220] sm:%s335]
                  %413 = vst [vmem:[%s343 + $0x88] sm:%s335] %v412
                  %v414 = vld [vmem:[%s342 + $0x230] sm:%s335]
                  %415 = vst [vmem:[%s343 + $0x8c] sm:%s335] %v414
                  %v416 = vld [vmem:[%s342 + $0x240] sm:%s335]
                  %417 = vst [vmem:[%s343 + $0x90] sm:%s335] %v416
                  %v418 = vld [vmem:[%s342 + $0x250] sm:%s335]
                  %419 = vst [vmem:[%s343 + $0x94] sm:%s335] %v418
                  %v420 = vld [vmem:[%s342 + $0x260] sm:%s335]
                  %421 = vst [vmem:[%s343 + $0x98] sm:%s335] %v420
                  %v422 = vld [vmem:[%s342 + $0x270] sm:%s335]
                  %423 = vst [vmem:[%s343 + $0x9c] sm:%s335] %v422
                  %v424 = vld [vmem:[%s342 + $0x280] sm:%s335]
                  %425 = vst [vmem:[%s343 + $0xa0] sm:%s335] %v424
                  %v426 = vld [vmem:[%s342 + $0x290] sm:%s335]
                  %427 = vst [vmem:[%s343 + $0xa4] sm:%s335] %v426
                  %v428 = vld [vmem:[%s342 + $0x2a0] sm:%s335]
                  %429 = vst [vmem:[%s343 + $0xa8] sm:%s335] %v428
                  %v430 = vld [vmem:[%s342 + $0x2b0] sm:%s335]
                  %431 = vst [vmem:[%s343 + $0xac] sm:%s335] %v430
                  %v432 = vld [vmem:[%s342 + $0x2c0] sm:%s335]
                  %433 = vst [vmem:[%s343 + $0xb0] sm:%s335] %v432
                  %v434 = vld [vmem:[%s342 + $0x2d0] sm:%s335]
                  %435 = vst [vmem:[%s343 + $0xb4] sm:%s335] %v434
                  %v436 = vld [vmem:[%s342 + $0x2e0] sm:%s335]
                  %437 = vst [vmem:[%s343 + $0xb8] sm:%s335] %v436
                  %v438 = vld [vmem:[%s342 + $0x2f0] sm:%s335]
                  %439 = vst [vmem:[%s343 + $0xbc] sm:%s335] %v438
                $region59: #{discriminator_feature_forward.26} parent=46 // loop_footer
                  %s341 = sadd.s32 1, %s337
                $region60: #{discriminator_feature_forward.26} parent=46 // loop_footer_branch
                  %336 = sbr.rel target = $region56
                $region61: #{discriminator_feature_forward.26} parent=46 // loop_exit
                  _
              $region47: #{discriminator_feature_forward.26} parent=31 // pred_fallthru
                _
            $region32: #{discriminator_feature_forward.26} parent=27 // pred_fallthru
              _
            // Predicated region
            $region33: #{discriminator_feature_forward.26} parent=27 // pred_check
              _
            $region34: #{discriminator_feature_forward.26} parent=27 // pred_check_branch
              %217 = sbr.rel (0) target = $region36
            $region35: #{discriminator_feature_forward.26} parent=27 // pred_region
              %s219 = ssub.s32 16, 1
              loop: start=0, step=1, limit=1
              $region37: #{discriminator_feature_forward.26} parent=35 // loop_pre_header
                _
              $region38: #{discriminator_feature_forward.26} parent=35 // loop_header
                %s221 = sphi 0, %s225
                %p222 = scmp.ge.s32.totalorder %s221, 1
                %s226 = sphi %s211, %s211
                %s227 = sphi %s206, %s206
              $region39: #{discriminator_feature_forward.26} parent=35 // loop_header_branch
                %224 = sbr.rel (%p222) target = $region43
              $region40: #{discriminator_feature_forward.26} parent=35 // loop_body
                %v228 = vld [vmem:[%s226] sm:%s219]
                %229 = vst [vmem:[%s227] sm:%s219] %v228
                %v230 = vld [vmem:[%s226 + $0x10] sm:%s219]
                %231 = vst [vmem:[%s227 + $0x4] sm:%s219] %v230
                %v232 = vld [vmem:[%s226 + $0x20] sm:%s219]
                %233 = vst [vmem:[%s227 + $0x8] sm:%s219] %v232
                %v234 = vld [vmem:[%s226 + $0x30] sm:%s219]
                %235 = vst [vmem:[%s227 + $0xc] sm:%s219] %v234
                %v236 = vld [vmem:[%s226 + $0x40] sm:%s219]
                %237 = vst [vmem:[%s227 + $0x10] sm:%s219] %v236
                %v238 = vld [vmem:[%s226 + $0x50] sm:%s219]
                %239 = vst [vmem:[%s227 + $0x14] sm:%s219] %v238
                %v240 = vld [vmem:[%s226 + $0x60] sm:%s219]
                %241 = vst [vmem:[%s227 + $0x18] sm:%s219] %v240
                %v242 = vld [vmem:[%s226 + $0x70] sm:%s219]
                %243 = vst [vmem:[%s227 + $0x1c] sm:%s219] %v242
                %v244 = vld [vmem:[%s226 + $0x80] sm:%s219]
                %245 = vst [vmem:[%s227 + $0x20] sm:%s219] %v244
                %v246 = vld [vmem:[%s226 + $0x90] sm:%s219]
                %247 = vst [vmem:[%s227 + $0x24] sm:%s219] %v246
                %v248 = vld [vmem:[%s226 + $0xa0] sm:%s219]
                %249 = vst [vmem:[%s227 + $0x28] sm:%s219] %v248
                %v250 = vld [vmem:[%s226 + $0xb0] sm:%s219]
                %251 = vst [vmem:[%s227 + $0x2c] sm:%s219] %v250
                %v252 = vld [vmem:[%s226 + $0xc0] sm:%s219]
                %253 = vst [vmem:[%s227 + $0x30] sm:%s219] %v252
                %v254 = vld [vmem:[%s226 + $0xd0] sm:%s219]
                %255 = vst [vmem:[%s227 + $0x34] sm:%s219] %v254
                %v256 = vld [vmem:[%s226 + $0xe0] sm:%s219]
                %257 = vst [vmem:[%s227 + $0x38] sm:%s219] %v256
                %v258 = vld [vmem:[%s226 + $0xf0] sm:%s219]
                %259 = vst [vmem:[%s227 + $0x3c] sm:%s219] %v258
                %v260 = vld [vmem:[%s226 + $0x100] sm:%s219]
                %261 = vst [vmem:[%s227 + $0x40] sm:%s219] %v260
                %v262 = vld [vmem:[%s226 + $0x110] sm:%s219]
                %263 = vst [vmem:[%s227 + $0x44] sm:%s219] %v262
                %v264 = vld [vmem:[%s226 + $0x120] sm:%s219]
                %265 = vst [vmem:[%s227 + $0x48] sm:%s219] %v264
                %v266 = vld [vmem:[%s226 + $0x130] sm:%s219]
                %267 = vst [vmem:[%s227 + $0x4c] sm:%s219] %v266
                %v268 = vld [vmem:[%s226 + $0x140] sm:%s219]
                %269 = vst [vmem:[%s227 + $0x50] sm:%s219] %v268
                %v270 = vld [vmem:[%s226 + $0x150] sm:%s219]
                %271 = vst [vmem:[%s227 + $0x54] sm:%s219] %v270
                %v272 = vld [vmem:[%s226 + $0x160] sm:%s219]
                %273 = vst [vmem:[%s227 + $0x58] sm:%s219] %v272
                %v274 = vld [vmem:[%s226 + $0x170] sm:%s219]
                %275 = vst [vmem:[%s227 + $0x5c] sm:%s219] %v274
                %v276 = vld [vmem:[%s226 + $0x180] sm:%s219]
                %277 = vst [vmem:[%s227 + $0x60] sm:%s219] %v276
                %v278 = vld [vmem:[%s226 + $0x190] sm:%s219]
                %279 = vst [vmem:[%s227 + $0x64] sm:%s219] %v278
                %v280 = vld [vmem:[%s226 + $0x1a0] sm:%s219]
                %281 = vst [vmem:[%s227 + $0x68] sm:%s219] %v280
                %v282 = vld [vmem:[%s226 + $0x1b0] sm:%s219]
                %283 = vst [vmem:[%s227 + $0x6c] sm:%s219] %v282
                %v284 = vld [vmem:[%s226 + $0x1c0] sm:%s219]
                %285 = vst [vmem:[%s227 + $0x70] sm:%s219] %v284
                %v286 = vld [vmem:[%s226 + $0x1d0] sm:%s219]
                %287 = vst [vmem:[%s227 + $0x74] sm:%s219] %v286
                %v288 = vld [vmem:[%s226 + $0x1e0] sm:%s219]
                %289 = vst [vmem:[%s227 + $0x78] sm:%s219] %v288
                %v290 = vld [vmem:[%s226 + $0x1f0] sm:%s219]
                %291 = vst [vmem:[%s227 + $0x7c] sm:%s219] %v290
                %v292 = vld [vmem:[%s226 + $0x200] sm:%s219]
                %293 = vst [vmem:[%s227 + $0x80] sm:%s219] %v292
                %v294 = vld [vmem:[%s226 + $0x210] sm:%s219]
                %295 = vst [vmem:[%s227 + $0x84] sm:%s219] %v294
                %v296 = vld [vmem:[%s226 + $0x220] sm:%s219]
                %297 = vst [vmem:[%s227 + $0x88] sm:%s219] %v296
                %v298 = vld [vmem:[%s226 + $0x230] sm:%s219]
                %299 = vst [vmem:[%s227 + $0x8c] sm:%s219] %v298
                %v300 = vld [vmem:[%s226 + $0x240] sm:%s219]
                %301 = vst [vmem:[%s227 + $0x90] sm:%s219] %v300
                %v302 = vld [vmem:[%s226 + $0x250] sm:%s219]
                %303 = vst [vmem:[%s227 + $0x94] sm:%s219] %v302
                %v304 = vld [vmem:[%s226 + $0x260] sm:%s219]
                %305 = vst [vmem:[%s227 + $0x98] sm:%s219] %v304
                %v306 = vld [vmem:[%s226 + $0x270] sm:%s219]
                %307 = vst [vmem:[%s227 + $0x9c] sm:%s219] %v306
                %v308 = vld [vmem:[%s226 + $0x280] sm:%s219]
                %309 = vst [vmem:[%s227 + $0xa0] sm:%s219] %v308
                %v310 = vld [vmem:[%s226 + $0x290] sm:%s219]
                %311 = vst [vmem:[%s227 + $0xa4] sm:%s219] %v310
                %v312 = vld [vmem:[%s226 + $0x2a0] sm:%s219]
                %313 = vst [vmem:[%s227 + $0xa8] sm:%s219] %v312
                %v314 = vld [vmem:[%s226 + $0x2b0] sm:%s219]
                %315 = vst [vmem:[%s227 + $0xac] sm:%s219] %v314
                %v316 = vld [vmem:[%s226 + $0x2c0] sm:%s219]
                %317 = vst [vmem:[%s227 + $0xb0] sm:%s219] %v316
                %v318 = vld [vmem:[%s226 + $0x2d0] sm:%s219]
                %319 = vst [vmem:[%s227 + $0xb4] sm:%s219] %v318
                %v320 = vld [vmem:[%s226 + $0x2e0] sm:%s219]
                %321 = vst [vmem:[%s227 + $0xb8] sm:%s219] %v320
                %v322 = vld [vmem:[%s226 + $0x2f0] sm:%s219]
                %323 = vst [vmem:[%s227 + $0xbc] sm:%s219] %v322
              $region41: #{discriminator_feature_forward.26} parent=35 // loop_footer
                %s225 = sadd.s32 1, %s221
              $region42: #{discriminator_feature_forward.26} parent=35 // loop_footer_branch
                %220 = sbr.rel target = $region38
              $region43: #{discriminator_feature_forward.26} parent=35 // loop_exit
                _
            $region36: #{discriminator_feature_forward.26} parent=27 // pred_fallthru
              _
          $region28: #{discriminator_feature_forward.26} parent=23 // pred_fallthru
            _
          %440 = vnop
        $region24: #{discriminator_feature_forward.26} parent=15 // pred_fallthru
          _
        // Predicated region
        $region62: #{discriminator_feature_forward.26} parent=15 // pred_check
          %p441 = pneg %p106
        $region63: #{discriminator_feature_forward.26} parent=15 // pred_check_branch
          %443 = sbr.rel (%p441) target = $region65
        $region64: #{discriminator_feature_forward.26} parent=15 // pred_region
          %p444 = scmp.lt.s32.totalorder %s19, 3
          %s445 = scalar_select %p444, %s19, 3
          %s446 = scalar_lea.vmem %s2, %s445
        $region65: #{discriminator_feature_forward.26} parent=15 // pred_fallthru
          _
      $region16: #{discriminator_feature_forward.26} parent=5 // pred_fallthru
        _
      %p447 = scmp.le.s32.totalorder 1, %s11
      %p448 = scmp.lt.s32.totalorder %s11, 25
      %p449 = pnand %p447, %p448
      %p450 = pneg %p449
      // Predicated region
      $region66: #{discriminator_feature_forward.26} parent=5 // pred_check
        _
      $region67: #{discriminator_feature_forward.26} parent=5 // pred_check_branch
        %452 = sbr.rel (%p449) target = $region69
      $region68: #{discriminator_feature_forward.26} parent=5 // pred_region
        %s453 = ssub.s32 %s11, 1
        %s454 = sand.u32 %s73, 1
        %s455 = sand.u32 %s73, 1
        %s456 = smul.addr %s455, 192
        %s457 = scalar_lea.vmem [#allocation3], %s456
        // Predicated region
        $region70: #{discriminator_feature_forward.26} parent=68 // pred_check
          %p458 = pneg %p86
        $region71: #{discriminator_feature_forward.26} parent=68 // pred_check_branch
          %460 = sbr.rel (%p458) target = $region73
        $region72: #{discriminator_feature_forward.26} parent=68 // pred_region
          _
        $region73: #{discriminator_feature_forward.26} parent=68 // pred_fallthru
          _
        %s461 = smul.u32 3, %s23
        %p462 = scmp.lt.s32.totalorder %s21, 0
        %s463 = scalar_select %p462, %s21, 0
        %p464 = scmp.lt.s32.totalorder %s461, 17
        %s465 = scalar_select %p464, %s461, 17
        %s466 = smul.addr %s463, 18
        %s467 = sadd.s32 %s465, %s466
        %s468 = smul.addr %s467, 4
        %s469 = scalar_lea.vmem %s0, %s468
        %p470 = pneg %p58
        %p471 = pneg %p55
        %s472 = sand.u32 %s73, 1
        %s473 = sand.u32 %s73, 1
        %s474 = smul.addr %s473, 192
        %s475 = scalar_lea.vmem [#allocation3], %s474
        %p476 = pneg %p86
        %p477 = pneg %p83
        %p478 = scmp.lt.s32.totalorder %s22, 3
        %s479 = scalar_select %p478, %s22, 3
        %s480 = scalar_lea.vmem %s2, %s479
        %p481 = pneg %p112
        %p482 = pneg %p109
        %p483 = pneg %p140
        %p484 = pneg %p137
        %p485 = scmp.lt.s32.totalorder %s21, 0
        %s486 = scalar_select %p485, %s21, 0
        %p487 = scmp.lt.s32.totalorder %s22, 3
        %s488 = scalar_select %p487, %s22, 3
        %s489 = smul.addr %s486, 4
        %s490 = sadd.s32 %s488, %s489
        %s491 = smul.addr %s490, 8
        %s492 = scalar_lea.vmem %s3, %s491
        %p493 = pneg %p168
        %p494 = pneg %p165
        %p495 = scmp.lt.s32.totalorder %s21, 0
        %s496 = scalar_select %p495, %s21, 0
        %p497 = scmp.lt.s32.totalorder %s22, 3
        %s498 = scalar_select %p497, %s22, 3
        %s499 = smul.addr %s496, 4
        %s500 = sadd.s32 %s498, %s499
        %s501 = smul.addr %s500, 2
        %s502 = scalar_lea.vmem %s4, %s501
        %s503 = smul.u32 3, %s23
        %p504 = scmp.lt.s32.totalorder %s21, 0
        %s505 = scalar_select %p504, %s21, 0
        %p506 = scmp.lt.s32.totalorder %s503, 17
        %s507 = scalar_select %p506, %s503, 17
        %s508 = smul.addr %s505, 18
        %s509 = sadd.s32 %s507, %s508
        %s510 = smul.addr %s509, 4
        %s511 = scalar_lea.vmem %s0, %s510
        %s512 = smul.u32 3, %s23
        %s513 = smul.u32 48, %s23
        %p514 = scmp.lt.s32.totalorder %s22, 3
        %s515 = scalar_select %p514, %s22, 3
        %s516 = scalar_lea.vmem %s2, %s515
        %p517 = scmp.lt.s32.totalorder %s21, 0
        %s518 = scalar_select %p517, %s21, 0
        %p519 = scmp.lt.s32.totalorder %s22, 3
        %s520 = scalar_select %p519, %s22, 3
        %s521 = smul.addr %s518, 4
        %s522 = sadd.s32 %s520, %s521
        %s523 = smul.addr %s522, 8
        %s524 = scalar_lea.vmem %s3, %s523
        %p525 = scmp.lt.s32.totalorder %s21, 0
        %s526 = scalar_select %p525, %s21, 0
        %p527 = scmp.lt.s32.totalorder %s22, 3
        %s528 = scalar_select %p527, %s22, 3
        %s529 = smul.addr %s526, 4
        %s530 = sadd.s32 %s528, %s529
        %s531 = smul.addr %s530, 2
        %s532 = scalar_lea.vmem %s4, %s531
        %p533 = scmp.eq.s32.totalorder %s23, 0
        // Predicated region
        $region74: #{discriminator_feature_forward.26} parent=68 // pred_check
          %p534 = pneg %p533
        $region75: #{discriminator_feature_forward.26} parent=68 // pred_check_branch
          %536 = sbr.rel (%p534) target = $region77
        $region76: #{discriminator_feature_forward.26} parent=68 // pred_region
          %537 = vst [vmem:[#allocation2] sm:$0xff] 0.0
        $region77: #{discriminator_feature_forward.26} parent=68 // pred_fallthru
          _
        %v538 = vld [vmem:[#allocation2] sm:$0xff]
        %v539 = vld [vmem:[%s511] sm:$0xff]
        %v540 = vld [vmem:[%s511 + $0x8] sm:$0xf]
        %v541 = vld [vmem:[%s457] sm:$0xf]
        %v542 = vld [vmem:[%s457 + $0x4] sm:$0xf]
        %v543 = vld [vmem:[%s457 + $0x8] sm:$0xf]
        %v544 = vld [vmem:[%s457 + $0xc] sm:$0xf]
        %v545 = vld [vmem:[%s457 + $0x10] sm:$0xf]
        %v546 = vld [vmem:[%s457 + $0x14] sm:$0xf]
        %v547 = vld [vmem:[%s457 + $0x18] sm:$0xf]
        %v548 = vld [vmem:[%s457 + $0x1c] sm:$0xf]
        %v549 = vld [vmem:[%s457 + $0x20] sm:$0xf]
        %v550 = vld [vmem:[%s457 + $0x24] sm:$0xf]
        %v551 = vld [vmem:[%s457 + $0x28] sm:$0xf]
        %v552 = vld [vmem:[%s457 + $0x2c] sm:$0xf]
        %v553 = vld [vmem:[%s457 + $0x30] sm:$0xf]
        %v554 = vld [vmem:[%s457 + $0x34] sm:$0xf]
        %v555 = vld [vmem:[%s457 + $0x38] sm:$0xf]
        %v556 = vld [vmem:[%s457 + $0x3c] sm:$0xf]
        %v557 = vld [vmem:[%s457 + $0x40] sm:$0xf]
        %v558 = vld [vmem:[%s457 + $0x44] sm:$0xf]
        %v559 = vld [vmem:[%s457 + $0x48] sm:$0xf]
        %v560 = vld [vmem:[%s457 + $0x4c] sm:$0xf]
        %v561 = vld [vmem:[%s457 + $0x50] sm:$0xf]
        %v562 = vld [vmem:[%s457 + $0x54] sm:$0xf]
        %v563 = vld [vmem:[%s457 + $0x58] sm:$0xf]
        %v564 = vld [vmem:[%s457 + $0x5c] sm:$0xf]
        %v565 = vld [vmem:[%s457 + $0x60] sm:$0xf]
        %v566 = vld [vmem:[%s457 + $0x64] sm:$0xf]
        %v567 = vld [vmem:[%s457 + $0x68] sm:$0xf]
        %v568 = vld [vmem:[%s457 + $0x6c] sm:$0xf]
        %v569 = vld [vmem:[%s457 + $0x70] sm:$0xf]
        %v570 = vld [vmem:[%s457 + $0x74] sm:$0xf]
        %v571 = vld [vmem:[%s457 + $0x78] sm:$0xf]
        %v572 = vld [vmem:[%s457 + $0x7c] sm:$0xf]
        %v573 = vld [vmem:[%s457 + $0x80] sm:$0xf]
        %v574 = vld [vmem:[%s457 + $0x84] sm:$0xf]
        %v575 = vld [vmem:[%s457 + $0x88] sm:$0xf]
        %v576 = vld [vmem:[%s457 + $0x8c] sm:$0xf]
        %v577 = vld [vmem:[%s457 + $0x90] sm:$0xf]
        %v578 = vld [vmem:[%s457 + $0x94] sm:$0xf]
        %v579 = vld [vmem:[%s457 + $0x98] sm:$0xf]
        %v580 = vld [vmem:[%s457 + $0x9c] sm:$0xf]
        %v581 = vld [vmem:[%s457 + $0xa0] sm:$0xf]
        %v582 = vld [vmem:[%s457 + $0xa4] sm:$0xf]
        %v583 = vld [vmem:[%s457 + $0xa8] sm:$0xf]
        %v584 = vld [vmem:[%s457 + $0xac] sm:$0xf]
        %v585 = vld [vmem:[%s457 + $0xb0] sm:$0xf]
        %v586 = vld [vmem:[%s457 + $0xb4] sm:$0xf]
        %v587 = vld [vmem:[%s457 + $0xb8] sm:$0xf]
        %v588 = vld [vmem:[%s457 + $0xbc] sm:$0xf]
        %v591 = vunpack.c.l.b16 %v539
        %v592 = vunpack.c.h.b16 %v539
        %v593 = vunpack.c.l.b16 %v540
        %v594 = vpack.c.b16 %v591, %v591
        %v595 = vpack.c.b16 %v592, %v592
        %v596 = vpack.c.b16 %v593, %v593
        %v648 = vunpack.c.l.b16 %v541
        %v649 = vunpack.c.l.b16 %v542
        %v650 = vunpack.c.l.b16 %v543
        %v651 = vunpack.c.l.b16 %v544
        %v652 = vunpack.c.l.b16 %v545
        %v653 = vunpack.c.l.b16 %v546
        %v654 = vunpack.c.l.b16 %v547
        %v655 = vunpack.c.l.b16 %v548
        %v656 = vunpack.c.l.b16 %v549
        %v657 = vunpack.c.l.b16 %v550
        %v658 = vunpack.c.l.b16 %v551
        %v659 = vunpack.c.l.b16 %v552
        %v660 = vunpack.c.l.b16 %v553
        %v661 = vunpack.c.l.b16 %v554
        %v662 = vunpack.c.l.b16 %v555
        %v663 = vunpack.c.l.b16 %v556
        %v664 = vunpack.c.l.b16 %v557
        %v665 = vunpack.c.l.b16 %v558
        %v666 = vunpack.c.l.b16 %v559
        %v667 = vunpack.c.l.b16 %v560
        %v668 = vunpack.c.l.b16 %v561
        %v669 = vunpack.c.l.b16 %v562
        %v670 = vunpack.c.l.b16 %v563
        %v671 = vunpack.c.l.b16 %v564
        %v672 = vunpack.c.l.b16 %v565
        %v673 = vunpack.c.l.b16 %v566
        %v674 = vunpack.c.l.b16 %v567
        %v675 = vunpack.c.l.b16 %v568
        %v676 = vunpack.c.l.b16 %v569
        %v677 = vunpack.c.l.b16 %v570
        %v678 = vunpack.c.l.b16 %v571
        %v679 = vunpack.c.l.b16 %v572
        %v680 = vunpack.c.l.b16 %v573
        %v681 = vunpack.c.l.b16 %v574
        %v682 = vunpack.c.l.b16 %v575
        %v683 = vunpack.c.l.b16 %v576
        %v684 = vunpack.c.l.b16 %v577
        %v685 = vunpack.c.l.b16 %v578
        %v686 = vunpack.c.l.b16 %v579
        %v687 = vunpack.c.l.b16 %v580
        %v688 = vunpack.c.l.b16 %v581
        %v689 = vunpack.c.l.b16 %v582
        %v690 = vunpack.c.l.b16 %v583
        %v691 = vunpack.c.l.b16 %v584
        %v692 = vunpack.c.l.b16 %v585
        %v693 = vunpack.c.l.b16 %v586
        %v694 = vunpack.c.l.b16 %v587
        %v695 = vunpack.c.l.b16 %v588
        %v696 = vpack.c.b16 %v649, %v648
        %v697 = vpack.c.b16 %v651, %v650
        %v698 = vpack.c.b16 %v653, %v652
        %v699 = vpack.c.b16 %v655, %v654
        %v700 = vpack.c.b16 %v657, %v656
        %v701 = vpack.c.b16 %v659, %v658
        %v702 = vpack.c.b16 %v661, %v660
        %v703 = vpack.c.b16 %v663, %v662
        %v704 = vpack.c.b16 %v665, %v664
        %v705 = vpack.c.b16 %v667, %v666
        %v706 = vpack.c.b16 %v669, %v668
        %v707 = vpack.c.b16 %v671, %v670
        %v708 = vpack.c.b16 %v673, %v672
        %v709 = vpack.c.b16 %v675, %v674
        %v710 = vpack.c.b16 %v677, %v676
        %v711 = vpack.c.b16 %v679, %v678
        %v712 = vpack.c.b16 %v681, %v680
        %v713 = vpack.c.b16 %v683, %v682
        %v714 = vpack.c.b16 %v685, %v684
        %v715 = vpack.c.b16 %v687, %v686
        %v716 = vpack.c.b16 %v689, %v688
        %v717 = vpack.c.b16 %v691, %v690
        %v718 = vpack.c.b16 %v693, %v692
        %v719 = vpack.c.b16 %v695, %v694
        %744 = vmatpush.bf16.msra.mxu0 %v703
        %745 = vmatpush.bf16.msra.mxu0 %v702
        %746 = vmatpush.bf16.msra.mxu0 %v701
        %747 = vmatpush.bf16.msra.mxu0 %v700
        %748 = vmatpush.bf16.msra.mxu0 %v699
        %749 = vmatpush.bf16.msra.mxu0 %v698
        %750 = vmatpush.bf16.msra.mxu0 %v697
        %751 = vmatpush.bf16.msra.mxu0 %v696
        %752 = vmatmul.bf16.gmra.mxu0 %v594
        %v753 = vpop.f32.mrf.mxu0
        %v754 = vadd.f32 0.0, %v753
        %v755 = vpop.f32.mrf.mxu0
        %756 = vdwg.mxu0
        %757 = vmatpush.bf16.msra.mxu0 %v711
        %758 = vmatpush.bf16.msra.mxu0 %v710
        %759 = vmatpush.bf16.msra.mxu0 %v709
        %760 = vmatpush.bf16.msra.mxu0 %v708
        %761 = vmatpush.bf16.msra.mxu0 %v707
        %762 = vmatpush.bf16.msra.mxu0 %v706
        %763 = vmatpush.bf16.msra.mxu0 %v705
        %764 = vmatpush.bf16.msra.mxu0 %v704
        %765 = vmatmul.bf16.gmra.mxu0 %v595
        %v766 = vpop.f32.mrf.mxu0
        %v767 = vadd.f32 %v754, %v766
        %v768 = vpop.f32.mrf.mxu0
        %769 = vdwg.mxu0
        %770 = vmatpush.bf16.msra.mxu0 %v719
        %771 = vmatpush.bf16.msra.mxu0 %v718
        %772 = vmatpush.bf16.msra.mxu0 %v717
        %773 = vmatpush.bf16.msra.mxu0 %v716
        %774 = vmatpush.bf16.msra.mxu0 %v715
        %775 = vmatpush.bf16.msra.mxu0 %v714
        %776 = vmatpush.bf16.msra.mxu0 %v713
        %777 = vmatpush.bf16.msra.mxu0 %v712
        %778 = vmatmul.bf16.gmra.mxu0 %v596
        %v779 = vpop.f32.mrf.mxu0
        %v780 = vadd.f32 %v767, %v779
        %v781 = vpop.f32.mrf.mxu0
        %782 = vdwg.mxu0
        %v783 = vadd.f32 %v538, %v780
        %784 = vst [vmem:[#allocation2] sm:$0xff] %v783
        %p785 = scmp.eq.s32.totalorder %s23, 5
        // Predicated region
        $region78: #{discriminator_feature_forward.26} parent=68 // pred_check
          %p786 = pneg %p785
        $region79: #{discriminator_feature_forward.26} parent=68 // pred_check_branch
          %788 = sbr.rel (%p786) target = $region81
        $region80: #{discriminator_feature_forward.26} parent=68 // pred_region
          %v789 = vld [vmem:[#allocation2] sm:$0xff]
          %v790 = vld [vmem:[%s516] sm:$0x1]
          %v792 = vperm.slane %v790, 0
          %v794 = vadd.f32 %v789, %v792
          %795 = vst [vmem:[%s524] sm:$0xff] %v794
          %v796 = vrot.slane %v794, 4
          %v797 = vadd.f32 %v794, %v796
          %v798 = vrot.slane %v797, 2
          %v799 = vadd.f32 %v797, %v798
          %v800 = vrot.slane %v799, 1
          %v801 = vadd.f32 %v799, %v800
          %v802 = vmul.f32 %v794, %v794
          %v803 = vrot.slane %v802, 4
          %v804 = vadd.f32 %v802, %v803
          %v805 = vrot.slane %v804, 2
          %v806 = vadd.f32 %v804, %v805
          %v807 = vrot.slane %v806, 1
          %v808 = vadd.f32 %v806, %v807
          %vm809 = vcmask 1040384
          %v810 = vsel %vm809, %v801, %v808
          %811 = vst [vmem:[%s532] sm:$0x3] %v810
        $region81: #{discriminator_feature_forward.26} parent=68 // pred_fallthru
          _
        %p812 = scmp.lt.s32.totalorder %s21, 0
        %s813 = scalar_select %p812, %s21, 0
        %p814 = scmp.lt.s32.totalorder %s22, 3
        %s815 = scalar_select %p814, %s22, 3
        %s816 = smul.addr %s813, 4
        %s817 = sadd.s32 %s815, %s816
        %s818 = smul.addr %s817, 8
        %s819 = scalar_lea.vmem %s3, %s818
        %p820 = scmp.lt.s32.totalorder %s21, 0
        %s821 = scalar_select %p820, %s21, 0
        %p822 = scmp.lt.s32.totalorder %s22, 3
        %s823 = scalar_select %p822, %s22, 3
        %s824 = smul.addr %s821, 4
        %s825 = sadd.s32 %s823, %s824
        %s826 = smul.addr %s825, 2
        %s827 = scalar_lea.vmem %s4, %s826
        // Predicated region
        $region82: #{discriminator_feature_forward.26} parent=68 // pred_check
          %p828 = pneg %p137
        $region83: #{discriminator_feature_forward.26} parent=68 // pred_check_branch
          %830 = sbr.rel (%p828) target = $region85
        $region84: #{discriminator_feature_forward.26} parent=68 // pred_region
          _
        $region85: #{discriminator_feature_forward.26} parent=68 // pred_fallthru
          _
        // Predicated region
        $region86: #{discriminator_feature_forward.26} parent=68 // pred_check
          %p831 = pneg %p165
        $region87: #{discriminator_feature_forward.26} parent=68 // pred_check_branch
          %833 = sbr.rel (%p831) target = $region89
        $region88: #{discriminator_feature_forward.26} parent=68 // pred_region
          _
        $region89: #{discriminator_feature_forward.26} parent=68 // pred_fallthru
          _
      $region69: #{discriminator_feature_forward.26} parent=5 // pred_fallthru
        _
      %p834 = scmp.le.s32.totalorder 2, %s11
      // Predicated region
      $region90: #{discriminator_feature_forward.26} parent=5 // pred_check
        %p835 = pneg %p834
      $region91: #{discriminator_feature_forward.26} parent=5 // pred_check_branch
        %837 = sbr.rel (%p835) target = $region93
      $region92: #{discriminator_feature_forward.26} parent=5 // pred_region
        %s838 = ssub.s32 %s11, 2
        // Predicated region
        $region94: #{discriminator_feature_forward.26} parent=92 // pred_check
          %p839 = pneg %p143
        $region95: #{discriminator_feature_forward.26} parent=92 // pred_check_branch
          %841 = sbr.rel (%p839) target = $region97
        $region96: #{discriminator_feature_forward.26} parent=92 // pred_region
          %p842 = scmp.lt.s32.totalorder %s24, 0
          %s843 = scalar_select %p842, %s24, 0
          %p844 = scmp.lt.s32.totalorder %s25, 3
          %s845 = scalar_select %p844, %s25, 3
          %s846 = smul.addr %s843, 4
          %s847 = sadd.s32 %s845, %s846
          %s848 = smul.addr %s847, 8
          %s849 = scalar_lea.vmem %s3, %s848
        $region97: #{discriminator_feature_forward.26} parent=92 // pred_fallthru
          _
        // Predicated region
        $region98: #{discriminator_feature_forward.26} parent=92 // pred_check
          %p850 = pneg %p171
        $region99: #{discriminator_feature_forward.26} parent=92 // pred_check_branch
          %852 = sbr.rel (%p850) target = $region101
        $region100: #{discriminator_feature_forward.26} parent=92 // pred_region
          %p853 = scmp.lt.s32.totalorder %s24, 0
          %s854 = scalar_select %p853, %s24, 0
          %p855 = scmp.lt.s32.totalorder %s25, 3
          %s856 = scalar_select %p855, %s25, 3
          %s857 = smul.addr %s854, 4
          %s858 = sadd.s32 %s856, %s857
          %s859 = smul.addr %s858, 2
          %s860 = scalar_lea.vmem %s4, %s859
        $region101: #{discriminator_feature_forward.26} parent=92 // pred_fallthru
          _
      $region93: #{discriminator_feature_forward.26} parent=5 // pred_fallthru
        _
    $region6: #{discriminator_feature_forward.26} parent=1 // loop_footer
      %s15 = sadd.s32 1, %s11
    $region7: #{discriminator_feature_forward.26} parent=1 // loop_footer_branch
      %10 = sbr.rel target = $region3
    $region8: #{discriminator_feature_forward.26} parent=1 // loop_exit
      _

// kernel: discriminator_feature_forward.28
$region0: #{discriminator_feature_forward.28}
  #allocation0 [shape = 'u32[]', space=smem, size = 0x4, offset = 0x4, fixed_abs, tag = 'smem constant byte address 0x4 - core index']
  #allocation1 [shape = 'u32[72,128]{1,0:T(1,128)}', space=vmem, size = 0x9000, scoped, tag = 'internal scratch']
  #allocation2 [shape = 'f32[8,128]{1,0:T(8,128)}', space=vmem, size = 0x1000, scoped, tag = 'scratch operand']
  %s0 = inlined_call_operand.vmem [shape: bf16[8,4608], index: 0, kind: input, shape index: {}]
  %s1 = inlined_call_operand.vmem [shape: bf16[4608,512], index: 1, kind: input, shape index: {}]
  %s2 = inlined_call_operand.vmem [shape: f32[1,512], index: 2, kind: input, shape index: {}]
  %s3 = inlined_call_operand.vmem [shape: f32[8,512], index: 3, kind: output, shape index: {0}]
  %s4 = inlined_call_operand.vmem [shape: f32[1,2,512], index: 4, kind: output, shape index: {1}]
  %5 = xla_tuple %s3, %s4
  %s6 = sld [smem:[#allocation0]]
  $region102: #{discriminator_feature_forward.28} parent=0
    _
  %s8 = ssub.s32 1, %s6
  %s9 = scalar_select 0, %s8, %s6
  $region1: #{discriminator_feature_forward.28} parent=0
    #allocation3 [shape = 'u8[262144]{0}', space=vmem, size = 0x40000, scoped, tag = 'input window, operand 1']
    loop: start=0, step=1, limit=38
    $region2: #{discriminator_feature_forward.28} parent=1 // loop_pre_header
      _
    $region3: #{discriminator_feature_forward.28} parent=1 // loop_header
      %s11 = sphi 0, %s15
      %p12 = scmp.ge.s32.totalorder %s11, 38
      %s18 = sphi 0, %s37
      %s19 = sphi 0, %s33
      %s20 = sphi 0, %s29
      %s21 = sphi 0, %s18
      %s22 = sphi 0, %s19
      %s23 = sphi 0, %s20
      %s24 = sphi 0, %s21
      %s25 = sphi 0, %s22
      %s26 = sphi 0, %s23
      %s42 = sphi 0, %s44
      %s45 = sphi 0, %s42
      %s46 = sphi 0, %s45
      %s62 = sphi 0, %s46
      %s70 = sphi 0, %s72
      %s73 = sphi 0, %s70
      %s74 = sphi 0, %s73
      %s90 = sphi 0, %s74
      %s96 = sphi 0, %s98
      %s99 = sphi 0, %s96
      %s100 = sphi 0, %s99
      %s116 = sphi 0, %s100
      %s124 = sphi 0, %s126
      %s127 = sphi 0, %s124
      %s128 = sphi 0, %s127
      %s144 = sphi 0, %s128
      %s152 = sphi 0, %s154
      %s155 = sphi 0, %s152
      %s156 = sphi 0, %s155
      %s172 = sphi 0, %s156
    $region4: #{discriminator_feature_forward.28} parent=1 // loop_header_branch
      %14 = sbr.rel (%p12) target = $region8
    $region5: #{discriminator_feature_forward.28} parent=1 // loop_body
      %s16 = ssub.s32 %s11, 1
      %s17 = ssub.s32 %s11, 2
      %s27 = sadd.s32 1, %s20
      %p28 = scmp.ge.s32.totalorder %s27, 9
      %s29 = scalar_select %p28, 0, %s27
      %s30 = sadd.s32 1, %s19
      %s31 = scalar_select %p28, %s30, %s19
      %p32 = scmp.ge.s32.totalorder %s31, 4
      %s33 = scalar_select %p32, 0, %s31
      %s34 = sadd.s32 1, %s18
      %s35 = scalar_select %p32, %s34, %s18
      %p36 = scmp.ge.s32.totalorder %s35, 1
      %s37 = scalar_select %p36, 0, %s35
      %s38 = ssub.s32 %s18, %s37
      %s39 = ssub.s32 %s20, %s29
      %s40 = sor.u32 %s38, %s39
      %p41 = scmp.eq.s32.totalorder %s40, 0
      %s43 = sadd.s32 %s42, 1
      %s44 = scalar_select %p41, %s42, %s43
      %p47 = pneg %p41
      %p48 = scmp.eq.s32.totalorder %s11, 35
      %p49 = por %p47, %p48
      %p50 = scmp.ne.s32.totalorder %s42, %s45
      %p51 = scmp.eq.s32.totalorder %s11, 0
      %p52 = por %p50, %p51
      %p53 = scmp.ne.s32.totalorder %s42, %s45
      %p54 = scmp.eq.s32.totalorder %s16, 35
      %p55 = por %p53, %p54
      %p56 = scmp.ne.s32.totalorder %s45, %s46
      %p57 = scmp.eq.s32.totalorder %s16, 0
      %p58 = por %p56, %p57
      %p59 = scmp.ne.s32.totalorder %s45, %s46
      %p60 = scmp.eq.s32.totalorder %s17, 35
      %p61 = por %p59, %p60
      %p63 = scmp.ne.s32.totalorder %s46, %s62
      %p64 = scmp.eq.s32.totalorder %s17, 0
      %p65 = por %p63, %p64
      %s66 = ssub.s32 %s20, %s29
      %s67 = ssub.s32 %s19, %s33
      %s68 = sor.u32 %s66, %s67
      %p69 = scmp.eq.s32.totalorder %s68, 0
      %s71 = sadd.s32 %s70, 1
      %s72 = scalar_select %p69, %s70, %s71
      %p75 = pneg %p69
      %p76 = scmp.eq.s32.totalorder %s11, 35
      %p77 = por %p75, %p76
      %p78 = scmp.ne.s32.totalorder %s70, %s73
      %p79 = scmp.eq.s32.totalorder %s11, 0
      %p80 = por %p78, %p79
      %p81 = scmp.ne.s32.totalorder %s70, %s73
      %p82 = scmp.eq.s32.totalorder %s16, 35
      %p83 = por %p81, %p82
      %p84 = scmp.ne.s32.totalorder %s73, %s74
      %p85 = scmp.eq.s32.totalorder %s16, 0
      %p86 = por %p84, %p85
      %p87 = scmp.ne.s32.totalorder %s73, %s74
      %p88 = scmp.eq.s32.totalorder %s17, 35
      %p89 = por %p87, %p88
      %p91 = scmp.ne.s32.totalorder %s74, %s90
      %p92 = scmp.eq.s32.totalorder %s17, 0
      %p93 = por %p91, %p92
      %s94 = ssub.s32 %s19, %s33
      %p95 = scmp.eq.s32.totalorder %s94, 0
      %s97 = sadd.s32 %s96, 1
      %s98 = scalar_select %p95, %s96, %s97
      %p101 = pneg %p95
      %p102 = scmp.eq.s32.totalorder %s11, 35
      %p103 = por %p101, %p102
      %p104 = scmp.ne.s32.totalorder %s96, %s99
      %p105 = scmp.eq.s32.totalorder %s11, 0
      %p106 = por %p104, %p105
      %p107 = scmp.ne.s32.totalorder %s96, %s99
      %p108 = scmp.eq.s32.totalorder %s16, 35
      %p109 = por %p107, %p108
      %p110 = scmp.ne.s32.totalorder %s99, %s100
      %p111 = scmp.eq.s32.totalorder %s16, 0
      %p112 = por %p110, %p111
      %p113 = scmp.ne.s32.totalorder %s99, %s100
      %p114 = scmp.eq.s32.totalorder %s17, 35
      %p115 = por %p113, %p114
      %p117 = scmp.ne.s32.totalorder %s100, %s116
      %p118 = scmp.eq.s32.totalorder %s17, 0
      %p119 = por %p117, %p118
      %s120 = ssub.s32 %s18, %s37
      %s121 = ssub.s32 %s19, %s33
      %s122 = sor.u32 %s120, %s121
      %p123 = scmp.eq.s32.totalorder %s122, 0
      %s125 = sadd.s32 %s124, 1
      %s126 = scalar_select %p123, %s124, %s125
      %p129 = pneg %p123
      %p130 = scmp.eq.s32.totalorder %s11, 35
      %p131 = por %p129, %p130
      %p132 = scmp.ne.s32.totalorder %s124, %s127
      %p133 = scmp.eq.s32.totalorder %s11, 0
      %p134 = por %p132, %p133
      %p135 = scmp.ne.s32.totalorder %s124, %s127
      %p136 = scmp.eq.s32.totalorder %s16, 35
      %p137 = por %p135, %p136
      %p138 = scmp.ne.s32.totalorder %s127, %s128
      %p139 = scmp.eq.s32.totalorder %s16, 0
      %p140 = por %p138, %p139
      %p141 = scmp.ne.s32.totalorder %s127, %s128
      %p142 = scmp.eq.s32.totalorder %s17, 35
      %p143 = por %p141, %p142
      %p145 = scmp.ne.s32.totalorder %s128, %s144
      %p146 = scmp.eq.s32.totalorder %s17, 0
      %p147 = por %p145, %p146
      %s148 = ssub.s32 %s18, %s37
      %s149 = ssub.s32 %s19, %s33
      %s150 = sor.u32 %s148, %s149
      %p151 = scmp.eq.s32.totalorder %s150, 0
      %s153 = sadd.s32 %s152, 1
      %s154 = scalar_select %p151, %s152, %s153
      %p157 = pneg %p151
      %p158 = scmp.eq.s32.totalorder %s11, 35
      %p159 = por %p157, %p158
      %p160 = scmp.ne.s32.totalorder %s152, %s155
      %p161 = scmp.eq.s32.totalorder %s11, 0
      %p162 = por %p160, %p161
      %p163 = scmp.ne.s32.totalorder %s152, %s155
      %p164 = scmp.eq.s32.totalorder %s16, 35
      %p165 = por %p163, %p164
      %p166 = scmp.ne.s32.totalorder %s155, %s156
      %p167 = scmp.eq.s32.totalorder %s16, 0
      %p168 = por %p166, %p167
      %p169 = scmp.ne.s32.totalorder %s155, %s156
      %p170 = scmp.eq.s32.totalorder %s17, 35
      %p171 = por %p169, %p170
      %p173 = scmp.ne.s32.totalorder %s156, %s172
      %p174 = scmp.eq.s32.totalorder %s17, 0
      %p175 = por %p173, %p174
      %p176 = scmp.le.s32.totalorder 1, %s11
      %p177 = scmp.lt.s32.totalorder %s11, 37
      %p178 = pnand %p176, %p177
      %p179 = pneg %p178
      // Predicated region
      $region9: #{discriminator_feature_forward.28} parent=5 // pred_check
        _
      $region10: #{discriminator_feature_forward.28} parent=5 // pred_check_branch
        %181 = sbr.rel (%p178) target = $region12
      $region11: #{discriminator_feature_forward.28} parent=5 // pred_region
        %s182 = ssub.s32 %s11, 1
      $region12: #{discriminator_feature_forward.28} parent=5 // pred_fallthru
        _
      %p183 = scmp.lt.s32.totalorder %s11, 36
      // Predicated region
      $region13: #{discriminator_feature_forward.28} parent=5 // pred_check
        %p184 = pneg %p183
      $region14: #{discriminator_feature_forward.28} parent=5 // pred_check_branch
        %186 = sbr.rel (%p184) target = $region16
      $region15: #{discriminator_feature_forward.28} parent=5 // pred_region
        // Predicated region
        $region17: #{discriminator_feature_forward.28} parent=15 // pred_check
          %p187 = pneg %p52
        $region18: #{discriminator_feature_forward.28} parent=15 // pred_check_branch
          %189 = sbr.rel (%p187) target = $region20
        $region19: #{discriminator_feature_forward.28} parent=15 // pred_region
          %s190 = smul.u32 4, %s20
          %p191 = scmp.lt.s32.totalorder %s18, 0
          %s192 = scalar_select %p191, %s18, 0
          %p193 = scmp.lt.s32.totalorder %s190, 35
          %s194 = scalar_select %p193, %s190, 35
          %s195 = smul.addr %s192, 36
          %s196 = sadd.s32 %s194, %s195
          %s197 = smul.addr %s196, 4
          %s198 = scalar_lea.vmem %s0, %s197
          %s199 = smul.u32 4, %s20
        $region20: #{discriminator_feature_forward.28} parent=15 // pred_fallthru
          _
        // Predicated region
        $region21: #{discriminator_feature_forward.28} parent=15 // pred_check
          %p200 = pneg %p80
        $region22: #{discriminator_feature_forward.28} parent=15 // pred_check_branch
          %202 = sbr.rel (%p200) target = $region24
        $region23: #{discriminator_feature_forward.28} parent=15 // pred_region
          %s203 = sand.u32 %s70, 1
          %s204 = sand.u32 %s70, 1
          %s205 = smul.addr %s204, 256
          %s206 = scalar_lea.vmem [#allocation3], %s205
          %s207 = smul.u32 64, %s20
          %s208 = smul.addr %s207, 4
          %s209 = sadd.s32 %s19, %s208
          %s210 = smul.addr %s209, 4
          %s211 = scalar_lea.vmem %s1, %s210
          // Predicated region
          $region25: #{discriminator_feature_forward.28} parent=23 // pred_check
            _
          $region26: #{discriminator_feature_forward.28} parent=23 // pred_check_branch
            %213 = sbr.rel (0) target = $region28
          $region27: #{discriminator_feature_forward.28} parent=23 // pred_region
            // Predicated region
            $region29: #{discriminator_feature_forward.28} parent=27 // pred_check
              _
            $region30: #{discriminator_feature_forward.28} parent=27 // pred_check_branch
              %215 = sbr.rel target = $region32
            $region31: #{discriminator_feature_forward.28} parent=27 // pred_region
              // Predicated region
              $region44: #{discriminator_feature_forward.28} parent=31 // pred_check
                _
              $region45: #{discriminator_feature_forward.28} parent=31 // pred_check_branch
                %357 = sbr.rel (0) target = $region47
              $region46: #{discriminator_feature_forward.28} parent=31 // pred_region
                loop: start=0, step=1, limit=1
                $region48: #{discriminator_feature_forward.28} parent=46 // loop_pre_header
                  _
                $region49: #{discriminator_feature_forward.28} parent=46 // loop_header
                  %s359 = sphi 0, %s363
                  %p360 = scmp.ge.s32.totalorder %s359, 1
                  %s364 = sphi %s211, %s211
                  %s365 = sphi %s206, %s206
                $region50: #{discriminator_feature_forward.28} parent=46 // loop_header_branch
                  %362 = sbr.rel (%p360) target = $region54
                $region51: #{discriminator_feature_forward.28} parent=46 // loop_body
                  _
                $region52: #{discriminator_feature_forward.28} parent=46 // loop_footer
                  %s363 = sadd.s32 1, %s359
                $region53: #{discriminator_feature_forward.28} parent=46 // loop_footer_branch
                  %358 = sbr.rel target = $region49
                $region54: #{discriminator_feature_forward.28} parent=46 // loop_exit
                  _
                %s367 = ssub.s32 16, 1
                loop: start=0, step=1, limit=1
                $region55: #{discriminator_feature_forward.28} parent=46 // loop_pre_header
                  _
                $region56: #{discriminator_feature_forward.28} parent=46 // loop_header
                  %s369 = sphi 0, %s373
                  %p370 = scmp.ge.s32.totalorder %s369, 1
                  %s374 = sphi %s211, %s211
                  %s375 = sphi %s206, %s206
                $region57: #{discriminator_feature_forward.28} parent=46 // loop_header_branch
                  %372 = sbr.rel (%p370) target = $region61
                $region58: #{discriminator_feature_forward.28} parent=46 // loop_body
                  %v376 = vld [vmem:[%s374] sm:%s367]
                  %377 = vst [vmem:[%s375] sm:%s367] %v376
                  %v378 = vld [vmem:[%s374 + $0x10] sm:%s367]
                  %379 = vst [vmem:[%s375 + $0x4] sm:%s367] %v378
                  %v380 = vld [vmem:[%s374 + $0x20] sm:%s367]
                  %381 = vst [vmem:[%s375 + $0x8] sm:%s367] %v380
                  %v382 = vld [vmem:[%s374 + $0x30] sm:%s367]
                  %383 = vst [vmem:[%s375 + $0xc] sm:%s367] %v382
                  %v384 = vld [vmem:[%s374 + $0x40] sm:%s367]
                  %385 = vst [vmem:[%s375 + $0x10] sm:%s367] %v384
                  %v386 = vld [vmem:[%s374 + $0x50] sm:%s367]
                  %387 = vst [vmem:[%s375 + $0x14] sm:%s367] %v386
                  %v388 = vld [vmem:[%s374 + $0x60] sm:%s367]
                  %389 = vst [vmem:[%s375 + $0x18] sm:%s367] %v388
                  %v390 = vld [vmem:[%s374 + $0x70] sm:%s367]
                  %391 = vst [vmem:[%s375 + $0x1c] sm:%s367] %v390
                  %v392 = vld [vmem:[%s374 + $0x80] sm:%s367]
                  %393 = vst [vmem:[%s375 + $0x20] sm:%s367] %v392
                  %v394 = vld [vmem:[%s374 + $0x90] sm:%s367]
                  %395 = vst [vmem:[%s375 + $0x24] sm:%s367] %v394
                  %v396 = vld [vmem:[%s374 + $0xa0] sm:%s367]
                  %397 = vst [vmem:[%s375 + $0x28] sm:%s367] %v396
                  %v398 = vld [vmem:[%s374 + $0xb0] sm:%s367]
                  %399 = vst [vmem:[%s375 + $0x2c] sm:%s367] %v398
                  %v400 = vld [vmem:[%s374 + $0xc0] sm:%s367]
                  %401 = vst [vmem:[%s375 + $0x30] sm:%s367] %v400
                  %v402 = vld [vmem:[%s374 + $0xd0] sm:%s367]
                  %403 = vst [vmem:[%s375 + $0x34] sm:%s367] %v402
                  %v404 = vld [vmem:[%s374 + $0xe0] sm:%s367]
                  %405 = vst [vmem:[%s375 + $0x38] sm:%s367] %v404
                  %v406 = vld [vmem:[%s374 + $0xf0] sm:%s367]
                  %407 = vst [vmem:[%s375 + $0x3c] sm:%s367] %v406
                  %v408 = vld [vmem:[%s374 + $0x100] sm:%s367]
                  %409 = vst [vmem:[%s375 + $0x40] sm:%s367] %v408
                  %v410 = vld [vmem:[%s374 + $0x110] sm:%s367]
                  %411 = vst [vmem:[%s375 + $0x44] sm:%s367] %v410
                  %v412 = vld [vmem:[%s374 + $0x120] sm:%s367]
                  %413 = vst [vmem:[%s375 + $0x48] sm:%s367] %v412
                  %v414 = vld [vmem:[%s374 + $0x130] sm:%s367]
                  %415 = vst [vmem:[%s375 + $0x4c] sm:%s367] %v414
                  %v416 = vld [vmem:[%s374 + $0x140] sm:%s367]
                  %417 = vst [vmem:[%s375 + $0x50] sm:%s367] %v416
                  %v418 = vld [vmem:[%s374 + $0x150] sm:%s367]
                  %419 = vst [vmem:[%s375 + $0x54] sm:%s367] %v418
                  %v420 = vld [vmem:[%s374 + $0x160] sm:%s367]
                  %421 = vst [vmem:[%s375 + $0x58] sm:%s367] %v420
                  %v422 = vld [vmem:[%s374 + $0x170] sm:%s367]
                  %423 = vst [vmem:[%s375 + $0x5c] sm:%s367] %v422
                  %v424 = vld [vmem:[%s374 + $0x180] sm:%s367]
                  %425 = vst [vmem:[%s375 + $0x60] sm:%s367] %v424
                  %v426 = vld [vmem:[%s374 + $0x190] sm:%s367]
                  %427 = vst [vmem:[%s375 + $0x64] sm:%s367] %v426
                  %v428 = vld [vmem:[%s374 + $0x1a0] sm:%s367]
                  %429 = vst [vmem:[%s375 + $0x68] sm:%s367] %v428
                  %v430 = vld [vmem:[%s374 + $0x1b0] sm:%s367]
                  %431 = vst [vmem:[%s375 + $0x6c] sm:%s367] %v430
                  %v432 = vld [vmem:[%s374 + $0x1c0] sm:%s367]
                  %433 = vst [vmem:[%s375 + $0x70] sm:%s367] %v432
                  %v434 = vld [vmem:[%s374 + $0x1d0] sm:%s367]
                  %435 = vst [vmem:[%s375 + $0x74] sm:%s367] %v434
                  %v436 = vld [vmem:[%s374 + $0x1e0] sm:%s367]
                  %437 = vst [vmem:[%s375 + $0x78] sm:%s367] %v436
                  %v438 = vld [vmem:[%s374 + $0x1f0] sm:%s367]
                  %439 = vst [vmem:[%s375 + $0x7c] sm:%s367] %v438
                  %v440 = vld [vmem:[%s374 + $0x200] sm:%s367]
                  %441 = vst [vmem:[%s375 + $0x80] sm:%s367] %v440
                  %v442 = vld [vmem:[%s374 + $0x210] sm:%s367]
                  %443 = vst [vmem:[%s375 + $0x84] sm:%s367] %v442
                  %v444 = vld [vmem:[%s374 + $0x220] sm:%s367]
                  %445 = vst [vmem:[%s375 + $0x88] sm:%s367] %v444
                  %v446 = vld [vmem:[%s374 + $0x230] sm:%s367]
                  %447 = vst [vmem:[%s375 + $0x8c] sm:%s367] %v446
                  %v448 = vld [vmem:[%s374 + $0x240] sm:%s367]
                  %449 = vst [vmem:[%s375 + $0x90] sm:%s367] %v448
                  %v450 = vld [vmem:[%s374 + $0x250] sm:%s367]
                  %451 = vst [vmem:[%s375 + $0x94] sm:%s367] %v450
                  %v452 = vld [vmem:[%s374 + $0x260] sm:%s367]
                  %453 = vst [vmem:[%s375 + $0x98] sm:%s367] %v452
                  %v454 = vld [vmem:[%s374 + $0x270] sm:%s367]
                  %455 = vst [vmem:[%s375 + $0x9c] sm:%s367] %v454
                  %v456 = vld [vmem:[%s374 + $0x280] sm:%s367]
                  %457 = vst [vmem:[%s375 + $0xa0] sm:%s367] %v456
                  %v458 = vld [vmem:[%s374 + $0x290] sm:%s367]
                  %459 = vst [vmem:[%s375 + $0xa4] sm:%s367] %v458
                  %v460 = vld [vmem:[%s374 + $0x2a0] sm:%s367]
                  %461 = vst [vmem:[%s375 + $0xa8] sm:%s367] %v460
                  %v462 = vld [vmem:[%s374 + $0x2b0] sm:%s367]
                  %463 = vst [vmem:[%s375 + $0xac] sm:%s367] %v462
                  %v464 = vld [vmem:[%s374 + $0x2c0] sm:%s367]
                  %465 = vst [vmem:[%s375 + $0xb0] sm:%s367] %v464
                  %v466 = vld [vmem:[%s374 + $0x2d0] sm:%s367]
                  %467 = vst [vmem:[%s375 + $0xb4] sm:%s367] %v466
                  %v468 = vld [vmem:[%s374 + $0x2e0] sm:%s367]
                  %469 = vst [vmem:[%s375 + $0xb8] sm:%s367] %v468
                  %v470 = vld [vmem:[%s374 + $0x2f0] sm:%s367]
                  %471 = vst [vmem:[%s375 + $0xbc] sm:%s367] %v470
                  %v472 = vld [vmem:[%s374 + $0x300] sm:%s367]
                  %473 = vst [vmem:[%s375 + $0xc0] sm:%s367] %v472
                  %v474 = vld [vmem:[%s374 + $0x310] sm:%s367]
                  %475 = vst [vmem:[%s375 + $0xc4] sm:%s367] %v474
                  %v476 = vld [vmem:[%s374 + $0x320] sm:%s367]
                  %477 = vst [vmem:[%s375 + $0xc8] sm:%s367] %v476
                  %v478 = vld [vmem:[%s374 + $0x330] sm:%s367]
                  %479 = vst [vmem:[%s375 + $0xcc] sm:%s367] %v478
                  %v480 = vld [vmem:[%s374 + $0x340] sm:%s367]
                  %481 = vst [vmem:[%s375 + $0xd0] sm:%s367] %v480
                  %v482 = vld [vmem:[%s374 + $0x350] sm:%s367]
                  %483 = vst [vmem:[%s375 + $0xd4] sm:%s367] %v482
                  %v484 = vld [vmem:[%s374 + $0x360] sm:%s367]
                  %485 = vst [vmem:[%s375 + $0xd8] sm:%s367] %v484
                  %v486 = vld [vmem:[%s374 + $0x370] sm:%s367]
                  %487 = vst [vmem:[%s375 + $0xdc] sm:%s367] %v486
                  %v488 = vld [vmem:[%s374 + $0x380] sm:%s367]
                  %489 = vst [vmem:[%s375 + $0xe0] sm:%s367] %v488
                  %v490 = vld [vmem:[%s374 + $0x390] sm:%s367]
                  %491 = vst [vmem:[%s375 + $0xe4] sm:%s367] %v490
                  %v492 = vld [vmem:[%s374 + $0x3a0] sm:%s367]
                  %493 = vst [vmem:[%s375 + $0xe8] sm:%s367] %v492
                  %v494 = vld [vmem:[%s374 + $0x3b0] sm:%s367]
                  %495 = vst [vmem:[%s375 + $0xec] sm:%s367] %v494
                  %v496 = vld [vmem:[%s374 + $0x3c0] sm:%s367]
                  %497 = vst [vmem:[%s375 + $0xf0] sm:%s367] %v496
                  %v498 = vld [vmem:[%s374 + $0x3d0] sm:%s367]
                  %499 = vst [vmem:[%s375 + $0xf4] sm:%s367] %v498
                  %v500 = vld [vmem:[%s374 + $0x3e0] sm:%s367]
                  %501 = vst [vmem:[%s375 + $0xf8] sm:%s367] %v500
                  %v502 = vld [vmem:[%s374 + $0x3f0] sm:%s367]
                  %503 = vst [vmem:[%s375 + $0xfc] sm:%s367] %v502
                $region59: #{discriminator_feature_forward.28} parent=46 // loop_footer
                  %s373 = sadd.s32 1, %s369
                $region60: #{discriminator_feature_forward.28} parent=46 // loop_footer_branch
                  %368 = sbr.rel target = $region56
                $region61: #{discriminator_feature_forward.28} parent=46 // loop_exit
                  _
              $region47: #{discriminator_feature_forward.28} parent=31 // pred_fallthru
                _
            $region32: #{discriminator_feature_forward.28} parent=27 // pred_fallthru
              _
            // Predicated region
            $region33: #{discriminator_feature_forward.28} parent=27 // pred_check
              _
            $region34: #{discriminator_feature_forward.28} parent=27 // pred_check_branch
              %217 = sbr.rel (0) target = $region36
            $region35: #{discriminator_feature_forward.28} parent=27 // pred_region
              %s219 = ssub.s32 16, 1
              loop: start=0, step=1, limit=1
              $region37: #{discriminator_feature_forward.28} parent=35 // loop_pre_header
                _
              $region38: #{discriminator_feature_forward.28} parent=35 // loop_header
                %s221 = sphi 0, %s225
                %p222 = scmp.ge.s32.totalorder %s221, 1
                %s226 = sphi %s211, %s211
                %s227 = sphi %s206, %s206
              $region39: #{discriminator_feature_forward.28} parent=35 // loop_header_branch
                %224 = sbr.rel (%p222) target = $region43
              $region40: #{discriminator_feature_forward.28} parent=35 // loop_body
                %v228 = vld [vmem:[%s226] sm:%s219]
                %229 = vst [vmem:[%s227] sm:%s219] %v228
                %v230 = vld [vmem:[%s226 + $0x10] sm:%s219]
                %231 = vst [vmem:[%s227 + $0x4] sm:%s219] %v230
                %v232 = vld [vmem:[%s226 + $0x20] sm:%s219]
                %233 = vst [vmem:[%s227 + $0x8] sm:%s219] %v232
                %v234 = vld [vmem:[%s226 + $0x30] sm:%s219]
                %235 = vst [vmem:[%s227 + $0xc] sm:%s219] %v234
                %v236 = vld [vmem:[%s226 + $0x40] sm:%s219]
                %237 = vst [vmem:[%s227 + $0x10] sm:%s219] %v236
                %v238 = vld [vmem:[%s226 + $0x50] sm:%s219]
                %239 = vst [vmem:[%s227 + $0x14] sm:%s219] %v238
                %v240 = vld [vmem:[%s226 + $0x60] sm:%s219]
                %241 = vst [vmem:[%s227 + $0x18] sm:%s219] %v240
                %v242 = vld [vmem:[%s226 + $0x70] sm:%s219]
                %243 = vst [vmem:[%s227 + $0x1c] sm:%s219] %v242
                %v244 = vld [vmem:[%s226 + $0x80] sm:%s219]
                %245 = vst [vmem:[%s227 + $0x20] sm:%s219] %v244
                %v246 = vld [vmem:[%s226 + $0x90] sm:%s219]
                %247 = vst [vmem:[%s227 + $0x24] sm:%s219] %v246
                %v248 = vld [vmem:[%s226 + $0xa0] sm:%s219]
                %249 = vst [vmem:[%s227 + $0x28] sm:%s219] %v248
                %v250 = vld [vmem:[%s226 + $0xb0] sm:%s219]
                %251 = vst [vmem:[%s227 + $0x2c] sm:%s219] %v250
                %v252 = vld [vmem:[%s226 + $0xc0] sm:%s219]
                %253 = vst [vmem:[%s227 + $0x30] sm:%s219] %v252
                %v254 = vld [vmem:[%s226 + $0xd0] sm:%s219]
                %255 = vst [vmem:[%s227 + $0x34] sm:%s219] %v254
                %v256 = vld [vmem:[%s226 + $0xe0] sm:%s219]
                %257 = vst [vmem:[%s227 + $0x38] sm:%s219] %v256
                %v258 = vld [vmem:[%s226 + $0xf0] sm:%s219]
                %259 = vst [vmem:[%s227 + $0x3c] sm:%s219] %v258
                %v260 = vld [vmem:[%s226 + $0x100] sm:%s219]
                %261 = vst [vmem:[%s227 + $0x40] sm:%s219] %v260
                %v262 = vld [vmem:[%s226 + $0x110] sm:%s219]
                %263 = vst [vmem:[%s227 + $0x44] sm:%s219] %v262
                %v264 = vld [vmem:[%s226 + $0x120] sm:%s219]
                %265 = vst [vmem:[%s227 + $0x48] sm:%s219] %v264
                %v266 = vld [vmem:[%s226 + $0x130] sm:%s219]
                %267 = vst [vmem:[%s227 + $0x4c] sm:%s219] %v266
                %v268 = vld [vmem:[%s226 + $0x140] sm:%s219]
                %269 = vst [vmem:[%s227 + $0x50] sm:%s219] %v268
                %v270 = vld [vmem:[%s226 + $0x150] sm:%s219]
                %271 = vst [vmem:[%s227 + $0x54] sm:%s219] %v270
                %v272 = vld [vmem:[%s226 + $0x160] sm:%s219]
                %273 = vst [vmem:[%s227 + $0x58] sm:%s219] %v272
                %v274 = vld [vmem:[%s226 + $0x170] sm:%s219]
                %275 = vst [vmem:[%s227 + $0x5c] sm:%s219] %v274
                %v276 = vld [vmem:[%s226 + $0x180] sm:%s219]
                %277 = vst [vmem:[%s227 + $0x60] sm:%s219] %v276
                %v278 = vld [vmem:[%s226 + $0x190] sm:%s219]
                %279 = vst [vmem:[%s227 + $0x64] sm:%s219] %v278
                %v280 = vld [vmem:[%s226 + $0x1a0] sm:%s219]
                %281 = vst [vmem:[%s227 + $0x68] sm:%s219] %v280
                %v282 = vld [vmem:[%s226 + $0x1b0] sm:%s219]
                %283 = vst [vmem:[%s227 + $0x6c] sm:%s219] %v282
                %v284 = vld [vmem:[%s226 + $0x1c0] sm:%s219]
                %285 = vst [vmem:[%s227 + $0x70] sm:%s219] %v284
                %v286 = vld [vmem:[%s226 + $0x1d0] sm:%s219]
                %287 = vst [vmem:[%s227 + $0x74] sm:%s219] %v286
                %v288 = vld [vmem:[%s226 + $0x1e0] sm:%s219]
                %289 = vst [vmem:[%s227 + $0x78] sm:%s219] %v288
                %v290 = vld [vmem:[%s226 + $0x1f0] sm:%s219]
                %291 = vst [vmem:[%s227 + $0x7c] sm:%s219] %v290
                %v292 = vld [vmem:[%s226 + $0x200] sm:%s219]
                %293 = vst [vmem:[%s227 + $0x80] sm:%s219] %v292
                %v294 = vld [vmem:[%s226 + $0x210] sm:%s219]
                %295 = vst [vmem:[%s227 + $0x84] sm:%s219] %v294
                %v296 = vld [vmem:[%s226 + $0x220] sm:%s219]
                %297 = vst [vmem:[%s227 + $0x88] sm:%s219] %v296
                %v298 = vld [vmem:[%s226 + $0x230] sm:%s219]
                %299 = vst [vmem:[%s227 + $0x8c] sm:%s219] %v298
                %v300 = vld [vmem:[%s226 + $0x240] sm:%s219]
                %301 = vst [vmem:[%s227 + $0x90] sm:%s219] %v300
                %v302 = vld [vmem:[%s226 + $0x250] sm:%s219]
                %303 = vst [vmem:[%s227 + $0x94] sm:%s219] %v302
                %v304 = vld [vmem:[%s226 + $0x260] sm:%s219]
                %305 = vst [vmem:[%s227 + $0x98] sm:%s219] %v304
                %v306 = vld [vmem:[%s226 + $0x270] sm:%s219]
                %307 = vst [vmem:[%s227 + $0x9c] sm:%s219] %v306
                %v308 = vld [vmem:[%s226 + $0x280] sm:%s219]
                %309 = vst [vmem:[%s227 + $0xa0] sm:%s219] %v308
                %v310 = vld [vmem:[%s226 + $0x290] sm:%s219]
                %311 = vst [vmem:[%s227 + $0xa4] sm:%s219] %v310
                %v312 = vld [vmem:[%s226 + $0x2a0] sm:%s219]
                %313 = vst [vmem:[%s227 + $0xa8] sm:%s219] %v312
                %v314 = vld [vmem:[%s226 + $0x2b0] sm:%s219]
                %315 = vst [vmem:[%s227 + $0xac] sm:%s219] %v314
                %v316 = vld [vmem:[%s226 + $0x2c0] sm:%s219]
                %317 = vst [vmem:[%s227 + $0xb0] sm:%s219] %v316
                %v318 = vld [vmem:[%s226 + $0x2d0] sm:%s219]
                %319 = vst [vmem:[%s227 + $0xb4] sm:%s219] %v318
                %v320 = vld [vmem:[%s226 + $0x2e0] sm:%s219]
                %321 = vst [vmem:[%s227 + $0xb8] sm:%s219] %v320
                %v322 = vld [vmem:[%s226 + $0x2f0] sm:%s219]
                %323 = vst [vmem:[%s227 + $0xbc] sm:%s219] %v322
                %v324 = vld [vmem:[%s226 + $0x300] sm:%s219]
                %325 = vst [vmem:[%s227 + $0xc0] sm:%s219] %v324
                %v326 = vld [vmem:[%s226 + $0x310] sm:%s219]
                %327 = vst [vmem:[%s227 + $0xc4] sm:%s219] %v326
                %v328 = vld [vmem:[%s226 + $0x320] sm:%s219]
                %329 = vst [vmem:[%s227 + $0xc8] sm:%s219] %v328
                %v330 = vld [vmem:[%s226 + $0x330] sm:%s219]
                %331 = vst [vmem:[%s227 + $0xcc] sm:%s219] %v330
                %v332 = vld [vmem:[%s226 + $0x340] sm:%s219]
                %333 = vst [vmem:[%s227 + $0xd0] sm:%s219] %v332
                %v334 = vld [vmem:[%s226 + $0x350] sm:%s219]
                %335 = vst [vmem:[%s227 + $0xd4] sm:%s219] %v334
                %v336 = vld [vmem:[%s226 + $0x360] sm:%s219]
                %337 = vst [vmem:[%s227 + $0xd8] sm:%s219] %v336
                %v338 = vld [vmem:[%s226 + $0x370] sm:%s219]
                %339 = vst [vmem:[%s227 + $0xdc] sm:%s219] %v338
                %v340 = vld [vmem:[%s226 + $0x380] sm:%s219]
                %341 = vst [vmem:[%s227 + $0xe0] sm:%s219] %v340
                %v342 = vld [vmem:[%s226 + $0x390] sm:%s219]
                %343 = vst [vmem:[%s227 + $0xe4] sm:%s219] %v342
                %v344 = vld [vmem:[%s226 + $0x3a0] sm:%s219]
                %345 = vst [vmem:[%s227 + $0xe8] sm:%s219] %v344
                %v346 = vld [vmem:[%s226 + $0x3b0] sm:%s219]
                %347 = vst [vmem:[%s227 + $0xec] sm:%s219] %v346
                %v348 = vld [vmem:[%s226 + $0x3c0] sm:%s219]
                %349 = vst [vmem:[%s227 + $0xf0] sm:%s219] %v348
                %v350 = vld [vmem:[%s226 + $0x3d0] sm:%s219]
                %351 = vst [vmem:[%s227 + $0xf4] sm:%s219] %v350
                %v352 = vld [vmem:[%s226 + $0x3e0] sm:%s219]
                %353 = vst [vmem:[%s227 + $0xf8] sm:%s219] %v352
                %v354 = vld [vmem:[%s226 + $0x3f0] sm:%s219]
                %355 = vst [vmem:[%s227 + $0xfc] sm:%s219] %v354
              $region41: #{discriminator_feature_forward.28} parent=35 // loop_footer
                %s225 = sadd.s32 1, %s221
              $region42: #{discriminator_feature_forward.28} parent=35 // loop_footer_branch
                %220 = sbr.rel target = $region38
              $region43: #{discriminator_feature_forward.28} parent=35 // loop_exit
                _
            $region36: #{discriminator_feature_forward.28} parent=27 // pred_fallthru
              _
          $region28: #{discriminator_feature_forward.28} parent=23 // pred_fallthru
            _
          %504 = vnop
        $region24: #{discriminator_feature_forward.28} parent=15 // pred_fallthru
          _
        // Predicated region
        $region62: #{discriminator_feature_forward.28} parent=15 // pred_check
          %p505 = pneg %p106
        $region63: #{discriminator_feature_forward.28} parent=15 // pred_check_branch
          %507 = sbr.rel (%p505) target = $region65
        $region64: #{discriminator_feature_forward.28} parent=15 // pred_region
          %p508 = scmp.lt.s32.totalorder %s19, 3
          %s509 = scalar_select %p508, %s19, 3
          %s510 = scalar_lea.vmem %s2, %s509
        $region65: #{discriminator_feature_forward.28} parent=15 // pred_fallthru
          _
      $region16: #{discriminator_feature_forward.28} parent=5 // pred_fallthru
        _
      %p511 = scmp.le.s32.totalorder 1, %s11
      %p512 = scmp.lt.s32.totalorder %s11, 37
      %p513 = pnand %p511, %p512
      %p514 = pneg %p513
      // Predicated region
      $region66: #{discriminator_feature_forward.28} parent=5 // pred_check
        _
      $region67: #{discriminator_feature_forward.28} parent=5 // pred_check_branch
        %516 = sbr.rel (%p513) target = $region69
      $region68: #{discriminator_feature_forward.28} parent=5 // pred_region
        %s517 = ssub.s32 %s11, 1
        %s518 = sand.u32 %s73, 1
        %s519 = sand.u32 %s73, 1
        %s520 = smul.addr %s519, 256
        %s521 = scalar_lea.vmem [#allocation3], %s520
        // Predicated region
        $region70: #{discriminator_feature_forward.28} parent=68 // pred_check
          %p522 = pneg %p86
        $region71: #{discriminator_feature_forward.28} parent=68 // pred_check_branch
          %524 = sbr.rel (%p522) target = $region73
        $region72: #{discriminator_feature_forward.28} parent=68 // pred_region
          _
        $region73: #{discriminator_feature_forward.28} parent=68 // pred_fallthru
          _
        %s525 = smul.u32 4, %s23
        %p526 = scmp.lt.s32.totalorder %s21, 0
        %s527 = scalar_select %p526, %s21, 0
        %p528 = scmp.lt.s32.totalorder %s525, 35
        %s529 = scalar_select %p528, %s525, 35
        %s530 = smul.addr %s527, 36
        %s531 = sadd.s32 %s529, %s530
        %s532 = smul.addr %s531, 4
        %s533 = scalar_lea.vmem %s0, %s532
        %p534 = pneg %p58
        %p535 = pneg %p55
        %s536 = sand.u32 %s73, 1
        %s537 = sand.u32 %s73, 1
        %s538 = smul.addr %s537, 256
        %s539 = scalar_lea.vmem [#allocation3], %s538
        %p540 = pneg %p86
        %p541 = pneg %p83
        %p542 = scmp.lt.s32.totalorder %s22, 3
        %s543 = scalar_select %p542, %s22, 3
        %s544 = scalar_lea.vmem %s2, %s543
        %p545 = pneg %p112
        %p546 = pneg %p109
        %p547 = pneg %p140
        %p548 = pneg %p137
        %p549 = scmp.lt.s32.totalorder %s21, 0
        %s550 = scalar_select %p549, %s21, 0
        %p551 = scmp.lt.s32.totalorder %s22, 3
        %s552 = scalar_select %p551, %s22, 3
        %s553 = smul.addr %s550, 4
        %s554 = sadd.s32 %s552, %s553
        %s555 = smul.addr %s554, 8
        %s556 = scalar_lea.vmem %s3, %s555
        %p557 = pneg %p168
        %p558 = pneg %p165
        %p559 = scmp.lt.s32.totalorder %s21, 0
        %s560 = scalar_select %p559, %s21, 0
        %p561 = scmp.lt.s32.totalorder %s22, 3
        %s562 = scalar_select %p561, %s22, 3
        %s563 = smul.addr %s560, 4
        %s564 = sadd.s32 %s562, %s563
        %s565 = smul.addr %s564, 2
        %s566 = scalar_lea.vmem %s4, %s565
        %s567 = smul.u32 4, %s23
        %p568 = scmp.lt.s32.totalorder %s21, 0
        %s569 = scalar_select %p568, %s21, 0
        %p570 = scmp.lt.s32.totalorder %s567, 35
        %s571 = scalar_select %p570, %s567, 35
        %s572 = smul.addr %s569, 36
        %s573 = sadd.s32 %s571, %s572
        %s574 = smul.addr %s573, 4
        %s575 = scalar_lea.vmem %s0, %s574
        %s576 = smul.u32 4, %s23
        %s577 = smul.u32 64, %s23
        %p578 = scmp.lt.s32.totalorder %s22, 3
        %s579 = scalar_select %p578, %s22, 3
        %s580 = scalar_lea.vmem %s2, %s579
        %p581 = scmp.lt.s32.totalorder %s21, 0
        %s582 = scalar_select %p581, %s21, 0
        %p583 = scmp.lt.s32.totalorder %s22, 3
        %s584 = scalar_select %p583, %s22, 3
        %s585 = smul.addr %s582, 4
        %s586 = sadd.s32 %s584, %s585
        %s587 = smul.addr %s586, 8
        %s588 = scalar_lea.vmem %s3, %s587
        %p589 = scmp.lt.s32.totalorder %s21, 0
        %s590 = scalar_select %p589, %s21, 0
        %p591 = scmp.lt.s32.totalorder %s22, 3
        %s592 = scalar_select %p591, %s22, 3
        %s593 = smul.addr %s590, 4
        %s594 = sadd.s32 %s592, %s593
        %s595 = smul.addr %s594, 2
        %s596 = scalar_lea.vmem %s4, %s595
        %p597 = scmp.eq.s32.totalorder %s23, 0
        // Predicated region
        $region74: #{discriminator_feature_forward.28} parent=68 // pred_check
          %p598 = pneg %p597
        $region75: #{discriminator_feature_forward.28} parent=68 // pred_check_branch
          %600 = sbr.rel (%p598) target = $region77
        $region76: #{discriminator_feature_forward.28} parent=68 // pred_region
          %601 = vst [vmem:[#allocation2] sm:$0xff] 0.0
        $region77: #{discriminator_feature_forward.28} parent=68 // pred_fallthru
          _
        %v602 = vld [vmem:[#allocation2] sm:$0xff]
        %v603 = vld [vmem:[%s575] sm:$0xff]
        %v604 = vld [vmem:[%s575 + $0x8] sm:$0xff]
        %v605 = vld [vmem:[%s521] sm:$0xf]
        %v606 = vld [vmem:[%s521 + $0x4] sm:$0xf]
        %v607 = vld [vmem:[%s521 + $0x8] sm:$0xf]
        %v608 = vld [vmem:[%s521 + $0xc] sm:$0xf]
        %v609 = vld [vmem:[%s521 + $0x10] sm:$0xf]
        %v610 = vld [vmem:[%s521 + $0x14] sm:$0xf]
        %v611 = vld [vmem:[%s521 + $0x18] sm:$0xf]
        %v612 = vld [vmem:[%s521 + $0x1c] sm:$0xf]
        %v613 = vld [vmem:[%s521 + $0x20] sm:$0xf]
        %v614 = vld [vmem:[%s521 + $0x24] sm:$0xf]
        %v615 = vld [vmem:[%s521 + $0x28] sm:$0xf]
        %v616 = vld [vmem:[%s521 + $0x2c] sm:$0xf]
        %v617 = vld [vmem:[%s521 + $0x30] sm:$0xf]
        %v618 = vld [vmem:[%s521 + $0x34] sm:$0xf]
        %v619 = vld [vmem:[%s521 + $0x38] sm:$0xf]
        %v620 = vld [vmem:[%s521 + $0x3c] sm:$0xf]
        %v621 = vld [vmem:[%s521 + $0x40] sm:$0xf]
        %v622 = vld [vmem:[%s521 + $0x44] sm:$0xf]
        %v623 = vld [vmem:[%s521 + $0x48] sm:$0xf]
        %v624 = vld [vmem:[%s521 + $0x4c] sm:$0xf]
        %v625 = vld [vmem:[%s521 + $0x50] sm:$0xf]
        %v626 = vld [vmem:[%s521 + $0x54] sm:$0xf]
        %v627 = vld [vmem:[%s521 + $0x58] sm:$0xf]
        %v628 = vld [vmem:[%s521 + $0x5c] sm:$0xf]
        %v629 = vld [vmem:[%s521 + $0x60] sm:$0xf]
        %v630 = vld [vmem:[%s521 + $0x64] sm:$0xf]
        %v631 = vld [vmem:[%s521 + $0x68] sm:$0xf]
        %v632 = vld [vmem:[%s521 + $0x6c] sm:$0xf]
        %v633 = vld [vmem:[%s521 + $0x70] sm:$0xf]
        %v634 = vld [vmem:[%s521 + $0x74] sm:$0xf]
        %v635 = vld [vmem:[%s521 + $0x78] sm:$0xf]
        %v636 = vld [vmem:[%s521 + $0x7c] sm:$0xf]
        %v637 = vld [vmem:[%s521 + $0x80] sm:$0xf]
        %v638 = vld [vmem:[%s521 + $0x84] sm:$0xf]
        %v639 = vld [vmem:[%s521 + $0x88] sm:$0xf]
        %v640 = vld [vmem:[%s521 + $0x8c] sm:$0xf]
        %v641 = vld [vmem:[%s521 + $0x90] sm:$0xf]
        %v642 = vld [vmem:[%s521 + $0x94] sm:$0xf]
        %v643 = vld [vmem:[%s521 + $0x98] sm:$0xf]
        %v644 = vld [vmem:[%s521 + $0x9c] sm:$0xf]
        %v645 = vld [vmem:[%s521 + $0xa0] sm:$0xf]
        %v646 = vld [vmem:[%s521 + $0xa4] sm:$0xf]
        %v647 = vld [vmem:[%s521 + $0xa8] sm:$0xf]
        %v648 = vld [vmem:[%s521 + $0xac] sm:$0xf]
        %v649 = vld [vmem:[%s521 + $0xb0] sm:$0xf]
        %v650 = vld [vmem:[%s521 + $0xb4] sm:$0xf]
        %v651 = vld [vmem:[%s521 + $0xb8] sm:$0xf]
        %v652 = vld [vmem:[%s521 + $0xbc] sm:$0xf]
        %v653 = vld [vmem:[%s521 + $0xc0] sm:$0xf]
        %v654 = vld [vmem:[%s521 + $0xc4] sm:$0xf]
        %v655 = vld [vmem:[%s521 + $0xc8] sm:$0xf]
        %v656 = vld [vmem:[%s521 + $0xcc] sm:$0xf]
        %v657 = vld [vmem:[%s521 + $0xd0] sm:$0xf]
        %v658 = vld [vmem:[%s521 + $0xd4] sm:$0xf]
        %v659 = vld [vmem:[%s521 + $0xd8] sm:$0xf]
        %v660 = vld [vmem:[%s521 + $0xdc] sm:$0xf]
        %v661 = vld [vmem:[%s521 + $0xe0] sm:$0xf]
        %v662 = vld [vmem:[%s521 + $0xe4] sm:$0xf]
        %v663 = vld [vmem:[%s521 + $0xe8] sm:$0xf]
        %v664 = vld [vmem:[%s521 + $0xec] sm:$0xf]
        %v665 = vld [vmem:[%s521 + $0xf0] sm:$0xf]
        %v666 = vld [vmem:[%s521 + $0xf4] sm:$0xf]
        %v667 = vld [vmem:[%s521 + $0xf8] sm:$0xf]
        %v668 = vld [vmem:[%s521 + $0xfc] sm:$0xf]
        %v671 = vunpack.c.l.b16 %v603
        %v672 = vunpack.c.h.b16 %v603
        %v673 = vunpack.c.l.b16 %v604
        %v674 = vunpack.c.h.b16 %v604
        %v675 = vpack.c.b16 %v671, %v671
        %v676 = vpack.c.b16 %v672, %v672
        %v677 = vpack.c.b16 %v673, %v673
        %v678 = vpack.c.b16 %v674, %v674
        %v747 = vunpack.c.l.b16 %v605
        %v748 = vunpack.c.l.b16 %v606
        %v749 = vunpack.c.l.b16 %v607
        %v750 = vunpack.c.l.b16 %v608
        %v751 = vunpack.c.l.b16 %v609
        %v752 = vunpack.c.l.b16 %v610
        %v753 = vunpack.c.l.b16 %v611
        %v754 = vunpack.c.l.b16 %v612
        %v755 = vunpack.c.l.b16 %v613
        %v756 = vunpack.c.l.b16 %v614
        %v757 = vunpack.c.l.b16 %v615
        %v758 = vunpack.c.l.b16 %v616
        %v759 = vunpack.c.l.b16 %v617
        %v760 = vunpack.c.l.b16 %v618
        %v761 = vunpack.c.l.b16 %v619
        %v762 = vunpack.c.l.b16 %v620
        %v763 = vunpack.c.l.b16 %v621
        %v764 = vunpack.c.l.b16 %v622
        %v765 = vunpack.c.l.b16 %v623
        %v766 = vunpack.c.l.b16 %v624
        %v767 = vunpack.c.l.b16 %v625
        %v768 = vunpack.c.l.b16 %v626
        %v769 = vunpack.c.l.b16 %v627
        %v770 = vunpack.c.l.b16 %v628
        %v771 = vunpack.c.l.b16 %v629
        %v772 = vunpack.c.l.b16 %v630
        %v773 = vunpack.c.l.b16 %v631
        %v774 = vunpack.c.l.b16 %v632
        %v775 = vunpack.c.l.b16 %v633
        %v776 = vunpack.c.l.b16 %v634
        %v777 = vunpack.c.l.b16 %v635
        %v778 = vunpack.c.l.b16 %v636
        %v779 = vunpack.c.l.b16 %v637
        %v780 = vunpack.c.l.b16 %v638
        %v781 = vunpack.c.l.b16 %v639
        %v782 = vunpack.c.l.b16 %v640
        %v783 = vunpack.c.l.b16 %v641
        %v784 = vunpack.c.l.b16 %v642
        %v785 = vunpack.c.l.b16 %v643
        %v786 = vunpack.c.l.b16 %v644
        %v787 = vunpack.c.l.b16 %v645
        %v788 = vunpack.c.l.b16 %v646
        %v789 = vunpack.c.l.b16 %v647
        %v790 = vunpack.c.l.b16 %v648
        %v791 = vunpack.c.l.b16 %v649
        %v792 = vunpack.c.l.b16 %v650
        %v793 = vunpack.c.l.b16 %v651
        %v794 = vunpack.c.l.b16 %v652
        %v795 = vunpack.c.l.b16 %v653
        %v796 = vunpack.c.l.b16 %v654
        %v797 = vunpack.c.l.b16 %v655
        %v798 = vunpack.c.l.b16 %v656
        %v799 = vunpack.c.l.b16 %v657
        %v800 = vunpack.c.l.b16 %v658
        %v801 = vunpack.c.l.b16 %v659
        %v802 = vunpack.c.l.b16 %v660
        %v803 = vunpack.c.l.b16 %v661
        %v804 = vunpack.c.l.b16 %v662
        %v805 = vunpack.c.l.b16 %v663
        %v806 = vunpack.c.l.b16 %v664
        %v807 = vunpack.c.l.b16 %v665
        %v808 = vunpack.c.l.b16 %v666
        %v809 = vunpack.c.l.b16 %v667
        %v810 = vunpack.c.l.b16 %v668
        %v811 = vpack.c.b16 %v748, %v747
        %v812 = vpack.c.b16 %v750, %v749
        %v813 = vpack.c.b16 %v752, %v751
        %v814 = vpack.c.b16 %v754, %v753
        %v815 = vpack.c.b16 %v756, %v755
        %v816 = vpack.c.b16 %v758, %v757
        %v817 = vpack.c.b16 %v760, %v759
        %v818 = vpack.c.b16 %v762, %v761
        %v819 = vpack.c.b16 %v764, %v763
        %v820 = vpack.c.b16 %v766, %v765
        %v821 = vpack.c.b16 %v768, %v767
        %v822 = vpack.c.b16 %v770, %v769
        %v823 = vpack.c.b16 %v772, %v771
        %v824 = vpack.c.b16 %v774, %v773
        %v825 = vpack.c.b16 %v776, %v775
        %v826 = vpack.c.b16 %v778, %v777
        %v827 = vpack.c.b16 %v780, %v779
        %v828 = vpack.c.b16 %v782, %v781
        %v829 = vpack.c.b16 %v784, %v783
        %v830 = vpack.c.b16 %v786, %v785
        %v831 = vpack.c.b16 %v788, %v787
        %v832 = vpack.c.b16 %v790, %v789
        %v833 = vpack.c.b16 %v792, %v791
        %v834 = vpack.c.b16 %v794, %v793
        %v835 = vpack.c.b16 %v796, %v795
        %v836 = vpack.c.b16 %v798, %v797
        %v837 = vpack.c.b16 %v800, %v799
        %v838 = vpack.c.b16 %v802, %v801
        %v839 = vpack.c.b16 %v804, %v803
        %v840 = vpack.c.b16 %v806, %v805
        %v841 = vpack.c.b16 %v808, %v807
        %v842 = vpack.c.b16 %v810, %v809
        %875 = vmatpush.bf16.msra.mxu0 %v818
        %876 = vmatpush.bf16.msra.mxu0 %v817
        %877 = vmatpush.bf16.msra.mxu0 %v816
        %878 = vmatpush.bf16.msra.mxu0 %v815
        %879 = vmatpush.bf16.msra.mxu0 %v814
        %880 = vmatpush.bf16.msra.mxu0 %v813
        %881 = vmatpush.bf16.msra.mxu0 %v812
        %882 = vmatpush.bf16.msra.mxu0 %v811
        %883 = vmatmul.bf16.gmra.mxu0 %v675
        %v884 = vpop.f32.mrf.mxu0
        %v885 = vadd.f32 0.0, %v884
        %v886 = vpop.f32.mrf.mxu0
        %887 = vdwg.mxu0
        %888 = vmatpush.bf16.msra.mxu0 %v826
        %889 = vmatpush.bf16.msra.mxu0 %v825
        %890 = vmatpush.bf16.msra.mxu0 %v824
        %891 = vmatpush.bf16.msra.mxu0 %v823
        %892 = vmatpush.bf16.msra.mxu0 %v822
        %893 = vmatpush.bf16.msra.mxu0 %v821
        %894 = vmatpush.bf16.msra.mxu0 %v820
        %895 = vmatpush.bf16.msra.mxu0 %v819
        %896 = vmatmul.bf16.gmra.mxu0 %v676
        %v897 = vpop.f32.mrf.mxu0
        %v898 = vadd.f32 %v885, %v897
        %v899 = vpop.f32.mrf.mxu0
        %900 = vdwg.mxu0
        %901 = vmatpush.bf16.msra.mxu0 %v834
        %902 = vmatpush.bf16.msra.mxu0 %v833
        %903 = vmatpush.bf16.msra.mxu0 %v832
        %904 = vmatpush.bf16.msra.mxu0 %v831
        %905 = vmatpush.bf16.msra.mxu0 %v830
        %906 = vmatpush.bf16.msra.mxu0 %v829
        %907 = vmatpush.bf16.msra.mxu0 %v828
        %908 = vmatpush.bf16.msra.mxu0 %v827
        %909 = vmatmul.bf16.gmra.mxu0 %v677
        %v910 = vpop.f32.mrf.mxu0
        %v911 = vadd.f32 %v898, %v910
        %v912 = vpop.f32.mrf.mxu0
        %913 = vdwg.mxu0
        %914 = vmatpush.bf16.msra.mxu0 %v842
        %915 = vmatpush.bf16.msra.mxu0 %v841
        %916 = vmatpush.bf16.msra.mxu0 %v840
        %917 = vmatpush.bf16.msra.mxu0 %v839
        %918 = vmatpush.bf16.msra.mxu0 %v838
        %919 = vmatpush.bf16.msra.mxu0 %v837
        %920 = vmatpush.bf16.msra.mxu0 %v836
        %921 = vmatpush.bf16.msra.mxu0 %v835
        %922 = vmatmul.bf16.gmra.mxu0 %v678
        %v923 = vpop.f32.mrf.mxu0
        %v924 = vadd.f32 %v911, %v923
        %v925 = vpop.f32.mrf.mxu0
        %926 = vdwg.mxu0
        %v927 = vadd.f32 %v602, %v924
        %928 = vst [vmem:[#allocation2] sm:$0xff] %v927
        %p929 = scmp.eq.s32.totalorder %s23, 8
        // Predicated region
        $region78: #{discriminator_feature_forward.28} parent=68 // pred_check
          %p930 = pneg %p929
        $region79: #{discriminator_feature_forward.28} parent=68 // pred_check_branch
          %932 = sbr.rel (%p930) target = $region81
        $region80: #{discriminator_feature_forward.28} parent=68 // pred_region
          %v933 = vld [vmem:[#allocation2] sm:$0xff]
          %v934 = vld [vmem:[%s580] sm:$0x1]
          %v936 = vperm.slane %v934, 0
          %v938 = vadd.f32 %v933, %v936
          %939 = vst [vmem:[%s588] sm:$0xff] %v938
          %v940 = vrot.slane %v938, 4
          %v941 = vadd.f32 %v938, %v940
          %v942 = vrot.slane %v941, 2
          %v943 = vadd.f32 %v941, %v942
          %v944 = vrot.slane %v943, 1
          %v945 = vadd.f32 %v943, %v944
          %v946 = vmul.f32 %v938, %v938
          %v947 = vrot.slane %v946, 4
          %v948 = vadd.f32 %v946, %v947
          %v949 = vrot.slane %v948, 2
          %v950 = vadd.f32 %v948, %v949
          %v951 = vrot.slane %v950, 1
          %v952 = vadd.f32 %v950, %v951
          %vm953 = vcmask 1040384
          %v954 = vsel %vm953, %v945, %v952
          %955 = vst [vmem:[%s596] sm:$0x3] %v954
        $region81: #{discriminator_feature_forward.28} parent=68 // pred_fallthru
          _
        %p956 = scmp.lt.s32.totalorder %s21, 0
        %s957 = scalar_select %p956, %s21, 0
        %p958 = scmp.lt.s32.totalorder %s22, 3
        %s959 = scalar_select %p958, %s22, 3
        %s960 = smul.addr %s957, 4
        %s961 = sadd.s32 %s959, %s960
        %s962 = smul.addr %s961, 8
        %s963 = scalar_lea.vmem %s3, %s962
        %p964 = scmp.lt.s32.totalorder %s21, 0
        %s965 = scalar_select %p964, %s21, 0
        %p966 = scmp.lt.s32.totalorder %s22, 3
        %s967 = scalar_select %p966, %s22, 3
        %s968 = smul.addr %s965, 4
        %s969 = sadd.s32 %s967, %s968
        %s970 = smul.addr %s969, 2
        %s971 = scalar_lea.vmem %s4, %s970
        // Predicated region
        $region82: #{discriminator_feature_forward.28} parent=68 // pred_check
          %p972 = pneg %p137
        $region83: #{discriminator_feature_forward.28} parent=68 // pred_check_branch
          %974 = sbr.rel (%p972) target = $region85
        $region84: #{discriminator_feature_forward.28} parent=68 // pred_region
          _
        $region85: #{discriminator_feature_forward.28} parent=68 // pred_fallthru
          _
        // Predicated region
        $region86: #{discriminator_feature_forward.28} parent=68 // pred_check
          %p975 = pneg %p165
        $region87: #{discriminator_feature_forward.28} parent=68 // pred_check_branch
          %977 = sbr.rel (%p975) target = $region89
        $region88: #{discriminator_feature_forward.28} parent=68 // pred_region
          _
        $region89: #{discriminator_feature_forward.28} parent=68 // pred_fallthru
          _
      $region69: #{discriminator_feature_forward.28} parent=5 // pred_fallthru
        _
      %p978 = scmp.le.s32.totalorder 2, %s11
      // Predicated region
      $region90: #{discriminator_feature_forward.28} parent=5 // pred_check
        %p979 = pneg %p978
      $region91: #{discriminator_feature_forward.28} parent=5 // pred_check_branch
        %981 = sbr.rel (%p979) target = $region93
      $region92: #{discriminator_feature_forward.28} parent=5 // pred_region
        %s982 = ssub.s32 %s11, 2
        // Predicated region
        $region94: #{discriminator_feature_forward.28} parent=92 // pred_check
          %p983 = pneg %p143
        $region95: #{discriminator_feature_forward.28} parent=92 // pred_check_branch
          %985 = sbr.rel (%p983) target = $region97
        $region96: #{discriminator_feature_forward.28} parent=92 // pred_region
          %p986 = scmp.lt.s32.totalorder %s24, 0
          %s987 = scalar_select %p986, %s24, 0
          %p988 = scmp.lt.s32.totalorder %s25, 3
          %s989 = scalar_select %p988, %s25, 3
          %s990 = smul.addr %s987, 4
          %s991 = sadd.s32 %s989, %s990
          %s992 = smul.addr %s991, 8
          %s993 = scalar_lea.vmem %s3, %s992
        $region97: #{discriminator_feature_forward.28} parent=92 // pred_fallthru
          _
        // Predicated region
        $region98: #{discriminator_feature_forward.28} parent=92 // pred_check
          %p994 = pneg %p171
        $region99: #{discriminator_feature_forward.28} parent=92 // pred_check_branch
          %996 = sbr.rel (%p994) target = $region101
        $region100: #{discriminator_feature_forward.28} parent=92 // pred_region
          %p997 = scmp.lt.s32.totalorder %s24, 0
          %s998 = scalar_select %p997, %s24, 0
          %p999 = scmp.lt.s32.totalorder %s25, 3
          %s1000 = scalar_select %p999, %s25, 3
          %s1001 = smul.addr %s998, 4
          %s1002 = sadd.s32 %s1000, %s1001
          %s1003 = smul.addr %s1002, 2
          %s1004 = scalar_lea.vmem %s4, %s1003
        $region101: #{discriminator_feature_forward.28} parent=92 // pred_fallthru
          _
      $region93: #{discriminator_feature_forward.28} parent=5 // pred_fallthru
        _
    $region6: #{discriminator_feature_forward.28} parent=1 // loop_footer
      %s15 = sadd.s32 1, %s11
    $region7: #{discriminator_feature_forward.28} parent=1 // loop_footer_branch
      %10 = sbr.rel target = $region3
    $region8: #{discriminator_feature_forward.28} parent=1 // loop_exit
      _

</llo_original>
